<compile_context>
chip_gen: v6e
topology: v6e:2x2x1
jax: 0.10.0
libtpu: 0.0.40
codegen_flags: <defaults>
</compile_context>

<pallas_src>
import jax
import jax.numpy as jnp
from jax import lax
from jax.experimental import pallas as pl
from jax.experimental.pallas import tpu as pltpu

_LANE = 128


def _attn_basic_block_kernel(x_ref, w1_ref, w2_ref, b1_ref, b2_ref, o_ref,
                             slab_ref, h1p_ref):
    # x_ref   : (1, H+2, W+2, Cp) bf16  spatially zero-padded, channel-padded
    # w{1,2}  : (3, 3*Cp, Cp)     bf16  [kx, ky*Cp+ci, co], BN scale pre-folded
    # b{1,2}  : (1, Cp)           f32   folded BN bias (beta - mean*scale)
    # o_ref   : (1, H, W, Cp)     f32
    # slab_ref: (H, W+2, 3*Cp)    bf16  scratch: im2col over the 3 row taps
    # h1p_ref : (H+2, W+2, Cp)    bf16  scratch: zero-bordered conv1 activation
    _, H, W, Cp = o_ref.shape
    Wp = W + 2
    rt = 8 if H % 8 == 0 else H          # M-tile: rt*W rows per MXU matmul
    b1 = b1_ref[0]
    b2 = b2_ref[0]

    def assemble_slab(load_rows):
        # slab[y, x, ky*Cp + ci] = padded_src[y + ky, x, ci]
        # Stores land at 128-aligned lane offsets (no masked/misaligned stores).
        for ky in range(3):
            slab_ref[:, :, ky * Cp:(ky + 1) * Cp] = load_rows(ky)

    def conv_rows(w_ref, r0):
        # 3 matmuls with K = 3*Cp (row taps + channels folded into contraction).
        acc = jnp.zeros((rt * W, Cp), jnp.float32)
        for kx in range(3):
            patch = slab_ref[r0:r0 + rt, kx:kx + W, :]
            acc = acc + jnp.dot(patch.reshape(rt * W, 3 * Cp), w_ref[kx],
                                preferred_element_type=jnp.float32)
        return acc

    # ---- conv1 (+ folded bn1 scale) -> bias + relu -> h1p_ref interior ----
    assemble_slab(lambda ky: x_ref[0, ky:ky + H, :, :])

    # Zero only the 1-wide border of the h1 pad buffer (NOT the whole buffer).
    h1p_ref[0:1, :, :] = jnp.zeros((1, Wp, Cp), h1p_ref.dtype)
    h1p_ref[H + 1:H + 2, :, :] = jnp.zeros((1, Wp, Cp), h1p_ref.dtype)
    h1p_ref[:, 0:1, :] = jnp.zeros((H + 2, 1, Cp), h1p_ref.dtype)
    h1p_ref[:, W + 1:W + 2, :] = jnp.zeros((H + 2, 1, Cp), h1p_ref.dtype)

    for r0 in range(0, H, rt):
        acc1 = conv_rows(w1_ref, r0)
        h1 = jnp.maximum(acc1 + b1, 0.0)
        h1p_ref[r0 + 1:r0 + 1 + rt, 1:W + 1, :] = (
            h1.astype(h1p_ref.dtype).reshape(rt, W, Cp))

    # ---- conv2 (+ folded bn2 scale) -> bias + residual + relu -> o_ref ----
    assemble_slab(lambda ky: h1p_ref[ky:ky + H, :, :])

    for r0 in range(0, H, rt):
        acc2 = conv_rows(w2_ref, r0)
        identity = x_ref[0, r0 + 1:r0 + 1 + rt, 1:W + 1, :].astype(jnp.float32)
        out = jnp.maximum(acc2 + b2 + identity.reshape(rt * W, Cp), 0.0)
        o_ref[0, r0:r0 + rt, :, :] = out.reshape(rt, W, Cp)


def attn_basic_block_forward(x_nchw, w1, w2,
                             g1, be1, rm1, rv1,
                             g2, be2, rm2, rv2, eps=1e-5):
    """Inference forward of AttnBasicBlock (stride=1, no downsample).

    x_nchw: (N, C, H, W) f32.  w1/w2: (3, 3, C, C) HWIO.  BN params: (C,) each.
    Returns (N, C, H, W) f32.
    """
    N, Cin, H, W = x_nchw.shape
    C = w1.shape[-1]
    assert Cin == C, "residual add requires inplanes == planes (no downsample)"

    Cp = ((C + _LANE - 1) // _LANE) * _LANE

    # Fold inference BN into per-channel scale/bias; fold scale into weights.
    s1 = g1 / jnp.sqrt(rv1 + eps)
    b1 = be1 - rm1 * s1
    s2 = g2 / jnp.sqrt(rv2 + eps)
    b2 = be2 - rm2 * s2

    def prep_w(w, s):
        wf = w * s.reshape(1, 1, 1, C)                       # fold BN scale
        wf = jnp.pad(wf, ((0, 0), (0, 0), (0, Cp - C), (0, Cp - C)))
        # (ky, kx, ci, co) -> (kx, ky*Cp + ci, co): matches the in-kernel im2col.
        return jnp.transpose(wf, (1, 0, 2, 3)).reshape(
            3, 3 * Cp, Cp).astype(jnp.bfloat16)

    w1k = prep_w(w1, s1)
    w2k = prep_w(w2, s2)
    b1p = jnp.pad(b1, (0, Cp - C)).reshape(1, Cp).astype(jnp.float32)
    b2p = jnp.pad(b2, (0, Cp - C)).reshape(1, Cp).astype(jnp.float32)

    # Single fused materialization: NHWC transpose + spatial pad(1,1) +
    # channel pad to 128-lane multiple + bf16 cast (the transpose/cast copy is
    # needed anyway, so the spatial pad adds no extra HBM round trip).
    x = jnp.transpose(x_nchw, (0, 2, 3, 1))
    x = jnp.pad(x, ((0, 0), (1, 1), (1, 1), (0, Cp - C))).astype(jnp.bfloat16)

    out = pl.pallas_call(
        _attn_basic_block_kernel,
        out_shape=jax.ShapeDtypeStruct((N, H, W, Cp), jnp.float32),
        grid_spec=pltpu.PrefetchScalarGridSpec(
            num_scalar_prefetch=0,
            grid=(N,),
            in_specs=[
                pl.BlockSpec((1, H + 2, W + 2, Cp), lambda n: (n, 0, 0, 0)),
                pl.BlockSpec((3, 3 * Cp, Cp), lambda n: (0, 0, 0)),
                pl.BlockSpec((3, 3 * Cp, Cp), lambda n: (0, 0, 0)),
                pl.BlockSpec((1, Cp), lambda n: (0, 0)),
                pl.BlockSpec((1, Cp), lambda n: (0, 0)),
            ],
            out_specs=pl.BlockSpec((1, H, W, Cp), lambda n: (n, 0, 0, 0)),
            scratch_shapes=[
                pltpu.VMEM((H, W + 2, 3 * Cp), jnp.bfloat16),   # im2col slab
                pltpu.VMEM((H + 2, W + 2, Cp), jnp.bfloat16),   # padded h1
            ],
        ),
        compiler_params=pltpu.CompilerParams(
            dimension_semantics=("parallel",)),
    )(x, w1k, w2k, b1p, b2p)

    return jnp.transpose(out[:, :, :, :C], (0, 3, 1, 2))


def _reference_f32(x_nchw, w1, w2, g1, be1, rm1, rv1, g2, be2, rm2, rv2,
                   eps=1e-5):
    # Full-precision module semantics (conv -> BN -> relu -> conv -> BN -> +x -> relu).
    s1 = g1 / jnp.sqrt(rv1 + eps); b1 = be1 - rm1 * s1
    s2 = g2 / jnp.sqrt(rv2 + eps); b2 = be2 - rm2 * s2
    x = jnp.transpose(x_nchw, (0, 2, 3, 1))
    dn = lax.conv_dimension_numbers(x.shape, w1.shape, ('NHWC', 'HWIO', 'NHWC'))
    h = lax.conv_general_dilated(x, w1, (1, 1), 'SAME', dimension_numbers=dn)
    h = jnp.maximum(h * s1 + b1, 0.0)
    h2 = lax.conv_general_dilated(h, w2, (1, 1), 'SAME', dimension_numbers=dn)
    out = jnp.maximum(h2 * s2 + b2 + x, 0.0)
    return jnp.transpose(out, (0, 3, 1, 2))


def _reference_bf16(x_nchw, w1, w2, g1, be1, rm1, rv1, g2, be2, rm2, rv2,
                    eps=1e-5):
    # Same numerics as the kernel: bf16 conv operands (BN scale folded into the
    # weights before the cast), f32 accumulation, f32 bias/ReLU/residual.
    s1 = g1 / jnp.sqrt(rv1 + eps); b1 = be1 - rm1 * s1
    s2 = g2 / jnp.sqrt(rv2 + eps); b2 = be2 - rm2 * s2
    x = jnp.transpose(x_nchw, (0, 2, 3, 1))
    xb = x.astype(jnp.bfloat16)
    w1f = (w1 * s1.reshape(1, 1, 1, -1)).astype(jnp.bfloat16)
    w2f = (w2 * s2.reshape(1, 1, 1, -1)).astype(jnp.bfloat16)
    dn = lax.conv_dimension_numbers(x.shape, w1.shape, ('NHWC', 'HWIO', 'NHWC'))
    h = lax.conv_general_dilated(xb, w1f, (1, 1), 'SAME', dimension_numbers=dn,
                                 preferred_element_type=jnp.float32)
    h = jnp.maximum(h + b1, 0.0)
    h2 = lax.conv_general_dilated(h.astype(jnp.bfloat16), w2f, (1, 1), 'SAME',
                                  dimension_numbers=dn,
                                  preferred_element_type=jnp.float32)
    out = jnp.maximum(h2 + b2 + xb.astype(jnp.float32), 0.0)
    return jnp.transpose(out, (0, 3, 1, 2))


if __name__ == "__main__":
    N, C, H, W = 2, 8, 16, 16
    eps = 1e-5  # PyTorch BatchNorm2d default

    key = jax.random.PRNGKey(0)
    ks = jax.random.split(key, 11)

    x = jax.random.normal(ks[0], (N, C, H, W), jnp.float32)          # NCHW
    w1 = 0.1 * jax.random.normal(ks[1], (3, 3, C, C), jnp.float32)   # HWIO
    w2 = 0.1 * jax.random.normal(ks[2], (3, 3, C, C), jnp.float32)   # HWIO

    g1 = 1.0 + 0.1 * jax.random.normal(ks[3], (C,), jnp.float32)
    be1 = 0.1 * jax.random.normal(ks[4], (C,), jnp.float32)
    rm1 = 0.1 * jax.random.normal(ks[5], (C,), jnp.float32)
    rv1 = jax.random.uniform(ks[6], (C,), jnp.float32, 0.5, 1.5)
    g2 = 1.0 + 0.1 * jax.random.normal(ks[7], (C,), jnp.float32)
    be2 = 0.1 * jax.random.normal(ks[8], (C,), jnp.float32)
    rm2 = 0.1 * jax.random.normal(ks[9], (C,), jnp.float32)
    rv2 = jax.random.uniform(ks[10], (C,), jnp.float32, 0.5, 1.5)

    args = (x, w1, w2, g1, be1, rm1, rv1, g2, be2, rm2, rv2)

    fwd = jax.jit(attn_basic_block_forward)
    out = jax.block_until_ready(fwd(*args))
    assert out.shape == (N, C, H, W)

    # Tight check against a reference with identical bf16-operand numerics.
    ref_b = _reference_bf16(*args)
    assert jnp.allclose(out, ref_b, atol=2e-2, rtol=2e-2), (
        f"bf16-ref max abs err {jnp.max(jnp.abs(out - ref_b))}")

    # Loose sanity check against the full-f32 module semantics (bf16 rounding).
    ref_f = _reference_f32(*args)
    assert jnp.allclose(out, ref_f, atol=1e-1, rtol=1e-1), (
        f"f32-ref max abs err {jnp.max(jnp.abs(out - ref_f))}")

    print("KERNEL_OK")
</pallas_src>

<mosaic_0001>
module attributes {stable_mosaic.version = 11 : i64} {
  func.func @_attn_basic_block_kernel(%arg0: i32, %arg1: memref<1x18x18x128xbf16, #tpu.memory_space<vmem>>, %arg2: memref<3x384x128xbf16, #tpu.memory_space<vmem>>, %arg3: memref<3x384x128xbf16, #tpu.memory_space<vmem>>, %arg4: memref<1x128xf32, #tpu.memory_space<vmem>>, %arg5: memref<1x128xf32, #tpu.memory_space<vmem>>, %arg6: memref<1x16x16x128xf32, #tpu.memory_space<vmem>>, %arg7: memref<16x18x384xbf16, #tpu.memory_space<vmem>>, %arg8: memref<18x18x128xbf16, #tpu.memory_space<vmem>>) attributes {dimension_semantics = [#tpu.dimension_semantics<parallel>], iteration_bounds = array<i64: 2>, scalar_prefetch = 0 : i64, scratch_operands = 2 : i64, tpu.core_type = #tpu.core_type<tc>, window_params = [{transform_indices = @transform_0, window_bounds = array<i64: 1, 18, 18, 128>}, {pipeline_mode = #tpu.pipeline_mode<synchronous>, transform_indices = @transform_1, window_bounds = array<i64: 3, 384, 128>}, {pipeline_mode = #tpu.pipeline_mode<synchronous>, transform_indices = @transform_2, window_bounds = array<i64: 3, 384, 128>}, {pipeline_mode = #tpu.pipeline_mode<synchronous>, transform_indices = @transform_3, window_bounds = array<i64: 1, 128>}, {pipeline_mode = #tpu.pipeline_mode<synchronous>, transform_indices = @transform_4, window_bounds = array<i64: 1, 128>}, {transform_indices = @transform_5, window_bounds = array<i64: 1, 16, 16, 128>}]} {
    %c0 = arith.constant 0 : index
    %c0_0 = arith.constant 0 : index
    %0 = vector.load %arg4[%c0, %c0_0] : memref<1x128xf32, #tpu.memory_space<vmem>>, vector<1x128xf32>
    %1 = vector.shape_cast %0 : vector<1x128xf32> to vector<128xf32>
    %c0_1 = arith.constant 0 : index
    %c0_2 = arith.constant 0 : index
    %2 = vector.load %arg5[%c0_1, %c0_2] : memref<1x128xf32, #tpu.memory_space<vmem>>, vector<1x128xf32>
    %3 = vector.shape_cast %2 : vector<1x128xf32> to vector<128xf32>
    %c0_3 = arith.constant 0 : index
    %c0_4 = arith.constant 0 : index
    %c0_5 = arith.constant 0 : index
    %c0_6 = arith.constant 0 : index
    %4 = vector.load %arg1[%c0_3, %c0_4, %c0_5, %c0_6] : memref<1x18x18x128xbf16, #tpu.memory_space<vmem>>, vector<1x16x18x128xbf16>
    %5 = vector.shape_cast %4 : vector<1x16x18x128xbf16> to vector<16x18x128xbf16>
    %c0_7 = arith.constant 0 : index
    %c0_8 = arith.constant 0 : index
    %c0_9 = arith.constant 0 : index
    %6 = vector.load %arg7[%c0_7, %c0_8, %c0_9] : memref<16x18x384xbf16, #tpu.memory_space<vmem>>, vector<16x18x128xbf16>
    tpu.vector_store %arg7[%c0_7, %c0_8, %c0_9], %5 {strides = array<i32>} : memref<16x18x384xbf16, #tpu.memory_space<vmem>>, vector<16x18x128xbf16>,
    %c0_10 = arith.constant 0 : index
    %c1 = arith.constant 1 : index
    %c0_11 = arith.constant 0 : index
    %c0_12 = arith.constant 0 : index
    %7 = vector.load %arg1[%c0_10, %c1, %c0_11, %c0_12] : memref<1x18x18x128xbf16, #tpu.memory_space<vmem>>, vector<1x16x18x128xbf16>
    %8 = vector.shape_cast %7 : vector<1x16x18x128xbf16> to vector<16x18x128xbf16>
    %c0_13 = arith.constant 0 : index
    %c0_14 = arith.constant 0 : index
    %c128 = arith.constant 128 : index
    %9 = vector.load %arg7[%c0_13, %c0_14, %c128] : memref<16x18x384xbf16, #tpu.memory_space<vmem>>, vector<16x18x128xbf16>
    tpu.vector_store %arg7[%c0_13, %c0_14, %c128], %8 {strides = array<i32>} : memref<16x18x384xbf16, #tpu.memory_space<vmem>>, vector<16x18x128xbf16>,
    %c0_15 = arith.constant 0 : index
    %c2 = arith.constant 2 : index
    %c0_16 = arith.constant 0 : index
    %c0_17 = arith.constant 0 : index
    %10 = vector.load %arg1[%c0_15, %c2, %c0_16, %c0_17] : memref<1x18x18x128xbf16, #tpu.memory_space<vmem>>, vector<1x16x18x128xbf16>
    %11 = vector.shape_cast %10 : vector<1x16x18x128xbf16> to vector<16x18x128xbf16>
    %c0_18 = arith.constant 0 : index
    %c0_19 = arith.constant 0 : index
    %c256 = arith.constant 256 : index
    %12 = vector.load %arg7[%c0_18, %c0_19, %c256] : memref<16x18x384xbf16, #tpu.memory_space<vmem>>, vector<16x18x128xbf16>
    tpu.vector_store %arg7[%c0_18, %c0_19, %c256], %11 {strides = array<i32>} : memref<16x18x384xbf16, #tpu.memory_space<vmem>>, vector<16x18x128xbf16>,
    %cst = arith.constant 0.000000e+00 : bf16
    %13 = vector.broadcast %cst : bf16 to vector<1x18x128xbf16>
    %c0_20 = arith.constant 0 : index
    %c0_21 = arith.constant 0 : index
    %c0_22 = arith.constant 0 : index
    %14 = vector.load %arg8[%c0_20, %c0_21, %c0_22] : memref<18x18x128xbf16, #tpu.memory_space<vmem>>, vector<1x18x128xbf16>
    tpu.vector_store %arg8[%c0_20, %c0_21, %c0_22], %13 {strides = array<i32>} : memref<18x18x128xbf16, #tpu.memory_space<vmem>>, vector<1x18x128xbf16>,
    %cst_23 = arith.constant 0.000000e+00 : bf16
    %15 = vector.broadcast %cst_23 : bf16 to vector<1x18x128xbf16>
    %c17 = arith.constant 17 : index
    %c0_24 = arith.constant 0 : index
    %c0_25 = arith.constant 0 : index
    %16 = vector.load %arg8[%c17, %c0_24, %c0_25] : memref<18x18x128xbf16, #tpu.memory_space<vmem>>, vector<1x18x128xbf16>
    tpu.vector_store %arg8[%c17, %c0_24, %c0_25], %15 {strides = array<i32>} : memref<18x18x128xbf16, #tpu.memory_space<vmem>>, vector<1x18x128xbf16>,
    %cst_26 = arith.constant 0.000000e+00 : bf16
    %17 = vector.broadcast %cst_26 : bf16 to vector<18x1x128xbf16>
    %c0_27 = arith.constant 0 : index
    %c0_28 = arith.constant 0 : index
    %c0_29 = arith.constant 0 : index
    %18 = vector.load %arg8[%c0_27, %c0_28, %c0_29] : memref<18x18x128xbf16, #tpu.memory_space<vmem>>, vector<18x1x128xbf16>
    tpu.vector_store %arg8[%c0_27, %c0_28, %c0_29], %17 {strides = array<i32>} : memref<18x18x128xbf16, #tpu.memory_space<vmem>>, vector<18x1x128xbf16>,
    %cst_30 = arith.constant 0.000000e+00 : bf16
    %19 = vector.broadcast %cst_30 : bf16 to vector<18x1x128xbf16>
    %c0_31 = arith.constant 0 : index
    %c17_32 = arith.constant 17 : index
    %c0_33 = arith.constant 0 : index
    %20 = vector.load %arg8[%c0_31, %c17_32, %c0_33] : memref<18x18x128xbf16, #tpu.memory_space<vmem>>, vector<18x1x128xbf16>
    tpu.vector_store %arg8[%c0_31, %c17_32, %c0_33], %19 {strides = array<i32>} : memref<18x18x128xbf16, #tpu.memory_space<vmem>>, vector<18x1x128xbf16>,
    %cst_34 = arith.constant 0.000000e+00 : f32
    %21 = vector.broadcast %cst_34 : f32 to vector<128x128xf32>
    %c0_35 = arith.constant 0 : index
    %c0_36 = arith.constant 0 : index
    %c0_37 = arith.constant 0 : index
    %22 = vector.load %arg7[%c0_35, %c0_36, %c0_37] : memref<16x18x384xbf16, #tpu.memory_space<vmem>>, vector<8x16x384xbf16>
    %23 = vector.shape_cast %22 : vector<8x16x384xbf16> to vector<128x384xbf16>
    %c0_38 = arith.constant 0 : index
    %c0_39 = arith.constant 0 : index
    %c0_40 = arith.constant 0 : index
    %24 = vector.load %arg2[%c0_38, %c0_39, %c0_40] : memref<3x384x128xbf16, #tpu.memory_space<vmem>>, vector<1x384x128xbf16>
    %25 = vector.shape_cast %24 : vector<1x384x128xbf16> to vector<384x128xbf16>
    %cst_41 = arith.constant dense<0.000000e+00> : vector<128x128xf32>
    %26 = tpu.matmul %23, %25, %cst_41 {dimension_numbers = #tpu.dot_dimension_numbers<[1], [0], [0], [1], [0, 0, 1, 1], [], []>} : vector<128x384xbf16>, vector<384x128xbf16>, vector<128x128xf32> -> vector<128x128xf32>
    %27 = arith.addf %21, %26 : vector<128x128xf32>
    %c0_42 = arith.constant 0 : index
    %c1_43 = arith.constant 1 : index
    %c0_44 = arith.constant 0 : index
    %28 = vector.load %arg7[%c0_42, %c1_43, %c0_44] : memref<16x18x384xbf16, #tpu.memory_space<vmem>>, vector<8x16x384xbf16>
    %29 = vector.shape_cast %28 : vector<8x16x384xbf16> to vector<128x384xbf16>
    %c1_45 = arith.constant 1 : index
    %c0_46 = arith.constant 0 : index
    %c0_47 = arith.constant 0 : index
    %30 = vector.load %arg2[%c1_45, %c0_46, %c0_47] : memref<3x384x128xbf16, #tpu.memory_space<vmem>>, vector<1x384x128xbf16>
    %31 = vector.shape_cast %30 : vector<1x384x128xbf16> to vector<384x128xbf16>
    %cst_48 = arith.constant dense<0.000000e+00> : vector<128x128xf32>
    %32 = tpu.matmul %29, %31, %cst_48 {dimension_numbers = #tpu.dot_dimension_numbers<[1], [0], [0], [1], [0, 0, 1, 1], [], []>} : vector<128x384xbf16>, vector<384x128xbf16>, vector<128x128xf32> -> vector<128x128xf32>
    %33 = arith.addf %27, %32 : vector<128x128xf32>
    %c0_49 = arith.constant 0 : index
    %c2_50 = arith.constant 2 : index
    %c0_51 = arith.constant 0 : index
    %34 = vector.load %arg7[%c0_49, %c2_50, %c0_51] : memref<16x18x384xbf16, #tpu.memory_space<vmem>>, vector<8x16x384xbf16>
    %35 = vector.shape_cast %34 : vector<8x16x384xbf16> to vector<128x384xbf16>
    %c2_52 = arith.constant 2 : index
    %c0_53 = arith.constant 0 : index
    %c0_54 = arith.constant 0 : index
    %36 = vector.load %arg2[%c2_52, %c0_53, %c0_54] : memref<3x384x128xbf16, #tpu.memory_space<vmem>>, vector<1x384x128xbf16>
    %37 = vector.shape_cast %36 : vector<1x384x128xbf16> to vector<384x128xbf16>
    %cst_55 = arith.constant dense<0.000000e+00> : vector<128x128xf32>
    %38 = tpu.matmul %35, %37, %cst_55 {dimension_numbers = #tpu.dot_dimension_numbers<[1], [0], [0], [1], [0, 0, 1, 1], [], []>} : vector<128x384xbf16>, vector<384x128xbf16>, vector<128x128xf32> -> vector<128x128xf32>
    %39 = arith.addf %33, %38 : vector<128x128xf32>
    %40 = vector.shape_cast %1 : vector<128xf32> to vector<1x128xf32>
    %41 = vector.broadcast %40 : vector<1x128xf32> to vector<128x128xf32>
    %42 = arith.addf %39, %41 : vector<128x128xf32>
    %cst_56 = arith.constant 0.000000e+00 : f32
    %43 = vector.broadcast %cst_56 : f32 to vector<128x128xf32>
    %44 = arith.maximumf %42, %43 : vector<128x128xf32>
    %45 = arith.truncf %44 : vector<128x128xf32> to vector<128x128xbf16>
    %46 = vector.shape_cast %45 : vector<128x128xbf16> to vector<8x16x128xbf16>
    %c1_57 = arith.constant 1 : index
    %c1_58 = arith.constant 1 : index
    %c0_59 = arith.constant 0 : index
    %47 = vector.load %arg8[%c1_57, %c1_58, %c0_59] : memref<18x18x128xbf16, #tpu.memory_space<vmem>>, vector<8x16x128xbf16>
    tpu.vector_store %arg8[%c1_57, %c1_58, %c0_59], %46 {strides = array<i32>} : memref<18x18x128xbf16, #tpu.memory_space<vmem>>, vector<8x16x128xbf16>,
    %cst_60 = arith.constant 0.000000e+00 : f32
    %48 = vector.broadcast %cst_60 : f32 to vector<128x128xf32>
    %c8 = arith.constant 8 : index
    %c0_61 = arith.constant 0 : index
    %c0_62 = arith.constant 0 : index
    %49 = vector.load %arg7[%c8, %c0_61, %c0_62] : memref<16x18x384xbf16, #tpu.memory_space<vmem>>, vector<8x16x384xbf16>
    %50 = vector.shape_cast %49 : vector<8x16x384xbf16> to vector<128x384xbf16>
    %c0_63 = arith.constant 0 : index
    %c0_64 = arith.constant 0 : index
    %c0_65 = arith.constant 0 : index
    %51 = vector.load %arg2[%c0_63, %c0_64, %c0_65] : memref<3x384x128xbf16, #tpu.memory_space<vmem>>, vector<1x384x128xbf16>
    %52 = vector.shape_cast %51 : vector<1x384x128xbf16> to vector<384x128xbf16>
    %cst_66 = arith.constant dense<0.000000e+00> : vector<128x128xf32>
    %53 = tpu.matmul %50, %52, %cst_66 {dimension_numbers = #tpu.dot_dimension_numbers<[1], [0], [0], [1], [0, 0, 1, 1], [], []>} : vector<128x384xbf16>, vector<384x128xbf16>, vector<128x128xf32> -> vector<128x128xf32>
    %54 = arith.addf %48, %53 : vector<128x128xf32>
    %c8_67 = arith.constant 8 : index
    %c1_68 = arith.constant 1 : index
    %c0_69 = arith.constant 0 : index
    %55 = vector.load %arg7[%c8_67, %c1_68, %c0_69] : memref<16x18x384xbf16, #tpu.memory_space<vmem>>, vector<8x16x384xbf16>
    %56 = vector.shape_cast %55 : vector<8x16x384xbf16> to vector<128x384xbf16>
    %c1_70 = arith.constant 1 : index
    %c0_71 = arith.constant 0 : index
    %c0_72 = arith.constant 0 : index
    %57 = vector.load %arg2[%c1_70, %c0_71, %c0_72] : memref<3x384x128xbf16, #tpu.memory_space<vmem>>, vector<1x384x128xbf16>
    %58 = vector.shape_cast %57 : vector<1x384x128xbf16> to vector<384x128xbf16>
    %cst_73 = arith.constant dense<0.000000e+00> : vector<128x128xf32>
    %59 = tpu.matmul %56, %58, %cst_73 {dimension_numbers = #tpu.dot_dimension_numbers<[1], [0], [0], [1], [0, 0, 1, 1], [], []>} : vector<128x384xbf16>, vector<384x128xbf16>, vector<128x128xf32> -> vector<128x128xf32>
    %60 = arith.addf %54, %59 : vector<128x128xf32>
    %c8_74 = arith.constant 8 : index
    %c2_75 = arith.constant 2 : index
    %c0_76 = arith.constant 0 : index
    %61 = vector.load %arg7[%c8_74, %c2_75, %c0_76] : memref<16x18x384xbf16, #tpu.memory_space<vmem>>, vector<8x16x384xbf16>
    %62 = vector.shape_cast %61 : vector<8x16x384xbf16> to vector<128x384xbf16>
    %c2_77 = arith.constant 2 : index
    %c0_78 = arith.constant 0 : index
    %c0_79 = arith.constant 0 : index
    %63 = vector.load %arg2[%c2_77, %c0_78, %c0_79] : memref<3x384x128xbf16, #tpu.memory_space<vmem>>, vector<1x384x128xbf16>
    %64 = vector.shape_cast %63 : vector<1x384x128xbf16> to vector<384x128xbf16>
    %cst_80 = arith.constant dense<0.000000e+00> : vector<128x128xf32>
    %65 = tpu.matmul %62, %64, %cst_80 {dimension_numbers = #tpu.dot_dimension_numbers<[1], [0], [0], [1], [0, 0, 1, 1], [], []>} : vector<128x384xbf16>, vector<384x128xbf16>, vector<128x128xf32> -> vector<128x128xf32>
    %66 = arith.addf %60, %65 : vector<128x128xf32>
    %67 = vector.shape_cast %1 : vector<128xf32> to vector<1x128xf32>
    %68 = vector.broadcast %67 : vector<1x128xf32> to vector<128x128xf32>
    %69 = arith.addf %66, %68 : vector<128x128xf32>
    %cst_81 = arith.constant 0.000000e+00 : f32
    %70 = vector.broadcast %cst_81 : f32 to vector<128x128xf32>
    %71 = arith.maximumf %69, %70 : vector<128x128xf32>
    %72 = arith.truncf %71 : vector<128x128xf32> to vector<128x128xbf16>
    %73 = vector.shape_cast %72 : vector<128x128xbf16> to vector<8x16x128xbf16>
    %c9 = arith.constant 9 : index
    %c1_82 = arith.constant 1 : index
    %c0_83 = arith.constant 0 : index
    %74 = vector.load %arg8[%c9, %c1_82, %c0_83] : memref<18x18x128xbf16, #tpu.memory_space<vmem>>, vector<8x16x128xbf16>
    tpu.vector_store %arg8[%c9, %c1_82, %c0_83], %73 {strides = array<i32>} : memref<18x18x128xbf16, #tpu.memory_space<vmem>>, vector<8x16x128xbf16>,
    %c0_84 = arith.constant 0 : index
    %c0_85 = arith.constant 0 : index
    %c0_86 = arith.constant 0 : index
    %75 = vector.load %arg8[%c0_84, %c0_85, %c0_86] : memref<18x18x128xbf16, #tpu.memory_space<vmem>>, vector<16x18x128xbf16>
    %c0_87 = arith.constant 0 : index
    %c0_88 = arith.constant 0 : index
    %c0_89 = arith.constant 0 : index
    %76 = vector.load %arg7[%c0_87, %c0_88, %c0_89] : memref<16x18x384xbf16, #tpu.memory_space<vmem>>, vector<16x18x128xbf16>
    tpu.vector_store %arg7[%c0_87, %c0_88, %c0_89], %75 {strides = array<i32>} : memref<16x18x384xbf16, #tpu.memory_space<vmem>>, vector<16x18x128xbf16>,
    %c1_90 = arith.constant 1 : index
    %c0_91 = arith.constant 0 : index
    %c0_92 = arith.constant 0 : index
    %77 = vector.load %arg8[%c1_90, %c0_91, %c0_92] : memref<18x18x128xbf16, #tpu.memory_space<vmem>>, vector<16x18x128xbf16>
    %c0_93 = arith.constant 0 : index
    %c0_94 = arith.constant 0 : index
    %c128_95 = arith.constant 128 : index
    %78 = vector.load %arg7[%c0_93, %c0_94, %c128_95] : memref<16x18x384xbf16, #tpu.memory_space<vmem>>, vector<16x18x128xbf16>
    tpu.vector_store %arg7[%c0_93, %c0_94, %c128_95], %77 {strides = array<i32>} : memref<16x18x384xbf16, #tpu.memory_space<vmem>>, vector<16x18x128xbf16>,
    %c2_96 = arith.constant 2 : index
    %c0_97 = arith.constant 0 : index
    %c0_98 = arith.constant 0 : index
    %79 = vector.load %arg8[%c2_96, %c0_97, %c0_98] : memref<18x18x128xbf16, #tpu.memory_space<vmem>>, vector<16x18x128xbf16>
    %c0_99 = arith.constant 0 : index
    %c0_100 = arith.constant 0 : index
    %c256_101 = arith.constant 256 : index
    %80 = vector.load %arg7[%c0_99, %c0_100, %c256_101] : memref<16x18x384xbf16, #tpu.memory_space<vmem>>, vector<16x18x128xbf16>
    tpu.vector_store %arg7[%c0_99, %c0_100, %c256_101], %79 {strides = array<i32>} : memref<16x18x384xbf16, #tpu.memory_space<vmem>>, vector<16x18x128xbf16>,
    %cst_102 = arith.constant 0.000000e+00 : f32
    %81 = vector.broadcast %cst_102 : f32 to vector<128x128xf32>
    %c0_103 = arith.constant 0 : index
    %c0_104 = arith.constant 0 : index
    %c0_105 = arith.constant 0 : index
    %82 = vector.load %arg7[%c0_103, %c0_104, %c0_105] : memref<16x18x384xbf16, #tpu.memory_space<vmem>>, vector<8x16x384xbf16>
    %83 = vector.shape_cast %82 : vector<8x16x384xbf16> to vector<128x384xbf16>
    %c0_106 = arith.constant 0 : index
    %c0_107 = arith.constant 0 : index
    %c0_108 = arith.constant 0 : index
    %84 = vector.load %arg3[%c0_106, %c0_107, %c0_108] : memref<3x384x128xbf16, #tpu.memory_space<vmem>>, vector<1x384x128xbf16>
    %85 = vector.shape_cast %84 : vector<1x384x128xbf16> to vector<384x128xbf16>
    %cst_109 = arith.constant dense<0.000000e+00> : vector<128x128xf32>
    %86 = tpu.matmul %83, %85, %cst_109 {dimension_numbers = #tpu.dot_dimension_numbers<[1], [0], [0], [1], [0, 0, 1, 1], [], []>} : vector<128x384xbf16>, vector<384x128xbf16>, vector<128x128xf32> -> vector<128x128xf32>
    %87 = arith.addf %81, %86 : vector<128x128xf32>
    %c0_110 = arith.constant 0 : index
    %c1_111 = arith.constant 1 : index
    %c0_112 = arith.constant 0 : index
    %88 = vector.load %arg7[%c0_110, %c1_111, %c0_112] : memref<16x18x384xbf16, #tpu.memory_space<vmem>>, vector<8x16x384xbf16>
    %89 = vector.shape_cast %88 : vector<8x16x384xbf16> to vector<128x384xbf16>
    %c1_113 = arith.constant 1 : index
    %c0_114 = arith.constant 0 : index
    %c0_115 = arith.constant 0 : index
    %90 = vector.load %arg3[%c1_113, %c0_114, %c0_115] : memref<3x384x128xbf16, #tpu.memory_space<vmem>>, vector<1x384x128xbf16>
    %91 = vector.shape_cast %90 : vector<1x384x128xbf16> to vector<384x128xbf16>
    %cst_116 = arith.constant dense<0.000000e+00> : vector<128x128xf32>
    %92 = tpu.matmul %89, %91, %cst_116 {dimension_numbers = #tpu.dot_dimension_numbers<[1], [0], [0], [1], [0, 0, 1, 1], [], []>} : vector<128x384xbf16>, vector<384x128xbf16>, vector<128x128xf32> -> vector<128x128xf32>
    %93 = arith.addf %87, %92 : vector<128x128xf32>
    %c0_117 = arith.constant 0 : index
    %c2_118 = arith.constant 2 : index
    %c0_119 = arith.constant 0 : index
    %94 = vector.load %arg7[%c0_117, %c2_118, %c0_119] : memref<16x18x384xbf16, #tpu.memory_space<vmem>>, vector<8x16x384xbf16>
    %95 = vector.shape_cast %94 : vector<8x16x384xbf16> to vector<128x384xbf16>
    %c2_120 = arith.constant 2 : index
    %c0_121 = arith.constant 0 : index
    %c0_122 = arith.constant 0 : index
    %96 = vector.load %arg3[%c2_120, %c0_121, %c0_122] : memref<3x384x128xbf16, #tpu.memory_space<vmem>>, vector<1x384x128xbf16>
    %97 = vector.shape_cast %96 : vector<1x384x128xbf16> to vector<384x128xbf16>
    %cst_123 = arith.constant dense<0.000000e+00> : vector<128x128xf32>
    %98 = tpu.matmul %95, %97, %cst_123 {dimension_numbers = #tpu.dot_dimension_numbers<[1], [0], [0], [1], [0, 0, 1, 1], [], []>} : vector<128x384xbf16>, vector<384x128xbf16>, vector<128x128xf32> -> vector<128x128xf32>
    %99 = arith.addf %93, %98 : vector<128x128xf32>
    %c0_124 = arith.constant 0 : index
    %c1_125 = arith.constant 1 : index
    %c1_126 = arith.constant 1 : index
    %c0_127 = arith.constant 0 : index
    %100 = vector.load %arg1[%c0_124, %c1_125, %c1_126, %c0_127] : memref<1x18x18x128xbf16, #tpu.memory_space<vmem>>, vector<1x8x16x128xbf16>
    %101 = vector.shape_cast %100 : vector<1x8x16x128xbf16> to vector<8x16x128xbf16>
    %102 = arith.extf %101 : vector<8x16x128xbf16> to vector<8x16x128xf32>
    %103 = vector.shape_cast %3 : vector<128xf32> to vector<1x128xf32>
    %104 = vector.broadcast %103 : vector<1x128xf32> to vector<128x128xf32>
    %105 = arith.addf %99, %104 : vector<128x128xf32>
    %106 = vector.shape_cast %102 : vector<8x16x128xf32> to vector<128x128xf32>
    %107 = arith.addf %105, %106 : vector<128x128xf32>
    %cst_128 = arith.constant 0.000000e+00 : f32
    %108 = vector.broadcast %cst_128 : f32 to vector<128x128xf32>
    %109 = arith.maximumf %107, %108 : vector<128x128xf32>
    %110 = vector.shape_cast %109 : vector<128x128xf32> to vector<8x16x128xf32>
    %c0_129 = arith.constant 0 : index
    %c0_130 = arith.constant 0 : index
    %c0_131 = arith.constant 0 : index
    %c0_132 = arith.constant 0 : index
    %111 = vector.load %arg6[%c0_129, %c0_130, %c0_131, %c0_132] : memref<1x16x16x128xf32, #tpu.memory_space<vmem>>, vector<1x8x16x128xf32>
    %112 = vector.shape_cast %111 : vector<1x8x16x128xf32> to vector<8x16x128xf32>
    %113 = vector.shape_cast %110 : vector<8x16x128xf32> to vector<1x8x16x128xf32>
    tpu.vector_store %arg6[%c0_129, %c0_130, %c0_131, %c0_132], %113 {strides = array<i32>} : memref<1x16x16x128xf32, #tpu.memory_space<vmem>>, vector<1x8x16x128xf32>,
    %cst_133 = arith.constant 0.000000e+00 : f32
    %114 = vector.broadcast %cst_133 : f32 to vector<128x128xf32>
    %c8_134 = arith.constant 8 : index
    %c0_135 = arith.constant 0 : index
    %c0_136 = arith.constant 0 : index
    %115 = vector.load %arg7[%c8_134, %c0_135, %c0_136] : memref<16x18x384xbf16, #tpu.memory_space<vmem>>, vector<8x16x384xbf16>
    %116 = vector.shape_cast %115 : vector<8x16x384xbf16> to vector<128x384xbf16>
    %c0_137 = arith.constant 0 : index
    %c0_138 = arith.constant 0 : index
    %c0_139 = arith.constant 0 : index
    %117 = vector.load %arg3[%c0_137, %c0_138, %c0_139] : memref<3x384x128xbf16, #tpu.memory_space<vmem>>, vector<1x384x128xbf16>
    %118 = vector.shape_cast %117 : vector<1x384x128xbf16> to vector<384x128xbf16>
    %cst_140 = arith.constant dense<0.000000e+00> : vector<128x128xf32>
    %119 = tpu.matmul %116, %118, %cst_140 {dimension_numbers = #tpu.dot_dimension_numbers<[1], [0], [0], [1], [0, 0, 1, 1], [], []>} : vector<128x384xbf16>, vector<384x128xbf16>, vector<128x128xf32> -> vector<128x128xf32>
    %120 = arith.addf %114, %119 : vector<128x128xf32>
    %c8_141 = arith.constant 8 : index
    %c1_142 = arith.constant 1 : index
    %c0_143 = arith.constant 0 : index
    %121 = vector.load %arg7[%c8_141, %c1_142, %c0_143] : memref<16x18x384xbf16, #tpu.memory_space<vmem>>, vector<8x16x384xbf16>
    %122 = vector.shape_cast %121 : vector<8x16x384xbf16> to vector<128x384xbf16>
    %c1_144 = arith.constant 1 : index
    %c0_145 = arith.constant 0 : index
    %c0_146 = arith.constant 0 : index
    %123 = vector.load %arg3[%c1_144, %c0_145, %c0_146] : memref<3x384x128xbf16, #tpu.memory_space<vmem>>, vector<1x384x128xbf16>
    %124 = vector.shape_cast %123 : vector<1x384x128xbf16> to vector<384x128xbf16>
    %cst_147 = arith.constant dense<0.000000e+00> : vector<128x128xf32>
    %125 = tpu.matmul %122, %124, %cst_147 {dimension_numbers = #tpu.dot_dimension_numbers<[1], [0], [0], [1], [0, 0, 1, 1], [], []>} : vector<128x384xbf16>, vector<384x128xbf16>, vector<128x128xf32> -> vector<128x128xf32>
    %126 = arith.addf %120, %125 : vector<128x128xf32>
    %c8_148 = arith.constant 8 : index
    %c2_149 = arith.constant 2 : index
    %c0_150 = arith.constant 0 : index
    %127 = vector.load %arg7[%c8_148, %c2_149, %c0_150] : memref<16x18x384xbf16, #tpu.memory_space<vmem>>, vector<8x16x384xbf16>
    %128 = vector.shape_cast %127 : vector<8x16x384xbf16> to vector<128x384xbf16>
    %c2_151 = arith.constant 2 : index
    %c0_152 = arith.constant 0 : index
    %c0_153 = arith.constant 0 : index
    %129 = vector.load %arg3[%c2_151, %c0_152, %c0_153] : memref<3x384x128xbf16, #tpu.memory_space<vmem>>, vector<1x384x128xbf16>
    %130 = vector.shape_cast %129 : vector<1x384x128xbf16> to vector<384x128xbf16>
    %cst_154 = arith.constant dense<0.000000e+00> : vector<128x128xf32>
    %131 = tpu.matmul %128, %130, %cst_154 {dimension_numbers = #tpu.dot_dimension_numbers<[1], [0], [0], [1], [0, 0, 1, 1], [], []>} : vector<128x384xbf16>, vector<384x128xbf16>, vector<128x128xf32> -> vector<128x128xf32>
    %132 = arith.addf %126, %131 : vector<128x128xf32>
    %c0_155 = arith.constant 0 : index
    %c9_156 = arith.constant 9 : index
    %c1_157 = arith.constant 1 : index
    %c0_158 = arith.constant 0 : index
    %133 = vector.load %arg1[%c0_155, %c9_156, %c1_157, %c0_158] : memref<1x18x18x128xbf16, #tpu.memory_space<vmem>>, vector<1x8x16x128xbf16>
    %134 = vector.shape_cast %133 : vector<1x8x16x128xbf16> to vector<8x16x128xbf16>
    %135 = arith.extf %134 : vector<8x16x128xbf16> to vector<8x16x128xf32>
    %136 = vector.shape_cast %3 : vector<128xf32> to vector<1x128xf32>
    %137 = vector.broadcast %136 : vector<1x128xf32> to vector<128x128xf32>
    %138 = arith.addf %132, %137 : vector<128x128xf32>
    %139 = vector.shape_cast %135 : vector<8x16x128xf32> to vector<128x128xf32>
    %140 = arith.addf %138, %139 : vector<128x128xf32>
    %cst_159 = arith.constant 0.000000e+00 : f32
    %141 = vector.broadcast %cst_159 : f32 to vector<128x128xf32>
    %142 = arith.maximumf %140, %141 : vector<128x128xf32>
    %143 = vector.shape_cast %142 : vector<128x128xf32> to vector<8x16x128xf32>
    %c0_160 = arith.constant 0 : index
    %c8_161 = arith.constant 8 : index
    %c0_162 = arith.constant 0 : index
    %c0_163 = arith.constant 0 : index
    %144 = vector.load %arg6[%c0_160, %c8_161, %c0_162, %c0_163] : memref<1x16x16x128xf32, #tpu.memory_space<vmem>>, vector<1x8x16x128xf32>
    %145 = vector.shape_cast %144 : vector<1x8x16x128xf32> to vector<8x16x128xf32>
    %146 = vector.shape_cast %143 : vector<8x16x128xf32> to vector<1x8x16x128xf32>
    tpu.vector_store %arg6[%c0_160, %c8_161, %c0_162, %c0_163], %146 {strides = array<i32>} : memref<1x16x16x128xf32, #tpu.memory_space<vmem>>, vector<1x8x16x128xf32>,
    return
  }
  func.func @transform_0(%arg0: i32) -> (i32, i32, i32, i32) {
    %c0_i32 = arith.constant 0 : i32
    %c0_i32_0 = arith.constant 0 : i32
    %c0_i32_1 = arith.constant 0 : i32
    %c0_i32_2 = arith.constant 0 : i32
    return %arg0, %c0_i32, %c0_i32_0, %c0_i32_1 : i32, i32, i32, i32
  }
  func.func @transform_1(%arg0: i32) -> (i32, i32, i32) {
    %c0_i32 = arith.constant 0 : i32
    %c0_i32_0 = arith.constant 0 : i32
    %c0_i32_1 = arith.constant 0 : i32
    %c0_i32_2 = arith.constant 0 : i32
    return %c0_i32, %c0_i32_0, %c0_i32_1 : i32, i32, i32
  }
  func.func @transform_2(%arg0: i32) -> (i32, i32, i32) {
    %c0_i32 = arith.constant 0 : i32
    %c0_i32_0 = arith.constant 0 : i32
    %c0_i32_1 = arith.constant 0 : i32
    %c0_i32_2 = arith.constant 0 : i32
    return %c0_i32, %c0_i32_0, %c0_i32_1 : i32, i32, i32
  }
  func.func @transform_3(%arg0: i32) -> (i32, i32) {
    %c0_i32 = arith.constant 0 : i32
    %c0_i32_0 = arith.constant 0 : i32
    %c0_i32_1 = arith.constant 0 : i32
    return %c0_i32, %c0_i32_0 : i32, i32
  }
  func.func @transform_4(%arg0: i32) -> (i32, i32) {
    %c0_i32 = arith.constant 0 : i32
    %c0_i32_0 = arith.constant 0 : i32
    %c0_i32_1 = arith.constant 0 : i32
    return %c0_i32, %c0_i32_0 : i32, i32
  }
  func.func @transform_5(%arg0: i32) -> (i32, i32, i32, i32) {
    %c0_i32 = arith.constant 0 : i32
    %c0_i32_0 = arith.constant 0 : i32
    %c0_i32_1 = arith.constant 0 : i32
    %c0_i32_2 = arith.constant 0 : i32
    return %arg0, %c0_i32, %c0_i32_0, %c0_i32_1 : i32, i32, i32, i32
  }
}

</mosaic_0001>

<llo_original>
// kernel: attn_basic_block_forward.1
$region0: #{attn_basic_block_forward.1}
  #allocation0 [shape = 'u32[]', space=smem, size = 0x4, offset = 0x4, fixed_abs, tag = 'smem constant byte address 0x4 - core index']
  #allocation1 [shape = 'u32[144,128]{1,0:T(1,128)}', space=vmem, size = 0x12000, scoped, tag = 'internal scratch']
  #allocation2 [shape = 'bf16[16,18,384]{2,1,0:T(8,128)(2,1)}', space=vmem, size = 0x48000, scoped, tag = 'scratch operand']
  #allocation3 [shape = 'bf16[18,18,128]{2,1,0:T(8,128)(2,1)}', space=vmem, size = 0x1b000, scoped, tag = 'scratch operand']
  %s0 = inlined_call_operand.vmem [shape: bf16[2,18,18,128], index: 0, kind: input, shape index: {}]
  %s1 = inlined_call_operand.vmem [shape: bf16[3,384,128], index: 1, kind: input, shape index: {}]
  %s2 = inlined_call_operand.vmem [shape: bf16[3,384,128], index: 2, kind: input, shape index: {}]
  %s3 = inlined_call_operand.vmem [shape: f32[1,128], index: 3, kind: input, shape index: {}]
  %s4 = inlined_call_operand.vmem [shape: f32[1,128], index: 4, kind: input, shape index: {}]
  %s5 = inlined_call_operand.vmem [shape: f32[2,16,16,128], index: 5, kind: output, shape index: {}]
  %s6 = sld [smem:[#allocation0]]
  $region53: #{attn_basic_block_forward.1} parent=0
    _
  %s8 = ssub.s32 1, %s6
  %s9 = scalar_select 0, %s8, %s6
  loop: start=0, step=1, limit=4
  $region2: #{attn_basic_block_forward.1} parent=0 // loop_pre_header
    _
  $region3: #{attn_basic_block_forward.1} parent=0 // loop_header
    %s11 = sphi 0, %s15
    %p12 = scmp.ge.s32.totalorder %s11, 4
    %s21 = sphi 0, %s23
    %s24 = sphi 0, %s21
    %s25 = sphi 0, %s24
    %s41 = sphi 0, %s25
    %s45 = sphi 0, %s45
    %s47 = sphi 0, %s45
    %s48 = sphi 0, %s47
    %s62 = sphi 0, %s48
    %s66 = sphi 0, %s66
    %s68 = sphi 0, %s66
    %s69 = sphi 0, %s68
    %s83 = sphi 0, %s69
    %s87 = sphi 0, %s87
    %s89 = sphi 0, %s87
    %s90 = sphi 0, %s89
    %s104 = sphi 0, %s90
    %s108 = sphi 0, %s108
    %s110 = sphi 0, %s108
    %s111 = sphi 0, %s110
    %s125 = sphi 0, %s111
    %s131 = sphi 0, %s133
    %s134 = sphi 0, %s131
    %s135 = sphi 0, %s134
    %s151 = sphi 0, %s135
  $region4: #{attn_basic_block_forward.1} parent=0 // loop_header_branch
    %14 = sbr.rel (%p12) target = $region8
  $region5: #{attn_basic_block_forward.1} parent=0 // loop_body
    %s16 = ssub.s32 %s11, 1
    %s17 = ssub.s32 %s11, 2
    %s18 = sadd.s32 %s11, 1
    %s19 = ssub.s32 %s11, %s18
    %p20 = scmp.eq.s32.totalorder %s19, 0
    %s22 = sadd.s32 %s21, 1
    %s23 = scalar_select %p20, %s21, %s22
    %p26 = pneg %p20
    %p27 = scmp.eq.s32.totalorder %s11, 1
    %p28 = por %p26, %p27
    %p29 = scmp.ne.s32.totalorder %s21, %s24
    %p30 = scmp.eq.s32.totalorder %s11, 0
    %p31 = por %p29, %p30
    %p32 = scmp.ne.s32.totalorder %s21, %s24
    %p33 = scmp.eq.s32.totalorder %s16, 1
    %p34 = por %p32, %p33
    %p35 = scmp.ne.s32.totalorder %s24, %s25
    %p36 = scmp.eq.s32.totalorder %s16, 0
    %p37 = por %p35, %p36
    %p38 = scmp.ne.s32.totalorder %s24, %s25
    %p39 = scmp.eq.s32.totalorder %s17, 1
    %p40 = por %p38, %p39
    %p42 = scmp.ne.s32.totalorder %s25, %s41
    %p43 = scmp.eq.s32.totalorder %s17, 0
    %p44 = por %p42, %p43
    %s46 = sadd.s32 %s45, 1
    %p49 = scmp.eq.s32.totalorder %s11, 1
    %p50 = scmp.ne.s32.totalorder %s45, %s47
    %p51 = scmp.eq.s32.totalorder %s11, 0
    %p52 = por %p50, %p51
    %p53 = scmp.ne.s32.totalorder %s45, %s47
    %p54 = scmp.eq.s32.totalorder %s16, 1
    %p55 = por %p53, %p54
    %p56 = scmp.ne.s32.totalorder %s47, %s48
    %p57 = scmp.eq.s32.totalorder %s16, 0
    %p58 = por %p56, %p57
    %p59 = scmp.ne.s32.totalorder %s47, %s48
    %p60 = scmp.eq.s32.totalorder %s17, 1
    %p61 = por %p59, %p60
    %p63 = scmp.ne.s32.totalorder %s48, %s62
    %p64 = scmp.eq.s32.totalorder %s17, 0
    %p65 = por %p63, %p64
    %s67 = sadd.s32 %s66, 1
    %p70 = scmp.eq.s32.totalorder %s11, 1
    %p71 = scmp.ne.s32.totalorder %s66, %s68
    %p72 = scmp.eq.s32.totalorder %s11, 0
    %p73 = por %p71, %p72
    %p74 = scmp.ne.s32.totalorder %s66, %s68
    %p75 = scmp.eq.s32.totalorder %s16, 1
    %p76 = por %p74, %p75
    %p77 = scmp.ne.s32.totalorder %s68, %s69
    %p78 = scmp.eq.s32.totalorder %s16, 0
    %p79 = por %p77, %p78
    %p80 = scmp.ne.s32.totalorder %s68, %s69
    %p81 = scmp.eq.s32.totalorder %s17, 1
    %p82 = por %p80, %p81
    %p84 = scmp.ne.s32.totalorder %s69, %s83
    %p85 = scmp.eq.s32.totalorder %s17, 0
    %p86 = por %p84, %p85
    %s88 = sadd.s32 %s87, 1
    %p91 = scmp.eq.s32.totalorder %s11, 1
    %p92 = scmp.ne.s32.totalorder %s87, %s89
    %p93 = scmp.eq.s32.totalorder %s11, 0
    %p94 = por %p92, %p93
    %p95 = scmp.ne.s32.totalorder %s87, %s89
    %p96 = scmp.eq.s32.totalorder %s16, 1
    %p97 = por %p95, %p96
    %p98 = scmp.ne.s32.totalorder %s89, %s90
    %p99 = scmp.eq.s32.totalorder %s16, 0
    %p100 = por %p98, %p99
    %p101 = scmp.ne.s32.totalorder %s89, %s90
    %p102 = scmp.eq.s32.totalorder %s17, 1
    %p103 = por %p101, %p102
    %p105 = scmp.ne.s32.totalorder %s90, %s104
    %p106 = scmp.eq.s32.totalorder %s17, 0
    %p107 = por %p105, %p106
    %s109 = sadd.s32 %s108, 1
    %p112 = scmp.eq.s32.totalorder %s11, 1
    %p113 = scmp.ne.s32.totalorder %s108, %s110
    %p114 = scmp.eq.s32.totalorder %s11, 0
    %p115 = por %p113, %p114
    %p116 = scmp.ne.s32.totalorder %s108, %s110
    %p117 = scmp.eq.s32.totalorder %s16, 1
    %p118 = por %p116, %p117
    %p119 = scmp.ne.s32.totalorder %s110, %s111
    %p120 = scmp.eq.s32.totalorder %s16, 0
    %p121 = por %p119, %p120
    %p122 = scmp.ne.s32.totalorder %s110, %s111
    %p123 = scmp.eq.s32.totalorder %s17, 1
    %p124 = por %p122, %p123
    %p126 = scmp.ne.s32.totalorder %s111, %s125
    %p127 = scmp.eq.s32.totalorder %s17, 0
    %p128 = por %p126, %p127
    %s129 = ssub.s32 %s11, %s18
    %p130 = scmp.eq.s32.totalorder %s129, 0
    %s132 = sadd.s32 %s131, 1
    %s133 = scalar_select %p130, %s131, %s132
    %p136 = pneg %p130
    %p137 = scmp.eq.s32.totalorder %s11, 1
    %p138 = por %p136, %p137
    %p139 = scmp.ne.s32.totalorder %s131, %s134
    %p140 = scmp.eq.s32.totalorder %s11, 0
    %p141 = por %p139, %p140
    %p142 = scmp.ne.s32.totalorder %s131, %s134
    %p143 = scmp.eq.s32.totalorder %s16, 1
    %p144 = por %p142, %p143
    %p145 = scmp.ne.s32.totalorder %s134, %s135
    %p146 = scmp.eq.s32.totalorder %s16, 0
    %p147 = por %p145, %p146
    %p148 = scmp.ne.s32.totalorder %s134, %s135
    %p149 = scmp.eq.s32.totalorder %s17, 1
    %p150 = por %p148, %p149
    %p152 = scmp.ne.s32.totalorder %s135, %s151
    %p153 = scmp.eq.s32.totalorder %s17, 0
    %p154 = por %p152, %p153
    %p155 = scmp.le.s32.totalorder 1, %s11
    %p156 = scmp.lt.s32.totalorder %s11, 3
    %p157 = pnand %p155, %p156
    %p158 = pneg %p157
    // Predicated region
    $region9: #{attn_basic_block_forward.1} parent=5 // pred_check
      _
    $region10: #{attn_basic_block_forward.1} parent=5 // pred_check_branch
      %160 = sbr.rel (%p157) target = $region12
    $region11: #{attn_basic_block_forward.1} parent=5 // pred_region
      %s161 = ssub.s32 %s11, 1
      // Predicated region
      $region13: #{attn_basic_block_forward.1} parent=11 // pred_check
        %p162 = pneg %p58
      $region14: #{attn_basic_block_forward.1} parent=11 // pred_check_branch
        %164 = sbr.rel (%p162) target = $region16
      $region15: #{attn_basic_block_forward.1} parent=11 // pred_region
        _
      $region16: #{attn_basic_block_forward.1} parent=11 // pred_fallthru
        _
      // Predicated region
      $region17: #{attn_basic_block_forward.1} parent=11 // pred_check
        %p165 = pneg %p79
      $region18: #{attn_basic_block_forward.1} parent=11 // pred_check_branch
        %167 = sbr.rel (%p165) target = $region20
      $region19: #{attn_basic_block_forward.1} parent=11 // pred_region
        _
      $region20: #{attn_basic_block_forward.1} parent=11 // pred_fallthru
        _
      // Predicated region
      $region21: #{attn_basic_block_forward.1} parent=11 // pred_check
        %p168 = pneg %p100
      $region22: #{attn_basic_block_forward.1} parent=11 // pred_check_branch
        %170 = sbr.rel (%p168) target = $region24
      $region23: #{attn_basic_block_forward.1} parent=11 // pred_region
        _
      $region24: #{attn_basic_block_forward.1} parent=11 // pred_fallthru
        _
      // Predicated region
      $region25: #{attn_basic_block_forward.1} parent=11 // pred_check
        %p171 = pneg %p121
      $region26: #{attn_basic_block_forward.1} parent=11 // pred_check_branch
        %173 = sbr.rel (%p171) target = $region28
      $region27: #{attn_basic_block_forward.1} parent=11 // pred_region
        _
      $region28: #{attn_basic_block_forward.1} parent=11 // pred_fallthru
        _
    $region12: #{attn_basic_block_forward.1} parent=5 // pred_fallthru
      _
    %p174 = scmp.lt.s32.totalorder %s11, 2
    // Predicated region
    $region29: #{attn_basic_block_forward.1} parent=5 // pred_check
      %p175 = pneg %p174
    $region30: #{attn_basic_block_forward.1} parent=5 // pred_check_branch
      %177 = sbr.rel (%p175) target = $region32
    $region31: #{attn_basic_block_forward.1} parent=5 // pred_region
      // Predicated region
      $region33: #{attn_basic_block_forward.1} parent=31 // pred_check
        %p178 = pneg %p31
      $region34: #{attn_basic_block_forward.1} parent=31 // pred_check_branch
        %180 = sbr.rel (%p178) target = $region36
      $region35: #{attn_basic_block_forward.1} parent=31 // pred_region
        %p181 = scmp.lt.s32.totalorder %s11, 1
        %s182 = scalar_select %p181, %s11, 1
        %s183 = smul.addr %s182, 54
        %s184 = smul.addr %s183, 4
        %s185 = scalar_lea.vmem %s0, %s184
      $region36: #{attn_basic_block_forward.1} parent=31 // pred_fallthru
        _
    $region32: #{attn_basic_block_forward.1} parent=5 // pred_fallthru
      _
    %p186 = scmp.le.s32.totalorder 1, %s11
    %p187 = scmp.lt.s32.totalorder %s11, 3
    %p188 = pnand %p186, %p187
    %p189 = pneg %p188
    // Predicated region
    $region37: #{attn_basic_block_forward.1} parent=5 // pred_check
      _
    $region38: #{attn_basic_block_forward.1} parent=5 // pred_check_branch
      %191 = sbr.rel (%p188) target = $region40
    $region39: #{attn_basic_block_forward.1} parent=5 // pred_region
      %s192 = ssub.s32 %s11, 1
      %p193 = scmp.lt.s32.totalorder %s16, 1
      %s194 = scalar_select %p193, %s16, 1
      %s195 = smul.addr %s194, 54
      %s196 = smul.addr %s195, 4
      %s197 = scalar_lea.vmem %s0, %s196
      %p198 = pneg %p37
      %p199 = pneg %p34
      %p200 = pneg %p58
      %p201 = pneg %p55
      %p202 = pneg %p79
      %p203 = pneg %p76
      %p204 = pneg %p100
      %p205 = pneg %p97
      %p206 = pneg %p121
      %p207 = pneg %p118
      %p208 = pneg %p147
      %p209 = pneg %p144
      %p210 = scmp.lt.s32.totalorder %s16, 1
      %s211 = scalar_select %p210, %s16, 1
      %s212 = smul.addr %s211, 32
      %s213 = smul.addr %s212, 8
      %s214 = scalar_lea.vmem %s5, %s213
      %p215 = scmp.lt.s32.totalorder %s16, 1
      %s216 = scalar_select %p215, %s16, 1
      %s217 = smul.addr %s216, 54
      %s218 = smul.addr %s217, 4
      %s219 = scalar_lea.vmem %s0, %s218
      %p220 = scmp.lt.s32.totalorder %s16, 1
      %s221 = scalar_select %p220, %s16, 1
      %s222 = smul.addr %s221, 32
      %s223 = smul.addr %s222, 8
      %s224 = scalar_lea.vmem %s5, %s223
      %v226 = vld [vmem:[%s3] sm:$0x1]
      %v227 = vld [vmem:[%s4] sm:$0x1]
      %v228 = vld [vmem:[%s219] sm:$0xf]
      %v229 = vld [vmem:[%s219 + $0x4] sm:$0xf]
      %v230 = vld [vmem:[%s219 + $0x8] sm:$0x1]
      %v231 = vld [vmem:[%s219 + $0xc] sm:$0xf]
      %v232 = vld [vmem:[%s219 + $0x10] sm:$0xf]
      %v233 = vld [vmem:[%s219 + $0x14] sm:$0x1]
      %v234 = vld [vmem:[%s219 + $0x18] sm:$0xf]
      %v235 = vld [vmem:[%s219 + $0x1c] sm:$0xf]
      %v236 = vld [vmem:[%s219 + $0x20] sm:$0x1]
      %v237 = vld [vmem:[%s219 + $0x24] sm:$0xf]
      %v238 = vld [vmem:[%s219 + $0x28] sm:$0xf]
      %v239 = vld [vmem:[%s219 + $0x2c] sm:$0x1]
      %v240 = vld [vmem:[%s219 + $0x30] sm:$0xf]
      %v241 = vld [vmem:[%s219 + $0x34] sm:$0xf]
      %v242 = vld [vmem:[%s219 + $0x38] sm:$0x1]
      %v243 = vld [vmem:[%s219 + $0x3c] sm:$0xf]
      %v244 = vld [vmem:[%s219 + $0x40] sm:$0xf]
      %v245 = vld [vmem:[%s219 + $0x44] sm:$0x1]
      %v246 = vld [vmem:[%s219 + $0x48] sm:$0xf]
      %v247 = vld [vmem:[%s219 + $0x4c] sm:$0xf]
      %v248 = vld [vmem:[%s219 + $0x50] sm:$0x1]
      %v249 = vld [vmem:[%s219 + $0x54] sm:$0xf]
      %v250 = vld [vmem:[%s219 + $0x58] sm:$0xf]
      %v251 = vld [vmem:[%s219 + $0x5c] sm:$0x1]
      %v252 = vld [vmem:[%s219 + $0x60] sm:$0xf]
      %v253 = vld [vmem:[%s219 + $0x64] sm:$0xf]
      %v254 = vld [vmem:[%s219 + $0x68] sm:$0x1]
      %v255 = vld [vmem:[%s219 + $0x6c] sm:$0xf]
      %v256 = vld [vmem:[%s219 + $0x70] sm:$0xf]
      %v257 = vld [vmem:[%s219 + $0x74] sm:$0x1]
      %v258 = vld [vmem:[%s219 + $0x78] sm:$0xf]
      %v259 = vld [vmem:[%s219 + $0x7c] sm:$0xf]
      %v260 = vld [vmem:[%s219 + $0x80] sm:$0x1]
      %v261 = vld [vmem:[%s219 + $0x84] sm:$0xf]
      %v262 = vld [vmem:[%s219 + $0x88] sm:$0xf]
      %v263 = vld [vmem:[%s219 + $0x8c] sm:$0x1]
      %v264 = vld [vmem:[%s219 + $0x90] sm:$0xf]
      %v265 = vld [vmem:[%s219 + $0x94] sm:$0xf]
      %v266 = vld [vmem:[%s219 + $0x98] sm:$0x1]
      %v267 = vld [vmem:[%s219 + $0x9c] sm:$0xf]
      %v268 = vld [vmem:[%s219 + $0xa0] sm:$0xf]
      %v269 = vld [vmem:[%s219 + $0xa4] sm:$0x1]
      %v270 = vld [vmem:[%s219 + $0xa8] sm:$0xf]
      %v271 = vld [vmem:[%s219 + $0xac] sm:$0xf]
      %v272 = vld [vmem:[%s219 + $0xb0] sm:$0x1]
      %v273 = vld [vmem:[%s219 + $0xb4] sm:$0xf]
      %v274 = vld [vmem:[%s219 + $0xb8] sm:$0xf]
      %v275 = vld [vmem:[%s219 + $0xbc] sm:$0x1]
      %276 = vst [vmem:[#allocation2] sm:$0xf] %v228
      %277 = vst [vmem:[#allocation2 + $0xc] sm:$0xf] %v229
      %278 = vst [vmem:[#allocation2 + $0x18] sm:$0x1] %v230
      %279 = vst [vmem:[#allocation2 + $0x24] sm:$0xf] %v231
      %280 = vst [vmem:[#allocation2 + $0x30] sm:$0xf] %v232
      %281 = vst [vmem:[#allocation2 + $0x3c] sm:$0x1] %v233
      %282 = vst [vmem:[#allocation2 + $0x48] sm:$0xf] %v234
      %283 = vst [vmem:[#allocation2 + $0x54] sm:$0xf] %v235
      %284 = vst [vmem:[#allocation2 + $0x60] sm:$0x1] %v236
      %285 = vst [vmem:[#allocation2 + $0x6c] sm:$0xf] %v237
      %286 = vst [vmem:[#allocation2 + $0x78] sm:$0xf] %v238
      %287 = vst [vmem:[#allocation2 + $0x84] sm:$0x1] %v239
      %288 = vst [vmem:[#allocation2 + $0x90] sm:$0xf] %v240
      %289 = vst [vmem:[#allocation2 + $0x9c] sm:$0xf] %v241
      %290 = vst [vmem:[#allocation2 + $0xa8] sm:$0x1] %v242
      %291 = vst [vmem:[#allocation2 + $0xb4] sm:$0xf] %v243
      %292 = vst [vmem:[#allocation2 + $0xc0] sm:$0xf] %v244
      %293 = vst [vmem:[#allocation2 + $0xcc] sm:$0x1] %v245
      %294 = vst [vmem:[#allocation2 + $0xd8] sm:$0xf] %v246
      %295 = vst [vmem:[#allocation2 + $0xe4] sm:$0xf] %v247
      %296 = vst [vmem:[#allocation2 + $0xf0] sm:$0x1] %v248
      %297 = vst [vmem:[#allocation2 + $0xfc] sm:$0xf] %v249
      %298 = vst [vmem:[#allocation2 + $0x108] sm:$0xf] %v250
      %299 = vst [vmem:[#allocation2 + $0x114] sm:$0x1] %v251
      %300 = vst [vmem:[#allocation2 + $0x120] sm:$0xf] %v252
      %301 = vst [vmem:[#allocation2 + $0x12c] sm:$0xf] %v253
      %302 = vst [vmem:[#allocation2 + $0x138] sm:$0x1] %v254
      %303 = vst [vmem:[#allocation2 + $0x144] sm:$0xf] %v255
      %304 = vst [vmem:[#allocation2 + $0x150] sm:$0xf] %v256
      %305 = vst [vmem:[#allocation2 + $0x15c] sm:$0x1] %v257
      %306 = vst [vmem:[#allocation2 + $0x168] sm:$0xf] %v258
      %307 = vst [vmem:[#allocation2 + $0x174] sm:$0xf] %v259
      %308 = vst [vmem:[#allocation2 + $0x180] sm:$0x1] %v260
      %309 = vst [vmem:[#allocation2 + $0x18c] sm:$0xf] %v261
      %310 = vst [vmem:[#allocation2 + $0x198] sm:$0xf] %v262
      %311 = vst [vmem:[#allocation2 + $0x1a4] sm:$0x1] %v263
      %312 = vst [vmem:[#allocation2 + $0x1b0] sm:$0xf] %v264
      %313 = vst [vmem:[#allocation2 + $0x1bc] sm:$0xf] %v265
      %314 = vst [vmem:[#allocation2 + $0x1c8] sm:$0x1] %v266
      %315 = vst [vmem:[#allocation2 + $0x1d4] sm:$0xf] %v267
      %316 = vst [vmem:[#allocation2 + $0x1e0] sm:$0xf] %v268
      %317 = vst [vmem:[#allocation2 + $0x1ec] sm:$0x1] %v269
      %318 = vst [vmem:[#allocation2 + $0x1f8] sm:$0xf] %v270
      %319 = vst [vmem:[#allocation2 + $0x204] sm:$0xf] %v271
      %320 = vst [vmem:[#allocation2 + $0x210] sm:$0x1] %v272
      %321 = vst [vmem:[#allocation2 + $0x21c] sm:$0xf] %v273
      %322 = vst [vmem:[#allocation2 + $0x228] sm:$0xf] %v274
      %323 = vst [vmem:[#allocation2 + $0x234] sm:$0x1] %v275
      %s324 = scalar_lea.vmem %s219, 12
      %v325 = vld [vmem:[%s324] sm:$0xf]
      %v326 = vld [vmem:[%s324 + $0x4] sm:$0xf]
      %v327 = vld [vmem:[%s324 + $0x8] sm:$0x1]
      %v328 = vld [vmem:[%s324 + $0xc] sm:$0xf]
      %v329 = vld [vmem:[%s324 + $0x10] sm:$0xf]
      %v330 = vld [vmem:[%s324 + $0x14] sm:$0x1]
      %v331 = vld [vmem:[%s324 + $0x18] sm:$0xf]
      %v332 = vld [vmem:[%s324 + $0x1c] sm:$0xf]
      %v333 = vld [vmem:[%s324 + $0x20] sm:$0x1]
      %v334 = vld [vmem:[%s324 + $0x24] sm:$0xf]
      %v335 = vld [vmem:[%s324 + $0x28] sm:$0xf]
      %v336 = vld [vmem:[%s324 + $0x2c] sm:$0x1]
      %v337 = vld [vmem:[%s324 + $0x30] sm:$0xf]
      %v338 = vld [vmem:[%s324 + $0x34] sm:$0xf]
      %v339 = vld [vmem:[%s324 + $0x38] sm:$0x1]
      %v340 = vld [vmem:[%s324 + $0x3c] sm:$0xf]
      %v341 = vld [vmem:[%s324 + $0x40] sm:$0xf]
      %v342 = vld [vmem:[%s324 + $0x44] sm:$0x1]
      %v343 = vld [vmem:[%s324 + $0x48] sm:$0xf]
      %v344 = vld [vmem:[%s324 + $0x4c] sm:$0xf]
      %v345 = vld [vmem:[%s324 + $0x50] sm:$0x1]
      %v346 = vld [vmem:[%s324 + $0x54] sm:$0xf]
      %v347 = vld [vmem:[%s324 + $0x58] sm:$0xf]
      %v348 = vld [vmem:[%s324 + $0x5c] sm:$0x1]
      %v349 = vld [vmem:[%s324 + $0x60] sm:$0xf]
      %v350 = vld [vmem:[%s324 + $0x64] sm:$0xf]
      %v351 = vld [vmem:[%s324 + $0x68] sm:$0x1]
      %v352 = vld [vmem:[%s324 + $0x6c] sm:$0xf]
      %v353 = vld [vmem:[%s324 + $0x70] sm:$0xf]
      %v354 = vld [vmem:[%s324 + $0x74] sm:$0x1]
      %v355 = vld [vmem:[%s324 + $0x78] sm:$0xf]
      %v356 = vld [vmem:[%s324 + $0x7c] sm:$0xf]
      %v357 = vld [vmem:[%s324 + $0x80] sm:$0x1]
      %v358 = vld [vmem:[%s324 + $0x84] sm:$0xf]
      %v359 = vld [vmem:[%s324 + $0x88] sm:$0xf]
      %v360 = vld [vmem:[%s324 + $0x8c] sm:$0x1]
      %v361 = vld [vmem:[%s324 + $0x90] sm:$0xf]
      %v362 = vld [vmem:[%s324 + $0x94] sm:$0xf]
      %v363 = vld [vmem:[%s324 + $0x98] sm:$0x1]
      %v364 = vld [vmem:[%s324 + $0x9c] sm:$0xf]
      %v365 = vld [vmem:[%s324 + $0xa0] sm:$0xf]
      %v366 = vld [vmem:[%s324 + $0xa4] sm:$0x1]
      %v367 = vld [vmem:[%s324 + $0xa8] sm:$0xf]
      %v368 = vld [vmem:[%s324 + $0xac] sm:$0xf]
      %v369 = vld [vmem:[%s324 + $0xb0] sm:$0x1]
      %v370 = vld [vmem:[%s324 + $0xb4] sm:$0xf]
      %v371 = vld [vmem:[%s324 + $0xb8] sm:$0xf]
      %v372 = vld [vmem:[%s324 + $0xbc] sm:$0x1]
      %373 = vst [vmem:[#allocation2 + $0x4] sm:$0xf] %v325
      %374 = vst [vmem:[#allocation2 + $0x10] sm:$0xf] %v326
      %375 = vst [vmem:[#allocation2 + $0x1c] sm:$0x1] %v327
      %376 = vst [vmem:[#allocation2 + $0x28] sm:$0xf] %v328
      %377 = vst [vmem:[#allocation2 + $0x34] sm:$0xf] %v329
      %378 = vst [vmem:[#allocation2 + $0x40] sm:$0x1] %v330
      %379 = vst [vmem:[#allocation2 + $0x4c] sm:$0xf] %v331
      %380 = vst [vmem:[#allocation2 + $0x58] sm:$0xf] %v332
      %381 = vst [vmem:[#allocation2 + $0x64] sm:$0x1] %v333
      %382 = vst [vmem:[#allocation2 + $0x70] sm:$0xf] %v334
      %383 = vst [vmem:[#allocation2 + $0x7c] sm:$0xf] %v335
      %384 = vst [vmem:[#allocation2 + $0x88] sm:$0x1] %v336
      %385 = vst [vmem:[#allocation2 + $0x94] sm:$0xf] %v337
      %386 = vst [vmem:[#allocation2 + $0xa0] sm:$0xf] %v338
      %387 = vst [vmem:[#allocation2 + $0xac] sm:$0x1] %v339
      %388 = vst [vmem:[#allocation2 + $0xb8] sm:$0xf] %v340
      %389 = vst [vmem:[#allocation2 + $0xc4] sm:$0xf] %v341
      %390 = vst [vmem:[#allocation2 + $0xd0] sm:$0x1] %v342
      %391 = vst [vmem:[#allocation2 + $0xdc] sm:$0xf] %v343
      %392 = vst [vmem:[#allocation2 + $0xe8] sm:$0xf] %v344
      %393 = vst [vmem:[#allocation2 + $0xf4] sm:$0x1] %v345
      %394 = vst [vmem:[#allocation2 + $0x100] sm:$0xf] %v346
      %395 = vst [vmem:[#allocation2 + $0x10c] sm:$0xf] %v347
      %396 = vst [vmem:[#allocation2 + $0x118] sm:$0x1] %v348
      %397 = vst [vmem:[#allocation2 + $0x124] sm:$0xf] %v349
      %398 = vst [vmem:[#allocation2 + $0x130] sm:$0xf] %v350
      %399 = vst [vmem:[#allocation2 + $0x13c] sm:$0x1] %v351
      %400 = vst [vmem:[#allocation2 + $0x148] sm:$0xf] %v352
      %401 = vst [vmem:[#allocation2 + $0x154] sm:$0xf] %v353
      %402 = vst [vmem:[#allocation2 + $0x160] sm:$0x1] %v354
      %403 = vst [vmem:[#allocation2 + $0x16c] sm:$0xf] %v355
      %404 = vst [vmem:[#allocation2 + $0x178] sm:$0xf] %v356
      %405 = vst [vmem:[#allocation2 + $0x184] sm:$0x1] %v357
      %406 = vst [vmem:[#allocation2 + $0x190] sm:$0xf] %v358
      %407 = vst [vmem:[#allocation2 + $0x19c] sm:$0xf] %v359
      %408 = vst [vmem:[#allocation2 + $0x1a8] sm:$0x1] %v360
      %409 = vst [vmem:[#allocation2 + $0x1b4] sm:$0xf] %v361
      %410 = vst [vmem:[#allocation2 + $0x1c0] sm:$0xf] %v362
      %411 = vst [vmem:[#allocation2 + $0x1cc] sm:$0x1] %v363
      %412 = vst [vmem:[#allocation2 + $0x1d8] sm:$0xf] %v364
      %413 = vst [vmem:[#allocation2 + $0x1e4] sm:$0xf] %v365
      %414 = vst [vmem:[#allocation2 + $0x1f0] sm:$0x1] %v366
      %415 = vst [vmem:[#allocation2 + $0x1fc] sm:$0xf] %v367
      %416 = vst [vmem:[#allocation2 + $0x208] sm:$0xf] %v368
      %417 = vst [vmem:[#allocation2 + $0x214] sm:$0x1] %v369
      %418 = vst [vmem:[#allocation2 + $0x220] sm:$0xf] %v370
      %419 = vst [vmem:[#allocation2 + $0x22c] sm:$0xf] %v371
      %420 = vst [vmem:[#allocation2 + $0x238] sm:$0x1] %v372
      %s421 = scalar_lea.vmem %s219, 24
      %v422 = vld [vmem:[%s421] sm:$0xf]
      %v423 = vld [vmem:[%s421 + $0x4] sm:$0xf]
      %v424 = vld [vmem:[%s421 + $0x8] sm:$0x1]
      %v425 = vld [vmem:[%s421 + $0xc] sm:$0xf]
      %v426 = vld [vmem:[%s421 + $0x10] sm:$0xf]
      %v427 = vld [vmem:[%s421 + $0x14] sm:$0x1]
      %v428 = vld [vmem:[%s421 + $0x18] sm:$0xf]
      %v429 = vld [vmem:[%s421 + $0x1c] sm:$0xf]
      %v430 = vld [vmem:[%s421 + $0x20] sm:$0x1]
      %v431 = vld [vmem:[%s421 + $0x24] sm:$0xf]
      %v432 = vld [vmem:[%s421 + $0x28] sm:$0xf]
      %v433 = vld [vmem:[%s421 + $0x2c] sm:$0x1]
      %v434 = vld [vmem:[%s421 + $0x30] sm:$0xf]
      %v435 = vld [vmem:[%s421 + $0x34] sm:$0xf]
      %v436 = vld [vmem:[%s421 + $0x38] sm:$0x1]
      %v437 = vld [vmem:[%s421 + $0x3c] sm:$0xf]
      %v438 = vld [vmem:[%s421 + $0x40] sm:$0xf]
      %v439 = vld [vmem:[%s421 + $0x44] sm:$0x1]
      %v440 = vld [vmem:[%s421 + $0x48] sm:$0xf]
      %v441 = vld [vmem:[%s421 + $0x4c] sm:$0xf]
      %v442 = vld [vmem:[%s421 + $0x50] sm:$0x1]
      %v443 = vld [vmem:[%s421 + $0x54] sm:$0xf]
      %v444 = vld [vmem:[%s421 + $0x58] sm:$0xf]
      %v445 = vld [vmem:[%s421 + $0x5c] sm:$0x1]
      %v446 = vld [vmem:[%s421 + $0x60] sm:$0xf]
      %v447 = vld [vmem:[%s421 + $0x64] sm:$0xf]
      %v448 = vld [vmem:[%s421 + $0x68] sm:$0x1]
      %v449 = vld [vmem:[%s421 + $0x6c] sm:$0xf]
      %v450 = vld [vmem:[%s421 + $0x70] sm:$0xf]
      %v451 = vld [vmem:[%s421 + $0x74] sm:$0x1]
      %v452 = vld [vmem:[%s421 + $0x78] sm:$0xf]
      %v453 = vld [vmem:[%s421 + $0x7c] sm:$0xf]
      %v454 = vld [vmem:[%s421 + $0x80] sm:$0x1]
      %v455 = vld [vmem:[%s421 + $0x84] sm:$0xf]
      %v456 = vld [vmem:[%s421 + $0x88] sm:$0xf]
      %v457 = vld [vmem:[%s421 + $0x8c] sm:$0x1]
      %v458 = vld [vmem:[%s421 + $0x90] sm:$0xf]
      %v459 = vld [vmem:[%s421 + $0x94] sm:$0xf]
      %v460 = vld [vmem:[%s421 + $0x98] sm:$0x1]
      %v461 = vld [vmem:[%s421 + $0x9c] sm:$0xf]
      %v462 = vld [vmem:[%s421 + $0xa0] sm:$0xf]
      %v463 = vld [vmem:[%s421 + $0xa4] sm:$0x1]
      %v464 = vld [vmem:[%s421 + $0xa8] sm:$0xf]
      %v465 = vld [vmem:[%s421 + $0xac] sm:$0xf]
      %v466 = vld [vmem:[%s421 + $0xb0] sm:$0x1]
      %v467 = vld [vmem:[%s421 + $0xb4] sm:$0xf]
      %v468 = vld [vmem:[%s421 + $0xb8] sm:$0xf]
      %v469 = vld [vmem:[%s421 + $0xbc] sm:$0x1]
      %470 = vst [vmem:[#allocation2 + $0x8] sm:$0xf] %v422
      %471 = vst [vmem:[#allocation2 + $0x14] sm:$0xf] %v423
      %472 = vst [vmem:[#allocation2 + $0x20] sm:$0x1] %v424
      %473 = vst [vmem:[#allocation2 + $0x2c] sm:$0xf] %v425
      %474 = vst [vmem:[#allocation2 + $0x38] sm:$0xf] %v426
      %475 = vst [vmem:[#allocation2 + $0x44] sm:$0x1] %v427
      %476 = vst [vmem:[#allocation2 + $0x50] sm:$0xf] %v428
      %477 = vst [vmem:[#allocation2 + $0x5c] sm:$0xf] %v429
      %478 = vst [vmem:[#allocation2 + $0x68] sm:$0x1] %v430
      %479 = vst [vmem:[#allocation2 + $0x74] sm:$0xf] %v431
      %480 = vst [vmem:[#allocation2 + $0x80] sm:$0xf] %v432
      %481 = vst [vmem:[#allocation2 + $0x8c] sm:$0x1] %v433
      %482 = vst [vmem:[#allocation2 + $0x98] sm:$0xf] %v434
      %483 = vst [vmem:[#allocation2 + $0xa4] sm:$0xf] %v435
      %484 = vst [vmem:[#allocation2 + $0xb0] sm:$0x1] %v436
      %485 = vst [vmem:[#allocation2 + $0xbc] sm:$0xf] %v437
      %486 = vst [vmem:[#allocation2 + $0xc8] sm:$0xf] %v438
      %487 = vst [vmem:[#allocation2 + $0xd4] sm:$0x1] %v439
      %488 = vst [vmem:[#allocation2 + $0xe0] sm:$0xf] %v440
      %489 = vst [vmem:[#allocation2 + $0xec] sm:$0xf] %v441
      %490 = vst [vmem:[#allocation2 + $0xf8] sm:$0x1] %v442
      %491 = vst [vmem:[#allocation2 + $0x104] sm:$0xf] %v443
      %492 = vst [vmem:[#allocation2 + $0x110] sm:$0xf] %v444
      %493 = vst [vmem:[#allocation2 + $0x11c] sm:$0x1] %v445
      %494 = vst [vmem:[#allocation2 + $0x128] sm:$0xf] %v446
      %495 = vst [vmem:[#allocation2 + $0x134] sm:$0xf] %v447
      %496 = vst [vmem:[#allocation2 + $0x140] sm:$0x1] %v448
      %497 = vst [vmem:[#allocation2 + $0x14c] sm:$0xf] %v449
      %498 = vst [vmem:[#allocation2 + $0x158] sm:$0xf] %v450
      %499 = vst [vmem:[#allocation2 + $0x164] sm:$0x1] %v451
      %500 = vst [vmem:[#allocation2 + $0x170] sm:$0xf] %v452
      %501 = vst [vmem:[#allocation2 + $0x17c] sm:$0xf] %v453
      %502 = vst [vmem:[#allocation2 + $0x188] sm:$0x1] %v454
      %503 = vst [vmem:[#allocation2 + $0x194] sm:$0xf] %v455
      %504 = vst [vmem:[#allocation2 + $0x1a0] sm:$0xf] %v456
      %505 = vst [vmem:[#allocation2 + $0x1ac] sm:$0x1] %v457
      %506 = vst [vmem:[#allocation2 + $0x1b8] sm:$0xf] %v458
      %507 = vst [vmem:[#allocation2 + $0x1c4] sm:$0xf] %v459
      %508 = vst [vmem:[#allocation2 + $0x1d0] sm:$0x1] %v460
      %509 = vst [vmem:[#allocation2 + $0x1dc] sm:$0xf] %v461
      %510 = vst [vmem:[#allocation2 + $0x1e8] sm:$0xf] %v462
      %511 = vst [vmem:[#allocation2 + $0x1f4] sm:$0x1] %v463
      %512 = vst [vmem:[#allocation2 + $0x200] sm:$0xf] %v464
      %513 = vst [vmem:[#allocation2 + $0x20c] sm:$0xf] %v465
      %514 = vst [vmem:[#allocation2 + $0x218] sm:$0x1] %v466
      %515 = vst [vmem:[#allocation2 + $0x224] sm:$0xf] %v467
      %516 = vst [vmem:[#allocation2 + $0x230] sm:$0xf] %v468
      %517 = vst [vmem:[#allocation2 + $0x23c] sm:$0x1] %v469
      %518 = vst [vmem:[#allocation3] sm:$0xf] 0
      %519 = vst [vmem:[#allocation3 + $0x4] sm:$0xf] 0
      %520 = vst [vmem:[#allocation3 + $0x8] sm:$0x1] 0
      %s521 = scalar_lea.vmem [#allocation3], 204
      %522 = vst [vmem:[%s521] sm:$0xf] 0
      %523 = vst [vmem:[%s521 + $0x4] sm:$0xf] 0
      %524 = vst [vmem:[%s521 + $0x8] sm:$0x1] 0
      %vm525 = vcmask 1040384
      %vm526 = vsmask.f32 256
      %vm527 = vmand %vm525, %vm526
      %v528 = vld [vmem:[#allocation3] sm:$0x1]
      %v529 = vsel %vm527, 0, %v528
      %530 = vst [vmem:[#allocation3] sm:$0x1] %v529
      %v531 = vld [vmem:[#allocation3 + $0xc] sm:$0x1]
      %v532 = vsel %vm527, 0, %v531
      %533 = vst [vmem:[#allocation3 + $0xc] sm:$0x1] %v532
      %v534 = vld [vmem:[#allocation3 + $0x18] sm:$0x1]
      %v535 = vsel %vm527, 0, %v534
      %536 = vst [vmem:[#allocation3 + $0x18] sm:$0x1] %v535
      %v537 = vld [vmem:[#allocation3 + $0x24] sm:$0x1]
      %v538 = vsel %vm527, 0, %v537
      %539 = vst [vmem:[#allocation3 + $0x24] sm:$0x1] %v538
      %v540 = vld [vmem:[#allocation3 + $0x30] sm:$0x1]
      %v541 = vsel %vm527, 0, %v540
      %542 = vst [vmem:[#allocation3 + $0x30] sm:$0x1] %v541
      %v543 = vld [vmem:[#allocation3 + $0x3c] sm:$0x1]
      %v544 = vsel %vm527, 0, %v543
      %545 = vst [vmem:[#allocation3 + $0x3c] sm:$0x1] %v544
      %v546 = vld [vmem:[#allocation3 + $0x48] sm:$0x1]
      %v547 = vsel %vm527, 0, %v546
      %548 = vst [vmem:[#allocation3 + $0x48] sm:$0x1] %v547
      %v549 = vld [vmem:[#allocation3 + $0x54] sm:$0x1]
      %v550 = vsel %vm527, 0, %v549
      %551 = vst [vmem:[#allocation3 + $0x54] sm:$0x1] %v550
      %v552 = vld [vmem:[#allocation3 + $0x60] sm:$0x1]
      %v553 = vsel %vm527, 0, %v552
      %554 = vst [vmem:[#allocation3 + $0x60] sm:$0x1] %v553
      %v555 = vld [vmem:[#allocation3 + $0x6c] sm:$0x1]
      %v556 = vsel %vm527, 0, %v555
      %557 = vst [vmem:[#allocation3 + $0x6c] sm:$0x1] %v556
      %v558 = vld [vmem:[#allocation3 + $0x78] sm:$0x1]
      %v559 = vsel %vm527, 0, %v558
      %560 = vst [vmem:[#allocation3 + $0x78] sm:$0x1] %v559
      %v561 = vld [vmem:[#allocation3 + $0x84] sm:$0x1]
      %v562 = vsel %vm527, 0, %v561
      %563 = vst [vmem:[#allocation3 + $0x84] sm:$0x1] %v562
      %v564 = vld [vmem:[#allocation3 + $0x90] sm:$0x1]
      %v565 = vsel %vm527, 0, %v564
      %566 = vst [vmem:[#allocation3 + $0x90] sm:$0x1] %v565
      %v567 = vld [vmem:[#allocation3 + $0x9c] sm:$0x1]
      %v568 = vsel %vm527, 0, %v567
      %569 = vst [vmem:[#allocation3 + $0x9c] sm:$0x1] %v568
      %v570 = vld [vmem:[#allocation3 + $0xa8] sm:$0x1]
      %v571 = vsel %vm527, 0, %v570
      %572 = vst [vmem:[#allocation3 + $0xa8] sm:$0x1] %v571
      %v573 = vld [vmem:[#allocation3 + $0xb4] sm:$0x1]
      %v574 = vsel %vm527, 0, %v573
      %575 = vst [vmem:[#allocation3 + $0xb4] sm:$0x1] %v574
      %v576 = vld [vmem:[#allocation3 + $0xc0] sm:$0x1]
      %v577 = vsel %vm527, 0, %v576
      %578 = vst [vmem:[#allocation3 + $0xc0] sm:$0x1] %v577
      %v579 = vld [vmem:[#allocation3 + $0xcc] sm:$0x1]
      %v580 = vsel %vm527, 0, %v579
      %581 = vst [vmem:[#allocation3 + $0xcc] sm:$0x1] %v580
      %vm582 = vsmask.f32 7938
      %vm583 = vmand %vm525, %vm582
      %v584 = vld [vmem:[#allocation3 + $0x8] sm:$0x1]
      %v585 = vsel %vm583, 0, %v584
      %586 = vst [vmem:[#allocation3 + $0x8] sm:$0x1] %v585
      %v587 = vld [vmem:[#allocation3 + $0x14] sm:$0x1]
      %v588 = vsel %vm583, 0, %v587
      %589 = vst [vmem:[#allocation3 + $0x14] sm:$0x1] %v588
      %v590 = vld [vmem:[#allocation3 + $0x20] sm:$0x1]
      %v591 = vsel %vm583, 0, %v590
      %592 = vst [vmem:[#allocation3 + $0x20] sm:$0x1] %v591
      %v593 = vld [vmem:[#allocation3 + $0x2c] sm:$0x1]
      %v594 = vsel %vm583, 0, %v593
      %595 = vst [vmem:[#allocation3 + $0x2c] sm:$0x1] %v594
      %v596 = vld [vmem:[#allocation3 + $0x38] sm:$0x1]
      %v597 = vsel %vm583, 0, %v596
      %598 = vst [vmem:[#allocation3 + $0x38] sm:$0x1] %v597
      %v599 = vld [vmem:[#allocation3 + $0x44] sm:$0x1]
      %v600 = vsel %vm583, 0, %v599
      %601 = vst [vmem:[#allocation3 + $0x44] sm:$0x1] %v600
      %v602 = vld [vmem:[#allocation3 + $0x50] sm:$0x1]
      %v603 = vsel %vm583, 0, %v602
      %604 = vst [vmem:[#allocation3 + $0x50] sm:$0x1] %v603
      %v605 = vld [vmem:[#allocation3 + $0x5c] sm:$0x1]
      %v606 = vsel %vm583, 0, %v605
      %607 = vst [vmem:[#allocation3 + $0x5c] sm:$0x1] %v606
      %v608 = vld [vmem:[#allocation3 + $0x68] sm:$0x1]
      %v609 = vsel %vm583, 0, %v608
      %610 = vst [vmem:[#allocation3 + $0x68] sm:$0x1] %v609
      %v611 = vld [vmem:[#allocation3 + $0x74] sm:$0x1]
      %v612 = vsel %vm583, 0, %v611
      %613 = vst [vmem:[#allocation3 + $0x74] sm:$0x1] %v612
      %v614 = vld [vmem:[#allocation3 + $0x80] sm:$0x1]
      %v615 = vsel %vm583, 0, %v614
      %616 = vst [vmem:[#allocation3 + $0x80] sm:$0x1] %v615
      %v617 = vld [vmem:[#allocation3 + $0x8c] sm:$0x1]
      %v618 = vsel %vm583, 0, %v617
      %619 = vst [vmem:[#allocation3 + $0x8c] sm:$0x1] %v618
      %v620 = vld [vmem:[#allocation3 + $0x98] sm:$0x1]
      %v621 = vsel %vm583, 0, %v620
      %622 = vst [vmem:[#allocation3 + $0x98] sm:$0x1] %v621
      %v623 = vld [vmem:[#allocation3 + $0xa4] sm:$0x1]
      %v624 = vsel %vm583, 0, %v623
      %625 = vst [vmem:[#allocation3 + $0xa4] sm:$0x1] %v624
      %v626 = vld [vmem:[#allocation3 + $0xb0] sm:$0x1]
      %v627 = vsel %vm583, 0, %v626
      %628 = vst [vmem:[#allocation3 + $0xb0] sm:$0x1] %v627
      %v629 = vld [vmem:[#allocation3 + $0xbc] sm:$0x1]
      %v630 = vsel %vm583, 0, %v629
      %631 = vst [vmem:[#allocation3 + $0xbc] sm:$0x1] %v630
      %v632 = vld [vmem:[#allocation3 + $0xc8] sm:$0x1]
      %v633 = vsel %vm583, 0, %v632
      %634 = vst [vmem:[#allocation3 + $0xc8] sm:$0x1] %v633
      %v635 = vld [vmem:[#allocation3 + $0xd4] sm:$0x1]
      %v636 = vsel %vm583, 0, %v635
      %637 = vst [vmem:[#allocation3 + $0xd4] sm:$0x1] %v636
      %v638 = vld [vmem:[#allocation2] sm:$0xff]
      %v639 = vld [vmem:[#allocation2 + $0x8] sm:$0xf]
      %v640 = vld [vmem:[#allocation2 + $0xc] sm:$0xff]
      %v641 = vld [vmem:[#allocation2 + $0x14] sm:$0xf]
      %v642 = vld [vmem:[#allocation2 + $0x24] sm:$0xff]
      %v643 = vld [vmem:[#allocation2 + $0x2c] sm:$0xf]
      %v644 = vld [vmem:[#allocation2 + $0x30] sm:$0xff]
      %v645 = vld [vmem:[#allocation2 + $0x38] sm:$0xf]
      %v646 = vld [vmem:[#allocation2 + $0x48] sm:$0xff]
      %v647 = vld [vmem:[#allocation2 + $0x50] sm:$0xf]
      %v648 = vld [vmem:[#allocation2 + $0x54] sm:$0xff]
      %v649 = vld [vmem:[#allocation2 + $0x5c] sm:$0xf]
      %v650 = vld [vmem:[#allocation2 + $0x6c] sm:$0xff]
      %v651 = vld [vmem:[#allocation2 + $0x74] sm:$0xf]
      %v652 = vld [vmem:[#allocation2 + $0x78] sm:$0xff]
      %v653 = vld [vmem:[#allocation2 + $0x80] sm:$0xf]
      %v654 = vld [vmem:[#allocation2 + $0x90] sm:$0xff]
      %v655 = vld [vmem:[#allocation2 + $0x98] sm:$0xf]
      %v656 = vld [vmem:[#allocation2 + $0x9c] sm:$0xff]
      %v657 = vld [vmem:[#allocation2 + $0xa4] sm:$0xf]
      %v658 = vld [vmem:[#allocation2 + $0xb4] sm:$0xff]
      %v659 = vld [vmem:[#allocation2 + $0xbc] sm:$0xf]
      %v660 = vld [vmem:[#allocation2 + $0xc0] sm:$0xff]
      %v661 = vld [vmem:[#allocation2 + $0xc8] sm:$0xf]
      %v662 = vld [vmem:[#allocation2 + $0xd8] sm:$0xff]
      %v663 = vld [vmem:[#allocation2 + $0xe0] sm:$0xf]
      %v664 = vld [vmem:[#allocation2 + $0xe4] sm:$0xff]
      %v665 = vld [vmem:[#allocation2 + $0xec] sm:$0xf]
      %v666 = vld [vmem:[#allocation2 + $0xfc] sm:$0xff]
      %v667 = vld [vmem:[#allocation2 + $0x104] sm:$0xf]
      %v668 = vld [vmem:[#allocation2 + $0x108] sm:$0xff]
      %v669 = vld [vmem:[#allocation2 + $0x110] sm:$0xf]
      %v670 = vld [vmem:[%s1] sm:$0xf]
      %v671 = vld [vmem:[%s1 + $0x4] sm:$0xf]
      %v672 = vld [vmem:[%s1 + $0x8] sm:$0xf]
      %v673 = vld [vmem:[%s1 + $0xc] sm:$0xf]
      %v674 = vld [vmem:[%s1 + $0x10] sm:$0xf]
      %v675 = vld [vmem:[%s1 + $0x14] sm:$0xf]
      %v676 = vld [vmem:[%s1 + $0x18] sm:$0xf]
      %v677 = vld [vmem:[%s1 + $0x1c] sm:$0xf]
      %v678 = vld [vmem:[%s1 + $0x20] sm:$0xf]
      %v679 = vld [vmem:[%s1 + $0x24] sm:$0xf]
      %v680 = vld [vmem:[%s1 + $0x28] sm:$0xf]
      %v681 = vld [vmem:[%s1 + $0x2c] sm:$0xf]
      %v682 = vld [vmem:[%s1 + $0x30] sm:$0xf]
      %v683 = vld [vmem:[%s1 + $0x34] sm:$0xf]
      %v684 = vld [vmem:[%s1 + $0x38] sm:$0xf]
      %v685 = vld [vmem:[%s1 + $0x3c] sm:$0xf]
      %v686 = vld [vmem:[%s1 + $0x40] sm:$0xf]
      %v687 = vld [vmem:[%s1 + $0x44] sm:$0xf]
      %v688 = vld [vmem:[%s1 + $0x48] sm:$0xf]
      %v689 = vld [vmem:[%s1 + $0x4c] sm:$0xf]
      %v690 = vld [vmem:[%s1 + $0x50] sm:$0xf]
      %v691 = vld [vmem:[%s1 + $0x54] sm:$0xf]
      %v692 = vld [vmem:[%s1 + $0x58] sm:$0xf]
      %v693 = vld [vmem:[%s1 + $0x5c] sm:$0xf]
      %v694 = vld [vmem:[%s1 + $0x60] sm:$0xf]
      %v695 = vld [vmem:[%s1 + $0x64] sm:$0xf]
      %v696 = vld [vmem:[%s1 + $0x68] sm:$0xf]
      %v697 = vld [vmem:[%s1 + $0x6c] sm:$0xf]
      %v698 = vld [vmem:[%s1 + $0x70] sm:$0xf]
      %v699 = vld [vmem:[%s1 + $0x74] sm:$0xf]
      %v700 = vld [vmem:[%s1 + $0x78] sm:$0xf]
      %v701 = vld [vmem:[%s1 + $0x7c] sm:$0xf]
      %v702 = vld [vmem:[%s1 + $0x80] sm:$0xf]
      %v703 = vld [vmem:[%s1 + $0x84] sm:$0xf]
      %v704 = vld [vmem:[%s1 + $0x88] sm:$0xf]
      %v705 = vld [vmem:[%s1 + $0x8c] sm:$0xf]
      %v706 = vld [vmem:[%s1 + $0x90] sm:$0xf]
      %v707 = vld [vmem:[%s1 + $0x94] sm:$0xf]
      %v708 = vld [vmem:[%s1 + $0x98] sm:$0xf]
      %v709 = vld [vmem:[%s1 + $0x9c] sm:$0xf]
      %v710 = vld [vmem:[%s1 + $0xa0] sm:$0xf]
      %v711 = vld [vmem:[%s1 + $0xa4] sm:$0xf]
      %v712 = vld [vmem:[%s1 + $0xa8] sm:$0xf]
      %v713 = vld [vmem:[%s1 + $0xac] sm:$0xf]
      %v714 = vld [vmem:[%s1 + $0xb0] sm:$0xf]
      %v715 = vld [vmem:[%s1 + $0xb4] sm:$0xf]
      %v716 = vld [vmem:[%s1 + $0xb8] sm:$0xf]
      %v717 = vld [vmem:[%s1 + $0xbc] sm:$0xf]
      %v718 = vld [vmem:[#allocation2 + $0x18] sm:$0x11]
      %v719 = vld [vmem:[#allocation2 + $0x20] sm:$0x1]
      %v720 = vld [vmem:[#allocation2 + $0x3c] sm:$0x11]
      %v721 = vld [vmem:[#allocation2 + $0x44] sm:$0x1]
      %v722 = vld [vmem:[#allocation2 + $0x60] sm:$0x11]
      %v723 = vld [vmem:[#allocation2 + $0x68] sm:$0x1]
      %v724 = vld [vmem:[#allocation2 + $0x84] sm:$0x11]
      %v725 = vld [vmem:[#allocation2 + $0x8c] sm:$0x1]
      %v726 = vld [vmem:[#allocation2 + $0xa8] sm:$0x11]
      %v727 = vld [vmem:[#allocation2 + $0xb0] sm:$0x1]
      %v728 = vld [vmem:[#allocation2 + $0xcc] sm:$0x11]
      %v729 = vld [vmem:[#allocation2 + $0xd4] sm:$0x1]
      %v730 = vld [vmem:[#allocation2 + $0xf0] sm:$0x11]
      %v731 = vld [vmem:[#allocation2 + $0xf8] sm:$0x1]
      %v732 = vld [vmem:[#allocation2 + $0x114] sm:$0x11]
      %v733 = vld [vmem:[#allocation2 + $0x11c] sm:$0x1]
      %vm734 = vsmask.f32 3328
      %vm735 = vsmask.f32 7440
      %vm736 = vmor %vm734, %vm735
      %v738 = vshrl.u32 %v638, 16
      %v740 = vrot.slane %v738, 4
      %v741 = vshll.u32 %v638, 16
      %v743 = vrot.slane %v741, 5
      %v744 = vor.u32 %v740, %v743
      %v745 = vrot.slane %v744, 4
      %v747 = vshll.u32 %v640, 16
      %v749 = vrot.slane %v747, 5
      %v750 = vsel %vm736, %v745, %v749
      %v752 = vshrl.u32 %v639, 16
      %v754 = vrot.slane %v752, 4
      %v755 = vshll.u32 %v639, 16
      %v757 = vrot.slane %v755, 5
      %v758 = vor.u32 %v754, %v757
      %v759 = vrot.slane %v758, 4
      %v761 = vshll.u32 %v641, 16
      %v763 = vrot.slane %v761, 5
      %v764 = vsel %vm736, %v759, %v763
      %v765 = vshrl.u32 %v640, 16
      %v767 = vrot.slane %v765, 4
      %v768 = vor.u32 %v767, %v749
      %v769 = vrot.slane %v768, 4
      %v771 = vshll.u32 %v718, 16
      %v773 = vrot.slane %v771, 5
      %v774 = vsel %vm736, %v769, %v773
      %v775 = vshrl.u32 %v641, 16
      %v777 = vrot.slane %v775, 4
      %v778 = vor.u32 %v777, %v763
      %v779 = vrot.slane %v778, 4
      %v781 = vshll.u32 %v719, 16
      %v783 = vrot.slane %v781, 5
      %v784 = vsel %vm736, %v779, %v783
      %v786 = vshrl.u32 %v642, 16
      %v788 = vrot.slane %v786, 4
      %v789 = vshll.u32 %v642, 16
      %v791 = vrot.slane %v789, 5
      %v792 = vor.u32 %v788, %v791
      %v793 = vrot.slane %v792, 4
      %v795 = vshll.u32 %v644, 16
      %v797 = vrot.slane %v795, 5
      %v798 = vsel %vm736, %v793, %v797
      %v800 = vshrl.u32 %v643, 16
      %v802 = vrot.slane %v800, 4
      %v803 = vshll.u32 %v643, 16
      %v805 = vrot.slane %v803, 5
      %v806 = vor.u32 %v802, %v805
      %v807 = vrot.slane %v806, 4
      %v809 = vshll.u32 %v645, 16
      %v811 = vrot.slane %v809, 5
      %v812 = vsel %vm736, %v807, %v811
      %v813 = vshrl.u32 %v644, 16
      %v815 = vrot.slane %v813, 4
      %v816 = vor.u32 %v815, %v797
      %v817 = vrot.slane %v816, 4
      %v819 = vshll.u32 %v720, 16
      %v821 = vrot.slane %v819, 5
      %v822 = vsel %vm736, %v817, %v821
      %v823 = vshrl.u32 %v645, 16
      %v825 = vrot.slane %v823, 4
      %v826 = vor.u32 %v825, %v811
      %v827 = vrot.slane %v826, 4
      %v829 = vshll.u32 %v721, 16
      %v831 = vrot.slane %v829, 5
      %v832 = vsel %vm736, %v827, %v831
      %v834 = vshrl.u32 %v646, 16
      %v836 = vrot.slane %v834, 4
      %v837 = vshll.u32 %v646, 16
      %v839 = vrot.slane %v837, 5
      %v840 = vor.u32 %v836, %v839
      %v841 = vrot.slane %v840, 4
      %v843 = vshll.u32 %v648, 16
      %v845 = vrot.slane %v843, 5
      %v846 = vsel %vm736, %v841, %v845
      %v848 = vshrl.u32 %v647, 16
      %v850 = vrot.slane %v848, 4
      %v851 = vshll.u32 %v647, 16
      %v853 = vrot.slane %v851, 5
      %v854 = vor.u32 %v850, %v853
      %v855 = vrot.slane %v854, 4
      %v857 = vshll.u32 %v649, 16
      %v859 = vrot.slane %v857, 5
      %v860 = vsel %vm736, %v855, %v859
      %v861 = vshrl.u32 %v648, 16
      %v863 = vrot.slane %v861, 4
      %v864 = vor.u32 %v863, %v845
      %v865 = vrot.slane %v864, 4
      %v867 = vshll.u32 %v722, 16
      %v869 = vrot.slane %v867, 5
      %v870 = vsel %vm736, %v865, %v869
      %v871 = vshrl.u32 %v649, 16
      %v873 = vrot.slane %v871, 4
      %v874 = vor.u32 %v873, %v859
      %v875 = vrot.slane %v874, 4
      %v877 = vshll.u32 %v723, 16
      %v879 = vrot.slane %v877, 5
      %v880 = vsel %vm736, %v875, %v879
      %v882 = vshrl.u32 %v650, 16
      %v884 = vrot.slane %v882, 4
      %v885 = vshll.u32 %v650, 16
      %v887 = vrot.slane %v885, 5
      %v888 = vor.u32 %v884, %v887
      %v889 = vrot.slane %v888, 4
      %v891 = vshll.u32 %v652, 16
      %v893 = vrot.slane %v891, 5
      %v894 = vsel %vm736, %v889, %v893
      %v896 = vshrl.u32 %v651, 16
      %v898 = vrot.slane %v896, 4
      %v899 = vshll.u32 %v651, 16
      %v901 = vrot.slane %v899, 5
      %v902 = vor.u32 %v898, %v901
      %v903 = vrot.slane %v902, 4
      %v905 = vshll.u32 %v653, 16
      %v907 = vrot.slane %v905, 5
      %v908 = vsel %vm736, %v903, %v907
      %v909 = vshrl.u32 %v652, 16
      %v911 = vrot.slane %v909, 4
      %v912 = vor.u32 %v911, %v893
      %v913 = vrot.slane %v912, 4
      %v915 = vshll.u32 %v724, 16
      %v917 = vrot.slane %v915, 5
      %v918 = vsel %vm736, %v913, %v917
      %v919 = vshrl.u32 %v653, 16
      %v921 = vrot.slane %v919, 4
      %v922 = vor.u32 %v921, %v907
      %v923 = vrot.slane %v922, 4
      %v925 = vshll.u32 %v725, 16
      %v927 = vrot.slane %v925, 5
      %v928 = vsel %vm736, %v923, %v927
      %v930 = vshrl.u32 %v654, 16
      %v932 = vrot.slane %v930, 4
      %v933 = vshll.u32 %v654, 16
      %v935 = vrot.slane %v933, 5
      %v936 = vor.u32 %v932, %v935
      %v937 = vrot.slane %v936, 4
      %v939 = vshll.u32 %v656, 16
      %v941 = vrot.slane %v939, 5
      %v942 = vsel %vm736, %v937, %v941
      %v944 = vshrl.u32 %v655, 16
      %v946 = vrot.slane %v944, 4
      %v947 = vshll.u32 %v655, 16
      %v949 = vrot.slane %v947, 5
      %v950 = vor.u32 %v946, %v949
      %v951 = vrot.slane %v950, 4
      %v953 = vshll.u32 %v657, 16
      %v955 = vrot.slane %v953, 5
      %v956 = vsel %vm736, %v951, %v955
      %v957 = vshrl.u32 %v656, 16
      %v959 = vrot.slane %v957, 4
      %v960 = vor.u32 %v959, %v941
      %v961 = vrot.slane %v960, 4
      %v963 = vshll.u32 %v726, 16
      %v965 = vrot.slane %v963, 5
      %v966 = vsel %vm736, %v961, %v965
      %v967 = vshrl.u32 %v657, 16
      %v969 = vrot.slane %v967, 4
      %v970 = vor.u32 %v969, %v955
      %v971 = vrot.slane %v970, 4
      %v973 = vshll.u32 %v727, 16
      %v975 = vrot.slane %v973, 5
      %v976 = vsel %vm736, %v971, %v975
      %v978 = vshrl.u32 %v658, 16
      %v980 = vrot.slane %v978, 4
      %v981 = vshll.u32 %v658, 16
      %v983 = vrot.slane %v981, 5
      %v984 = vor.u32 %v980, %v983
      %v985 = vrot.slane %v984, 4
      %v987 = vshll.u32 %v660, 16
      %v989 = vrot.slane %v987, 5
      %v990 = vsel %vm736, %v985, %v989
      %v992 = vshrl.u32 %v659, 16
      %v994 = vrot.slane %v992, 4
      %v995 = vshll.u32 %v659, 16
      %v997 = vrot.slane %v995, 5
      %v998 = vor.u32 %v994, %v997
      %v999 = vrot.slane %v998, 4
      %v1001 = vshll.u32 %v661, 16
      %v1003 = vrot.slane %v1001, 5
      %v1004 = vsel %vm736, %v999, %v1003
      %v1005 = vshrl.u32 %v660, 16
      %v1007 = vrot.slane %v1005, 4
      %v1008 = vor.u32 %v1007, %v989
      %v1009 = vrot.slane %v1008, 4
      %v1011 = vshll.u32 %v728, 16
      %v1013 = vrot.slane %v1011, 5
      %v1014 = vsel %vm736, %v1009, %v1013
      %v1015 = vshrl.u32 %v661, 16
      %v1017 = vrot.slane %v1015, 4
      %v1018 = vor.u32 %v1017, %v1003
      %v1019 = vrot.slane %v1018, 4
      %v1021 = vshll.u32 %v729, 16
      %v1023 = vrot.slane %v1021, 5
      %v1024 = vsel %vm736, %v1019, %v1023
      %v1026 = vshrl.u32 %v662, 16
      %v1028 = vrot.slane %v1026, 4
      %v1029 = vshll.u32 %v662, 16
      %v1031 = vrot.slane %v1029, 5
      %v1032 = vor.u32 %v1028, %v1031
      %v1033 = vrot.slane %v1032, 4
      %v1035 = vshll.u32 %v664, 16
      %v1037 = vrot.slane %v1035, 5
      %v1038 = vsel %vm736, %v1033, %v1037
      %v1040 = vshrl.u32 %v663, 16
      %v1042 = vrot.slane %v1040, 4
      %v1043 = vshll.u32 %v663, 16
      %v1045 = vrot.slane %v1043, 5
      %v1046 = vor.u32 %v1042, %v1045
      %v1047 = vrot.slane %v1046, 4
      %v1049 = vshll.u32 %v665, 16
      %v1051 = vrot.slane %v1049, 5
      %v1052 = vsel %vm736, %v1047, %v1051
      %v1053 = vshrl.u32 %v664, 16
      %v1055 = vrot.slane %v1053, 4
      %v1056 = vor.u32 %v1055, %v1037
      %v1057 = vrot.slane %v1056, 4
      %v1059 = vshll.u32 %v730, 16
      %v1061 = vrot.slane %v1059, 5
      %v1062 = vsel %vm736, %v1057, %v1061
      %v1063 = vshrl.u32 %v665, 16
      %v1065 = vrot.slane %v1063, 4
      %v1066 = vor.u32 %v1065, %v1051
      %v1067 = vrot.slane %v1066, 4
      %v1069 = vshll.u32 %v731, 16
      %v1071 = vrot.slane %v1069, 5
      %v1072 = vsel %vm736, %v1067, %v1071
      %v1074 = vshrl.u32 %v666, 16
      %v1076 = vrot.slane %v1074, 4
      %v1077 = vshll.u32 %v666, 16
      %v1079 = vrot.slane %v1077, 5
      %v1080 = vor.u32 %v1076, %v1079
      %v1081 = vrot.slane %v1080, 4
      %v1083 = vshll.u32 %v668, 16
      %v1085 = vrot.slane %v1083, 5
      %v1086 = vsel %vm736, %v1081, %v1085
      %v1088 = vshrl.u32 %v667, 16
      %v1090 = vrot.slane %v1088, 4
      %v1091 = vshll.u32 %v667, 16
      %v1093 = vrot.slane %v1091, 5
      %v1094 = vor.u32 %v1090, %v1093
      %v1095 = vrot.slane %v1094, 4
      %v1097 = vshll.u32 %v669, 16
      %v1099 = vrot.slane %v1097, 5
      %v1100 = vsel %vm736, %v1095, %v1099
      %v1101 = vshrl.u32 %v668, 16
      %v1103 = vrot.slane %v1101, 4
      %v1104 = vor.u32 %v1103, %v1085
      %v1105 = vrot.slane %v1104, 4
      %v1107 = vshll.u32 %v732, 16
      %v1109 = vrot.slane %v1107, 5
      %v1110 = vsel %vm736, %v1105, %v1109
      %v1111 = vshrl.u32 %v669, 16
      %v1113 = vrot.slane %v1111, 4
      %v1114 = vor.u32 %v1113, %v1099
      %v1115 = vrot.slane %v1114, 4
      %v1117 = vshll.u32 %v733, 16
      %v1119 = vrot.slane %v1117, 5
      %v1120 = vsel %vm736, %v1115, %v1119
      %s1121 = scalar_lea.vmem %s1, 192
      %v1122 = vld [vmem:[%s1121] sm:$0xf]
      %v1123 = vld [vmem:[%s1121 + $0x4] sm:$0xf]
      %v1124 = vld [vmem:[%s1121 + $0x8] sm:$0xf]
      %v1125 = vld [vmem:[%s1121 + $0xc] sm:$0xf]
      %v1126 = vld [vmem:[%s1121 + $0x10] sm:$0xf]
      %v1127 = vld [vmem:[%s1121 + $0x14] sm:$0xf]
      %v1128 = vld [vmem:[%s1121 + $0x18] sm:$0xf]
      %v1129 = vld [vmem:[%s1121 + $0x1c] sm:$0xf]
      %v1130 = vld [vmem:[%s1121 + $0x20] sm:$0xf]
      %v1131 = vld [vmem:[%s1121 + $0x24] sm:$0xf]
      %v1132 = vld [vmem:[%s1121 + $0x28] sm:$0xf]
      %v1133 = vld [vmem:[%s1121 + $0x2c] sm:$0xf]
      %v1134 = vld [vmem:[%s1121 + $0x30] sm:$0xf]
      %v1135 = vld [vmem:[%s1121 + $0x34] sm:$0xf]
      %v1136 = vld [vmem:[%s1121 + $0x38] sm:$0xf]
      %v1137 = vld [vmem:[%s1121 + $0x3c] sm:$0xf]
      %v1138 = vld [vmem:[%s1121 + $0x40] sm:$0xf]
      %v1139 = vld [vmem:[%s1121 + $0x44] sm:$0xf]
      %v1140 = vld [vmem:[%s1121 + $0x48] sm:$0xf]
      %v1141 = vld [vmem:[%s1121 + $0x4c] sm:$0xf]
      %v1142 = vld [vmem:[%s1121 + $0x50] sm:$0xf]
      %v1143 = vld [vmem:[%s1121 + $0x54] sm:$0xf]
      %v1144 = vld [vmem:[%s1121 + $0x58] sm:$0xf]
      %v1145 = vld [vmem:[%s1121 + $0x5c] sm:$0xf]
      %v1146 = vld [vmem:[%s1121 + $0x60] sm:$0xf]
      %v1147 = vld [vmem:[%s1121 + $0x64] sm:$0xf]
      %v1148 = vld [vmem:[%s1121 + $0x68] sm:$0xf]
      %v1149 = vld [vmem:[%s1121 + $0x6c] sm:$0xf]
      %v1150 = vld [vmem:[%s1121 + $0x70] sm:$0xf]
      %v1151 = vld [vmem:[%s1121 + $0x74] sm:$0xf]
      %v1152 = vld [vmem:[%s1121 + $0x78] sm:$0xf]
      %v1153 = vld [vmem:[%s1121 + $0x7c] sm:$0xf]
      %v1154 = vld [vmem:[%s1121 + $0x80] sm:$0xf]
      %v1155 = vld [vmem:[%s1121 + $0x84] sm:$0xf]
      %v1156 = vld [vmem:[%s1121 + $0x88] sm:$0xf]
      %v1157 = vld [vmem:[%s1121 + $0x8c] sm:$0xf]
      %v1158 = vld [vmem:[%s1121 + $0x90] sm:$0xf]
      %v1159 = vld [vmem:[%s1121 + $0x94] sm:$0xf]
      %v1160 = vld [vmem:[%s1121 + $0x98] sm:$0xf]
      %v1161 = vld [vmem:[%s1121 + $0x9c] sm:$0xf]
      %v1162 = vld [vmem:[%s1121 + $0xa0] sm:$0xf]
      %v1163 = vld [vmem:[%s1121 + $0xa4] sm:$0xf]
      %v1164 = vld [vmem:[%s1121 + $0xa8] sm:$0xf]
      %v1165 = vld [vmem:[%s1121 + $0xac] sm:$0xf]
      %v1166 = vld [vmem:[%s1121 + $0xb0] sm:$0xf]
      %v1167 = vld [vmem:[%s1121 + $0xb4] sm:$0xf]
      %v1168 = vld [vmem:[%s1121 + $0xb8] sm:$0xf]
      %v1169 = vld [vmem:[%s1121 + $0xbc] sm:$0xf]
      %v1170 = vunpack.c.l.b16 %v750
      %v1171 = vunpack.c.h.b16 %v750
      %v1172 = vunpack.c.l.b16 %v764
      %v1173 = vunpack.c.l.b16 %v774
      %v1174 = vunpack.c.h.b16 %v774
      %v1175 = vunpack.c.l.b16 %v784
      %v1176 = vunpack.c.l.b16 %v798
      %v1177 = vunpack.c.h.b16 %v798
      %v1178 = vunpack.c.l.b16 %v812
      %v1179 = vunpack.c.l.b16 %v822
      %v1180 = vunpack.c.h.b16 %v822
      %v1181 = vunpack.c.l.b16 %v832
      %v1182 = vunpack.c.l.b16 %v846
      %v1183 = vunpack.c.h.b16 %v846
      %v1184 = vunpack.c.l.b16 %v860
      %v1185 = vunpack.c.l.b16 %v870
      %v1186 = vunpack.c.h.b16 %v870
      %v1187 = vunpack.c.l.b16 %v880
      %v1188 = vunpack.c.l.b16 %v894
      %v1189 = vunpack.c.h.b16 %v894
      %v1190 = vunpack.c.l.b16 %v908
      %v1191 = vunpack.c.l.b16 %v918
      %v1192 = vunpack.c.h.b16 %v918
      %v1193 = vunpack.c.l.b16 %v928
      %v1194 = vunpack.c.l.b16 %v942
      %v1195 = vunpack.c.h.b16 %v942
      %v1196 = vunpack.c.l.b16 %v956
      %v1197 = vunpack.c.l.b16 %v966
      %v1198 = vunpack.c.h.b16 %v966
      %v1199 = vunpack.c.l.b16 %v976
      %v1200 = vunpack.c.l.b16 %v990
      %v1201 = vunpack.c.h.b16 %v990
      %v1202 = vunpack.c.l.b16 %v1004
      %v1203 = vunpack.c.l.b16 %v1014
      %v1204 = vunpack.c.h.b16 %v1014
      %v1205 = vunpack.c.l.b16 %v1024
      %v1206 = vunpack.c.l.b16 %v1038
      %v1207 = vunpack.c.h.b16 %v1038
      %v1208 = vunpack.c.l.b16 %v1052
      %v1209 = vunpack.c.l.b16 %v1062
      %v1210 = vunpack.c.h.b16 %v1062
      %v1211 = vunpack.c.l.b16 %v1072
      %v1212 = vunpack.c.l.b16 %v1086
      %v1213 = vunpack.c.h.b16 %v1086
      %v1214 = vunpack.c.l.b16 %v1100
      %v1215 = vunpack.c.l.b16 %v1110
      %v1216 = vunpack.c.h.b16 %v1110
      %v1217 = vunpack.c.l.b16 %v1120
      %v1218 = vpack.c.b16 %v1173, %v1170
      %v1219 = vpack.c.b16 %v1174, %v1171
      %v1220 = vpack.c.b16 %v1175, %v1172
      %v1221 = vpack.c.b16 %v1179, %v1176
      %v1222 = vpack.c.b16 %v1180, %v1177
      %v1223 = vpack.c.b16 %v1181, %v1178
      %v1224 = vpack.c.b16 %v1185, %v1182
      %v1225 = vpack.c.b16 %v1186, %v1183
      %v1226 = vpack.c.b16 %v1187, %v1184
      %v1227 = vpack.c.b16 %v1191, %v1188
      %v1228 = vpack.c.b16 %v1192, %v1189
      %v1229 = vpack.c.b16 %v1193, %v1190
      %v1230 = vpack.c.b16 %v1197, %v1194
      %v1231 = vpack.c.b16 %v1198, %v1195
      %v1232 = vpack.c.b16 %v1199, %v1196
      %v1233 = vpack.c.b16 %v1203, %v1200
      %v1234 = vpack.c.b16 %v1204, %v1201
      %v1235 = vpack.c.b16 %v1205, %v1202
      %v1236 = vpack.c.b16 %v1209, %v1206
      %v1237 = vpack.c.b16 %v1210, %v1207
      %v1238 = vpack.c.b16 %v1211, %v1208
      %v1239 = vpack.c.b16 %v1215, %v1212
      %v1240 = vpack.c.b16 %v1216, %v1213
      %v1241 = vpack.c.b16 %v1217, %v1214
      %v1314 = vunpack.c.l.b16 %v1122
      %v1315 = vunpack.c.l.b16 %v1123
      %v1316 = vunpack.c.l.b16 %v1124
      %v1317 = vunpack.c.l.b16 %v1125
      %v1318 = vunpack.c.l.b16 %v1126
      %v1319 = vunpack.c.l.b16 %v1127
      %v1320 = vunpack.c.l.b16 %v1128
      %v1321 = vunpack.c.l.b16 %v1129
      %v1322 = vunpack.c.l.b16 %v1130
      %v1323 = vunpack.c.l.b16 %v1131
      %v1324 = vunpack.c.l.b16 %v1132
      %v1325 = vunpack.c.l.b16 %v1133
      %v1326 = vunpack.c.l.b16 %v1134
      %v1327 = vunpack.c.l.b16 %v1135
      %v1328 = vunpack.c.l.b16 %v1136
      %v1329 = vunpack.c.l.b16 %v1137
      %v1330 = vunpack.c.l.b16 %v1138
      %v1331 = vunpack.c.l.b16 %v1139
      %v1332 = vunpack.c.l.b16 %v1140
      %v1333 = vunpack.c.l.b16 %v1141
      %v1334 = vunpack.c.l.b16 %v1142
      %v1335 = vunpack.c.l.b16 %v1143
      %v1336 = vunpack.c.l.b16 %v1144
      %v1337 = vunpack.c.l.b16 %v1145
      %v1338 = vunpack.c.l.b16 %v1146
      %v1339 = vunpack.c.l.b16 %v1147
      %v1340 = vunpack.c.l.b16 %v1148
      %v1341 = vunpack.c.l.b16 %v1149
      %v1342 = vunpack.c.l.b16 %v1150
      %v1343 = vunpack.c.l.b16 %v1151
      %v1344 = vunpack.c.l.b16 %v1152
      %v1345 = vunpack.c.l.b16 %v1153
      %v1346 = vunpack.c.l.b16 %v1154
      %v1347 = vunpack.c.l.b16 %v1155
      %v1348 = vunpack.c.l.b16 %v1156
      %v1349 = vunpack.c.l.b16 %v1157
      %v1350 = vunpack.c.l.b16 %v1158
      %v1351 = vunpack.c.l.b16 %v1159
      %v1352 = vunpack.c.l.b16 %v1160
      %v1353 = vunpack.c.l.b16 %v1161
      %v1354 = vunpack.c.l.b16 %v1162
      %v1355 = vunpack.c.l.b16 %v1163
      %v1356 = vunpack.c.l.b16 %v1164
      %v1357 = vunpack.c.l.b16 %v1165
      %v1358 = vunpack.c.l.b16 %v1166
      %v1359 = vunpack.c.l.b16 %v1167
      %v1360 = vunpack.c.l.b16 %v1168
      %v1361 = vunpack.c.l.b16 %v1169
      %v1362 = vpack.c.b16 %v1315, %v1314
      %v1363 = vpack.c.b16 %v1317, %v1316
      %v1364 = vpack.c.b16 %v1319, %v1318
      %v1365 = vpack.c.b16 %v1321, %v1320
      %v1366 = vpack.c.b16 %v1323, %v1322
      %v1367 = vpack.c.b16 %v1325, %v1324
      %v1368 = vpack.c.b16 %v1327, %v1326
      %v1369 = vpack.c.b16 %v1329, %v1328
      %v1370 = vpack.c.b16 %v1331, %v1330
      %v1371 = vpack.c.b16 %v1333, %v1332
      %v1372 = vpack.c.b16 %v1335, %v1334
      %v1373 = vpack.c.b16 %v1337, %v1336
      %v1374 = vpack.c.b16 %v1339, %v1338
      %v1375 = vpack.c.b16 %v1341, %v1340
      %v1376 = vpack.c.b16 %v1343, %v1342
      %v1377 = vpack.c.b16 %v1345, %v1344
      %v1378 = vpack.c.b16 %v1347, %v1346
      %v1379 = vpack.c.b16 %v1349, %v1348
      %v1380 = vpack.c.b16 %v1351, %v1350
      %v1381 = vpack.c.b16 %v1353, %v1352
      %v1382 = vpack.c.b16 %v1355, %v1354
      %v1383 = vpack.c.b16 %v1357, %v1356
      %v1384 = vpack.c.b16 %v1359, %v1358
      %v1385 = vpack.c.b16 %v1361, %v1360
      %1410 = vmatprep.subr.bf16.mxu0 0
      %1411 = vmatpush1.bf16.msra.mxu0 %v1369
      %1412 = vmatprep.subr.bf16.mxu0 0
      %1413 = vmatpush1.bf16.msra.mxu0 %v1368
      %1414 = vmatprep.subr.bf16.mxu0 0
      %1415 = vmatpush1.bf16.msra.mxu0 %v1367
      %1416 = vmatprep.subr.bf16.mxu0 0
      %1417 = vmatpush1.bf16.msra.mxu0 %v1366
      %1418 = vmatprep.subr.bf16.mxu0 0
      %1419 = vmatpush1.bf16.msra.mxu0 %v1365
      %1420 = vmatprep.subr.bf16.mxu0 0
      %1421 = vmatpush1.bf16.msra.mxu0 %v1364
      %1422 = vmatprep.subr.bf16.mxu0 0
      %1423 = vmatpush1.bf16.msra.mxu0 %v1363
      %1424 = vmatprep.subr.bf16.mxu0 0
      %1425 = vmatpush1.bf16.msra.mxu0 %v1362
      %1426 = vmatprep.subr.bf16.mxu0 0
      %1427 = vmatpush2.bf16.msra.mxu0 %v1377
      %1428 = vmatprep.subr.bf16.mxu0 0
      %1429 = vmatpush2.bf16.msra.mxu0 %v1376
      %1430 = vmatprep.subr.bf16.mxu0 0
      %1431 = vmatpush2.bf16.msra.mxu0 %v1375
      %1432 = vmatprep.subr.bf16.mxu0 0
      %1433 = vmatpush2.bf16.msra.mxu0 %v1374
      %1434 = vmatprep.subr.bf16.mxu0 0
      %1435 = vmatpush2.bf16.msra.mxu0 %v1373
      %1436 = vmatprep.subr.bf16.mxu0 0
      %1437 = vmatpush2.bf16.msra.mxu0 %v1372
      %1438 = vmatprep.subr.bf16.mxu0 0
      %1439 = vmatpush2.bf16.msra.mxu0 %v1371
      %1440 = vmatprep.subr.bf16.mxu0 0
      %1441 = vmatpush2.bf16.msra.mxu0 %v1370
      %1442 = vmatprep.mubr.bf16.mxu0 %v1219
      %1443 = vmatmul.mubr.bf16.gmra.mxu0 %v1218
      %v1444 = vpop.f32.mrf.mxu0
      %v1445 = vadd.f32 0.0, %v1444
      %v1446 = vpop.f32.mrf.mxu0
      %v1447 = vpop.f32.mrf.mxu0
      %v1448 = vadd.f32 0.0, %v1447
      %v1449 = vpop.f32.mrf.mxu0
      %1450 = vmatprep.mubr.bf16.mxu0 %v1222
      %1451 = vmatmul.mubr.bf16.gmra.mxu0 %v1221
      %v1452 = vpop.f32.mrf.mxu0
      %v1453 = vadd.f32 0.0, %v1452
      %v1454 = vpop.f32.mrf.mxu0
      %v1455 = vpop.f32.mrf.mxu0
      %v1456 = vadd.f32 0.0, %v1455
      %v1457 = vpop.f32.mrf.mxu0
      %1458 = vmatprep.mubr.bf16.mxu0 %v1225
      %1459 = vmatmul.mubr.bf16.gmra.mxu0 %v1224
      %v1460 = vpop.f32.mrf.mxu0
      %v1461 = vadd.f32 0.0, %v1460
      %v1462 = vpop.f32.mrf.mxu0
      %v1463 = vpop.f32.mrf.mxu0
      %v1464 = vadd.f32 0.0, %v1463
      %v1465 = vpop.f32.mrf.mxu0
      %1466 = vmatprep.mubr.bf16.mxu0 %v1228
      %1467 = vmatmul.mubr.bf16.gmra.mxu0 %v1227
      %v1468 = vpop.f32.mrf.mxu0
      %v1469 = vadd.f32 0.0, %v1468
      %v1470 = vpop.f32.mrf.mxu0
      %v1471 = vpop.f32.mrf.mxu0
      %v1472 = vadd.f32 0.0, %v1471
      %v1473 = vpop.f32.mrf.mxu0
      %1474 = vmatprep.mubr.bf16.mxu0 %v1231
      %1475 = vmatmul.mubr.bf16.gmra.mxu0 %v1230
      %v1476 = vpop.f32.mrf.mxu0
      %v1477 = vadd.f32 0.0, %v1476
      %v1478 = vpop.f32.mrf.mxu0
      %v1479 = vpop.f32.mrf.mxu0
      %v1480 = vadd.f32 0.0, %v1479
      %v1481 = vpop.f32.mrf.mxu0
      %1482 = vmatprep.mubr.bf16.mxu0 %v1234
      %1483 = vmatmul.mubr.bf16.gmra.mxu0 %v1233
      %v1484 = vpop.f32.mrf.mxu0
      %v1485 = vadd.f32 0.0, %v1484
      %v1486 = vpop.f32.mrf.mxu0
      %v1487 = vpop.f32.mrf.mxu0
      %v1488 = vadd.f32 0.0, %v1487
      %v1489 = vpop.f32.mrf.mxu0
      %1490 = vmatprep.mubr.bf16.mxu0 %v1237
      %1491 = vmatmul.mubr.bf16.gmra.mxu0 %v1236
      %v1492 = vpop.f32.mrf.mxu0
      %v1493 = vadd.f32 0.0, %v1492
      %v1494 = vpop.f32.mrf.mxu0
      %v1495 = vpop.f32.mrf.mxu0
      %v1496 = vadd.f32 0.0, %v1495
      %v1497 = vpop.f32.mrf.mxu0
      %1498 = vmatprep.mubr.bf16.mxu0 %v1240
      %1499 = vmatmul.mubr.bf16.gmra.mxu0 %v1239
      %v1500 = vpop.f32.mrf.mxu0
      %v1501 = vadd.f32 0.0, %v1500
      %v1502 = vpop.f32.mrf.mxu0
      %v1503 = vpop.f32.mrf.mxu0
      %v1504 = vadd.f32 0.0, %v1503
      %v1505 = vpop.f32.mrf.mxu0
      %1506 = vdwg.mxu0
      %1507 = vmatprep.subr.bf16.mxu0 0
      %1508 = vmatpush1.bf16.msra.mxu0 %v1385
      %1509 = vmatprep.subr.bf16.mxu0 0
      %1510 = vmatpush1.bf16.msra.mxu0 %v1384
      %1511 = vmatprep.subr.bf16.mxu0 0
      %1512 = vmatpush1.bf16.msra.mxu0 %v1383
      %1513 = vmatprep.subr.bf16.mxu0 0
      %1514 = vmatpush1.bf16.msra.mxu0 %v1382
      %1515 = vmatprep.subr.bf16.mxu0 0
      %1516 = vmatpush1.bf16.msra.mxu0 %v1381
      %1517 = vmatprep.subr.bf16.mxu0 0
      %1518 = vmatpush1.bf16.msra.mxu0 %v1380
      %1519 = vmatprep.subr.bf16.mxu0 0
      %1520 = vmatpush1.bf16.msra.mxu0 %v1379
      %1521 = vmatprep.subr.bf16.mxu0 0
      %1522 = vmatpush1.bf16.msra.mxu0 %v1378
      %1523 = vmatprep.subr.bf16.mxu0 0
      %1524 = vmatpush2.bf16.msra.mxu0 0
      %1525 = vmatprep.subr.bf16.mxu0 0
      %1526 = vmatpush2.bf16.msra.mxu0 0
      %1527 = vmatprep.subr.bf16.mxu0 0
      %1528 = vmatpush2.bf16.msra.mxu0 0
      %1529 = vmatprep.subr.bf16.mxu0 0
      %1530 = vmatpush2.bf16.msra.mxu0 0
      %1531 = vmatprep.subr.bf16.mxu0 0
      %1532 = vmatpush2.bf16.msra.mxu0 0
      %1533 = vmatprep.subr.bf16.mxu0 0
      %1534 = vmatpush2.bf16.msra.mxu0 0
      %1535 = vmatprep.subr.bf16.mxu0 0
      %1536 = vmatpush2.bf16.msra.mxu0 0
      %1537 = vmatprep.subr.bf16.mxu0 0
      %1538 = vmatpush2.bf16.msra.mxu0 0
      %1539 = vmatprep.mubr.bf16.mxu0 0
      %1540 = vmatmul.mubr.bf16.gmra.mxu0 %v1220
      %v1541 = vpop.f32.mrf.mxu0
      %v1542 = vadd.f32 %v1445, %v1541
      %v1543 = vpop.f32.mrf.mxu0
      %v1544 = vpop.f32.mrf.mxu0
      %v1545 = vadd.f32 %v1448, %v1544
      %v1546 = vpop.f32.mrf.mxu0
      %1547 = vmatprep.mubr.bf16.mxu0 0
      %1548 = vmatmul.mubr.bf16.gmra.mxu0 %v1223
      %v1549 = vpop.f32.mrf.mxu0
      %v1550 = vadd.f32 %v1453, %v1549
      %v1551 = vpop.f32.mrf.mxu0
      %v1552 = vpop.f32.mrf.mxu0
      %v1553 = vadd.f32 %v1456, %v1552
      %v1554 = vpop.f32.mrf.mxu0
      %1555 = vmatprep.mubr.bf16.mxu0 0
      %1556 = vmatmul.mubr.bf16.gmra.mxu0 %v1226
      %v1557 = vpop.f32.mrf.mxu0
      %v1558 = vadd.f32 %v1461, %v1557
      %v1559 = vpop.f32.mrf.mxu0
      %v1560 = vpop.f32.mrf.mxu0
      %v1561 = vadd.f32 %v1464, %v1560
      %v1562 = vpop.f32.mrf.mxu0
      %1563 = vmatprep.mubr.bf16.mxu0 0
      %1564 = vmatmul.mubr.bf16.gmra.mxu0 %v1229
      %v1565 = vpop.f32.mrf.mxu0
      %v1566 = vadd.f32 %v1469, %v1565
      %v1567 = vpop.f32.mrf.mxu0
      %v1568 = vpop.f32.mrf.mxu0
      %v1569 = vadd.f32 %v1472, %v1568
      %v1570 = vpop.f32.mrf.mxu0
      %1571 = vmatprep.mubr.bf16.mxu0 0
      %1572 = vmatmul.mubr.bf16.gmra.mxu0 %v1232
      %v1573 = vpop.f32.mrf.mxu0
      %v1574 = vadd.f32 %v1477, %v1573
      %v1575 = vpop.f32.mrf.mxu0
      %v1576 = vpop.f32.mrf.mxu0
      %v1577 = vadd.f32 %v1480, %v1576
      %v1578 = vpop.f32.mrf.mxu0
      %1579 = vmatprep.mubr.bf16.mxu0 0
      %1580 = vmatmul.mubr.bf16.gmra.mxu0 %v1235
      %v1581 = vpop.f32.mrf.mxu0
      %v1582 = vadd.f32 %v1485, %v1581
      %v1583 = vpop.f32.mrf.mxu0
      %v1584 = vpop.f32.mrf.mxu0
      %v1585 = vadd.f32 %v1488, %v1584
      %v1586 = vpop.f32.mrf.mxu0
      %1587 = vmatprep.mubr.bf16.mxu0 0
      %1588 = vmatmul.mubr.bf16.gmra.mxu0 %v1238
      %v1589 = vpop.f32.mrf.mxu0
      %v1590 = vadd.f32 %v1493, %v1589
      %v1591 = vpop.f32.mrf.mxu0
      %v1592 = vpop.f32.mrf.mxu0
      %v1593 = vadd.f32 %v1496, %v1592
      %v1594 = vpop.f32.mrf.mxu0
      %1595 = vmatprep.mubr.bf16.mxu0 0
      %1596 = vmatmul.mubr.bf16.gmra.mxu0 %v1241
      %v1597 = vpop.f32.mrf.mxu0
      %v1598 = vadd.f32 %v1501, %v1597
      %v1599 = vpop.f32.mrf.mxu0
      %v1600 = vpop.f32.mrf.mxu0
      %v1601 = vadd.f32 %v1504, %v1600
      %v1602 = vpop.f32.mrf.mxu0
      %1603 = vdwg.mxu0
      %v1636 = vunpack.c.l.b16 %v638
      %v1637 = vunpack.c.h.b16 %v638
      %v1638 = vunpack.c.l.b16 %v639
      %v1639 = vunpack.c.l.b16 %v640
      %v1640 = vunpack.c.h.b16 %v640
      %v1641 = vunpack.c.l.b16 %v641
      %v1642 = vunpack.c.l.b16 %v642
      %v1643 = vunpack.c.h.b16 %v642
      %v1644 = vunpack.c.l.b16 %v643
      %v1645 = vunpack.c.l.b16 %v644
      %v1646 = vunpack.c.h.b16 %v644
      %v1647 = vunpack.c.l.b16 %v645
      %v1648 = vunpack.c.l.b16 %v646
      %v1649 = vunpack.c.h.b16 %v646
      %v1650 = vunpack.c.l.b16 %v647
      %v1651 = vunpack.c.l.b16 %v648
      %v1652 = vunpack.c.h.b16 %v648
      %v1653 = vunpack.c.l.b16 %v649
      %v1654 = vunpack.c.l.b16 %v650
      %v1655 = vunpack.c.h.b16 %v650
      %v1656 = vunpack.c.l.b16 %v651
      %v1657 = vunpack.c.l.b16 %v652
      %v1658 = vunpack.c.h.b16 %v652
      %v1659 = vunpack.c.l.b16 %v653
      %v1660 = vunpack.c.l.b16 %v654
      %v1661 = vunpack.c.h.b16 %v654
      %v1662 = vunpack.c.l.b16 %v655
      %v1663 = vunpack.c.l.b16 %v656
      %v1664 = vunpack.c.h.b16 %v656
      %v1665 = vunpack.c.l.b16 %v657
      %v1666 = vunpack.c.l.b16 %v658
      %v1667 = vunpack.c.h.b16 %v658
      %v1668 = vunpack.c.l.b16 %v659
      %v1669 = vunpack.c.l.b16 %v660
      %v1670 = vunpack.c.h.b16 %v660
      %v1671 = vunpack.c.l.b16 %v661
      %v1672 = vunpack.c.l.b16 %v662
      %v1673 = vunpack.c.h.b16 %v662
      %v1674 = vunpack.c.l.b16 %v663
      %v1675 = vunpack.c.l.b16 %v664
      %v1676 = vunpack.c.h.b16 %v664
      %v1677 = vunpack.c.l.b16 %v665
      %v1678 = vunpack.c.l.b16 %v666
      %v1679 = vunpack.c.h.b16 %v666
      %v1680 = vunpack.c.l.b16 %v667
      %v1681 = vunpack.c.l.b16 %v668
      %v1682 = vunpack.c.h.b16 %v668
      %v1683 = vunpack.c.l.b16 %v669
      %v1684 = vpack.c.b16 %v1639, %v1636
      %v1685 = vpack.c.b16 %v1640, %v1637
      %v1686 = vpack.c.b16 %v1641, %v1638
      %v1687 = vpack.c.b16 %v1645, %v1642
      %v1688 = vpack.c.b16 %v1646, %v1643
      %v1689 = vpack.c.b16 %v1647, %v1644
      %v1690 = vpack.c.b16 %v1651, %v1648
      %v1691 = vpack.c.b16 %v1652, %v1649
      %v1692 = vpack.c.b16 %v1653, %v1650
      %v1693 = vpack.c.b16 %v1657, %v1654
      %v1694 = vpack.c.b16 %v1658, %v1655
      %v1695 = vpack.c.b16 %v1659, %v1656
      %v1696 = vpack.c.b16 %v1663, %v1660
      %v1697 = vpack.c.b16 %v1664, %v1661
      %v1698 = vpack.c.b16 %v1665, %v1662
      %v1699 = vpack.c.b16 %v1669, %v1666
      %v1700 = vpack.c.b16 %v1670, %v1667
      %v1701 = vpack.c.b16 %v1671, %v1668
      %v1702 = vpack.c.b16 %v1675, %v1672
      %v1703 = vpack.c.b16 %v1676, %v1673
      %v1704 = vpack.c.b16 %v1677, %v1674
      %v1705 = vpack.c.b16 %v1681, %v1678
      %v1706 = vpack.c.b16 %v1682, %v1679
      %v1707 = vpack.c.b16 %v1683, %v1680
      %v1780 = vunpack.c.l.b16 %v670
      %v1781 = vunpack.c.l.b16 %v671
      %v1782 = vunpack.c.l.b16 %v672
      %v1783 = vunpack.c.l.b16 %v673
      %v1784 = vunpack.c.l.b16 %v674
      %v1785 = vunpack.c.l.b16 %v675
      %v1786 = vunpack.c.l.b16 %v676
      %v1787 = vunpack.c.l.b16 %v677
      %v1788 = vunpack.c.l.b16 %v678
      %v1789 = vunpack.c.l.b16 %v679
      %v1790 = vunpack.c.l.b16 %v680
      %v1791 = vunpack.c.l.b16 %v681
      %v1792 = vunpack.c.l.b16 %v682
      %v1793 = vunpack.c.l.b16 %v683
      %v1794 = vunpack.c.l.b16 %v684
      %v1795 = vunpack.c.l.b16 %v685
      %v1796 = vunpack.c.l.b16 %v686
      %v1797 = vunpack.c.l.b16 %v687
      %v1798 = vunpack.c.l.b16 %v688
      %v1799 = vunpack.c.l.b16 %v689
      %v1800 = vunpack.c.l.b16 %v690
      %v1801 = vunpack.c.l.b16 %v691
      %v1802 = vunpack.c.l.b16 %v692
      %v1803 = vunpack.c.l.b16 %v693
      %v1804 = vunpack.c.l.b16 %v694
      %v1805 = vunpack.c.l.b16 %v695
      %v1806 = vunpack.c.l.b16 %v696
      %v1807 = vunpack.c.l.b16 %v697
      %v1808 = vunpack.c.l.b16 %v698
      %v1809 = vunpack.c.l.b16 %v699
      %v1810 = vunpack.c.l.b16 %v700
      %v1811 = vunpack.c.l.b16 %v701
      %v1812 = vunpack.c.l.b16 %v702
      %v1813 = vunpack.c.l.b16 %v703
      %v1814 = vunpack.c.l.b16 %v704
      %v1815 = vunpack.c.l.b16 %v705
      %v1816 = vunpack.c.l.b16 %v706
      %v1817 = vunpack.c.l.b16 %v707
      %v1818 = vunpack.c.l.b16 %v708
      %v1819 = vunpack.c.l.b16 %v709
      %v1820 = vunpack.c.l.b16 %v710
      %v1821 = vunpack.c.l.b16 %v711
      %v1822 = vunpack.c.l.b16 %v712
      %v1823 = vunpack.c.l.b16 %v713
      %v1824 = vunpack.c.l.b16 %v714
      %v1825 = vunpack.c.l.b16 %v715
      %v1826 = vunpack.c.l.b16 %v716
      %v1827 = vunpack.c.l.b16 %v717
      %v1828 = vpack.c.b16 %v1781, %v1780
      %v1829 = vpack.c.b16 %v1783, %v1782
      %v1830 = vpack.c.b16 %v1785, %v1784
      %v1831 = vpack.c.b16 %v1787, %v1786
      %v1832 = vpack.c.b16 %v1789, %v1788
      %v1833 = vpack.c.b16 %v1791, %v1790
      %v1834 = vpack.c.b16 %v1793, %v1792
      %v1835 = vpack.c.b16 %v1795, %v1794
      %v1836 = vpack.c.b16 %v1797, %v1796
      %v1837 = vpack.c.b16 %v1799, %v1798
      %v1838 = vpack.c.b16 %v1801, %v1800
      %v1839 = vpack.c.b16 %v1803, %v1802
      %v1840 = vpack.c.b16 %v1805, %v1804
      %v1841 = vpack.c.b16 %v1807, %v1806
      %v1842 = vpack.c.b16 %v1809, %v1808
      %v1843 = vpack.c.b16 %v1811, %v1810
      %v1844 = vpack.c.b16 %v1813, %v1812
      %v1845 = vpack.c.b16 %v1815, %v1814
      %v1846 = vpack.c.b16 %v1817, %v1816
      %v1847 = vpack.c.b16 %v1819, %v1818
      %v1848 = vpack.c.b16 %v1821, %v1820
      %v1849 = vpack.c.b16 %v1823, %v1822
      %v1850 = vpack.c.b16 %v1825, %v1824
      %v1851 = vpack.c.b16 %v1827, %v1826
      %1876 = vmatprep.subr.bf16.mxu0 0
      %1877 = vmatpush1.bf16.msra.mxu0 %v1835
      %1878 = vmatprep.subr.bf16.mxu0 0
      %1879 = vmatpush1.bf16.msra.mxu0 %v1834
      %1880 = vmatprep.subr.bf16.mxu0 0
      %1881 = vmatpush1.bf16.msra.mxu0 %v1833
      %1882 = vmatprep.subr.bf16.mxu0 0
      %1883 = vmatpush1.bf16.msra.mxu0 %v1832
      %1884 = vmatprep.subr.bf16.mxu0 0
      %1885 = vmatpush1.bf16.msra.mxu0 %v1831
      %1886 = vmatprep.subr.bf16.mxu0 0
      %1887 = vmatpush1.bf16.msra.mxu0 %v1830
      %1888 = vmatprep.subr.bf16.mxu0 0
      %1889 = vmatpush1.bf16.msra.mxu0 %v1829
      %1890 = vmatprep.subr.bf16.mxu0 0
      %1891 = vmatpush1.bf16.msra.mxu0 %v1828
      %1892 = vmatprep.subr.bf16.mxu0 0
      %1893 = vmatpush2.bf16.msra.mxu0 %v1843
      %1894 = vmatprep.subr.bf16.mxu0 0
      %1895 = vmatpush2.bf16.msra.mxu0 %v1842
      %1896 = vmatprep.subr.bf16.mxu0 0
      %1897 = vmatpush2.bf16.msra.mxu0 %v1841
      %1898 = vmatprep.subr.bf16.mxu0 0
      %1899 = vmatpush2.bf16.msra.mxu0 %v1840
      %1900 = vmatprep.subr.bf16.mxu0 0
      %1901 = vmatpush2.bf16.msra.mxu0 %v1839
      %1902 = vmatprep.subr.bf16.mxu0 0
      %1903 = vmatpush2.bf16.msra.mxu0 %v1838
      %1904 = vmatprep.subr.bf16.mxu0 0
      %1905 = vmatpush2.bf16.msra.mxu0 %v1837
      %1906 = vmatprep.subr.bf16.mxu0 0
      %1907 = vmatpush2.bf16.msra.mxu0 %v1836
      %1908 = vmatprep.mubr.bf16.mxu0 %v1685
      %1909 = vmatmul.mubr.bf16.gmra.mxu0 %v1684
      %v1910 = vpop.f32.mrf.mxu0
      %v1911 = vadd.f32 %v1542, %v1910
      %v1912 = vpop.f32.mrf.mxu0
      %v1913 = vpop.f32.mrf.mxu0
      %v1914 = vadd.f32 %v1545, %v1913
      %v1915 = vpop.f32.mrf.mxu0
      %1916 = vmatprep.mubr.bf16.mxu0 %v1688
      %1917 = vmatmul.mubr.bf16.gmra.mxu0 %v1687
      %v1918 = vpop.f32.mrf.mxu0
      %v1919 = vadd.f32 %v1550, %v1918
      %v1920 = vpop.f32.mrf.mxu0
      %v1921 = vpop.f32.mrf.mxu0
      %v1922 = vadd.f32 %v1553, %v1921
      %v1923 = vpop.f32.mrf.mxu0
      %1924 = vmatprep.mubr.bf16.mxu0 %v1691
      %1925 = vmatmul.mubr.bf16.gmra.mxu0 %v1690
      %v1926 = vpop.f32.mrf.mxu0
      %v1927 = vadd.f32 %v1558, %v1926
      %v1928 = vpop.f32.mrf.mxu0
      %v1929 = vpop.f32.mrf.mxu0
      %v1930 = vadd.f32 %v1561, %v1929
      %v1931 = vpop.f32.mrf.mxu0
      %1932 = vmatprep.mubr.bf16.mxu0 %v1694
      %1933 = vmatmul.mubr.bf16.gmra.mxu0 %v1693
      %v1934 = vpop.f32.mrf.mxu0
      %v1935 = vadd.f32 %v1566, %v1934
      %v1936 = vpop.f32.mrf.mxu0
      %v1937 = vpop.f32.mrf.mxu0
      %v1938 = vadd.f32 %v1569, %v1937
      %v1939 = vpop.f32.mrf.mxu0
      %1940 = vmatprep.mubr.bf16.mxu0 %v1697
      %1941 = vmatmul.mubr.bf16.gmra.mxu0 %v1696
      %v1942 = vpop.f32.mrf.mxu0
      %v1943 = vadd.f32 %v1574, %v1942
      %v1944 = vpop.f32.mrf.mxu0
      %v1945 = vpop.f32.mrf.mxu0
      %v1946 = vadd.f32 %v1577, %v1945
      %v1947 = vpop.f32.mrf.mxu0
      %1948 = vmatprep.mubr.bf16.mxu0 %v1700
      %1949 = vmatmul.mubr.bf16.gmra.mxu0 %v1699
      %v1950 = vpop.f32.mrf.mxu0
      %v1951 = vadd.f32 %v1582, %v1950
      %v1952 = vpop.f32.mrf.mxu0
      %v1953 = vpop.f32.mrf.mxu0
      %v1954 = vadd.f32 %v1585, %v1953
      %v1955 = vpop.f32.mrf.mxu0
      %1956 = vmatprep.mubr.bf16.mxu0 %v1703
      %1957 = vmatmul.mubr.bf16.gmra.mxu0 %v1702
      %v1958 = vpop.f32.mrf.mxu0
      %v1959 = vadd.f32 %v1590, %v1958
      %v1960 = vpop.f32.mrf.mxu0
      %v1961 = vpop.f32.mrf.mxu0
      %v1962 = vadd.f32 %v1593, %v1961
      %v1963 = vpop.f32.mrf.mxu0
      %1964 = vmatprep.mubr.bf16.mxu0 %v1706
      %1965 = vmatmul.mubr.bf16.gmra.mxu0 %v1705
      %v1966 = vpop.f32.mrf.mxu0
      %v1967 = vadd.f32 %v1598, %v1966
      %v1968 = vpop.f32.mrf.mxu0
      %v1969 = vpop.f32.mrf.mxu0
      %v1970 = vadd.f32 %v1601, %v1969
      %v1971 = vpop.f32.mrf.mxu0
      %1972 = vdwg.mxu0
      %1973 = vmatprep.subr.bf16.mxu0 0
      %1974 = vmatpush1.bf16.msra.mxu0 %v1851
      %1975 = vmatprep.subr.bf16.mxu0 0
      %1976 = vmatpush1.bf16.msra.mxu0 %v1850
      %1977 = vmatprep.subr.bf16.mxu0 0
      %1978 = vmatpush1.bf16.msra.mxu0 %v1849
      %1979 = vmatprep.subr.bf16.mxu0 0
      %1980 = vmatpush1.bf16.msra.mxu0 %v1848
      %1981 = vmatprep.subr.bf16.mxu0 0
      %1982 = vmatpush1.bf16.msra.mxu0 %v1847
      %1983 = vmatprep.subr.bf16.mxu0 0
      %1984 = vmatpush1.bf16.msra.mxu0 %v1846
      %1985 = vmatprep.subr.bf16.mxu0 0
      %1986 = vmatpush1.bf16.msra.mxu0 %v1845
      %1987 = vmatprep.subr.bf16.mxu0 0
      %1988 = vmatpush1.bf16.msra.mxu0 %v1844
      %1989 = vmatprep.subr.bf16.mxu0 0
      %1990 = vmatpush2.bf16.msra.mxu0 0
      %1991 = vmatprep.subr.bf16.mxu0 0
      %1992 = vmatpush2.bf16.msra.mxu0 0
      %1993 = vmatprep.subr.bf16.mxu0 0
      %1994 = vmatpush2.bf16.msra.mxu0 0
      %1995 = vmatprep.subr.bf16.mxu0 0
      %1996 = vmatpush2.bf16.msra.mxu0 0
      %1997 = vmatprep.subr.bf16.mxu0 0
      %1998 = vmatpush2.bf16.msra.mxu0 0
      %1999 = vmatprep.subr.bf16.mxu0 0
      %2000 = vmatpush2.bf16.msra.mxu0 0
      %2001 = vmatprep.subr.bf16.mxu0 0
      %2002 = vmatpush2.bf16.msra.mxu0 0
      %2003 = vmatprep.subr.bf16.mxu0 0
      %2004 = vmatpush2.bf16.msra.mxu0 0
      %2005 = vmatprep.mubr.bf16.mxu0 0
      %2006 = vmatmul.mubr.bf16.gmra.mxu0 %v1686
      %v2007 = vpop.f32.mrf.mxu0
      %v2008 = vadd.f32 %v1911, %v2007
      %v2009 = vpop.f32.mrf.mxu0
      %v2010 = vpop.f32.mrf.mxu0
      %v2011 = vadd.f32 %v1914, %v2010
      %v2012 = vpop.f32.mrf.mxu0
      %2013 = vmatprep.mubr.bf16.mxu0 0
      %2014 = vmatmul.mubr.bf16.gmra.mxu0 %v1689
      %v2015 = vpop.f32.mrf.mxu0
      %v2016 = vadd.f32 %v1919, %v2015
      %v2017 = vpop.f32.mrf.mxu0
      %v2018 = vpop.f32.mrf.mxu0
      %v2019 = vadd.f32 %v1922, %v2018
      %v2020 = vpop.f32.mrf.mxu0
      %2021 = vmatprep.mubr.bf16.mxu0 0
      %2022 = vmatmul.mubr.bf16.gmra.mxu0 %v1692
      %v2023 = vpop.f32.mrf.mxu0
      %v2024 = vadd.f32 %v1927, %v2023
      %v2025 = vpop.f32.mrf.mxu0
      %v2026 = vpop.f32.mrf.mxu0
      %v2027 = vadd.f32 %v1930, %v2026
      %v2028 = vpop.f32.mrf.mxu0
      %2029 = vmatprep.mubr.bf16.mxu0 0
      %2030 = vmatmul.mubr.bf16.gmra.mxu0 %v1695
      %v2031 = vpop.f32.mrf.mxu0
      %v2032 = vadd.f32 %v1935, %v2031
      %v2033 = vpop.f32.mrf.mxu0
      %v2034 = vpop.f32.mrf.mxu0
      %v2035 = vadd.f32 %v1938, %v2034
      %v2036 = vpop.f32.mrf.mxu0
      %2037 = vmatprep.mubr.bf16.mxu0 0
      %2038 = vmatmul.mubr.bf16.gmra.mxu0 %v1698
      %v2039 = vpop.f32.mrf.mxu0
      %v2040 = vadd.f32 %v1943, %v2039
      %v2041 = vpop.f32.mrf.mxu0
      %v2042 = vpop.f32.mrf.mxu0
      %v2043 = vadd.f32 %v1946, %v2042
      %v2044 = vpop.f32.mrf.mxu0
      %2045 = vmatprep.mubr.bf16.mxu0 0
      %2046 = vmatmul.mubr.bf16.gmra.mxu0 %v1701
      %v2047 = vpop.f32.mrf.mxu0
      %v2048 = vadd.f32 %v1951, %v2047
      %v2049 = vpop.f32.mrf.mxu0
      %v2050 = vpop.f32.mrf.mxu0
      %v2051 = vadd.f32 %v1954, %v2050
      %v2052 = vpop.f32.mrf.mxu0
      %2053 = vmatprep.mubr.bf16.mxu0 0
      %2054 = vmatmul.mubr.bf16.gmra.mxu0 %v1704
      %v2055 = vpop.f32.mrf.mxu0
      %v2056 = vadd.f32 %v1959, %v2055
      %v2057 = vpop.f32.mrf.mxu0
      %v2058 = vpop.f32.mrf.mxu0
      %v2059 = vadd.f32 %v1962, %v2058
      %v2060 = vpop.f32.mrf.mxu0
      %2061 = vmatprep.mubr.bf16.mxu0 0
      %2062 = vmatmul.mubr.bf16.gmra.mxu0 %v1707
      %v2063 = vpop.f32.mrf.mxu0
      %v2064 = vadd.f32 %v1967, %v2063
      %v2065 = vpop.f32.mrf.mxu0
      %v2066 = vpop.f32.mrf.mxu0
      %v2067 = vadd.f32 %v1970, %v2066
      %v2068 = vpop.f32.mrf.mxu0
      %2069 = vdwg.mxu0
      %v2070 = vld [vmem:[#allocation2] sm:$0xee]
      %v2071 = vld [vmem:[#allocation2 + $0x8] sm:$0xe]
      %v2072 = vld [vmem:[#allocation2 + $0x24] sm:$0xee]
      %v2073 = vld [vmem:[#allocation2 + $0x2c] sm:$0xe]
      %v2074 = vld [vmem:[#allocation2 + $0x48] sm:$0xee]
      %v2075 = vld [vmem:[#allocation2 + $0x50] sm:$0xe]
      %v2076 = vld [vmem:[#allocation2 + $0x6c] sm:$0xee]
      %v2077 = vld [vmem:[#allocation2 + $0x74] sm:$0xe]
      %v2078 = vld [vmem:[#allocation2 + $0x90] sm:$0xee]
      %v2079 = vld [vmem:[#allocation2 + $0x98] sm:$0xe]
      %v2080 = vld [vmem:[#allocation2 + $0xb4] sm:$0xee]
      %v2081 = vld [vmem:[#allocation2 + $0xbc] sm:$0xe]
      %v2082 = vld [vmem:[#allocation2 + $0xd8] sm:$0xee]
      %v2083 = vld [vmem:[#allocation2 + $0xe0] sm:$0xe]
      %v2084 = vld [vmem:[#allocation2 + $0xfc] sm:$0xee]
      %v2085 = vld [vmem:[#allocation2 + $0x104] sm:$0xe]
      %vm2118 = vcmask 1042432
      %vm2119 = vcmask 1046532
      %vm2120 = vmor %vm2118, %vm2119
      %v2121 = vrot.slane %v2070, 5
      %v2122 = vrot.slane %v2121, 4
      %v2123 = vrot.slane %v640, 5
      %v2124 = vsel %vm2120, %v2122, %v2123
      %v2125 = vrot.slane %v2071, 5
      %v2126 = vrot.slane %v2125, 4
      %v2127 = vrot.slane %v641, 5
      %v2128 = vsel %vm2120, %v2126, %v2127
      %v2129 = vrot.slane %v2123, 4
      %v2130 = vrot.slane %v718, 5
      %v2131 = vsel %vm2120, %v2129, %v2130
      %v2132 = vrot.slane %v2127, 4
      %v2133 = vrot.slane %v719, 5
      %v2134 = vsel %vm2120, %v2132, %v2133
      %v2135 = vrot.slane %v2072, 5
      %v2136 = vrot.slane %v2135, 4
      %v2137 = vrot.slane %v644, 5
      %v2138 = vsel %vm2120, %v2136, %v2137
      %v2139 = vrot.slane %v2073, 5
      %v2140 = vrot.slane %v2139, 4
      %v2141 = vrot.slane %v645, 5
      %v2142 = vsel %vm2120, %v2140, %v2141
      %v2143 = vrot.slane %v2137, 4
      %v2144 = vrot.slane %v720, 5
      %v2145 = vsel %vm2120, %v2143, %v2144
      %v2146 = vrot.slane %v2141, 4
      %v2147 = vrot.slane %v721, 5
      %v2148 = vsel %vm2120, %v2146, %v2147
      %v2149 = vrot.slane %v2074, 5
      %v2150 = vrot.slane %v2149, 4
      %v2151 = vrot.slane %v648, 5
      %v2152 = vsel %vm2120, %v2150, %v2151
      %v2153 = vrot.slane %v2075, 5
      %v2154 = vrot.slane %v2153, 4
      %v2155 = vrot.slane %v649, 5
      %v2156 = vsel %vm2120, %v2154, %v2155
      %v2157 = vrot.slane %v2151, 4
      %v2158 = vrot.slane %v722, 5
      %v2159 = vsel %vm2120, %v2157, %v2158
      %v2160 = vrot.slane %v2155, 4
      %v2161 = vrot.slane %v723, 5
      %v2162 = vsel %vm2120, %v2160, %v2161
      %v2163 = vrot.slane %v2076, 5
      %v2164 = vrot.slane %v2163, 4
      %v2165 = vrot.slane %v652, 5
      %v2166 = vsel %vm2120, %v2164, %v2165
      %v2167 = vrot.slane %v2077, 5
      %v2168 = vrot.slane %v2167, 4
      %v2169 = vrot.slane %v653, 5
      %v2170 = vsel %vm2120, %v2168, %v2169
      %v2171 = vrot.slane %v2165, 4
      %v2172 = vrot.slane %v724, 5
      %v2173 = vsel %vm2120, %v2171, %v2172
      %v2174 = vrot.slane %v2169, 4
      %v2175 = vrot.slane %v725, 5
      %v2176 = vsel %vm2120, %v2174, %v2175
      %v2177 = vrot.slane %v2078, 5
      %v2178 = vrot.slane %v2177, 4
      %v2179 = vrot.slane %v656, 5
      %v2180 = vsel %vm2120, %v2178, %v2179
      %v2181 = vrot.slane %v2079, 5
      %v2182 = vrot.slane %v2181, 4
      %v2183 = vrot.slane %v657, 5
      %v2184 = vsel %vm2120, %v2182, %v2183
      %v2185 = vrot.slane %v2179, 4
      %v2186 = vrot.slane %v726, 5
      %v2187 = vsel %vm2120, %v2185, %v2186
      %v2188 = vrot.slane %v2183, 4
      %v2189 = vrot.slane %v727, 5
      %v2190 = vsel %vm2120, %v2188, %v2189
      %v2191 = vrot.slane %v2080, 5
      %v2192 = vrot.slane %v2191, 4
      %v2193 = vrot.slane %v660, 5
      %v2194 = vsel %vm2120, %v2192, %v2193
      %v2195 = vrot.slane %v2081, 5
      %v2196 = vrot.slane %v2195, 4
      %v2197 = vrot.slane %v661, 5
      %v2198 = vsel %vm2120, %v2196, %v2197
      %v2199 = vrot.slane %v2193, 4
      %v2200 = vrot.slane %v728, 5
      %v2201 = vsel %vm2120, %v2199, %v2200
      %v2202 = vrot.slane %v2197, 4
      %v2203 = vrot.slane %v729, 5
      %v2204 = vsel %vm2120, %v2202, %v2203
      %v2205 = vrot.slane %v2082, 5
      %v2206 = vrot.slane %v2205, 4
      %v2207 = vrot.slane %v664, 5
      %v2208 = vsel %vm2120, %v2206, %v2207
      %v2209 = vrot.slane %v2083, 5
      %v2210 = vrot.slane %v2209, 4
      %v2211 = vrot.slane %v665, 5
      %v2212 = vsel %vm2120, %v2210, %v2211
      %v2213 = vrot.slane %v2207, 4
      %v2214 = vrot.slane %v730, 5
      %v2215 = vsel %vm2120, %v2213, %v2214
      %v2216 = vrot.slane %v2211, 4
      %v2217 = vrot.slane %v731, 5
      %v2218 = vsel %vm2120, %v2216, %v2217
      %v2219 = vrot.slane %v2084, 5
      %v2220 = vrot.slane %v2219, 4
      %v2221 = vrot.slane %v668, 5
      %v2222 = vsel %vm2120, %v2220, %v2221
      %v2223 = vrot.slane %v2085, 5
      %v2224 = vrot.slane %v2223, 4
      %v2225 = vrot.slane %v669, 5
      %v2226 = vsel %vm2120, %v2224, %v2225
      %v2227 = vrot.slane %v2221, 4
      %v2228 = vrot.slane %v732, 5
      %v2229 = vsel %vm2120, %v2227, %v2228
      %v2230 = vrot.slane %v2225, 4
      %v2231 = vrot.slane %v733, 5
      %v2232 = vsel %vm2120, %v2230, %v2231
      %s2233 = scalar_lea.vmem %s1, 384
      %v2234 = vld [vmem:[%s2233] sm:$0xf]
      %v2235 = vld [vmem:[%s2233 + $0x4] sm:$0xf]
      %v2236 = vld [vmem:[%s2233 + $0x8] sm:$0xf]
      %v2237 = vld [vmem:[%s2233 + $0xc] sm:$0xf]
      %v2238 = vld [vmem:[%s2233 + $0x10] sm:$0xf]
      %v2239 = vld [vmem:[%s2233 + $0x14] sm:$0xf]
      %v2240 = vld [vmem:[%s2233 + $0x18] sm:$0xf]
      %v2241 = vld [vmem:[%s2233 + $0x1c] sm:$0xf]
      %v2242 = vld [vmem:[%s2233 + $0x20] sm:$0xf]
      %v2243 = vld [vmem:[%s2233 + $0x24] sm:$0xf]
      %v2244 = vld [vmem:[%s2233 + $0x28] sm:$0xf]
      %v2245 = vld [vmem:[%s2233 + $0x2c] sm:$0xf]
      %v2246 = vld [vmem:[%s2233 + $0x30] sm:$0xf]
      %v2247 = vld [vmem:[%s2233 + $0x34] sm:$0xf]
      %v2248 = vld [vmem:[%s2233 + $0x38] sm:$0xf]
      %v2249 = vld [vmem:[%s2233 + $0x3c] sm:$0xf]
      %v2250 = vld [vmem:[%s2233 + $0x40] sm:$0xf]
      %v2251 = vld [vmem:[%s2233 + $0x44] sm:$0xf]
      %v2252 = vld [vmem:[%s2233 + $0x48] sm:$0xf]
      %v2253 = vld [vmem:[%s2233 + $0x4c] sm:$0xf]
      %v2254 = vld [vmem:[%s2233 + $0x50] sm:$0xf]
      %v2255 = vld [vmem:[%s2233 + $0x54] sm:$0xf]
      %v2256 = vld [vmem:[%s2233 + $0x58] sm:$0xf]
      %v2257 = vld [vmem:[%s2233 + $0x5c] sm:$0xf]
      %v2258 = vld [vmem:[%s2233 + $0x60] sm:$0xf]
      %v2259 = vld [vmem:[%s2233 + $0x64] sm:$0xf]
      %v2260 = vld [vmem:[%s2233 + $0x68] sm:$0xf]
      %v2261 = vld [vmem:[%s2233 + $0x6c] sm:$0xf]
      %v2262 = vld [vmem:[%s2233 + $0x70] sm:$0xf]
      %v2263 = vld [vmem:[%s2233 + $0x74] sm:$0xf]
      %v2264 = vld [vmem:[%s2233 + $0x78] sm:$0xf]
      %v2265 = vld [vmem:[%s2233 + $0x7c] sm:$0xf]
      %v2266 = vld [vmem:[%s2233 + $0x80] sm:$0xf]
      %v2267 = vld [vmem:[%s2233 + $0x84] sm:$0xf]
      %v2268 = vld [vmem:[%s2233 + $0x88] sm:$0xf]
      %v2269 = vld [vmem:[%s2233 + $0x8c] sm:$0xf]
      %v2270 = vld [vmem:[%s2233 + $0x90] sm:$0xf]
      %v2271 = vld [vmem:[%s2233 + $0x94] sm:$0xf]
      %v2272 = vld [vmem:[%s2233 + $0x98] sm:$0xf]
      %v2273 = vld [vmem:[%s2233 + $0x9c] sm:$0xf]
      %v2274 = vld [vmem:[%s2233 + $0xa0] sm:$0xf]
      %v2275 = vld [vmem:[%s2233 + $0xa4] sm:$0xf]
      %v2276 = vld [vmem:[%s2233 + $0xa8] sm:$0xf]
      %v2277 = vld [vmem:[%s2233 + $0xac] sm:$0xf]
      %v2278 = vld [vmem:[%s2233 + $0xb0] sm:$0xf]
      %v2279 = vld [vmem:[%s2233 + $0xb4] sm:$0xf]
      %v2280 = vld [vmem:[%s2233 + $0xb8] sm:$0xf]
      %v2281 = vld [vmem:[%s2233 + $0xbc] sm:$0xf]
      %v2282 = vunpack.c.l.b16 %v2124
      %v2283 = vunpack.c.h.b16 %v2124
      %v2284 = vunpack.c.l.b16 %v2128
      %v2285 = vunpack.c.l.b16 %v2131
      %v2286 = vunpack.c.h.b16 %v2131
      %v2287 = vunpack.c.l.b16 %v2134
      %v2288 = vunpack.c.l.b16 %v2138
      %v2289 = vunpack.c.h.b16 %v2138
      %v2290 = vunpack.c.l.b16 %v2142
      %v2291 = vunpack.c.l.b16 %v2145
      %v2292 = vunpack.c.h.b16 %v2145
      %v2293 = vunpack.c.l.b16 %v2148
      %v2294 = vunpack.c.l.b16 %v2152
      %v2295 = vunpack.c.h.b16 %v2152
      %v2296 = vunpack.c.l.b16 %v2156
      %v2297 = vunpack.c.l.b16 %v2159
      %v2298 = vunpack.c.h.b16 %v2159
      %v2299 = vunpack.c.l.b16 %v2162
      %v2300 = vunpack.c.l.b16 %v2166
      %v2301 = vunpack.c.h.b16 %v2166
      %v2302 = vunpack.c.l.b16 %v2170
      %v2303 = vunpack.c.l.b16 %v2173
      %v2304 = vunpack.c.h.b16 %v2173
      %v2305 = vunpack.c.l.b16 %v2176
      %v2306 = vunpack.c.l.b16 %v2180
      %v2307 = vunpack.c.h.b16 %v2180
      %v2308 = vunpack.c.l.b16 %v2184
      %v2309 = vunpack.c.l.b16 %v2187
      %v2310 = vunpack.c.h.b16 %v2187
      %v2311 = vunpack.c.l.b16 %v2190
      %v2312 = vunpack.c.l.b16 %v2194
      %v2313 = vunpack.c.h.b16 %v2194
      %v2314 = vunpack.c.l.b16 %v2198
      %v2315 = vunpack.c.l.b16 %v2201
      %v2316 = vunpack.c.h.b16 %v2201
      %v2317 = vunpack.c.l.b16 %v2204
      %v2318 = vunpack.c.l.b16 %v2208
      %v2319 = vunpack.c.h.b16 %v2208
      %v2320 = vunpack.c.l.b16 %v2212
      %v2321 = vunpack.c.l.b16 %v2215
      %v2322 = vunpack.c.h.b16 %v2215
      %v2323 = vunpack.c.l.b16 %v2218
      %v2324 = vunpack.c.l.b16 %v2222
      %v2325 = vunpack.c.h.b16 %v2222
      %v2326 = vunpack.c.l.b16 %v2226
      %v2327 = vunpack.c.l.b16 %v2229
      %v2328 = vunpack.c.h.b16 %v2229
      %v2329 = vunpack.c.l.b16 %v2232
      %v2330 = vpack.c.b16 %v2285, %v2282
      %v2331 = vpack.c.b16 %v2286, %v2283
      %v2332 = vpack.c.b16 %v2287, %v2284
      %v2333 = vpack.c.b16 %v2291, %v2288
      %v2334 = vpack.c.b16 %v2292, %v2289
      %v2335 = vpack.c.b16 %v2293, %v2290
      %v2336 = vpack.c.b16 %v2297, %v2294
      %v2337 = vpack.c.b16 %v2298, %v2295
      %v2338 = vpack.c.b16 %v2299, %v2296
      %v2339 = vpack.c.b16 %v2303, %v2300
      %v2340 = vpack.c.b16 %v2304, %v2301
      %v2341 = vpack.c.b16 %v2305, %v2302
      %v2342 = vpack.c.b16 %v2309, %v2306
      %v2343 = vpack.c.b16 %v2310, %v2307
      %v2344 = vpack.c.b16 %v2311, %v2308
      %v2345 = vpack.c.b16 %v2315, %v2312
      %v2346 = vpack.c.b16 %v2316, %v2313
      %v2347 = vpack.c.b16 %v2317, %v2314
      %v2348 = vpack.c.b16 %v2321, %v2318
      %v2349 = vpack.c.b16 %v2322, %v2319
      %v2350 = vpack.c.b16 %v2323, %v2320
      %v2351 = vpack.c.b16 %v2327, %v2324
      %v2352 = vpack.c.b16 %v2328, %v2325
      %v2353 = vpack.c.b16 %v2329, %v2326
      %v2426 = vunpack.c.l.b16 %v2234
      %v2427 = vunpack.c.l.b16 %v2235
      %v2428 = vunpack.c.l.b16 %v2236
      %v2429 = vunpack.c.l.b16 %v2237
      %v2430 = vunpack.c.l.b16 %v2238
      %v2431 = vunpack.c.l.b16 %v2239
      %v2432 = vunpack.c.l.b16 %v2240
      %v2433 = vunpack.c.l.b16 %v2241
      %v2434 = vunpack.c.l.b16 %v2242
      %v2435 = vunpack.c.l.b16 %v2243
      %v2436 = vunpack.c.l.b16 %v2244
      %v2437 = vunpack.c.l.b16 %v2245
      %v2438 = vunpack.c.l.b16 %v2246
      %v2439 = vunpack.c.l.b16 %v2247
      %v2440 = vunpack.c.l.b16 %v2248
      %v2441 = vunpack.c.l.b16 %v2249
      %v2442 = vunpack.c.l.b16 %v2250
      %v2443 = vunpack.c.l.b16 %v2251
      %v2444 = vunpack.c.l.b16 %v2252
      %v2445 = vunpack.c.l.b16 %v2253
      %v2446 = vunpack.c.l.b16 %v2254
      %v2447 = vunpack.c.l.b16 %v2255
      %v2448 = vunpack.c.l.b16 %v2256
      %v2449 = vunpack.c.l.b16 %v2257
      %v2450 = vunpack.c.l.b16 %v2258
      %v2451 = vunpack.c.l.b16 %v2259
      %v2452 = vunpack.c.l.b16 %v2260
      %v2453 = vunpack.c.l.b16 %v2261
      %v2454 = vunpack.c.l.b16 %v2262
      %v2455 = vunpack.c.l.b16 %v2263
      %v2456 = vunpack.c.l.b16 %v2264
      %v2457 = vunpack.c.l.b16 %v2265
      %v2458 = vunpack.c.l.b16 %v2266
      %v2459 = vunpack.c.l.b16 %v2267
      %v2460 = vunpack.c.l.b16 %v2268
      %v2461 = vunpack.c.l.b16 %v2269
      %v2462 = vunpack.c.l.b16 %v2270
      %v2463 = vunpack.c.l.b16 %v2271
      %v2464 = vunpack.c.l.b16 %v2272
      %v2465 = vunpack.c.l.b16 %v2273
      %v2466 = vunpack.c.l.b16 %v2274
      %v2467 = vunpack.c.l.b16 %v2275
      %v2468 = vunpack.c.l.b16 %v2276
      %v2469 = vunpack.c.l.b16 %v2277
      %v2470 = vunpack.c.l.b16 %v2278
      %v2471 = vunpack.c.l.b16 %v2279
      %v2472 = vunpack.c.l.b16 %v2280
      %v2473 = vunpack.c.l.b16 %v2281
      %v2474 = vpack.c.b16 %v2427, %v2426
      %v2475 = vpack.c.b16 %v2429, %v2428
      %v2476 = vpack.c.b16 %v2431, %v2430
      %v2477 = vpack.c.b16 %v2433, %v2432
      %v2478 = vpack.c.b16 %v2435, %v2434
      %v2479 = vpack.c.b16 %v2437, %v2436
      %v2480 = vpack.c.b16 %v2439, %v2438
      %v2481 = vpack.c.b16 %v2441, %v2440
      %v2482 = vpack.c.b16 %v2443, %v2442
      %v2483 = vpack.c.b16 %v2445, %v2444
      %v2484 = vpack.c.b16 %v2447, %v2446
      %v2485 = vpack.c.b16 %v2449, %v2448
      %v2486 = vpack.c.b16 %v2451, %v2450
      %v2487 = vpack.c.b16 %v2453, %v2452
      %v2488 = vpack.c.b16 %v2455, %v2454
      %v2489 = vpack.c.b16 %v2457, %v2456
      %v2490 = vpack.c.b16 %v2459, %v2458
      %v2491 = vpack.c.b16 %v2461, %v2460
      %v2492 = vpack.c.b16 %v2463, %v2462
      %v2493 = vpack.c.b16 %v2465, %v2464
      %v2494 = vpack.c.b16 %v2467, %v2466
      %v2495 = vpack.c.b16 %v2469, %v2468
      %v2496 = vpack.c.b16 %v2471, %v2470
      %v2497 = vpack.c.b16 %v2473, %v2472
      %2522 = vmatprep.subr.bf16.mxu0 0
      %2523 = vmatpush1.bf16.msra.mxu0 %v2481
      %2524 = vmatprep.subr.bf16.mxu0 0
      %2525 = vmatpush1.bf16.msra.mxu0 %v2480
      %2526 = vmatprep.subr.bf16.mxu0 0
      %2527 = vmatpush1.bf16.msra.mxu0 %v2479
      %2528 = vmatprep.subr.bf16.mxu0 0
      %2529 = vmatpush1.bf16.msra.mxu0 %v2478
      %2530 = vmatprep.subr.bf16.mxu0 0
      %2531 = vmatpush1.bf16.msra.mxu0 %v2477
      %2532 = vmatprep.subr.bf16.mxu0 0
      %2533 = vmatpush1.bf16.msra.mxu0 %v2476
      %2534 = vmatprep.subr.bf16.mxu0 0
      %2535 = vmatpush1.bf16.msra.mxu0 %v2475
      %2536 = vmatprep.subr.bf16.mxu0 0
      %2537 = vmatpush1.bf16.msra.mxu0 %v2474
      %2538 = vmatprep.subr.bf16.mxu0 0
      %2539 = vmatpush2.bf16.msra.mxu0 %v2489
      %2540 = vmatprep.subr.bf16.mxu0 0
      %2541 = vmatpush2.bf16.msra.mxu0 %v2488
      %2542 = vmatprep.subr.bf16.mxu0 0
      %2543 = vmatpush2.bf16.msra.mxu0 %v2487
      %2544 = vmatprep.subr.bf16.mxu0 0
      %2545 = vmatpush2.bf16.msra.mxu0 %v2486
      %2546 = vmatprep.subr.bf16.mxu0 0
      %2547 = vmatpush2.bf16.msra.mxu0 %v2485
      %2548 = vmatprep.subr.bf16.mxu0 0
      %2549 = vmatpush2.bf16.msra.mxu0 %v2484
      %2550 = vmatprep.subr.bf16.mxu0 0
      %2551 = vmatpush2.bf16.msra.mxu0 %v2483
      %2552 = vmatprep.subr.bf16.mxu0 0
      %2553 = vmatpush2.bf16.msra.mxu0 %v2482
      %2554 = vmatprep.mubr.bf16.mxu0 %v2331
      %2555 = vmatmul.mubr.bf16.gmra.mxu0 %v2330
      %v2556 = vpop.f32.mrf.mxu0
      %v2557 = vadd.f32 0.0, %v2556
      %v2558 = vpop.f32.mrf.mxu0
      %v2559 = vpop.f32.mrf.mxu0
      %v2560 = vadd.f32 0.0, %v2559
      %v2561 = vpop.f32.mrf.mxu0
      %2562 = vmatprep.mubr.bf16.mxu0 %v2334
      %2563 = vmatmul.mubr.bf16.gmra.mxu0 %v2333
      %v2564 = vpop.f32.mrf.mxu0
      %v2565 = vadd.f32 0.0, %v2564
      %v2566 = vpop.f32.mrf.mxu0
      %v2567 = vpop.f32.mrf.mxu0
      %v2568 = vadd.f32 0.0, %v2567
      %v2569 = vpop.f32.mrf.mxu0
      %2570 = vmatprep.mubr.bf16.mxu0 %v2337
      %2571 = vmatmul.mubr.bf16.gmra.mxu0 %v2336
      %v2572 = vpop.f32.mrf.mxu0
      %v2573 = vadd.f32 0.0, %v2572
      %v2574 = vpop.f32.mrf.mxu0
      %v2575 = vpop.f32.mrf.mxu0
      %v2576 = vadd.f32 0.0, %v2575
      %v2577 = vpop.f32.mrf.mxu0
      %2578 = vmatprep.mubr.bf16.mxu0 %v2340
      %2579 = vmatmul.mubr.bf16.gmra.mxu0 %v2339
      %v2580 = vpop.f32.mrf.mxu0
      %v2581 = vadd.f32 0.0, %v2580
      %v2582 = vpop.f32.mrf.mxu0
      %v2583 = vpop.f32.mrf.mxu0
      %v2584 = vadd.f32 0.0, %v2583
      %v2585 = vpop.f32.mrf.mxu0
      %2586 = vmatprep.mubr.bf16.mxu0 %v2343
      %2587 = vmatmul.mubr.bf16.gmra.mxu0 %v2342
      %v2588 = vpop.f32.mrf.mxu0
      %v2589 = vadd.f32 0.0, %v2588
      %v2590 = vpop.f32.mrf.mxu0
      %v2591 = vpop.f32.mrf.mxu0
      %v2592 = vadd.f32 0.0, %v2591
      %v2593 = vpop.f32.mrf.mxu0
      %2594 = vmatprep.mubr.bf16.mxu0 %v2346
      %2595 = vmatmul.mubr.bf16.gmra.mxu0 %v2345
      %v2596 = vpop.f32.mrf.mxu0
      %v2597 = vadd.f32 0.0, %v2596
      %v2598 = vpop.f32.mrf.mxu0
      %v2599 = vpop.f32.mrf.mxu0
      %v2600 = vadd.f32 0.0, %v2599
      %v2601 = vpop.f32.mrf.mxu0
      %2602 = vmatprep.mubr.bf16.mxu0 %v2349
      %2603 = vmatmul.mubr.bf16.gmra.mxu0 %v2348
      %v2604 = vpop.f32.mrf.mxu0
      %v2605 = vadd.f32 0.0, %v2604
      %v2606 = vpop.f32.mrf.mxu0
      %v2607 = vpop.f32.mrf.mxu0
      %v2608 = vadd.f32 0.0, %v2607
      %v2609 = vpop.f32.mrf.mxu0
      %2610 = vmatprep.mubr.bf16.mxu0 %v2352
      %2611 = vmatmul.mubr.bf16.gmra.mxu0 %v2351
      %v2612 = vpop.f32.mrf.mxu0
      %v2613 = vadd.f32 0.0, %v2612
      %v2614 = vpop.f32.mrf.mxu0
      %v2615 = vpop.f32.mrf.mxu0
      %v2616 = vadd.f32 0.0, %v2615
      %v2617 = vpop.f32.mrf.mxu0
      %2618 = vdwg.mxu0
      %2619 = vmatprep.subr.bf16.mxu0 0
      %2620 = vmatpush1.bf16.msra.mxu0 %v2497
      %2621 = vmatprep.subr.bf16.mxu0 0
      %2622 = vmatpush1.bf16.msra.mxu0 %v2496
      %2623 = vmatprep.subr.bf16.mxu0 0
      %2624 = vmatpush1.bf16.msra.mxu0 %v2495
      %2625 = vmatprep.subr.bf16.mxu0 0
      %2626 = vmatpush1.bf16.msra.mxu0 %v2494
      %2627 = vmatprep.subr.bf16.mxu0 0
      %2628 = vmatpush1.bf16.msra.mxu0 %v2493
      %2629 = vmatprep.subr.bf16.mxu0 0
      %2630 = vmatpush1.bf16.msra.mxu0 %v2492
      %2631 = vmatprep.subr.bf16.mxu0 0
      %2632 = vmatpush1.bf16.msra.mxu0 %v2491
      %2633 = vmatprep.subr.bf16.mxu0 0
      %2634 = vmatpush1.bf16.msra.mxu0 %v2490
      %2635 = vmatprep.subr.bf16.mxu0 0
      %2636 = vmatpush2.bf16.msra.mxu0 0
      %2637 = vmatprep.subr.bf16.mxu0 0
      %2638 = vmatpush2.bf16.msra.mxu0 0
      %2639 = vmatprep.subr.bf16.mxu0 0
      %2640 = vmatpush2.bf16.msra.mxu0 0
      %2641 = vmatprep.subr.bf16.mxu0 0
      %2642 = vmatpush2.bf16.msra.mxu0 0
      %2643 = vmatprep.subr.bf16.mxu0 0
      %2644 = vmatpush2.bf16.msra.mxu0 0
      %2645 = vmatprep.subr.bf16.mxu0 0
      %2646 = vmatpush2.bf16.msra.mxu0 0
      %2647 = vmatprep.subr.bf16.mxu0 0
      %2648 = vmatpush2.bf16.msra.mxu0 0
      %2649 = vmatprep.subr.bf16.mxu0 0
      %2650 = vmatpush2.bf16.msra.mxu0 0
      %2651 = vmatprep.mubr.bf16.mxu0 0
      %2652 = vmatmul.mubr.bf16.gmra.mxu0 %v2332
      %v2653 = vpop.f32.mrf.mxu0
      %v2654 = vadd.f32 %v2557, %v2653
      %v2655 = vpop.f32.mrf.mxu0
      %v2656 = vpop.f32.mrf.mxu0
      %v2657 = vadd.f32 %v2560, %v2656
      %v2658 = vpop.f32.mrf.mxu0
      %2659 = vmatprep.mubr.bf16.mxu0 0
      %2660 = vmatmul.mubr.bf16.gmra.mxu0 %v2335
      %v2661 = vpop.f32.mrf.mxu0
      %v2662 = vadd.f32 %v2565, %v2661
      %v2663 = vpop.f32.mrf.mxu0
      %v2664 = vpop.f32.mrf.mxu0
      %v2665 = vadd.f32 %v2568, %v2664
      %v2666 = vpop.f32.mrf.mxu0
      %2667 = vmatprep.mubr.bf16.mxu0 0
      %2668 = vmatmul.mubr.bf16.gmra.mxu0 %v2338
      %v2669 = vpop.f32.mrf.mxu0
      %v2670 = vadd.f32 %v2573, %v2669
      %v2671 = vpop.f32.mrf.mxu0
      %v2672 = vpop.f32.mrf.mxu0
      %v2673 = vadd.f32 %v2576, %v2672
      %v2674 = vpop.f32.mrf.mxu0
      %2675 = vmatprep.mubr.bf16.mxu0 0
      %2676 = vmatmul.mubr.bf16.gmra.mxu0 %v2341
      %v2677 = vpop.f32.mrf.mxu0
      %v2678 = vadd.f32 %v2581, %v2677
      %v2679 = vpop.f32.mrf.mxu0
      %v2680 = vpop.f32.mrf.mxu0
      %v2681 = vadd.f32 %v2584, %v2680
      %v2682 = vpop.f32.mrf.mxu0
      %2683 = vmatprep.mubr.bf16.mxu0 0
      %2684 = vmatmul.mubr.bf16.gmra.mxu0 %v2344
      %v2685 = vpop.f32.mrf.mxu0
      %v2686 = vadd.f32 %v2589, %v2685
      %v2687 = vpop.f32.mrf.mxu0
      %v2688 = vpop.f32.mrf.mxu0
      %v2689 = vadd.f32 %v2592, %v2688
      %v2690 = vpop.f32.mrf.mxu0
      %2691 = vmatprep.mubr.bf16.mxu0 0
      %2692 = vmatmul.mubr.bf16.gmra.mxu0 %v2347
      %v2693 = vpop.f32.mrf.mxu0
      %v2694 = vadd.f32 %v2597, %v2693
      %v2695 = vpop.f32.mrf.mxu0
      %v2696 = vpop.f32.mrf.mxu0
      %v2697 = vadd.f32 %v2600, %v2696
      %v2698 = vpop.f32.mrf.mxu0
      %2699 = vmatprep.mubr.bf16.mxu0 0
      %2700 = vmatmul.mubr.bf16.gmra.mxu0 %v2350
      %v2701 = vpop.f32.mrf.mxu0
      %v2702 = vadd.f32 %v2605, %v2701
      %v2703 = vpop.f32.mrf.mxu0
      %v2704 = vpop.f32.mrf.mxu0
      %v2705 = vadd.f32 %v2608, %v2704
      %v2706 = vpop.f32.mrf.mxu0
      %2707 = vmatprep.mubr.bf16.mxu0 0
      %2708 = vmatmul.mubr.bf16.gmra.mxu0 %v2353
      %v2709 = vpop.f32.mrf.mxu0
      %v2710 = vadd.f32 %v2613, %v2709
      %v2711 = vpop.f32.mrf.mxu0
      %v2712 = vpop.f32.mrf.mxu0
      %v2713 = vadd.f32 %v2616, %v2712
      %v2714 = vpop.f32.mrf.mxu0
      %2715 = vdwg.mxu0
      %v2716 = vadd.f32 %v2008, %v2654
      %v2717 = vadd.f32 %v2011, %v2657
      %v2718 = vadd.f32 %v2016, %v2662
      %v2719 = vadd.f32 %v2019, %v2665
      %v2720 = vadd.f32 %v2024, %v2670
      %v2721 = vadd.f32 %v2027, %v2673
      %v2722 = vadd.f32 %v2032, %v2678
      %v2723 = vadd.f32 %v2035, %v2681
      %v2724 = vadd.f32 %v2040, %v2686
      %v2725 = vadd.f32 %v2043, %v2689
      %v2726 = vadd.f32 %v2048, %v2694
      %v2727 = vadd.f32 %v2051, %v2697
      %v2728 = vadd.f32 %v2056, %v2702
      %v2729 = vadd.f32 %v2059, %v2705
      %v2730 = vadd.f32 %v2064, %v2710
      %v2731 = vadd.f32 %v2067, %v2713
      %v2733 = vlaneseq
      %v2734 = vshrl.u32 %v2733, 7
      %v2735 = vsub.s32 0, %v2734
      %v2736 = vrot.slane %v226, %v2735
      %v2738 = vadd.f32 %v2716, %v2736
      %v2739 = vadd.f32 %v2717, %v2736
      %v2740 = vadd.f32 %v2718, %v2736
      %v2741 = vadd.f32 %v2719, %v2736
      %v2742 = vadd.f32 %v2720, %v2736
      %v2743 = vadd.f32 %v2721, %v2736
      %v2744 = vadd.f32 %v2722, %v2736
      %v2745 = vadd.f32 %v2723, %v2736
      %v2746 = vadd.f32 %v2724, %v2736
      %v2747 = vadd.f32 %v2725, %v2736
      %v2748 = vadd.f32 %v2726, %v2736
      %v2749 = vadd.f32 %v2727, %v2736
      %v2750 = vadd.f32 %v2728, %v2736
      %v2751 = vadd.f32 %v2729, %v2736
      %v2752 = vadd.f32 %v2730, %v2736
      %v2753 = vadd.f32 %v2731, %v2736
      %v2754 = vmax.f32 %v2738, 0.0
      %v2755 = vmax.f32 %v2739, 0.0
      %v2756 = vmax.f32 %v2740, 0.0
      %v2757 = vmax.f32 %v2741, 0.0
      %v2758 = vmax.f32 %v2742, 0.0
      %v2759 = vmax.f32 %v2743, 0.0
      %v2760 = vmax.f32 %v2744, 0.0
      %v2761 = vmax.f32 %v2745, 0.0
      %v2762 = vmax.f32 %v2746, 0.0
      %v2763 = vmax.f32 %v2747, 0.0
      %v2764 = vmax.f32 %v2748, 0.0
      %v2765 = vmax.f32 %v2749, 0.0
      %v2766 = vmax.f32 %v2750, 0.0
      %v2767 = vmax.f32 %v2751, 0.0
      %v2768 = vmax.f32 %v2752, 0.0
      %v2769 = vmax.f32 %v2753, 0.0
      %v2770 = vpack.c.bf16 %v2755, %v2754
      %v2771 = vpack.c.bf16 %v2757, %v2756
      %v2772 = vpack.c.bf16 %v2759, %v2758
      %v2773 = vpack.c.bf16 %v2761, %v2760
      %v2774 = vpack.c.bf16 %v2763, %v2762
      %v2775 = vpack.c.bf16 %v2765, %v2764
      %v2776 = vpack.c.bf16 %v2767, %v2766
      %v2777 = vpack.c.bf16 %v2769, %v2768
      %v2786 = vunpack.c.l.b16 %v2770
      %v2787 = vunpack.c.h.b16 %v2770
      %v2788 = vunpack.c.l.b16 %v2771
      %v2789 = vunpack.c.h.b16 %v2771
      %v2790 = vunpack.c.l.b16 %v2772
      %v2791 = vunpack.c.h.b16 %v2772
      %v2792 = vunpack.c.l.b16 %v2773
      %v2793 = vunpack.c.h.b16 %v2773
      %v2794 = vunpack.c.l.b16 %v2774
      %v2795 = vunpack.c.h.b16 %v2774
      %v2796 = vunpack.c.l.b16 %v2775
      %v2797 = vunpack.c.h.b16 %v2775
      %v2798 = vunpack.c.l.b16 %v2776
      %v2799 = vunpack.c.h.b16 %v2776
      %v2800 = vunpack.c.l.b16 %v2777
      %v2801 = vunpack.c.h.b16 %v2777
      %v2802 = vpack.c.b16 %v2786, %v2786
      %v2803 = vpack.c.b16 %v2787, %v2787
      %v2804 = vpack.c.b16 %v2788, %v2788
      %v2805 = vpack.c.b16 %v2789, %v2789
      %v2806 = vpack.c.b16 %v2790, %v2790
      %v2807 = vpack.c.b16 %v2791, %v2791
      %v2808 = vpack.c.b16 %v2792, %v2792
      %v2809 = vpack.c.b16 %v2793, %v2793
      %v2810 = vpack.c.b16 %v2794, %v2794
      %v2811 = vpack.c.b16 %v2795, %v2795
      %v2812 = vpack.c.b16 %v2796, %v2796
      %v2813 = vpack.c.b16 %v2797, %v2797
      %v2814 = vpack.c.b16 %v2798, %v2798
      %v2815 = vpack.c.b16 %v2799, %v2799
      %v2816 = vpack.c.b16 %v2800, %v2800
      %v2817 = vpack.c.b16 %v2801, %v2801
      %vm2818 = vsmask.f32 4368
      %vm2819 = vmor %vm526, %vm2818
      %v2821 = vshrl.u32 %v2802, 16
      %v2823 = vrot.slane %v2821, 7
      %v2824 = vshll.u32 %v2802, 16
      %v2826 = vor.u32 %v2823, %v2824
      %v2827 = vrot.slane %v2823, 4
      %v2829 = vshrl.u32 %v2803, 16
      %v2831 = vrot.slane %v2829, 7
      %v2832 = vshll.u32 %v2803, 16
      %v2834 = vor.u32 %v2831, %v2832
      %v2835 = vsel %vm2819, %v2827, %v2834
      %v2836 = vrot.slane %v2831, 4
      %v2838 = vshrl.u32 %v2804, 16
      %v2840 = vrot.slane %v2838, 7
      %v2841 = vshll.u32 %v2804, 16
      %v2843 = vor.u32 %v2840, %v2841
      %v2844 = vrot.slane %v2840, 4
      %v2846 = vshrl.u32 %v2805, 16
      %v2848 = vrot.slane %v2846, 7
      %v2849 = vshll.u32 %v2805, 16
      %v2851 = vor.u32 %v2848, %v2849
      %v2852 = vsel %vm2819, %v2844, %v2851
      %v2853 = vrot.slane %v2848, 4
      %v2855 = vshrl.u32 %v2806, 16
      %v2857 = vrot.slane %v2855, 7
      %v2858 = vshll.u32 %v2806, 16
      %v2860 = vor.u32 %v2857, %v2858
      %v2861 = vrot.slane %v2857, 4
      %v2863 = vshrl.u32 %v2807, 16
      %v2865 = vrot.slane %v2863, 7
      %v2866 = vshll.u32 %v2807, 16
      %v2868 = vor.u32 %v2865, %v2866
      %v2869 = vsel %vm2819, %v2861, %v2868
      %v2870 = vrot.slane %v2865, 4
      %v2872 = vshrl.u32 %v2808, 16
      %v2874 = vrot.slane %v2872, 7
      %v2875 = vshll.u32 %v2808, 16
      %v2877 = vor.u32 %v2874, %v2875
      %v2878 = vrot.slane %v2874, 4
      %v2880 = vshrl.u32 %v2809, 16
      %v2882 = vrot.slane %v2880, 7
      %v2883 = vshll.u32 %v2809, 16
      %v2885 = vor.u32 %v2882, %v2883
      %v2886 = vsel %vm2819, %v2878, %v2885
      %v2887 = vrot.slane %v2882, 4
      %v2889 = vshrl.u32 %v2810, 16
      %v2891 = vrot.slane %v2889, 7
      %v2892 = vshll.u32 %v2810, 16
      %v2894 = vor.u32 %v2891, %v2892
      %v2895 = vrot.slane %v2891, 4
      %v2897 = vshrl.u32 %v2811, 16
      %v2899 = vrot.slane %v2897, 7
      %v2900 = vshll.u32 %v2811, 16
      %v2902 = vor.u32 %v2899, %v2900
      %v2903 = vsel %vm2819, %v2895, %v2902
      %v2904 = vrot.slane %v2899, 4
      %v2906 = vshrl.u32 %v2812, 16
      %v2908 = vrot.slane %v2906, 7
      %v2909 = vshll.u32 %v2812, 16
      %v2911 = vor.u32 %v2908, %v2909
      %v2912 = vrot.slane %v2908, 4
      %v2914 = vshrl.u32 %v2813, 16
      %v2916 = vrot.slane %v2914, 7
      %v2917 = vshll.u32 %v2813, 16
      %v2919 = vor.u32 %v2916, %v2917
      %v2920 = vsel %vm2819, %v2912, %v2919
      %v2921 = vrot.slane %v2916, 4
      %v2923 = vshrl.u32 %v2814, 16
      %v2925 = vrot.slane %v2923, 7
      %v2926 = vshll.u32 %v2814, 16
      %v2928 = vor.u32 %v2925, %v2926
      %v2929 = vrot.slane %v2925, 4
      %v2931 = vshrl.u32 %v2815, 16
      %v2933 = vrot.slane %v2931, 7
      %v2934 = vshll.u32 %v2815, 16
      %v2936 = vor.u32 %v2933, %v2934
      %v2937 = vsel %vm2819, %v2929, %v2936
      %v2938 = vrot.slane %v2933, 4
      %v2940 = vshrl.u32 %v2816, 16
      %v2942 = vrot.slane %v2940, 7
      %v2943 = vshll.u32 %v2816, 16
      %v2945 = vor.u32 %v2942, %v2943
      %v2946 = vrot.slane %v2942, 4
      %v2948 = vshrl.u32 %v2817, 16
      %v2950 = vrot.slane %v2948, 7
      %v2951 = vshll.u32 %v2817, 16
      %v2953 = vor.u32 %v2950, %v2951
      %v2954 = vsel %vm2819, %v2946, %v2953
      %v2955 = vrot.slane %v2950, 4
      %s2980 = scalar_lea.vmem [#allocation3], 12
      %vm2981 = vcmask 1043456
      %vm2982 = vmand %vm2981, %vm582
      %v2983 = vld [vmem:[%s2980] sm:$0xf]
      %v2984 = vsel %vm2982, %v2826, %v2983
      %2985 = vst [vmem:[%s2980] sm:$0xf] %v2984
      %2986 = vst [vmem:[%s2980 + $0x4] sm:$0xf] %v2835
      %v2987 = vld [vmem:[%s2980 + $0x8] sm:$0x1]
      %v2988 = vsel %vm527, %v2836, %v2987
      %2989 = vst [vmem:[%s2980 + $0x8] sm:$0x1] %v2988
      %v2990 = vld [vmem:[%s2980 + $0xc] sm:$0xf]
      %v2991 = vsel %vm2982, %v2843, %v2990
      %2992 = vst [vmem:[%s2980 + $0xc] sm:$0xf] %v2991
      %2993 = vst [vmem:[%s2980 + $0x10] sm:$0xf] %v2852
      %v2994 = vld [vmem:[%s2980 + $0x14] sm:$0x1]
      %v2995 = vsel %vm527, %v2853, %v2994
      %2996 = vst [vmem:[%s2980 + $0x14] sm:$0x1] %v2995
      %v2997 = vld [vmem:[%s2980 + $0x18] sm:$0xf]
      %v2998 = vsel %vm2982, %v2860, %v2997
      %2999 = vst [vmem:[%s2980 + $0x18] sm:$0xf] %v2998
      %3000 = vst [vmem:[%s2980 + $0x1c] sm:$0xf] %v2869
      %v3001 = vld [vmem:[%s2980 + $0x20] sm:$0x1]
      %v3002 = vsel %vm527, %v2870, %v3001
      %3003 = vst [vmem:[%s2980 + $0x20] sm:$0x1] %v3002
      %v3004 = vld [vmem:[%s2980 + $0x24] sm:$0xf]
      %v3005 = vsel %vm2982, %v2877, %v3004
      %3006 = vst [vmem:[%s2980 + $0x24] sm:$0xf] %v3005
      %3007 = vst [vmem:[%s2980 + $0x28] sm:$0xf] %v2886
      %v3008 = vld [vmem:[%s2980 + $0x2c] sm:$0x1]
      %v3009 = vsel %vm527, %v2887, %v3008
      %3010 = vst [vmem:[%s2980 + $0x2c] sm:$0x1] %v3009
      %v3011 = vld [vmem:[%s2980 + $0x30] sm:$0xf]
      %v3012 = vsel %vm2982, %v2894, %v3011
      %3013 = vst [vmem:[%s2980 + $0x30] sm:$0xf] %v3012
      %3014 = vst [vmem:[%s2980 + $0x34] sm:$0xf] %v2903
      %v3015 = vld [vmem:[%s2980 + $0x38] sm:$0x1]
      %v3016 = vsel %vm527, %v2904, %v3015
      %3017 = vst [vmem:[%s2980 + $0x38] sm:$0x1] %v3016
      %v3018 = vld [vmem:[%s2980 + $0x3c] sm:$0xf]
      %v3019 = vsel %vm2982, %v2911, %v3018
      %3020 = vst [vmem:[%s2980 + $0x3c] sm:$0xf] %v3019
      %3021 = vst [vmem:[%s2980 + $0x40] sm:$0xf] %v2920
      %v3022 = vld [vmem:[%s2980 + $0x44] sm:$0x1]
      %v3023 = vsel %vm527, %v2921, %v3022
      %3024 = vst [vmem:[%s2980 + $0x44] sm:$0x1] %v3023
      %v3025 = vld [vmem:[%s2980 + $0x48] sm:$0xf]
      %v3026 = vsel %vm2982, %v2928, %v3025
      %3027 = vst [vmem:[%s2980 + $0x48] sm:$0xf] %v3026
      %3028 = vst [vmem:[%s2980 + $0x4c] sm:$0xf] %v2937
      %v3029 = vld [vmem:[%s2980 + $0x50] sm:$0x1]
      %v3030 = vsel %vm527, %v2938, %v3029
      %3031 = vst [vmem:[%s2980 + $0x50] sm:$0x1] %v3030
      %v3032 = vld [vmem:[%s2980 + $0x54] sm:$0xf]
      %v3033 = vsel %vm2982, %v2945, %v3032
      %3034 = vst [vmem:[%s2980 + $0x54] sm:$0xf] %v3033
      %3035 = vst [vmem:[%s2980 + $0x58] sm:$0xf] %v2954
      %v3036 = vld [vmem:[%s2980 + $0x5c] sm:$0x1]
      %v3037 = vsel %vm527, %v2955, %v3036
      %3038 = vst [vmem:[%s2980 + $0x5c] sm:$0x1] %v3037
      %s3039 = scalar_lea.vmem [#allocation2], 288
      %v3040 = vld [vmem:[%s3039] sm:$0xff]
      %v3041 = vld [vmem:[%s3039 + $0x8] sm:$0xf]
      %v3042 = vld [vmem:[%s3039 + $0xc] sm:$0xff]
      %v3043 = vld [vmem:[%s3039 + $0x14] sm:$0xf]
      %v3044 = vld [vmem:[%s3039 + $0x24] sm:$0xff]
      %v3045 = vld [vmem:[%s3039 + $0x2c] sm:$0xf]
      %v3046 = vld [vmem:[%s3039 + $0x30] sm:$0xff]
      %v3047 = vld [vmem:[%s3039 + $0x38] sm:$0xf]
      %v3048 = vld [vmem:[%s3039 + $0x48] sm:$0xff]
      %v3049 = vld [vmem:[%s3039 + $0x50] sm:$0xf]
      %v3050 = vld [vmem:[%s3039 + $0x54] sm:$0xff]
      %v3051 = vld [vmem:[%s3039 + $0x5c] sm:$0xf]
      %v3052 = vld [vmem:[%s3039 + $0x6c] sm:$0xff]
      %v3053 = vld [vmem:[%s3039 + $0x74] sm:$0xf]
      %v3054 = vld [vmem:[%s3039 + $0x78] sm:$0xff]
      %v3055 = vld [vmem:[%s3039 + $0x80] sm:$0xf]
      %v3056 = vld [vmem:[%s3039 + $0x90] sm:$0xff]
      %v3057 = vld [vmem:[%s3039 + $0x98] sm:$0xf]
      %v3058 = vld [vmem:[%s3039 + $0x9c] sm:$0xff]
      %v3059 = vld [vmem:[%s3039 + $0xa4] sm:$0xf]
      %v3060 = vld [vmem:[%s3039 + $0xb4] sm:$0xff]
      %v3061 = vld [vmem:[%s3039 + $0xbc] sm:$0xf]
      %v3062 = vld [vmem:[%s3039 + $0xc0] sm:$0xff]
      %v3063 = vld [vmem:[%s3039 + $0xc8] sm:$0xf]
      %v3064 = vld [vmem:[%s3039 + $0xd8] sm:$0xff]
      %v3065 = vld [vmem:[%s3039 + $0xe0] sm:$0xf]
      %v3066 = vld [vmem:[%s3039 + $0xe4] sm:$0xff]
      %v3067 = vld [vmem:[%s3039 + $0xec] sm:$0xf]
      %v3068 = vld [vmem:[%s3039 + $0xfc] sm:$0xff]
      %v3069 = vld [vmem:[%s3039 + $0x104] sm:$0xf]
      %v3070 = vld [vmem:[%s3039 + $0x108] sm:$0xff]
      %v3071 = vld [vmem:[%s3039 + $0x110] sm:$0xf]
      %v3072 = vld [vmem:[%s1] sm:$0xf]
      %v3073 = vld [vmem:[%s1 + $0x4] sm:$0xf]
      %v3074 = vld [vmem:[%s1 + $0x8] sm:$0xf]
      %v3075 = vld [vmem:[%s1 + $0xc] sm:$0xf]
      %v3076 = vld [vmem:[%s1 + $0x10] sm:$0xf]
      %v3077 = vld [vmem:[%s1 + $0x14] sm:$0xf]
      %v3078 = vld [vmem:[%s1 + $0x18] sm:$0xf]
      %v3079 = vld [vmem:[%s1 + $0x1c] sm:$0xf]
      %v3080 = vld [vmem:[%s1 + $0x20] sm:$0xf]
      %v3081 = vld [vmem:[%s1 + $0x24] sm:$0xf]
      %v3082 = vld [vmem:[%s1 + $0x28] sm:$0xf]
      %v3083 = vld [vmem:[%s1 + $0x2c] sm:$0xf]
      %v3084 = vld [vmem:[%s1 + $0x30] sm:$0xf]
      %v3085 = vld [vmem:[%s1 + $0x34] sm:$0xf]
      %v3086 = vld [vmem:[%s1 + $0x38] sm:$0xf]
      %v3087 = vld [vmem:[%s1 + $0x3c] sm:$0xf]
      %v3088 = vld [vmem:[%s1 + $0x40] sm:$0xf]
      %v3089 = vld [vmem:[%s1 + $0x44] sm:$0xf]
      %v3090 = vld [vmem:[%s1 + $0x48] sm:$0xf]
      %v3091 = vld [vmem:[%s1 + $0x4c] sm:$0xf]
      %v3092 = vld [vmem:[%s1 + $0x50] sm:$0xf]
      %v3093 = vld [vmem:[%s1 + $0x54] sm:$0xf]
      %v3094 = vld [vmem:[%s1 + $0x58] sm:$0xf]
      %v3095 = vld [vmem:[%s1 + $0x5c] sm:$0xf]
      %v3096 = vld [vmem:[%s1 + $0x60] sm:$0xf]
      %v3097 = vld [vmem:[%s1 + $0x64] sm:$0xf]
      %v3098 = vld [vmem:[%s1 + $0x68] sm:$0xf]
      %v3099 = vld [vmem:[%s1 + $0x6c] sm:$0xf]
      %v3100 = vld [vmem:[%s1 + $0x70] sm:$0xf]
      %v3101 = vld [vmem:[%s1 + $0x74] sm:$0xf]
      %v3102 = vld [vmem:[%s1 + $0x78] sm:$0xf]
      %v3103 = vld [vmem:[%s1 + $0x7c] sm:$0xf]
      %v3104 = vld [vmem:[%s1 + $0x80] sm:$0xf]
      %v3105 = vld [vmem:[%s1 + $0x84] sm:$0xf]
      %v3106 = vld [vmem:[%s1 + $0x88] sm:$0xf]
      %v3107 = vld [vmem:[%s1 + $0x8c] sm:$0xf]
      %v3108 = vld [vmem:[%s1 + $0x90] sm:$0xf]
      %v3109 = vld [vmem:[%s1 + $0x94] sm:$0xf]
      %v3110 = vld [vmem:[%s1 + $0x98] sm:$0xf]
      %v3111 = vld [vmem:[%s1 + $0x9c] sm:$0xf]
      %v3112 = vld [vmem:[%s1 + $0xa0] sm:$0xf]
      %v3113 = vld [vmem:[%s1 + $0xa4] sm:$0xf]
      %v3114 = vld [vmem:[%s1 + $0xa8] sm:$0xf]
      %v3115 = vld [vmem:[%s1 + $0xac] sm:$0xf]
      %v3116 = vld [vmem:[%s1 + $0xb0] sm:$0xf]
      %v3117 = vld [vmem:[%s1 + $0xb4] sm:$0xf]
      %v3118 = vld [vmem:[%s1 + $0xb8] sm:$0xf]
      %v3119 = vld [vmem:[%s1 + $0xbc] sm:$0xf]
      %v3120 = vld [vmem:[%s3039 + $0x18] sm:$0x11]
      %v3121 = vld [vmem:[%s3039 + $0x20] sm:$0x1]
      %v3122 = vld [vmem:[%s3039 + $0x3c] sm:$0x11]
      %v3123 = vld [vmem:[%s3039 + $0x44] sm:$0x1]
      %v3124 = vld [vmem:[%s3039 + $0x60] sm:$0x11]
      %v3125 = vld [vmem:[%s3039 + $0x68] sm:$0x1]
      %v3126 = vld [vmem:[%s3039 + $0x84] sm:$0x11]
      %v3127 = vld [vmem:[%s3039 + $0x8c] sm:$0x1]
      %v3128 = vld [vmem:[%s3039 + $0xa8] sm:$0x11]
      %v3129 = vld [vmem:[%s3039 + $0xb0] sm:$0x1]
      %v3130 = vld [vmem:[%s3039 + $0xcc] sm:$0x11]
      %v3131 = vld [vmem:[%s3039 + $0xd4] sm:$0x1]
      %v3132 = vld [vmem:[%s3039 + $0xf0] sm:$0x11]
      %v3133 = vld [vmem:[%s3039 + $0xf8] sm:$0x1]
      %v3134 = vld [vmem:[%s3039 + $0x114] sm:$0x11]
      %v3135 = vld [vmem:[%s3039 + $0x11c] sm:$0x1]
      %v3137 = vshrl.u32 %v3040, 16
      %v3139 = vrot.slane %v3137, 4
      %v3140 = vshll.u32 %v3040, 16
      %v3142 = vrot.slane %v3140, 5
      %v3143 = vor.u32 %v3139, %v3142
      %v3144 = vrot.slane %v3143, 4
      %v3146 = vshll.u32 %v3042, 16
      %v3148 = vrot.slane %v3146, 5
      %v3149 = vsel %vm736, %v3144, %v3148
      %v3151 = vshrl.u32 %v3041, 16
      %v3153 = vrot.slane %v3151, 4
      %v3154 = vshll.u32 %v3041, 16
      %v3156 = vrot.slane %v3154, 5
      %v3157 = vor.u32 %v3153, %v3156
      %v3158 = vrot.slane %v3157, 4
      %v3160 = vshll.u32 %v3043, 16
      %v3162 = vrot.slane %v3160, 5
      %v3163 = vsel %vm736, %v3158, %v3162
      %v3164 = vshrl.u32 %v3042, 16
      %v3166 = vrot.slane %v3164, 4
      %v3167 = vor.u32 %v3166, %v3148
      %v3168 = vrot.slane %v3167, 4
      %v3170 = vshll.u32 %v3120, 16
      %v3172 = vrot.slane %v3170, 5
      %v3173 = vsel %vm736, %v3168, %v3172
      %v3174 = vshrl.u32 %v3043, 16
      %v3176 = vrot.slane %v3174, 4
      %v3177 = vor.u32 %v3176, %v3162
      %v3178 = vrot.slane %v3177, 4
      %v3180 = vshll.u32 %v3121, 16
      %v3182 = vrot.slane %v3180, 5
      %v3183 = vsel %vm736, %v3178, %v3182
      %v3185 = vshrl.u32 %v3044, 16
      %v3187 = vrot.slane %v3185, 4
      %v3188 = vshll.u32 %v3044, 16
      %v3190 = vrot.slane %v3188, 5
      %v3191 = vor.u32 %v3187, %v3190
      %v3192 = vrot.slane %v3191, 4
      %v3194 = vshll.u32 %v3046, 16
      %v3196 = vrot.slane %v3194, 5
      %v3197 = vsel %vm736, %v3192, %v3196
      %v3199 = vshrl.u32 %v3045, 16
      %v3201 = vrot.slane %v3199, 4
      %v3202 = vshll.u32 %v3045, 16
      %v3204 = vrot.slane %v3202, 5
      %v3205 = vor.u32 %v3201, %v3204
      %v3206 = vrot.slane %v3205, 4
      %v3208 = vshll.u32 %v3047, 16
      %v3210 = vrot.slane %v3208, 5
      %v3211 = vsel %vm736, %v3206, %v3210
      %v3212 = vshrl.u32 %v3046, 16
      %v3214 = vrot.slane %v3212, 4
      %v3215 = vor.u32 %v3214, %v3196
      %v3216 = vrot.slane %v3215, 4
      %v3218 = vshll.u32 %v3122, 16
      %v3220 = vrot.slane %v3218, 5
      %v3221 = vsel %vm736, %v3216, %v3220
      %v3222 = vshrl.u32 %v3047, 16
      %v3224 = vrot.slane %v3222, 4
      %v3225 = vor.u32 %v3224, %v3210
      %v3226 = vrot.slane %v3225, 4
      %v3228 = vshll.u32 %v3123, 16
      %v3230 = vrot.slane %v3228, 5
      %v3231 = vsel %vm736, %v3226, %v3230
      %v3233 = vshrl.u32 %v3048, 16
      %v3235 = vrot.slane %v3233, 4
      %v3236 = vshll.u32 %v3048, 16
      %v3238 = vrot.slane %v3236, 5
      %v3239 = vor.u32 %v3235, %v3238
      %v3240 = vrot.slane %v3239, 4
      %v3242 = vshll.u32 %v3050, 16
      %v3244 = vrot.slane %v3242, 5
      %v3245 = vsel %vm736, %v3240, %v3244
      %v3247 = vshrl.u32 %v3049, 16
      %v3249 = vrot.slane %v3247, 4
      %v3250 = vshll.u32 %v3049, 16
      %v3252 = vrot.slane %v3250, 5
      %v3253 = vor.u32 %v3249, %v3252
      %v3254 = vrot.slane %v3253, 4
      %v3256 = vshll.u32 %v3051, 16
      %v3258 = vrot.slane %v3256, 5
      %v3259 = vsel %vm736, %v3254, %v3258
      %v3260 = vshrl.u32 %v3050, 16
      %v3262 = vrot.slane %v3260, 4
      %v3263 = vor.u32 %v3262, %v3244
      %v3264 = vrot.slane %v3263, 4
      %v3266 = vshll.u32 %v3124, 16
      %v3268 = vrot.slane %v3266, 5
      %v3269 = vsel %vm736, %v3264, %v3268
      %v3270 = vshrl.u32 %v3051, 16
      %v3272 = vrot.slane %v3270, 4
      %v3273 = vor.u32 %v3272, %v3258
      %v3274 = vrot.slane %v3273, 4
      %v3276 = vshll.u32 %v3125, 16
      %v3278 = vrot.slane %v3276, 5
      %v3279 = vsel %vm736, %v3274, %v3278
      %v3281 = vshrl.u32 %v3052, 16
      %v3283 = vrot.slane %v3281, 4
      %v3284 = vshll.u32 %v3052, 16
      %v3286 = vrot.slane %v3284, 5
      %v3287 = vor.u32 %v3283, %v3286
      %v3288 = vrot.slane %v3287, 4
      %v3290 = vshll.u32 %v3054, 16
      %v3292 = vrot.slane %v3290, 5
      %v3293 = vsel %vm736, %v3288, %v3292
      %v3295 = vshrl.u32 %v3053, 16
      %v3297 = vrot.slane %v3295, 4
      %v3298 = vshll.u32 %v3053, 16
      %v3300 = vrot.slane %v3298, 5
      %v3301 = vor.u32 %v3297, %v3300
      %v3302 = vrot.slane %v3301, 4
      %v3304 = vshll.u32 %v3055, 16
      %v3306 = vrot.slane %v3304, 5
      %v3307 = vsel %vm736, %v3302, %v3306
      %v3308 = vshrl.u32 %v3054, 16
      %v3310 = vrot.slane %v3308, 4
      %v3311 = vor.u32 %v3310, %v3292
      %v3312 = vrot.slane %v3311, 4
      %v3314 = vshll.u32 %v3126, 16
      %v3316 = vrot.slane %v3314, 5
      %v3317 = vsel %vm736, %v3312, %v3316
      %v3318 = vshrl.u32 %v3055, 16
      %v3320 = vrot.slane %v3318, 4
      %v3321 = vor.u32 %v3320, %v3306
      %v3322 = vrot.slane %v3321, 4
      %v3324 = vshll.u32 %v3127, 16
      %v3326 = vrot.slane %v3324, 5
      %v3327 = vsel %vm736, %v3322, %v3326
      %v3329 = vshrl.u32 %v3056, 16
      %v3331 = vrot.slane %v3329, 4
      %v3332 = vshll.u32 %v3056, 16
      %v3334 = vrot.slane %v3332, 5
      %v3335 = vor.u32 %v3331, %v3334
      %v3336 = vrot.slane %v3335, 4
      %v3338 = vshll.u32 %v3058, 16
      %v3340 = vrot.slane %v3338, 5
      %v3341 = vsel %vm736, %v3336, %v3340
      %v3343 = vshrl.u32 %v3057, 16
      %v3345 = vrot.slane %v3343, 4
      %v3346 = vshll.u32 %v3057, 16
      %v3348 = vrot.slane %v3346, 5
      %v3349 = vor.u32 %v3345, %v3348
      %v3350 = vrot.slane %v3349, 4
      %v3352 = vshll.u32 %v3059, 16
      %v3354 = vrot.slane %v3352, 5
      %v3355 = vsel %vm736, %v3350, %v3354
      %v3356 = vshrl.u32 %v3058, 16
      %v3358 = vrot.slane %v3356, 4
      %v3359 = vor.u32 %v3358, %v3340
      %v3360 = vrot.slane %v3359, 4
      %v3362 = vshll.u32 %v3128, 16
      %v3364 = vrot.slane %v3362, 5
      %v3365 = vsel %vm736, %v3360, %v3364
      %v3366 = vshrl.u32 %v3059, 16
      %v3368 = vrot.slane %v3366, 4
      %v3369 = vor.u32 %v3368, %v3354
      %v3370 = vrot.slane %v3369, 4
      %v3372 = vshll.u32 %v3129, 16
      %v3374 = vrot.slane %v3372, 5
      %v3375 = vsel %vm736, %v3370, %v3374
      %v3377 = vshrl.u32 %v3060, 16
      %v3379 = vrot.slane %v3377, 4
      %v3380 = vshll.u32 %v3060, 16
      %v3382 = vrot.slane %v3380, 5
      %v3383 = vor.u32 %v3379, %v3382
      %v3384 = vrot.slane %v3383, 4
      %v3386 = vshll.u32 %v3062, 16
      %v3388 = vrot.slane %v3386, 5
      %v3389 = vsel %vm736, %v3384, %v3388
      %v3391 = vshrl.u32 %v3061, 16
      %v3393 = vrot.slane %v3391, 4
      %v3394 = vshll.u32 %v3061, 16
      %v3396 = vrot.slane %v3394, 5
      %v3397 = vor.u32 %v3393, %v3396
      %v3398 = vrot.slane %v3397, 4
      %v3400 = vshll.u32 %v3063, 16
      %v3402 = vrot.slane %v3400, 5
      %v3403 = vsel %vm736, %v3398, %v3402
      %v3404 = vshrl.u32 %v3062, 16
      %v3406 = vrot.slane %v3404, 4
      %v3407 = vor.u32 %v3406, %v3388
      %v3408 = vrot.slane %v3407, 4
      %v3410 = vshll.u32 %v3130, 16
      %v3412 = vrot.slane %v3410, 5
      %v3413 = vsel %vm736, %v3408, %v3412
      %v3414 = vshrl.u32 %v3063, 16
      %v3416 = vrot.slane %v3414, 4
      %v3417 = vor.u32 %v3416, %v3402
      %v3418 = vrot.slane %v3417, 4
      %v3420 = vshll.u32 %v3131, 16
      %v3422 = vrot.slane %v3420, 5
      %v3423 = vsel %vm736, %v3418, %v3422
      %v3425 = vshrl.u32 %v3064, 16
      %v3427 = vrot.slane %v3425, 4
      %v3428 = vshll.u32 %v3064, 16
      %v3430 = vrot.slane %v3428, 5
      %v3431 = vor.u32 %v3427, %v3430
      %v3432 = vrot.slane %v3431, 4
      %v3434 = vshll.u32 %v3066, 16
      %v3436 = vrot.slane %v3434, 5
      %v3437 = vsel %vm736, %v3432, %v3436
      %v3439 = vshrl.u32 %v3065, 16
      %v3441 = vrot.slane %v3439, 4
      %v3442 = vshll.u32 %v3065, 16
      %v3444 = vrot.slane %v3442, 5
      %v3445 = vor.u32 %v3441, %v3444
      %v3446 = vrot.slane %v3445, 4
      %v3448 = vshll.u32 %v3067, 16
      %v3450 = vrot.slane %v3448, 5
      %v3451 = vsel %vm736, %v3446, %v3450
      %v3452 = vshrl.u32 %v3066, 16
      %v3454 = vrot.slane %v3452, 4
      %v3455 = vor.u32 %v3454, %v3436
      %v3456 = vrot.slane %v3455, 4
      %v3458 = vshll.u32 %v3132, 16
      %v3460 = vrot.slane %v3458, 5
      %v3461 = vsel %vm736, %v3456, %v3460
      %v3462 = vshrl.u32 %v3067, 16
      %v3464 = vrot.slane %v3462, 4
      %v3465 = vor.u32 %v3464, %v3450
      %v3466 = vrot.slane %v3465, 4
      %v3468 = vshll.u32 %v3133, 16
      %v3470 = vrot.slane %v3468, 5
      %v3471 = vsel %vm736, %v3466, %v3470
      %v3473 = vshrl.u32 %v3068, 16
      %v3475 = vrot.slane %v3473, 4
      %v3476 = vshll.u32 %v3068, 16
      %v3478 = vrot.slane %v3476, 5
      %v3479 = vor.u32 %v3475, %v3478
      %v3480 = vrot.slane %v3479, 4
      %v3482 = vshll.u32 %v3070, 16
      %v3484 = vrot.slane %v3482, 5
      %v3485 = vsel %vm736, %v3480, %v3484
      %v3487 = vshrl.u32 %v3069, 16
      %v3489 = vrot.slane %v3487, 4
      %v3490 = vshll.u32 %v3069, 16
      %v3492 = vrot.slane %v3490, 5
      %v3493 = vor.u32 %v3489, %v3492
      %v3494 = vrot.slane %v3493, 4
      %v3496 = vshll.u32 %v3071, 16
      %v3498 = vrot.slane %v3496, 5
      %v3499 = vsel %vm736, %v3494, %v3498
      %v3500 = vshrl.u32 %v3070, 16
      %v3502 = vrot.slane %v3500, 4
      %v3503 = vor.u32 %v3502, %v3484
      %v3504 = vrot.slane %v3503, 4
      %v3506 = vshll.u32 %v3134, 16
      %v3508 = vrot.slane %v3506, 5
      %v3509 = vsel %vm736, %v3504, %v3508
      %v3510 = vshrl.u32 %v3071, 16
      %v3512 = vrot.slane %v3510, 4
      %v3513 = vor.u32 %v3512, %v3498
      %v3514 = vrot.slane %v3513, 4
      %v3516 = vshll.u32 %v3135, 16
      %v3518 = vrot.slane %v3516, 5
      %v3519 = vsel %vm736, %v3514, %v3518
      %v3520 = vld [vmem:[%s1121] sm:$0xf]
      %v3521 = vld [vmem:[%s1121 + $0x4] sm:$0xf]
      %v3522 = vld [vmem:[%s1121 + $0x8] sm:$0xf]
      %v3523 = vld [vmem:[%s1121 + $0xc] sm:$0xf]
      %v3524 = vld [vmem:[%s1121 + $0x10] sm:$0xf]
      %v3525 = vld [vmem:[%s1121 + $0x14] sm:$0xf]
      %v3526 = vld [vmem:[%s1121 + $0x18] sm:$0xf]
      %v3527 = vld [vmem:[%s1121 + $0x1c] sm:$0xf]
      %v3528 = vld [vmem:[%s1121 + $0x20] sm:$0xf]
      %v3529 = vld [vmem:[%s1121 + $0x24] sm:$0xf]
      %v3530 = vld [vmem:[%s1121 + $0x28] sm:$0xf]
      %v3531 = vld [vmem:[%s1121 + $0x2c] sm:$0xf]
      %v3532 = vld [vmem:[%s1121 + $0x30] sm:$0xf]
      %v3533 = vld [vmem:[%s1121 + $0x34] sm:$0xf]
      %v3534 = vld [vmem:[%s1121 + $0x38] sm:$0xf]
      %v3535 = vld [vmem:[%s1121 + $0x3c] sm:$0xf]
      %v3536 = vld [vmem:[%s1121 + $0x40] sm:$0xf]
      %v3537 = vld [vmem:[%s1121 + $0x44] sm:$0xf]
      %v3538 = vld [vmem:[%s1121 + $0x48] sm:$0xf]
      %v3539 = vld [vmem:[%s1121 + $0x4c] sm:$0xf]
      %v3540 = vld [vmem:[%s1121 + $0x50] sm:$0xf]
      %v3541 = vld [vmem:[%s1121 + $0x54] sm:$0xf]
      %v3542 = vld [vmem:[%s1121 + $0x58] sm:$0xf]
      %v3543 = vld [vmem:[%s1121 + $0x5c] sm:$0xf]
      %v3544 = vld [vmem:[%s1121 + $0x60] sm:$0xf]
      %v3545 = vld [vmem:[%s1121 + $0x64] sm:$0xf]
      %v3546 = vld [vmem:[%s1121 + $0x68] sm:$0xf]
      %v3547 = vld [vmem:[%s1121 + $0x6c] sm:$0xf]
      %v3548 = vld [vmem:[%s1121 + $0x70] sm:$0xf]
      %v3549 = vld [vmem:[%s1121 + $0x74] sm:$0xf]
      %v3550 = vld [vmem:[%s1121 + $0x78] sm:$0xf]
      %v3551 = vld [vmem:[%s1121 + $0x7c] sm:$0xf]
      %v3552 = vld [vmem:[%s1121 + $0x80] sm:$0xf]
      %v3553 = vld [vmem:[%s1121 + $0x84] sm:$0xf]
      %v3554 = vld [vmem:[%s1121 + $0x88] sm:$0xf]
      %v3555 = vld [vmem:[%s1121 + $0x8c] sm:$0xf]
      %v3556 = vld [vmem:[%s1121 + $0x90] sm:$0xf]
      %v3557 = vld [vmem:[%s1121 + $0x94] sm:$0xf]
      %v3558 = vld [vmem:[%s1121 + $0x98] sm:$0xf]
      %v3559 = vld [vmem:[%s1121 + $0x9c] sm:$0xf]
      %v3560 = vld [vmem:[%s1121 + $0xa0] sm:$0xf]
      %v3561 = vld [vmem:[%s1121 + $0xa4] sm:$0xf]
      %v3562 = vld [vmem:[%s1121 + $0xa8] sm:$0xf]
      %v3563 = vld [vmem:[%s1121 + $0xac] sm:$0xf]
      %v3564 = vld [vmem:[%s1121 + $0xb0] sm:$0xf]
      %v3565 = vld [vmem:[%s1121 + $0xb4] sm:$0xf]
      %v3566 = vld [vmem:[%s1121 + $0xb8] sm:$0xf]
      %v3567 = vld [vmem:[%s1121 + $0xbc] sm:$0xf]
      %v3568 = vunpack.c.l.b16 %v3149
      %v3569 = vunpack.c.h.b16 %v3149
      %v3570 = vunpack.c.l.b16 %v3163
      %v3571 = vunpack.c.l.b16 %v3173
      %v3572 = vunpack.c.h.b16 %v3173
      %v3573 = vunpack.c.l.b16 %v3183
      %v3574 = vunpack.c.l.b16 %v3197
      %v3575 = vunpack.c.h.b16 %v3197
      %v3576 = vunpack.c.l.b16 %v3211
      %v3577 = vunpack.c.l.b16 %v3221
      %v3578 = vunpack.c.h.b16 %v3221
      %v3579 = vunpack.c.l.b16 %v3231
      %v3580 = vunpack.c.l.b16 %v3245
      %v3581 = vunpack.c.h.b16 %v3245
      %v3582 = vunpack.c.l.b16 %v3259
      %v3583 = vunpack.c.l.b16 %v3269
      %v3584 = vunpack.c.h.b16 %v3269
      %v3585 = vunpack.c.l.b16 %v3279
      %v3586 = vunpack.c.l.b16 %v3293
      %v3587 = vunpack.c.h.b16 %v3293
      %v3588 = vunpack.c.l.b16 %v3307
      %v3589 = vunpack.c.l.b16 %v3317
      %v3590 = vunpack.c.h.b16 %v3317
      %v3591 = vunpack.c.l.b16 %v3327
      %v3592 = vunpack.c.l.b16 %v3341
      %v3593 = vunpack.c.h.b16 %v3341
      %v3594 = vunpack.c.l.b16 %v3355
      %v3595 = vunpack.c.l.b16 %v3365
      %v3596 = vunpack.c.h.b16 %v3365
      %v3597 = vunpack.c.l.b16 %v3375
      %v3598 = vunpack.c.l.b16 %v3389
      %v3599 = vunpack.c.h.b16 %v3389
      %v3600 = vunpack.c.l.b16 %v3403
      %v3601 = vunpack.c.l.b16 %v3413
      %v3602 = vunpack.c.h.b16 %v3413
      %v3603 = vunpack.c.l.b16 %v3423
      %v3604 = vunpack.c.l.b16 %v3437
      %v3605 = vunpack.c.h.b16 %v3437
      %v3606 = vunpack.c.l.b16 %v3451
      %v3607 = vunpack.c.l.b16 %v3461
      %v3608 = vunpack.c.h.b16 %v3461
      %v3609 = vunpack.c.l.b16 %v3471
      %v3610 = vunpack.c.l.b16 %v3485
      %v3611 = vunpack.c.h.b16 %v3485
      %v3612 = vunpack.c.l.b16 %v3499
      %v3613 = vunpack.c.l.b16 %v3509
      %v3614 = vunpack.c.h.b16 %v3509
      %v3615 = vunpack.c.l.b16 %v3519
      %v3616 = vpack.c.b16 %v3571, %v3568
      %v3617 = vpack.c.b16 %v3572, %v3569
      %v3618 = vpack.c.b16 %v3573, %v3570
      %v3619 = vpack.c.b16 %v3577, %v3574
      %v3620 = vpack.c.b16 %v3578, %v3575
      %v3621 = vpack.c.b16 %v3579, %v3576
      %v3622 = vpack.c.b16 %v3583, %v3580
      %v3623 = vpack.c.b16 %v3584, %v3581
      %v3624 = vpack.c.b16 %v3585, %v3582
      %v3625 = vpack.c.b16 %v3589, %v3586
      %v3626 = vpack.c.b16 %v3590, %v3587
      %v3627 = vpack.c.b16 %v3591, %v3588
      %v3628 = vpack.c.b16 %v3595, %v3592
      %v3629 = vpack.c.b16 %v3596, %v3593
      %v3630 = vpack.c.b16 %v3597, %v3594
      %v3631 = vpack.c.b16 %v3601, %v3598
      %v3632 = vpack.c.b16 %v3602, %v3599
      %v3633 = vpack.c.b16 %v3603, %v3600
      %v3634 = vpack.c.b16 %v3607, %v3604
      %v3635 = vpack.c.b16 %v3608, %v3605
      %v3636 = vpack.c.b16 %v3609, %v3606
      %v3637 = vpack.c.b16 %v3613, %v3610
      %v3638 = vpack.c.b16 %v3614, %v3611
      %v3639 = vpack.c.b16 %v3615, %v3612
      %v3712 = vunpack.c.l.b16 %v3520
      %v3713 = vunpack.c.l.b16 %v3521
      %v3714 = vunpack.c.l.b16 %v3522
      %v3715 = vunpack.c.l.b16 %v3523
      %v3716 = vunpack.c.l.b16 %v3524
      %v3717 = vunpack.c.l.b16 %v3525
      %v3718 = vunpack.c.l.b16 %v3526
      %v3719 = vunpack.c.l.b16 %v3527
      %v3720 = vunpack.c.l.b16 %v3528
      %v3721 = vunpack.c.l.b16 %v3529
      %v3722 = vunpack.c.l.b16 %v3530
      %v3723 = vunpack.c.l.b16 %v3531
      %v3724 = vunpack.c.l.b16 %v3532
      %v3725 = vunpack.c.l.b16 %v3533
      %v3726 = vunpack.c.l.b16 %v3534
      %v3727 = vunpack.c.l.b16 %v3535
      %v3728 = vunpack.c.l.b16 %v3536
      %v3729 = vunpack.c.l.b16 %v3537
      %v3730 = vunpack.c.l.b16 %v3538
      %v3731 = vunpack.c.l.b16 %v3539
      %v3732 = vunpack.c.l.b16 %v3540
      %v3733 = vunpack.c.l.b16 %v3541
      %v3734 = vunpack.c.l.b16 %v3542
      %v3735 = vunpack.c.l.b16 %v3543
      %v3736 = vunpack.c.l.b16 %v3544
      %v3737 = vunpack.c.l.b16 %v3545
      %v3738 = vunpack.c.l.b16 %v3546
      %v3739 = vunpack.c.l.b16 %v3547
      %v3740 = vunpack.c.l.b16 %v3548
      %v3741 = vunpack.c.l.b16 %v3549
      %v3742 = vunpack.c.l.b16 %v3550
      %v3743 = vunpack.c.l.b16 %v3551
      %v3744 = vunpack.c.l.b16 %v3552
      %v3745 = vunpack.c.l.b16 %v3553
      %v3746 = vunpack.c.l.b16 %v3554
      %v3747 = vunpack.c.l.b16 %v3555
      %v3748 = vunpack.c.l.b16 %v3556
      %v3749 = vunpack.c.l.b16 %v3557
      %v3750 = vunpack.c.l.b16 %v3558
      %v3751 = vunpack.c.l.b16 %v3559
      %v3752 = vunpack.c.l.b16 %v3560
      %v3753 = vunpack.c.l.b16 %v3561
      %v3754 = vunpack.c.l.b16 %v3562
      %v3755 = vunpack.c.l.b16 %v3563
      %v3756 = vunpack.c.l.b16 %v3564
      %v3757 = vunpack.c.l.b16 %v3565
      %v3758 = vunpack.c.l.b16 %v3566
      %v3759 = vunpack.c.l.b16 %v3567
      %v3760 = vpack.c.b16 %v3713, %v3712
      %v3761 = vpack.c.b16 %v3715, %v3714
      %v3762 = vpack.c.b16 %v3717, %v3716
      %v3763 = vpack.c.b16 %v3719, %v3718
      %v3764 = vpack.c.b16 %v3721, %v3720
      %v3765 = vpack.c.b16 %v3723, %v3722
      %v3766 = vpack.c.b16 %v3725, %v3724
      %v3767 = vpack.c.b16 %v3727, %v3726
      %v3768 = vpack.c.b16 %v3729, %v3728
      %v3769 = vpack.c.b16 %v3731, %v3730
      %v3770 = vpack.c.b16 %v3733, %v3732
      %v3771 = vpack.c.b16 %v3735, %v3734
      %v3772 = vpack.c.b16 %v3737, %v3736
      %v3773 = vpack.c.b16 %v3739, %v3738
      %v3774 = vpack.c.b16 %v3741, %v3740
      %v3775 = vpack.c.b16 %v3743, %v3742
      %v3776 = vpack.c.b16 %v3745, %v3744
      %v3777 = vpack.c.b16 %v3747, %v3746
      %v3778 = vpack.c.b16 %v3749, %v3748
      %v3779 = vpack.c.b16 %v3751, %v3750
      %v3780 = vpack.c.b16 %v3753, %v3752
      %v3781 = vpack.c.b16 %v3755, %v3754
      %v3782 = vpack.c.b16 %v3757, %v3756
      %v3783 = vpack.c.b16 %v3759, %v3758
      %3808 = vmatprep.subr.bf16.mxu0 0
      %3809 = vmatpush1.bf16.msra.mxu0 %v3767
      %3810 = vmatprep.subr.bf16.mxu0 0
      %3811 = vmatpush1.bf16.msra.mxu0 %v3766
      %3812 = vmatprep.subr.bf16.mxu0 0
      %3813 = vmatpush1.bf16.msra.mxu0 %v3765
      %3814 = vmatprep.subr.bf16.mxu0 0
      %3815 = vmatpush1.bf16.msra.mxu0 %v3764
      %3816 = vmatprep.subr.bf16.mxu0 0
      %3817 = vmatpush1.bf16.msra.mxu0 %v3763
      %3818 = vmatprep.subr.bf16.mxu0 0
      %3819 = vmatpush1.bf16.msra.mxu0 %v3762
      %3820 = vmatprep.subr.bf16.mxu0 0
      %3821 = vmatpush1.bf16.msra.mxu0 %v3761
      %3822 = vmatprep.subr.bf16.mxu0 0
      %3823 = vmatpush1.bf16.msra.mxu0 %v3760
      %3824 = vmatprep.subr.bf16.mxu0 0
      %3825 = vmatpush2.bf16.msra.mxu0 %v3775
      %3826 = vmatprep.subr.bf16.mxu0 0
      %3827 = vmatpush2.bf16.msra.mxu0 %v3774
      %3828 = vmatprep.subr.bf16.mxu0 0
      %3829 = vmatpush2.bf16.msra.mxu0 %v3773
      %3830 = vmatprep.subr.bf16.mxu0 0
      %3831 = vmatpush2.bf16.msra.mxu0 %v3772
      %3832 = vmatprep.subr.bf16.mxu0 0
      %3833 = vmatpush2.bf16.msra.mxu0 %v3771
      %3834 = vmatprep.subr.bf16.mxu0 0
      %3835 = vmatpush2.bf16.msra.mxu0 %v3770
      %3836 = vmatprep.subr.bf16.mxu0 0
      %3837 = vmatpush2.bf16.msra.mxu0 %v3769
      %3838 = vmatprep.subr.bf16.mxu0 0
      %3839 = vmatpush2.bf16.msra.mxu0 %v3768
      %3840 = vmatprep.mubr.bf16.mxu0 %v3617
      %3841 = vmatmul.mubr.bf16.gmra.mxu0 %v3616
      %v3842 = vpop.f32.mrf.mxu0
      %v3843 = vadd.f32 0.0, %v3842
      %v3844 = vpop.f32.mrf.mxu0
      %v3845 = vpop.f32.mrf.mxu0
      %v3846 = vadd.f32 0.0, %v3845
      %v3847 = vpop.f32.mrf.mxu0
      %3848 = vmatprep.mubr.bf16.mxu0 %v3620
      %3849 = vmatmul.mubr.bf16.gmra.mxu0 %v3619
      %v3850 = vpop.f32.mrf.mxu0
      %v3851 = vadd.f32 0.0, %v3850
      %v3852 = vpop.f32.mrf.mxu0
      %v3853 = vpop.f32.mrf.mxu0
      %v3854 = vadd.f32 0.0, %v3853
      %v3855 = vpop.f32.mrf.mxu0
      %3856 = vmatprep.mubr.bf16.mxu0 %v3623
      %3857 = vmatmul.mubr.bf16.gmra.mxu0 %v3622
      %v3858 = vpop.f32.mrf.mxu0
      %v3859 = vadd.f32 0.0, %v3858
      %v3860 = vpop.f32.mrf.mxu0
      %v3861 = vpop.f32.mrf.mxu0
      %v3862 = vadd.f32 0.0, %v3861
      %v3863 = vpop.f32.mrf.mxu0
      %3864 = vmatprep.mubr.bf16.mxu0 %v3626
      %3865 = vmatmul.mubr.bf16.gmra.mxu0 %v3625
      %v3866 = vpop.f32.mrf.mxu0
      %v3867 = vadd.f32 0.0, %v3866
      %v3868 = vpop.f32.mrf.mxu0
      %v3869 = vpop.f32.mrf.mxu0
      %v3870 = vadd.f32 0.0, %v3869
      %v3871 = vpop.f32.mrf.mxu0
      %3872 = vmatprep.mubr.bf16.mxu0 %v3629
      %3873 = vmatmul.mubr.bf16.gmra.mxu0 %v3628
      %v3874 = vpop.f32.mrf.mxu0
      %v3875 = vadd.f32 0.0, %v3874
      %v3876 = vpop.f32.mrf.mxu0
      %v3877 = vpop.f32.mrf.mxu0
      %v3878 = vadd.f32 0.0, %v3877
      %v3879 = vpop.f32.mrf.mxu0
      %3880 = vmatprep.mubr.bf16.mxu0 %v3632
      %3881 = vmatmul.mubr.bf16.gmra.mxu0 %v3631
      %v3882 = vpop.f32.mrf.mxu0
      %v3883 = vadd.f32 0.0, %v3882
      %v3884 = vpop.f32.mrf.mxu0
      %v3885 = vpop.f32.mrf.mxu0
      %v3886 = vadd.f32 0.0, %v3885
      %v3887 = vpop.f32.mrf.mxu0
      %3888 = vmatprep.mubr.bf16.mxu0 %v3635
      %3889 = vmatmul.mubr.bf16.gmra.mxu0 %v3634
      %v3890 = vpop.f32.mrf.mxu0
      %v3891 = vadd.f32 0.0, %v3890
      %v3892 = vpop.f32.mrf.mxu0
      %v3893 = vpop.f32.mrf.mxu0
      %v3894 = vadd.f32 0.0, %v3893
      %v3895 = vpop.f32.mrf.mxu0
      %3896 = vmatprep.mubr.bf16.mxu0 %v3638
      %3897 = vmatmul.mubr.bf16.gmra.mxu0 %v3637
      %v3898 = vpop.f32.mrf.mxu0
      %v3899 = vadd.f32 0.0, %v3898
      %v3900 = vpop.f32.mrf.mxu0
      %v3901 = vpop.f32.mrf.mxu0
      %v3902 = vadd.f32 0.0, %v3901
      %v3903 = vpop.f32.mrf.mxu0
      %3904 = vdwg.mxu0
      %3905 = vmatprep.subr.bf16.mxu0 0
      %3906 = vmatpush1.bf16.msra.mxu0 %v3783
      %3907 = vmatprep.subr.bf16.mxu0 0
      %3908 = vmatpush1.bf16.msra.mxu0 %v3782
      %3909 = vmatprep.subr.bf16.mxu0 0
      %3910 = vmatpush1.bf16.msra.mxu0 %v3781
      %3911 = vmatprep.subr.bf16.mxu0 0
      %3912 = vmatpush1.bf16.msra.mxu0 %v3780
      %3913 = vmatprep.subr.bf16.mxu0 0
      %3914 = vmatpush1.bf16.msra.mxu0 %v3779
      %3915 = vmatprep.subr.bf16.mxu0 0
      %3916 = vmatpush1.bf16.msra.mxu0 %v3778
      %3917 = vmatprep.subr.bf16.mxu0 0
      %3918 = vmatpush1.bf16.msra.mxu0 %v3777
      %3919 = vmatprep.subr.bf16.mxu0 0
      %3920 = vmatpush1.bf16.msra.mxu0 %v3776
      %3921 = vmatprep.subr.bf16.mxu0 0
      %3922 = vmatpush2.bf16.msra.mxu0 0
      %3923 = vmatprep.subr.bf16.mxu0 0
      %3924 = vmatpush2.bf16.msra.mxu0 0
      %3925 = vmatprep.subr.bf16.mxu0 0
      %3926 = vmatpush2.bf16.msra.mxu0 0
      %3927 = vmatprep.subr.bf16.mxu0 0
      %3928 = vmatpush2.bf16.msra.mxu0 0
      %3929 = vmatprep.subr.bf16.mxu0 0
      %3930 = vmatpush2.bf16.msra.mxu0 0
      %3931 = vmatprep.subr.bf16.mxu0 0
      %3932 = vmatpush2.bf16.msra.mxu0 0
      %3933 = vmatprep.subr.bf16.mxu0 0
      %3934 = vmatpush2.bf16.msra.mxu0 0
      %3935 = vmatprep.subr.bf16.mxu0 0
      %3936 = vmatpush2.bf16.msra.mxu0 0
      %3937 = vmatprep.mubr.bf16.mxu0 0
      %3938 = vmatmul.mubr.bf16.gmra.mxu0 %v3618
      %v3939 = vpop.f32.mrf.mxu0
      %v3940 = vadd.f32 %v3843, %v3939
      %v3941 = vpop.f32.mrf.mxu0
      %v3942 = vpop.f32.mrf.mxu0
      %v3943 = vadd.f32 %v3846, %v3942
      %v3944 = vpop.f32.mrf.mxu0
      %3945 = vmatprep.mubr.bf16.mxu0 0
      %3946 = vmatmul.mubr.bf16.gmra.mxu0 %v3621
      %v3947 = vpop.f32.mrf.mxu0
      %v3948 = vadd.f32 %v3851, %v3947
      %v3949 = vpop.f32.mrf.mxu0
      %v3950 = vpop.f32.mrf.mxu0
      %v3951 = vadd.f32 %v3854, %v3950
      %v3952 = vpop.f32.mrf.mxu0
      %3953 = vmatprep.mubr.bf16.mxu0 0
      %3954 = vmatmul.mubr.bf16.gmra.mxu0 %v3624
      %v3955 = vpop.f32.mrf.mxu0
      %v3956 = vadd.f32 %v3859, %v3955
      %v3957 = vpop.f32.mrf.mxu0
      %v3958 = vpop.f32.mrf.mxu0
      %v3959 = vadd.f32 %v3862, %v3958
      %v3960 = vpop.f32.mrf.mxu0
      %3961 = vmatprep.mubr.bf16.mxu0 0
      %3962 = vmatmul.mubr.bf16.gmra.mxu0 %v3627
      %v3963 = vpop.f32.mrf.mxu0
      %v3964 = vadd.f32 %v3867, %v3963
      %v3965 = vpop.f32.mrf.mxu0
      %v3966 = vpop.f32.mrf.mxu0
      %v3967 = vadd.f32 %v3870, %v3966
      %v3968 = vpop.f32.mrf.mxu0
      %3969 = vmatprep.mubr.bf16.mxu0 0
      %3970 = vmatmul.mubr.bf16.gmra.mxu0 %v3630
      %v3971 = vpop.f32.mrf.mxu0
      %v3972 = vadd.f32 %v3875, %v3971
      %v3973 = vpop.f32.mrf.mxu0
      %v3974 = vpop.f32.mrf.mxu0
      %v3975 = vadd.f32 %v3878, %v3974
      %v3976 = vpop.f32.mrf.mxu0
      %3977 = vmatprep.mubr.bf16.mxu0 0
      %3978 = vmatmul.mubr.bf16.gmra.mxu0 %v3633
      %v3979 = vpop.f32.mrf.mxu0
      %v3980 = vadd.f32 %v3883, %v3979
      %v3981 = vpop.f32.mrf.mxu0
      %v3982 = vpop.f32.mrf.mxu0
      %v3983 = vadd.f32 %v3886, %v3982
      %v3984 = vpop.f32.mrf.mxu0
      %3985 = vmatprep.mubr.bf16.mxu0 0
      %3986 = vmatmul.mubr.bf16.gmra.mxu0 %v3636
      %v3987 = vpop.f32.mrf.mxu0
      %v3988 = vadd.f32 %v3891, %v3987
      %v3989 = vpop.f32.mrf.mxu0
      %v3990 = vpop.f32.mrf.mxu0
      %v3991 = vadd.f32 %v3894, %v3990
      %v3992 = vpop.f32.mrf.mxu0
      %3993 = vmatprep.mubr.bf16.mxu0 0
      %3994 = vmatmul.mubr.bf16.gmra.mxu0 %v3639
      %v3995 = vpop.f32.mrf.mxu0
      %v3996 = vadd.f32 %v3899, %v3995
      %v3997 = vpop.f32.mrf.mxu0
      %v3998 = vpop.f32.mrf.mxu0
      %v3999 = vadd.f32 %v3902, %v3998
      %v4000 = vpop.f32.mrf.mxu0
      %4001 = vdwg.mxu0
      %v4034 = vunpack.c.l.b16 %v3040
      %v4035 = vunpack.c.h.b16 %v3040
      %v4036 = vunpack.c.l.b16 %v3041
      %v4037 = vunpack.c.l.b16 %v3042
      %v4038 = vunpack.c.h.b16 %v3042
      %v4039 = vunpack.c.l.b16 %v3043
      %v4040 = vunpack.c.l.b16 %v3044
      %v4041 = vunpack.c.h.b16 %v3044
      %v4042 = vunpack.c.l.b16 %v3045
      %v4043 = vunpack.c.l.b16 %v3046
      %v4044 = vunpack.c.h.b16 %v3046
      %v4045 = vunpack.c.l.b16 %v3047
      %v4046 = vunpack.c.l.b16 %v3048
      %v4047 = vunpack.c.h.b16 %v3048
      %v4048 = vunpack.c.l.b16 %v3049
      %v4049 = vunpack.c.l.b16 %v3050
      %v4050 = vunpack.c.h.b16 %v3050
      %v4051 = vunpack.c.l.b16 %v3051
      %v4052 = vunpack.c.l.b16 %v3052
      %v4053 = vunpack.c.h.b16 %v3052
      %v4054 = vunpack.c.l.b16 %v3053
      %v4055 = vunpack.c.l.b16 %v3054
      %v4056 = vunpack.c.h.b16 %v3054
      %v4057 = vunpack.c.l.b16 %v3055
      %v4058 = vunpack.c.l.b16 %v3056
      %v4059 = vunpack.c.h.b16 %v3056
      %v4060 = vunpack.c.l.b16 %v3057
      %v4061 = vunpack.c.l.b16 %v3058
      %v4062 = vunpack.c.h.b16 %v3058
      %v4063 = vunpack.c.l.b16 %v3059
      %v4064 = vunpack.c.l.b16 %v3060
      %v4065 = vunpack.c.h.b16 %v3060
      %v4066 = vunpack.c.l.b16 %v3061
      %v4067 = vunpack.c.l.b16 %v3062
      %v4068 = vunpack.c.h.b16 %v3062
      %v4069 = vunpack.c.l.b16 %v3063
      %v4070 = vunpack.c.l.b16 %v3064
      %v4071 = vunpack.c.h.b16 %v3064
      %v4072 = vunpack.c.l.b16 %v3065
      %v4073 = vunpack.c.l.b16 %v3066
      %v4074 = vunpack.c.h.b16 %v3066
      %v4075 = vunpack.c.l.b16 %v3067
      %v4076 = vunpack.c.l.b16 %v3068
      %v4077 = vunpack.c.h.b16 %v3068
      %v4078 = vunpack.c.l.b16 %v3069
      %v4079 = vunpack.c.l.b16 %v3070
      %v4080 = vunpack.c.h.b16 %v3070
      %v4081 = vunpack.c.l.b16 %v3071
      %v4082 = vpack.c.b16 %v4037, %v4034
      %v4083 = vpack.c.b16 %v4038, %v4035
      %v4084 = vpack.c.b16 %v4039, %v4036
      %v4085 = vpack.c.b16 %v4043, %v4040
      %v4086 = vpack.c.b16 %v4044, %v4041
      %v4087 = vpack.c.b16 %v4045, %v4042
      %v4088 = vpack.c.b16 %v4049, %v4046
      %v4089 = vpack.c.b16 %v4050, %v4047
      %v4090 = vpack.c.b16 %v4051, %v4048
      %v4091 = vpack.c.b16 %v4055, %v4052
      %v4092 = vpack.c.b16 %v4056, %v4053
      %v4093 = vpack.c.b16 %v4057, %v4054
      %v4094 = vpack.c.b16 %v4061, %v4058
      %v4095 = vpack.c.b16 %v4062, %v4059
      %v4096 = vpack.c.b16 %v4063, %v4060
      %v4097 = vpack.c.b16 %v4067, %v4064
      %v4098 = vpack.c.b16 %v4068, %v4065
      %v4099 = vpack.c.b16 %v4069, %v4066
      %v4100 = vpack.c.b16 %v4073, %v4070
      %v4101 = vpack.c.b16 %v4074, %v4071
      %v4102 = vpack.c.b16 %v4075, %v4072
      %v4103 = vpack.c.b16 %v4079, %v4076
      %v4104 = vpack.c.b16 %v4080, %v4077
      %v4105 = vpack.c.b16 %v4081, %v4078
      %v4178 = vunpack.c.l.b16 %v3072
      %v4179 = vunpack.c.l.b16 %v3073
      %v4180 = vunpack.c.l.b16 %v3074
      %v4181 = vunpack.c.l.b16 %v3075
      %v4182 = vunpack.c.l.b16 %v3076
      %v4183 = vunpack.c.l.b16 %v3077
      %v4184 = vunpack.c.l.b16 %v3078
      %v4185 = vunpack.c.l.b16 %v3079
      %v4186 = vunpack.c.l.b16 %v3080
      %v4187 = vunpack.c.l.b16 %v3081
      %v4188 = vunpack.c.l.b16 %v3082
      %v4189 = vunpack.c.l.b16 %v3083
      %v4190 = vunpack.c.l.b16 %v3084
      %v4191 = vunpack.c.l.b16 %v3085
      %v4192 = vunpack.c.l.b16 %v3086
      %v4193 = vunpack.c.l.b16 %v3087
      %v4194 = vunpack.c.l.b16 %v3088
      %v4195 = vunpack.c.l.b16 %v3089
      %v4196 = vunpack.c.l.b16 %v3090
      %v4197 = vunpack.c.l.b16 %v3091
      %v4198 = vunpack.c.l.b16 %v3092
      %v4199 = vunpack.c.l.b16 %v3093
      %v4200 = vunpack.c.l.b16 %v3094
      %v4201 = vunpack.c.l.b16 %v3095
      %v4202 = vunpack.c.l.b16 %v3096
      %v4203 = vunpack.c.l.b16 %v3097
      %v4204 = vunpack.c.l.b16 %v3098
      %v4205 = vunpack.c.l.b16 %v3099
      %v4206 = vunpack.c.l.b16 %v3100
      %v4207 = vunpack.c.l.b16 %v3101
      %v4208 = vunpack.c.l.b16 %v3102
      %v4209 = vunpack.c.l.b16 %v3103
      %v4210 = vunpack.c.l.b16 %v3104
      %v4211 = vunpack.c.l.b16 %v3105
      %v4212 = vunpack.c.l.b16 %v3106
      %v4213 = vunpack.c.l.b16 %v3107
      %v4214 = vunpack.c.l.b16 %v3108
      %v4215 = vunpack.c.l.b16 %v3109
      %v4216 = vunpack.c.l.b16 %v3110
      %v4217 = vunpack.c.l.b16 %v3111
      %v4218 = vunpack.c.l.b16 %v3112
      %v4219 = vunpack.c.l.b16 %v3113
      %v4220 = vunpack.c.l.b16 %v3114
      %v4221 = vunpack.c.l.b16 %v3115
      %v4222 = vunpack.c.l.b16 %v3116
      %v4223 = vunpack.c.l.b16 %v3117
      %v4224 = vunpack.c.l.b16 %v3118
      %v4225 = vunpack.c.l.b16 %v3119
      %v4226 = vpack.c.b16 %v4179, %v4178
      %v4227 = vpack.c.b16 %v4181, %v4180
      %v4228 = vpack.c.b16 %v4183, %v4182
      %v4229 = vpack.c.b16 %v4185, %v4184
      %v4230 = vpack.c.b16 %v4187, %v4186
      %v4231 = vpack.c.b16 %v4189, %v4188
      %v4232 = vpack.c.b16 %v4191, %v4190
      %v4233 = vpack.c.b16 %v4193, %v4192
      %v4234 = vpack.c.b16 %v4195, %v4194
      %v4235 = vpack.c.b16 %v4197, %v4196
      %v4236 = vpack.c.b16 %v4199, %v4198
      %v4237 = vpack.c.b16 %v4201, %v4200
      %v4238 = vpack.c.b16 %v4203, %v4202
      %v4239 = vpack.c.b16 %v4205, %v4204
      %v4240 = vpack.c.b16 %v4207, %v4206
      %v4241 = vpack.c.b16 %v4209, %v4208
      %v4242 = vpack.c.b16 %v4211, %v4210
      %v4243 = vpack.c.b16 %v4213, %v4212
      %v4244 = vpack.c.b16 %v4215, %v4214
      %v4245 = vpack.c.b16 %v4217, %v4216
      %v4246 = vpack.c.b16 %v4219, %v4218
      %v4247 = vpack.c.b16 %v4221, %v4220
      %v4248 = vpack.c.b16 %v4223, %v4222
      %v4249 = vpack.c.b16 %v4225, %v4224
      %4274 = vmatprep.subr.bf16.mxu0 0
      %4275 = vmatpush1.bf16.msra.mxu0 %v4233
      %4276 = vmatprep.subr.bf16.mxu0 0
      %4277 = vmatpush1.bf16.msra.mxu0 %v4232
      %4278 = vmatprep.subr.bf16.mxu0 0
      %4279 = vmatpush1.bf16.msra.mxu0 %v4231
      %4280 = vmatprep.subr.bf16.mxu0 0
      %4281 = vmatpush1.bf16.msra.mxu0 %v4230
      %4282 = vmatprep.subr.bf16.mxu0 0
      %4283 = vmatpush1.bf16.msra.mxu0 %v4229
      %4284 = vmatprep.subr.bf16.mxu0 0
      %4285 = vmatpush1.bf16.msra.mxu0 %v4228
      %4286 = vmatprep.subr.bf16.mxu0 0
      %4287 = vmatpush1.bf16.msra.mxu0 %v4227
      %4288 = vmatprep.subr.bf16.mxu0 0
      %4289 = vmatpush1.bf16.msra.mxu0 %v4226
      %4290 = vmatprep.subr.bf16.mxu0 0
      %4291 = vmatpush2.bf16.msra.mxu0 %v4241
      %4292 = vmatprep.subr.bf16.mxu0 0
      %4293 = vmatpush2.bf16.msra.mxu0 %v4240
      %4294 = vmatprep.subr.bf16.mxu0 0
      %4295 = vmatpush2.bf16.msra.mxu0 %v4239
      %4296 = vmatprep.subr.bf16.mxu0 0
      %4297 = vmatpush2.bf16.msra.mxu0 %v4238
      %4298 = vmatprep.subr.bf16.mxu0 0
      %4299 = vmatpush2.bf16.msra.mxu0 %v4237
      %4300 = vmatprep.subr.bf16.mxu0 0
      %4301 = vmatpush2.bf16.msra.mxu0 %v4236
      %4302 = vmatprep.subr.bf16.mxu0 0
      %4303 = vmatpush2.bf16.msra.mxu0 %v4235
      %4304 = vmatprep.subr.bf16.mxu0 0
      %4305 = vmatpush2.bf16.msra.mxu0 %v4234
      %4306 = vmatprep.mubr.bf16.mxu0 %v4083
      %4307 = vmatmul.mubr.bf16.gmra.mxu0 %v4082
      %v4308 = vpop.f32.mrf.mxu0
      %v4309 = vadd.f32 %v3940, %v4308
      %v4310 = vpop.f32.mrf.mxu0
      %v4311 = vpop.f32.mrf.mxu0
      %v4312 = vadd.f32 %v3943, %v4311
      %v4313 = vpop.f32.mrf.mxu0
      %4314 = vmatprep.mubr.bf16.mxu0 %v4086
      %4315 = vmatmul.mubr.bf16.gmra.mxu0 %v4085
      %v4316 = vpop.f32.mrf.mxu0
      %v4317 = vadd.f32 %v3948, %v4316
      %v4318 = vpop.f32.mrf.mxu0
      %v4319 = vpop.f32.mrf.mxu0
      %v4320 = vadd.f32 %v3951, %v4319
      %v4321 = vpop.f32.mrf.mxu0
      %4322 = vmatprep.mubr.bf16.mxu0 %v4089
      %4323 = vmatmul.mubr.bf16.gmra.mxu0 %v4088
      %v4324 = vpop.f32.mrf.mxu0
      %v4325 = vadd.f32 %v3956, %v4324
      %v4326 = vpop.f32.mrf.mxu0
      %v4327 = vpop.f32.mrf.mxu0
      %v4328 = vadd.f32 %v3959, %v4327
      %v4329 = vpop.f32.mrf.mxu0
      %4330 = vmatprep.mubr.bf16.mxu0 %v4092
      %4331 = vmatmul.mubr.bf16.gmra.mxu0 %v4091
      %v4332 = vpop.f32.mrf.mxu0
      %v4333 = vadd.f32 %v3964, %v4332
      %v4334 = vpop.f32.mrf.mxu0
      %v4335 = vpop.f32.mrf.mxu0
      %v4336 = vadd.f32 %v3967, %v4335
      %v4337 = vpop.f32.mrf.mxu0
      %4338 = vmatprep.mubr.bf16.mxu0 %v4095
      %4339 = vmatmul.mubr.bf16.gmra.mxu0 %v4094
      %v4340 = vpop.f32.mrf.mxu0
      %v4341 = vadd.f32 %v3972, %v4340
      %v4342 = vpop.f32.mrf.mxu0
      %v4343 = vpop.f32.mrf.mxu0
      %v4344 = vadd.f32 %v3975, %v4343
      %v4345 = vpop.f32.mrf.mxu0
      %4346 = vmatprep.mubr.bf16.mxu0 %v4098
      %4347 = vmatmul.mubr.bf16.gmra.mxu0 %v4097
      %v4348 = vpop.f32.mrf.mxu0
      %v4349 = vadd.f32 %v3980, %v4348
      %v4350 = vpop.f32.mrf.mxu0
      %v4351 = vpop.f32.mrf.mxu0
      %v4352 = vadd.f32 %v3983, %v4351
      %v4353 = vpop.f32.mrf.mxu0
      %4354 = vmatprep.mubr.bf16.mxu0 %v4101
      %4355 = vmatmul.mubr.bf16.gmra.mxu0 %v4100
      %v4356 = vpop.f32.mrf.mxu0
      %v4357 = vadd.f32 %v3988, %v4356
      %v4358 = vpop.f32.mrf.mxu0
      %v4359 = vpop.f32.mrf.mxu0
      %v4360 = vadd.f32 %v3991, %v4359
      %v4361 = vpop.f32.mrf.mxu0
      %4362 = vmatprep.mubr.bf16.mxu0 %v4104
      %4363 = vmatmul.mubr.bf16.gmra.mxu0 %v4103
      %v4364 = vpop.f32.mrf.mxu0
      %v4365 = vadd.f32 %v3996, %v4364
      %v4366 = vpop.f32.mrf.mxu0
      %v4367 = vpop.f32.mrf.mxu0
      %v4368 = vadd.f32 %v3999, %v4367
      %v4369 = vpop.f32.mrf.mxu0
      %4370 = vdwg.mxu0
      %4371 = vmatprep.subr.bf16.mxu0 0
      %4372 = vmatpush1.bf16.msra.mxu0 %v4249
      %4373 = vmatprep.subr.bf16.mxu0 0
      %4374 = vmatpush1.bf16.msra.mxu0 %v4248
      %4375 = vmatprep.subr.bf16.mxu0 0
      %4376 = vmatpush1.bf16.msra.mxu0 %v4247
      %4377 = vmatprep.subr.bf16.mxu0 0
      %4378 = vmatpush1.bf16.msra.mxu0 %v4246
      %4379 = vmatprep.subr.bf16.mxu0 0
      %4380 = vmatpush1.bf16.msra.mxu0 %v4245
      %4381 = vmatprep.subr.bf16.mxu0 0
      %4382 = vmatpush1.bf16.msra.mxu0 %v4244
      %4383 = vmatprep.subr.bf16.mxu0 0
      %4384 = vmatpush1.bf16.msra.mxu0 %v4243
      %4385 = vmatprep.subr.bf16.mxu0 0
      %4386 = vmatpush1.bf16.msra.mxu0 %v4242
      %4387 = vmatprep.subr.bf16.mxu0 0
      %4388 = vmatpush2.bf16.msra.mxu0 0
      %4389 = vmatprep.subr.bf16.mxu0 0
      %4390 = vmatpush2.bf16.msra.mxu0 0
      %4391 = vmatprep.subr.bf16.mxu0 0
      %4392 = vmatpush2.bf16.msra.mxu0 0
      %4393 = vmatprep.subr.bf16.mxu0 0
      %4394 = vmatpush2.bf16.msra.mxu0 0
      %4395 = vmatprep.subr.bf16.mxu0 0
      %4396 = vmatpush2.bf16.msra.mxu0 0
      %4397 = vmatprep.subr.bf16.mxu0 0
      %4398 = vmatpush2.bf16.msra.mxu0 0
      %4399 = vmatprep.subr.bf16.mxu0 0
      %4400 = vmatpush2.bf16.msra.mxu0 0
      %4401 = vmatprep.subr.bf16.mxu0 0
      %4402 = vmatpush2.bf16.msra.mxu0 0
      %4403 = vmatprep.mubr.bf16.mxu0 0
      %4404 = vmatmul.mubr.bf16.gmra.mxu0 %v4084
      %v4405 = vpop.f32.mrf.mxu0
      %v4406 = vadd.f32 %v4309, %v4405
      %v4407 = vpop.f32.mrf.mxu0
      %v4408 = vpop.f32.mrf.mxu0
      %v4409 = vadd.f32 %v4312, %v4408
      %v4410 = vpop.f32.mrf.mxu0
      %4411 = vmatprep.mubr.bf16.mxu0 0
      %4412 = vmatmul.mubr.bf16.gmra.mxu0 %v4087
      %v4413 = vpop.f32.mrf.mxu0
      %v4414 = vadd.f32 %v4317, %v4413
      %v4415 = vpop.f32.mrf.mxu0
      %v4416 = vpop.f32.mrf.mxu0
      %v4417 = vadd.f32 %v4320, %v4416
      %v4418 = vpop.f32.mrf.mxu0
      %4419 = vmatprep.mubr.bf16.mxu0 0
      %4420 = vmatmul.mubr.bf16.gmra.mxu0 %v4090
      %v4421 = vpop.f32.mrf.mxu0
      %v4422 = vadd.f32 %v4325, %v4421
      %v4423 = vpop.f32.mrf.mxu0
      %v4424 = vpop.f32.mrf.mxu0
      %v4425 = vadd.f32 %v4328, %v4424
      %v4426 = vpop.f32.mrf.mxu0
      %4427 = vmatprep.mubr.bf16.mxu0 0
      %4428 = vmatmul.mubr.bf16.gmra.mxu0 %v4093
      %v4429 = vpop.f32.mrf.mxu0
      %v4430 = vadd.f32 %v4333, %v4429
      %v4431 = vpop.f32.mrf.mxu0
      %v4432 = vpop.f32.mrf.mxu0
      %v4433 = vadd.f32 %v4336, %v4432
      %v4434 = vpop.f32.mrf.mxu0
      %4435 = vmatprep.mubr.bf16.mxu0 0
      %4436 = vmatmul.mubr.bf16.gmra.mxu0 %v4096
      %v4437 = vpop.f32.mrf.mxu0
      %v4438 = vadd.f32 %v4341, %v4437
      %v4439 = vpop.f32.mrf.mxu0
      %v4440 = vpop.f32.mrf.mxu0
      %v4441 = vadd.f32 %v4344, %v4440
      %v4442 = vpop.f32.mrf.mxu0
      %4443 = vmatprep.mubr.bf16.mxu0 0
      %4444 = vmatmul.mubr.bf16.gmra.mxu0 %v4099
      %v4445 = vpop.f32.mrf.mxu0
      %v4446 = vadd.f32 %v4349, %v4445
      %v4447 = vpop.f32.mrf.mxu0
      %v4448 = vpop.f32.mrf.mxu0
      %v4449 = vadd.f32 %v4352, %v4448
      %v4450 = vpop.f32.mrf.mxu0
      %4451 = vmatprep.mubr.bf16.mxu0 0
      %4452 = vmatmul.mubr.bf16.gmra.mxu0 %v4102
      %v4453 = vpop.f32.mrf.mxu0
      %v4454 = vadd.f32 %v4357, %v4453
      %v4455 = vpop.f32.mrf.mxu0
      %v4456 = vpop.f32.mrf.mxu0
      %v4457 = vadd.f32 %v4360, %v4456
      %v4458 = vpop.f32.mrf.mxu0
      %4459 = vmatprep.mubr.bf16.mxu0 0
      %4460 = vmatmul.mubr.bf16.gmra.mxu0 %v4105
      %v4461 = vpop.f32.mrf.mxu0
      %v4462 = vadd.f32 %v4365, %v4461
      %v4463 = vpop.f32.mrf.mxu0
      %v4464 = vpop.f32.mrf.mxu0
      %v4465 = vadd.f32 %v4368, %v4464
      %v4466 = vpop.f32.mrf.mxu0
      %4467 = vdwg.mxu0
      %v4468 = vld [vmem:[%s3039] sm:$0xee]
      %v4469 = vld [vmem:[%s3039 + $0x8] sm:$0xe]
      %v4470 = vld [vmem:[%s3039 + $0x24] sm:$0xee]
      %v4471 = vld [vmem:[%s3039 + $0x2c] sm:$0xe]
      %v4472 = vld [vmem:[%s3039 + $0x48] sm:$0xee]
      %v4473 = vld [vmem:[%s3039 + $0x50] sm:$0xe]
      %v4474 = vld [vmem:[%s3039 + $0x6c] sm:$0xee]
      %v4475 = vld [vmem:[%s3039 + $0x74] sm:$0xe]
      %v4476 = vld [vmem:[%s3039 + $0x90] sm:$0xee]
      %v4477 = vld [vmem:[%s3039 + $0x98] sm:$0xe]
      %v4478 = vld [vmem:[%s3039 + $0xb4] sm:$0xee]
      %v4479 = vld [vmem:[%s3039 + $0xbc] sm:$0xe]
      %v4480 = vld [vmem:[%s3039 + $0xd8] sm:$0xee]
      %v4481 = vld [vmem:[%s3039 + $0xe0] sm:$0xe]
      %v4482 = vld [vmem:[%s3039 + $0xfc] sm:$0xee]
      %v4483 = vld [vmem:[%s3039 + $0x104] sm:$0xe]
      %v4516 = vrot.slane %v4468, 5
      %v4517 = vrot.slane %v4516, 4
      %v4518 = vrot.slane %v3042, 5
      %v4519 = vsel %vm2120, %v4517, %v4518
      %v4520 = vrot.slane %v4469, 5
      %v4521 = vrot.slane %v4520, 4
      %v4522 = vrot.slane %v3043, 5
      %v4523 = vsel %vm2120, %v4521, %v4522
      %v4524 = vrot.slane %v4518, 4
      %v4525 = vrot.slane %v3120, 5
      %v4526 = vsel %vm2120, %v4524, %v4525
      %v4527 = vrot.slane %v4522, 4
      %v4528 = vrot.slane %v3121, 5
      %v4529 = vsel %vm2120, %v4527, %v4528
      %v4530 = vrot.slane %v4470, 5
      %v4531 = vrot.slane %v4530, 4
      %v4532 = vrot.slane %v3046, 5
      %v4533 = vsel %vm2120, %v4531, %v4532
      %v4534 = vrot.slane %v4471, 5
      %v4535 = vrot.slane %v4534, 4
      %v4536 = vrot.slane %v3047, 5
      %v4537 = vsel %vm2120, %v4535, %v4536
      %v4538 = vrot.slane %v4532, 4
      %v4539 = vrot.slane %v3122, 5
      %v4540 = vsel %vm2120, %v4538, %v4539
      %v4541 = vrot.slane %v4536, 4
      %v4542 = vrot.slane %v3123, 5
      %v4543 = vsel %vm2120, %v4541, %v4542
      %v4544 = vrot.slane %v4472, 5
      %v4545 = vrot.slane %v4544, 4
      %v4546 = vrot.slane %v3050, 5
      %v4547 = vsel %vm2120, %v4545, %v4546
      %v4548 = vrot.slane %v4473, 5
      %v4549 = vrot.slane %v4548, 4
      %v4550 = vrot.slane %v3051, 5
      %v4551 = vsel %vm2120, %v4549, %v4550
      %v4552 = vrot.slane %v4546, 4
      %v4553 = vrot.slane %v3124, 5
      %v4554 = vsel %vm2120, %v4552, %v4553
      %v4555 = vrot.slane %v4550, 4
      %v4556 = vrot.slane %v3125, 5
      %v4557 = vsel %vm2120, %v4555, %v4556
      %v4558 = vrot.slane %v4474, 5
      %v4559 = vrot.slane %v4558, 4
      %v4560 = vrot.slane %v3054, 5
      %v4561 = vsel %vm2120, %v4559, %v4560
      %v4562 = vrot.slane %v4475, 5
      %v4563 = vrot.slane %v4562, 4
      %v4564 = vrot.slane %v3055, 5
      %v4565 = vsel %vm2120, %v4563, %v4564
      %v4566 = vrot.slane %v4560, 4
      %v4567 = vrot.slane %v3126, 5
      %v4568 = vsel %vm2120, %v4566, %v4567
      %v4569 = vrot.slane %v4564, 4
      %v4570 = vrot.slane %v3127, 5
      %v4571 = vsel %vm2120, %v4569, %v4570
      %v4572 = vrot.slane %v4476, 5
      %v4573 = vrot.slane %v4572, 4
      %v4574 = vrot.slane %v3058, 5
      %v4575 = vsel %vm2120, %v4573, %v4574
      %v4576 = vrot.slane %v4477, 5
      %v4577 = vrot.slane %v4576, 4
      %v4578 = vrot.slane %v3059, 5
      %v4579 = vsel %vm2120, %v4577, %v4578
      %v4580 = vrot.slane %v4574, 4
      %v4581 = vrot.slane %v3128, 5
      %v4582 = vsel %vm2120, %v4580, %v4581
      %v4583 = vrot.slane %v4578, 4
      %v4584 = vrot.slane %v3129, 5
      %v4585 = vsel %vm2120, %v4583, %v4584
      %v4586 = vrot.slane %v4478, 5
      %v4587 = vrot.slane %v4586, 4
      %v4588 = vrot.slane %v3062, 5
      %v4589 = vsel %vm2120, %v4587, %v4588
      %v4590 = vrot.slane %v4479, 5
      %v4591 = vrot.slane %v4590, 4
      %v4592 = vrot.slane %v3063, 5
      %v4593 = vsel %vm2120, %v4591, %v4592
      %v4594 = vrot.slane %v4588, 4
      %v4595 = vrot.slane %v3130, 5
      %v4596 = vsel %vm2120, %v4594, %v4595
      %v4597 = vrot.slane %v4592, 4
      %v4598 = vrot.slane %v3131, 5
      %v4599 = vsel %vm2120, %v4597, %v4598
      %v4600 = vrot.slane %v4480, 5
      %v4601 = vrot.slane %v4600, 4
      %v4602 = vrot.slane %v3066, 5
      %v4603 = vsel %vm2120, %v4601, %v4602
      %v4604 = vrot.slane %v4481, 5
      %v4605 = vrot.slane %v4604, 4
      %v4606 = vrot.slane %v3067, 5
      %v4607 = vsel %vm2120, %v4605, %v4606
      %v4608 = vrot.slane %v4602, 4
      %v4609 = vrot.slane %v3132, 5
      %v4610 = vsel %vm2120, %v4608, %v4609
      %v4611 = vrot.slane %v4606, 4
      %v4612 = vrot.slane %v3133, 5
      %v4613 = vsel %vm2120, %v4611, %v4612
      %v4614 = vrot.slane %v4482, 5
      %v4615 = vrot.slane %v4614, 4
      %v4616 = vrot.slane %v3070, 5
      %v4617 = vsel %vm2120, %v4615, %v4616
      %v4618 = vrot.slane %v4483, 5
      %v4619 = vrot.slane %v4618, 4
      %v4620 = vrot.slane %v3071, 5
      %v4621 = vsel %vm2120, %v4619, %v4620
      %v4622 = vrot.slane %v4616, 4
      %v4623 = vrot.slane %v3134, 5
      %v4624 = vsel %vm2120, %v4622, %v4623
      %v4625 = vrot.slane %v4620, 4
      %v4626 = vrot.slane %v3135, 5
      %v4627 = vsel %vm2120, %v4625, %v4626
      %v4628 = vld [vmem:[%s2233] sm:$0xf]
      %v4629 = vld [vmem:[%s2233 + $0x4] sm:$0xf]
      %v4630 = vld [vmem:[%s2233 + $0x8] sm:$0xf]
      %v4631 = vld [vmem:[%s2233 + $0xc] sm:$0xf]
      %v4632 = vld [vmem:[%s2233 + $0x10] sm:$0xf]
      %v4633 = vld [vmem:[%s2233 + $0x14] sm:$0xf]
      %v4634 = vld [vmem:[%s2233 + $0x18] sm:$0xf]
      %v4635 = vld [vmem:[%s2233 + $0x1c] sm:$0xf]
      %v4636 = vld [vmem:[%s2233 + $0x20] sm:$0xf]
      %v4637 = vld [vmem:[%s2233 + $0x24] sm:$0xf]
      %v4638 = vld [vmem:[%s2233 + $0x28] sm:$0xf]
      %v4639 = vld [vmem:[%s2233 + $0x2c] sm:$0xf]
      %v4640 = vld [vmem:[%s2233 + $0x30] sm:$0xf]
      %v4641 = vld [vmem:[%s2233 + $0x34] sm:$0xf]
      %v4642 = vld [vmem:[%s2233 + $0x38] sm:$0xf]
      %v4643 = vld [vmem:[%s2233 + $0x3c] sm:$0xf]
      %v4644 = vld [vmem:[%s2233 + $0x40] sm:$0xf]
      %v4645 = vld [vmem:[%s2233 + $0x44] sm:$0xf]
      %v4646 = vld [vmem:[%s2233 + $0x48] sm:$0xf]
      %v4647 = vld [vmem:[%s2233 + $0x4c] sm:$0xf]
      %v4648 = vld [vmem:[%s2233 + $0x50] sm:$0xf]
      %v4649 = vld [vmem:[%s2233 + $0x54] sm:$0xf]
      %v4650 = vld [vmem:[%s2233 + $0x58] sm:$0xf]
      %v4651 = vld [vmem:[%s2233 + $0x5c] sm:$0xf]
      %v4652 = vld [vmem:[%s2233 + $0x60] sm:$0xf]
      %v4653 = vld [vmem:[%s2233 + $0x64] sm:$0xf]
      %v4654 = vld [vmem:[%s2233 + $0x68] sm:$0xf]
      %v4655 = vld [vmem:[%s2233 + $0x6c] sm:$0xf]
      %v4656 = vld [vmem:[%s2233 + $0x70] sm:$0xf]
      %v4657 = vld [vmem:[%s2233 + $0x74] sm:$0xf]
      %v4658 = vld [vmem:[%s2233 + $0x78] sm:$0xf]
      %v4659 = vld [vmem:[%s2233 + $0x7c] sm:$0xf]
      %v4660 = vld [vmem:[%s2233 + $0x80] sm:$0xf]
      %v4661 = vld [vmem:[%s2233 + $0x84] sm:$0xf]
      %v4662 = vld [vmem:[%s2233 + $0x88] sm:$0xf]
      %v4663 = vld [vmem:[%s2233 + $0x8c] sm:$0xf]
      %v4664 = vld [vmem:[%s2233 + $0x90] sm:$0xf]
      %v4665 = vld [vmem:[%s2233 + $0x94] sm:$0xf]
      %v4666 = vld [vmem:[%s2233 + $0x98] sm:$0xf]
      %v4667 = vld [vmem:[%s2233 + $0x9c] sm:$0xf]
      %v4668 = vld [vmem:[%s2233 + $0xa0] sm:$0xf]
      %v4669 = vld [vmem:[%s2233 + $0xa4] sm:$0xf]
      %v4670 = vld [vmem:[%s2233 + $0xa8] sm:$0xf]
      %v4671 = vld [vmem:[%s2233 + $0xac] sm:$0xf]
      %v4672 = vld [vmem:[%s2233 + $0xb0] sm:$0xf]
      %v4673 = vld [vmem:[%s2233 + $0xb4] sm:$0xf]
      %v4674 = vld [vmem:[%s2233 + $0xb8] sm:$0xf]
      %v4675 = vld [vmem:[%s2233 + $0xbc] sm:$0xf]
      %v4676 = vunpack.c.l.b16 %v4519
      %v4677 = vunpack.c.h.b16 %v4519
      %v4678 = vunpack.c.l.b16 %v4523
      %v4679 = vunpack.c.l.b16 %v4526
      %v4680 = vunpack.c.h.b16 %v4526
      %v4681 = vunpack.c.l.b16 %v4529
      %v4682 = vunpack.c.l.b16 %v4533
      %v4683 = vunpack.c.h.b16 %v4533
      %v4684 = vunpack.c.l.b16 %v4537
      %v4685 = vunpack.c.l.b16 %v4540
      %v4686 = vunpack.c.h.b16 %v4540
      %v4687 = vunpack.c.l.b16 %v4543
      %v4688 = vunpack.c.l.b16 %v4547
      %v4689 = vunpack.c.h.b16 %v4547
      %v4690 = vunpack.c.l.b16 %v4551
      %v4691 = vunpack.c.l.b16 %v4554
      %v4692 = vunpack.c.h.b16 %v4554
      %v4693 = vunpack.c.l.b16 %v4557
      %v4694 = vunpack.c.l.b16 %v4561
      %v4695 = vunpack.c.h.b16 %v4561
      %v4696 = vunpack.c.l.b16 %v4565
      %v4697 = vunpack.c.l.b16 %v4568
      %v4698 = vunpack.c.h.b16 %v4568
      %v4699 = vunpack.c.l.b16 %v4571
      %v4700 = vunpack.c.l.b16 %v4575
      %v4701 = vunpack.c.h.b16 %v4575
      %v4702 = vunpack.c.l.b16 %v4579
      %v4703 = vunpack.c.l.b16 %v4582
      %v4704 = vunpack.c.h.b16 %v4582
      %v4705 = vunpack.c.l.b16 %v4585
      %v4706 = vunpack.c.l.b16 %v4589
      %v4707 = vunpack.c.h.b16 %v4589
      %v4708 = vunpack.c.l.b16 %v4593
      %v4709 = vunpack.c.l.b16 %v4596
      %v4710 = vunpack.c.h.b16 %v4596
      %v4711 = vunpack.c.l.b16 %v4599
      %v4712 = vunpack.c.l.b16 %v4603
      %v4713 = vunpack.c.h.b16 %v4603
      %v4714 = vunpack.c.l.b16 %v4607
      %v4715 = vunpack.c.l.b16 %v4610
      %v4716 = vunpack.c.h.b16 %v4610
      %v4717 = vunpack.c.l.b16 %v4613
      %v4718 = vunpack.c.l.b16 %v4617
      %v4719 = vunpack.c.h.b16 %v4617
      %v4720 = vunpack.c.l.b16 %v4621
      %v4721 = vunpack.c.l.b16 %v4624
      %v4722 = vunpack.c.h.b16 %v4624
      %v4723 = vunpack.c.l.b16 %v4627
      %v4724 = vpack.c.b16 %v4679, %v4676
      %v4725 = vpack.c.b16 %v4680, %v4677
      %v4726 = vpack.c.b16 %v4681, %v4678
      %v4727 = vpack.c.b16 %v4685, %v4682
      %v4728 = vpack.c.b16 %v4686, %v4683
      %v4729 = vpack.c.b16 %v4687, %v4684
      %v4730 = vpack.c.b16 %v4691, %v4688
      %v4731 = vpack.c.b16 %v4692, %v4689
      %v4732 = vpack.c.b16 %v4693, %v4690
      %v4733 = vpack.c.b16 %v4697, %v4694
      %v4734 = vpack.c.b16 %v4698, %v4695
      %v4735 = vpack.c.b16 %v4699, %v4696
      %v4736 = vpack.c.b16 %v4703, %v4700
      %v4737 = vpack.c.b16 %v4704, %v4701
      %v4738 = vpack.c.b16 %v4705, %v4702
      %v4739 = vpack.c.b16 %v4709, %v4706
      %v4740 = vpack.c.b16 %v4710, %v4707
      %v4741 = vpack.c.b16 %v4711, %v4708
      %v4742 = vpack.c.b16 %v4715, %v4712
      %v4743 = vpack.c.b16 %v4716, %v4713
      %v4744 = vpack.c.b16 %v4717, %v4714
      %v4745 = vpack.c.b16 %v4721, %v4718
      %v4746 = vpack.c.b16 %v4722, %v4719
      %v4747 = vpack.c.b16 %v4723, %v4720
      %v4820 = vunpack.c.l.b16 %v4628
      %v4821 = vunpack.c.l.b16 %v4629
      %v4822 = vunpack.c.l.b16 %v4630
      %v4823 = vunpack.c.l.b16 %v4631
      %v4824 = vunpack.c.l.b16 %v4632
      %v4825 = vunpack.c.l.b16 %v4633
      %v4826 = vunpack.c.l.b16 %v4634
      %v4827 = vunpack.c.l.b16 %v4635
      %v4828 = vunpack.c.l.b16 %v4636
      %v4829 = vunpack.c.l.b16 %v4637
      %v4830 = vunpack.c.l.b16 %v4638
      %v4831 = vunpack.c.l.b16 %v4639
      %v4832 = vunpack.c.l.b16 %v4640
      %v4833 = vunpack.c.l.b16 %v4641
      %v4834 = vunpack.c.l.b16 %v4642
      %v4835 = vunpack.c.l.b16 %v4643
      %v4836 = vunpack.c.l.b16 %v4644
      %v4837 = vunpack.c.l.b16 %v4645
      %v4838 = vunpack.c.l.b16 %v4646
      %v4839 = vunpack.c.l.b16 %v4647
      %v4840 = vunpack.c.l.b16 %v4648
      %v4841 = vunpack.c.l.b16 %v4649
      %v4842 = vunpack.c.l.b16 %v4650
      %v4843 = vunpack.c.l.b16 %v4651
      %v4844 = vunpack.c.l.b16 %v4652
      %v4845 = vunpack.c.l.b16 %v4653
      %v4846 = vunpack.c.l.b16 %v4654
      %v4847 = vunpack.c.l.b16 %v4655
      %v4848 = vunpack.c.l.b16 %v4656
      %v4849 = vunpack.c.l.b16 %v4657
      %v4850 = vunpack.c.l.b16 %v4658
      %v4851 = vunpack.c.l.b16 %v4659
      %v4852 = vunpack.c.l.b16 %v4660
      %v4853 = vunpack.c.l.b16 %v4661
      %v4854 = vunpack.c.l.b16 %v4662
      %v4855 = vunpack.c.l.b16 %v4663
      %v4856 = vunpack.c.l.b16 %v4664
      %v4857 = vunpack.c.l.b16 %v4665
      %v4858 = vunpack.c.l.b16 %v4666
      %v4859 = vunpack.c.l.b16 %v4667
      %v4860 = vunpack.c.l.b16 %v4668
      %v4861 = vunpack.c.l.b16 %v4669
      %v4862 = vunpack.c.l.b16 %v4670
      %v4863 = vunpack.c.l.b16 %v4671
      %v4864 = vunpack.c.l.b16 %v4672
      %v4865 = vunpack.c.l.b16 %v4673
      %v4866 = vunpack.c.l.b16 %v4674
      %v4867 = vunpack.c.l.b16 %v4675
      %v4868 = vpack.c.b16 %v4821, %v4820
      %v4869 = vpack.c.b16 %v4823, %v4822
      %v4870 = vpack.c.b16 %v4825, %v4824
      %v4871 = vpack.c.b16 %v4827, %v4826
      %v4872 = vpack.c.b16 %v4829, %v4828
      %v4873 = vpack.c.b16 %v4831, %v4830
      %v4874 = vpack.c.b16 %v4833, %v4832
      %v4875 = vpack.c.b16 %v4835, %v4834
      %v4876 = vpack.c.b16 %v4837, %v4836
      %v4877 = vpack.c.b16 %v4839, %v4838
      %v4878 = vpack.c.b16 %v4841, %v4840
      %v4879 = vpack.c.b16 %v4843, %v4842
      %v4880 = vpack.c.b16 %v4845, %v4844
      %v4881 = vpack.c.b16 %v4847, %v4846
      %v4882 = vpack.c.b16 %v4849, %v4848
      %v4883 = vpack.c.b16 %v4851, %v4850
      %v4884 = vpack.c.b16 %v4853, %v4852
      %v4885 = vpack.c.b16 %v4855, %v4854
      %v4886 = vpack.c.b16 %v4857, %v4856
      %v4887 = vpack.c.b16 %v4859, %v4858
      %v4888 = vpack.c.b16 %v4861, %v4860
      %v4889 = vpack.c.b16 %v4863, %v4862
      %v4890 = vpack.c.b16 %v4865, %v4864
      %v4891 = vpack.c.b16 %v4867, %v4866
      %4916 = vmatprep.subr.bf16.mxu0 0
      %4917 = vmatpush1.bf16.msra.mxu0 %v4875
      %4918 = vmatprep.subr.bf16.mxu0 0
      %4919 = vmatpush1.bf16.msra.mxu0 %v4874
      %4920 = vmatprep.subr.bf16.mxu0 0
      %4921 = vmatpush1.bf16.msra.mxu0 %v4873
      %4922 = vmatprep.subr.bf16.mxu0 0
      %4923 = vmatpush1.bf16.msra.mxu0 %v4872
      %4924 = vmatprep.subr.bf16.mxu0 0
      %4925 = vmatpush1.bf16.msra.mxu0 %v4871
      %4926 = vmatprep.subr.bf16.mxu0 0
      %4927 = vmatpush1.bf16.msra.mxu0 %v4870
      %4928 = vmatprep.subr.bf16.mxu0 0
      %4929 = vmatpush1.bf16.msra.mxu0 %v4869
      %4930 = vmatprep.subr.bf16.mxu0 0
      %4931 = vmatpush1.bf16.msra.mxu0 %v4868
      %4932 = vmatprep.subr.bf16.mxu0 0
      %4933 = vmatpush2.bf16.msra.mxu0 %v4883
      %4934 = vmatprep.subr.bf16.mxu0 0
      %4935 = vmatpush2.bf16.msra.mxu0 %v4882
      %4936 = vmatprep.subr.bf16.mxu0 0
      %4937 = vmatpush2.bf16.msra.mxu0 %v4881
      %4938 = vmatprep.subr.bf16.mxu0 0
      %4939 = vmatpush2.bf16.msra.mxu0 %v4880
      %4940 = vmatprep.subr.bf16.mxu0 0
      %4941 = vmatpush2.bf16.msra.mxu0 %v4879
      %4942 = vmatprep.subr.bf16.mxu0 0
      %4943 = vmatpush2.bf16.msra.mxu0 %v4878
      %4944 = vmatprep.subr.bf16.mxu0 0
      %4945 = vmatpush2.bf16.msra.mxu0 %v4877
      %4946 = vmatprep.subr.bf16.mxu0 0
      %4947 = vmatpush2.bf16.msra.mxu0 %v4876
      %4948 = vmatprep.mubr.bf16.mxu0 %v4725
      %4949 = vmatmul.mubr.bf16.gmra.mxu0 %v4724
      %v4950 = vpop.f32.mrf.mxu0
      %v4951 = vadd.f32 0.0, %v4950
      %v4952 = vpop.f32.mrf.mxu0
      %v4953 = vpop.f32.mrf.mxu0
      %v4954 = vadd.f32 0.0, %v4953
      %v4955 = vpop.f32.mrf.mxu0
      %4956 = vmatprep.mubr.bf16.mxu0 %v4728
      %4957 = vmatmul.mubr.bf16.gmra.mxu0 %v4727
      %v4958 = vpop.f32.mrf.mxu0
      %v4959 = vadd.f32 0.0, %v4958
      %v4960 = vpop.f32.mrf.mxu0
      %v4961 = vpop.f32.mrf.mxu0
      %v4962 = vadd.f32 0.0, %v4961
      %v4963 = vpop.f32.mrf.mxu0
      %4964 = vmatprep.mubr.bf16.mxu0 %v4731
      %4965 = vmatmul.mubr.bf16.gmra.mxu0 %v4730
      %v4966 = vpop.f32.mrf.mxu0
      %v4967 = vadd.f32 0.0, %v4966
      %v4968 = vpop.f32.mrf.mxu0
      %v4969 = vpop.f32.mrf.mxu0
      %v4970 = vadd.f32 0.0, %v4969
      %v4971 = vpop.f32.mrf.mxu0
      %4972 = vmatprep.mubr.bf16.mxu0 %v4734
      %4973 = vmatmul.mubr.bf16.gmra.mxu0 %v4733
      %v4974 = vpop.f32.mrf.mxu0
      %v4975 = vadd.f32 0.0, %v4974
      %v4976 = vpop.f32.mrf.mxu0
      %v4977 = vpop.f32.mrf.mxu0
      %v4978 = vadd.f32 0.0, %v4977
      %v4979 = vpop.f32.mrf.mxu0
      %4980 = vmatprep.mubr.bf16.mxu0 %v4737
      %4981 = vmatmul.mubr.bf16.gmra.mxu0 %v4736
      %v4982 = vpop.f32.mrf.mxu0
      %v4983 = vadd.f32 0.0, %v4982
      %v4984 = vpop.f32.mrf.mxu0
      %v4985 = vpop.f32.mrf.mxu0
      %v4986 = vadd.f32 0.0, %v4985
      %v4987 = vpop.f32.mrf.mxu0
      %4988 = vmatprep.mubr.bf16.mxu0 %v4740
      %4989 = vmatmul.mubr.bf16.gmra.mxu0 %v4739
      %v4990 = vpop.f32.mrf.mxu0
      %v4991 = vadd.f32 0.0, %v4990
      %v4992 = vpop.f32.mrf.mxu0
      %v4993 = vpop.f32.mrf.mxu0
      %v4994 = vadd.f32 0.0, %v4993
      %v4995 = vpop.f32.mrf.mxu0
      %4996 = vmatprep.mubr.bf16.mxu0 %v4743
      %4997 = vmatmul.mubr.bf16.gmra.mxu0 %v4742
      %v4998 = vpop.f32.mrf.mxu0
      %v4999 = vadd.f32 0.0, %v4998
      %v5000 = vpop.f32.mrf.mxu0
      %v5001 = vpop.f32.mrf.mxu0
      %v5002 = vadd.f32 0.0, %v5001
      %v5003 = vpop.f32.mrf.mxu0
      %5004 = vmatprep.mubr.bf16.mxu0 %v4746
      %5005 = vmatmul.mubr.bf16.gmra.mxu0 %v4745
      %v5006 = vpop.f32.mrf.mxu0
      %v5007 = vadd.f32 0.0, %v5006
      %v5008 = vpop.f32.mrf.mxu0
      %v5009 = vpop.f32.mrf.mxu0
      %v5010 = vadd.f32 0.0, %v5009
      %v5011 = vpop.f32.mrf.mxu0
      %5012 = vdwg.mxu0
      %5013 = vmatprep.subr.bf16.mxu0 0
      %5014 = vmatpush1.bf16.msra.mxu0 %v4891
      %5015 = vmatprep.subr.bf16.mxu0 0
      %5016 = vmatpush1.bf16.msra.mxu0 %v4890
      %5017 = vmatprep.subr.bf16.mxu0 0
      %5018 = vmatpush1.bf16.msra.mxu0 %v4889
      %5019 = vmatprep.subr.bf16.mxu0 0
      %5020 = vmatpush1.bf16.msra.mxu0 %v4888
      %5021 = vmatprep.subr.bf16.mxu0 0
      %5022 = vmatpush1.bf16.msra.mxu0 %v4887
      %5023 = vmatprep.subr.bf16.mxu0 0
      %5024 = vmatpush1.bf16.msra.mxu0 %v4886
      %5025 = vmatprep.subr.bf16.mxu0 0
      %5026 = vmatpush1.bf16.msra.mxu0 %v4885
      %5027 = vmatprep.subr.bf16.mxu0 0
      %5028 = vmatpush1.bf16.msra.mxu0 %v4884
      %5029 = vmatprep.subr.bf16.mxu0 0
      %5030 = vmatpush2.bf16.msra.mxu0 0
      %5031 = vmatprep.subr.bf16.mxu0 0
      %5032 = vmatpush2.bf16.msra.mxu0 0
      %5033 = vmatprep.subr.bf16.mxu0 0
      %5034 = vmatpush2.bf16.msra.mxu0 0
      %5035 = vmatprep.subr.bf16.mxu0 0
      %5036 = vmatpush2.bf16.msra.mxu0 0
      %5037 = vmatprep.subr.bf16.mxu0 0
      %5038 = vmatpush2.bf16.msra.mxu0 0
      %5039 = vmatprep.subr.bf16.mxu0 0
      %5040 = vmatpush2.bf16.msra.mxu0 0
      %5041 = vmatprep.subr.bf16.mxu0 0
      %5042 = vmatpush2.bf16.msra.mxu0 0
      %5043 = vmatprep.subr.bf16.mxu0 0
      %5044 = vmatpush2.bf16.msra.mxu0 0
      %5045 = vmatprep.mubr.bf16.mxu0 0
      %5046 = vmatmul.mubr.bf16.gmra.mxu0 %v4726
      %v5047 = vpop.f32.mrf.mxu0
      %v5048 = vadd.f32 %v4951, %v5047
      %v5049 = vpop.f32.mrf.mxu0
      %v5050 = vpop.f32.mrf.mxu0
      %v5051 = vadd.f32 %v4954, %v5050
      %v5052 = vpop.f32.mrf.mxu0
      %5053 = vmatprep.mubr.bf16.mxu0 0
      %5054 = vmatmul.mubr.bf16.gmra.mxu0 %v4729
      %v5055 = vpop.f32.mrf.mxu0
      %v5056 = vadd.f32 %v4959, %v5055
      %v5057 = vpop.f32.mrf.mxu0
      %v5058 = vpop.f32.mrf.mxu0
      %v5059 = vadd.f32 %v4962, %v5058
      %v5060 = vpop.f32.mrf.mxu0
      %5061 = vmatprep.mubr.bf16.mxu0 0
      %5062 = vmatmul.mubr.bf16.gmra.mxu0 %v4732
      %v5063 = vpop.f32.mrf.mxu0
      %v5064 = vadd.f32 %v4967, %v5063
      %v5065 = vpop.f32.mrf.mxu0
      %v5066 = vpop.f32.mrf.mxu0
      %v5067 = vadd.f32 %v4970, %v5066
      %v5068 = vpop.f32.mrf.mxu0
      %5069 = vmatprep.mubr.bf16.mxu0 0
      %5070 = vmatmul.mubr.bf16.gmra.mxu0 %v4735
      %v5071 = vpop.f32.mrf.mxu0
      %v5072 = vadd.f32 %v4975, %v5071
      %v5073 = vpop.f32.mrf.mxu0
      %v5074 = vpop.f32.mrf.mxu0
      %v5075 = vadd.f32 %v4978, %v5074
      %v5076 = vpop.f32.mrf.mxu0
      %5077 = vmatprep.mubr.bf16.mxu0 0
      %5078 = vmatmul.mubr.bf16.gmra.mxu0 %v4738
      %v5079 = vpop.f32.mrf.mxu0
      %v5080 = vadd.f32 %v4983, %v5079
      %v5081 = vpop.f32.mrf.mxu0
      %v5082 = vpop.f32.mrf.mxu0
      %v5083 = vadd.f32 %v4986, %v5082
      %v5084 = vpop.f32.mrf.mxu0
      %5085 = vmatprep.mubr.bf16.mxu0 0
      %5086 = vmatmul.mubr.bf16.gmra.mxu0 %v4741
      %v5087 = vpop.f32.mrf.mxu0
      %v5088 = vadd.f32 %v4991, %v5087
      %v5089 = vpop.f32.mrf.mxu0
      %v5090 = vpop.f32.mrf.mxu0
      %v5091 = vadd.f32 %v4994, %v5090
      %v5092 = vpop.f32.mrf.mxu0
      %5093 = vmatprep.mubr.bf16.mxu0 0
      %5094 = vmatmul.mubr.bf16.gmra.mxu0 %v4744
      %v5095 = vpop.f32.mrf.mxu0
      %v5096 = vadd.f32 %v4999, %v5095
      %v5097 = vpop.f32.mrf.mxu0
      %v5098 = vpop.f32.mrf.mxu0
      %v5099 = vadd.f32 %v5002, %v5098
      %v5100 = vpop.f32.mrf.mxu0
      %5101 = vmatprep.mubr.bf16.mxu0 0
      %5102 = vmatmul.mubr.bf16.gmra.mxu0 %v4747
      %v5103 = vpop.f32.mrf.mxu0
      %v5104 = vadd.f32 %v5007, %v5103
      %v5105 = vpop.f32.mrf.mxu0
      %v5106 = vpop.f32.mrf.mxu0
      %v5107 = vadd.f32 %v5010, %v5106
      %v5108 = vpop.f32.mrf.mxu0
      %5109 = vdwg.mxu0
      %v5110 = vadd.f32 %v4406, %v5048
      %v5111 = vadd.f32 %v4409, %v5051
      %v5112 = vadd.f32 %v4414, %v5056
      %v5113 = vadd.f32 %v4417, %v5059
      %v5114 = vadd.f32 %v4422, %v5064
      %v5115 = vadd.f32 %v4425, %v5067
      %v5116 = vadd.f32 %v4430, %v5072
      %v5117 = vadd.f32 %v4433, %v5075
      %v5118 = vadd.f32 %v4438, %v5080
      %v5119 = vadd.f32 %v4441, %v5083
      %v5120 = vadd.f32 %v4446, %v5088
      %v5121 = vadd.f32 %v4449, %v5091
      %v5122 = vadd.f32 %v4454, %v5096
      %v5123 = vadd.f32 %v4457, %v5099
      %v5124 = vadd.f32 %v4462, %v5104
      %v5125 = vadd.f32 %v4465, %v5107
      %v5126 = vadd.f32 %v5110, %v2736
      %v5127 = vadd.f32 %v5111, %v2736
      %v5128 = vadd.f32 %v5112, %v2736
      %v5129 = vadd.f32 %v5113, %v2736
      %v5130 = vadd.f32 %v5114, %v2736
      %v5131 = vadd.f32 %v5115, %v2736
      %v5132 = vadd.f32 %v5116, %v2736
      %v5133 = vadd.f32 %v5117, %v2736
      %v5134 = vadd.f32 %v5118, %v2736
      %v5135 = vadd.f32 %v5119, %v2736
      %v5136 = vadd.f32 %v5120, %v2736
      %v5137 = vadd.f32 %v5121, %v2736
      %v5138 = vadd.f32 %v5122, %v2736
      %v5139 = vadd.f32 %v5123, %v2736
      %v5140 = vadd.f32 %v5124, %v2736
      %v5141 = vadd.f32 %v5125, %v2736
      %v5142 = vmax.f32 %v5126, 0.0
      %v5143 = vmax.f32 %v5127, 0.0
      %v5144 = vmax.f32 %v5128, 0.0
      %v5145 = vmax.f32 %v5129, 0.0
      %v5146 = vmax.f32 %v5130, 0.0
      %v5147 = vmax.f32 %v5131, 0.0
      %v5148 = vmax.f32 %v5132, 0.0
      %v5149 = vmax.f32 %v5133, 0.0
      %v5150 = vmax.f32 %v5134, 0.0
      %v5151 = vmax.f32 %v5135, 0.0
      %v5152 = vmax.f32 %v5136, 0.0
      %v5153 = vmax.f32 %v5137, 0.0
      %v5154 = vmax.f32 %v5138, 0.0
      %v5155 = vmax.f32 %v5139, 0.0
      %v5156 = vmax.f32 %v5140, 0.0
      %v5157 = vmax.f32 %v5141, 0.0
      %v5158 = vpack.c.bf16 %v5143, %v5142
      %v5159 = vpack.c.bf16 %v5145, %v5144
      %v5160 = vpack.c.bf16 %v5147, %v5146
      %v5161 = vpack.c.bf16 %v5149, %v5148
      %v5162 = vpack.c.bf16 %v5151, %v5150
      %v5163 = vpack.c.bf16 %v5153, %v5152
      %v5164 = vpack.c.bf16 %v5155, %v5154
      %v5165 = vpack.c.bf16 %v5157, %v5156
      %v5174 = vunpack.c.l.b16 %v5158
      %v5175 = vunpack.c.h.b16 %v5158
      %v5176 = vunpack.c.l.b16 %v5159
      %v5177 = vunpack.c.h.b16 %v5159
      %v5178 = vunpack.c.l.b16 %v5160
      %v5179 = vunpack.c.h.b16 %v5160
      %v5180 = vunpack.c.l.b16 %v5161
      %v5181 = vunpack.c.h.b16 %v5161
      %v5182 = vunpack.c.l.b16 %v5162
      %v5183 = vunpack.c.h.b16 %v5162
      %v5184 = vunpack.c.l.b16 %v5163
      %v5185 = vunpack.c.h.b16 %v5163
      %v5186 = vunpack.c.l.b16 %v5164
      %v5187 = vunpack.c.h.b16 %v5164
      %v5188 = vunpack.c.l.b16 %v5165
      %v5189 = vunpack.c.h.b16 %v5165
      %v5190 = vpack.c.b16 %v5174, %v5174
      %v5191 = vpack.c.b16 %v5175, %v5175
      %v5192 = vpack.c.b16 %v5176, %v5176
      %v5193 = vpack.c.b16 %v5177, %v5177
      %v5194 = vpack.c.b16 %v5178, %v5178
      %v5195 = vpack.c.b16 %v5179, %v5179
      %v5196 = vpack.c.b16 %v5180, %v5180
      %v5197 = vpack.c.b16 %v5181, %v5181
      %v5198 = vpack.c.b16 %v5182, %v5182
      %v5199 = vpack.c.b16 %v5183, %v5183
      %v5200 = vpack.c.b16 %v5184, %v5184
      %v5201 = vpack.c.b16 %v5185, %v5185
      %v5202 = vpack.c.b16 %v5186, %v5186
      %v5203 = vpack.c.b16 %v5187, %v5187
      %v5204 = vpack.c.b16 %v5188, %v5188
      %v5205 = vpack.c.b16 %v5189, %v5189
      %v5207 = vshrl.u32 %v5190, 16
      %v5209 = vrot.slane %v5207, 7
      %v5210 = vshll.u32 %v5190, 16
      %v5212 = vor.u32 %v5209, %v5210
      %v5213 = vrot.slane %v5209, 4
      %v5215 = vshrl.u32 %v5191, 16
      %v5217 = vrot.slane %v5215, 7
      %v5218 = vshll.u32 %v5191, 16
      %v5220 = vor.u32 %v5217, %v5218
      %v5221 = vsel %vm2819, %v5213, %v5220
      %v5222 = vrot.slane %v5217, 4
      %v5224 = vshrl.u32 %v5192, 16
      %v5226 = vrot.slane %v5224, 7
      %v5227 = vshll.u32 %v5192, 16
      %v5229 = vor.u32 %v5226, %v5227
      %v5230 = vrot.slane %v5226, 4
      %v5232 = vshrl.u32 %v5193, 16
      %v5234 = vrot.slane %v5232, 7
      %v5235 = vshll.u32 %v5193, 16
      %v5237 = vor.u32 %v5234, %v5235
      %v5238 = vsel %vm2819, %v5230, %v5237
      %v5239 = vrot.slane %v5234, 4
      %v5241 = vshrl.u32 %v5194, 16
      %v5243 = vrot.slane %v5241, 7
      %v5244 = vshll.u32 %v5194, 16
      %v5246 = vor.u32 %v5243, %v5244
      %v5247 = vrot.slane %v5243, 4
      %v5249 = vshrl.u32 %v5195, 16
      %v5251 = vrot.slane %v5249, 7
      %v5252 = vshll.u32 %v5195, 16
      %v5254 = vor.u32 %v5251, %v5252
      %v5255 = vsel %vm2819, %v5247, %v5254
      %v5256 = vrot.slane %v5251, 4
      %v5258 = vshrl.u32 %v5196, 16
      %v5260 = vrot.slane %v5258, 7
      %v5261 = vshll.u32 %v5196, 16
      %v5263 = vor.u32 %v5260, %v5261
      %v5264 = vrot.slane %v5260, 4
      %v5266 = vshrl.u32 %v5197, 16
      %v5268 = vrot.slane %v5266, 7
      %v5269 = vshll.u32 %v5197, 16
      %v5271 = vor.u32 %v5268, %v5269
      %v5272 = vsel %vm2819, %v5264, %v5271
      %v5273 = vrot.slane %v5268, 4
      %v5275 = vshrl.u32 %v5198, 16
      %v5277 = vrot.slane %v5275, 7
      %v5278 = vshll.u32 %v5198, 16
      %v5280 = vor.u32 %v5277, %v5278
      %v5281 = vrot.slane %v5277, 4
      %v5283 = vshrl.u32 %v5199, 16
      %v5285 = vrot.slane %v5283, 7
      %v5286 = vshll.u32 %v5199, 16
      %v5288 = vor.u32 %v5285, %v5286
      %v5289 = vsel %vm2819, %v5281, %v5288
      %v5290 = vrot.slane %v5285, 4
      %v5292 = vshrl.u32 %v5200, 16
      %v5294 = vrot.slane %v5292, 7
      %v5295 = vshll.u32 %v5200, 16
      %v5297 = vor.u32 %v5294, %v5295
      %v5298 = vrot.slane %v5294, 4
      %v5300 = vshrl.u32 %v5201, 16
      %v5302 = vrot.slane %v5300, 7
      %v5303 = vshll.u32 %v5201, 16
      %v5305 = vor.u32 %v5302, %v5303
      %v5306 = vsel %vm2819, %v5298, %v5305
      %v5307 = vrot.slane %v5302, 4
      %v5309 = vshrl.u32 %v5202, 16
      %v5311 = vrot.slane %v5309, 7
      %v5312 = vshll.u32 %v5202, 16
      %v5314 = vor.u32 %v5311, %v5312
      %v5315 = vrot.slane %v5311, 4
      %v5317 = vshrl.u32 %v5203, 16
      %v5319 = vrot.slane %v5317, 7
      %v5320 = vshll.u32 %v5203, 16
      %v5322 = vor.u32 %v5319, %v5320
      %v5323 = vsel %vm2819, %v5315, %v5322
      %v5324 = vrot.slane %v5319, 4
      %v5326 = vshrl.u32 %v5204, 16
      %v5328 = vrot.slane %v5326, 7
      %v5329 = vshll.u32 %v5204, 16
      %v5331 = vor.u32 %v5328, %v5329
      %v5332 = vrot.slane %v5328, 4
      %v5334 = vshrl.u32 %v5205, 16
      %v5336 = vrot.slane %v5334, 7
      %v5337 = vshll.u32 %v5205, 16
      %v5339 = vor.u32 %v5336, %v5337
      %v5340 = vsel %vm2819, %v5332, %v5339
      %v5341 = vrot.slane %v5336, 4
      %s5366 = scalar_lea.vmem [#allocation3], 108
      %v5367 = vld [vmem:[%s5366] sm:$0xf]
      %v5368 = vsel %vm2982, %v5212, %v5367
      %5369 = vst [vmem:[%s5366] sm:$0xf] %v5368
      %5370 = vst [vmem:[%s5366 + $0x4] sm:$0xf] %v5221
      %v5371 = vld [vmem:[%s5366 + $0x8] sm:$0x1]
      %v5372 = vsel %vm527, %v5222, %v5371
      %5373 = vst [vmem:[%s5366 + $0x8] sm:$0x1] %v5372
      %v5374 = vld [vmem:[%s5366 + $0xc] sm:$0xf]
      %v5375 = vsel %vm2982, %v5229, %v5374
      %5376 = vst [vmem:[%s5366 + $0xc] sm:$0xf] %v5375
      %5377 = vst [vmem:[%s5366 + $0x10] sm:$0xf] %v5238
      %v5378 = vld [vmem:[%s5366 + $0x14] sm:$0x1]
      %v5379 = vsel %vm527, %v5239, %v5378
      %5380 = vst [vmem:[%s5366 + $0x14] sm:$0x1] %v5379
      %v5381 = vld [vmem:[%s5366 + $0x18] sm:$0xf]
      %v5382 = vsel %vm2982, %v5246, %v5381
      %5383 = vst [vmem:[%s5366 + $0x18] sm:$0xf] %v5382
      %5384 = vst [vmem:[%s5366 + $0x1c] sm:$0xf] %v5255
      %v5385 = vld [vmem:[%s5366 + $0x20] sm:$0x1]
      %v5386 = vsel %vm527, %v5256, %v5385
      %5387 = vst [vmem:[%s5366 + $0x20] sm:$0x1] %v5386
      %v5388 = vld [vmem:[%s5366 + $0x24] sm:$0xf]
      %v5389 = vsel %vm2982, %v5263, %v5388
      %5390 = vst [vmem:[%s5366 + $0x24] sm:$0xf] %v5389
      %5391 = vst [vmem:[%s5366 + $0x28] sm:$0xf] %v5272
      %v5392 = vld [vmem:[%s5366 + $0x2c] sm:$0x1]
      %v5393 = vsel %vm527, %v5273, %v5392
      %5394 = vst [vmem:[%s5366 + $0x2c] sm:$0x1] %v5393
      %v5395 = vld [vmem:[%s5366 + $0x30] sm:$0xf]
      %v5396 = vsel %vm2982, %v5280, %v5395
      %5397 = vst [vmem:[%s5366 + $0x30] sm:$0xf] %v5396
      %5398 = vst [vmem:[%s5366 + $0x34] sm:$0xf] %v5289
      %v5399 = vld [vmem:[%s5366 + $0x38] sm:$0x1]
      %v5400 = vsel %vm527, %v5290, %v5399
      %5401 = vst [vmem:[%s5366 + $0x38] sm:$0x1] %v5400
      %v5402 = vld [vmem:[%s5366 + $0x3c] sm:$0xf]
      %v5403 = vsel %vm2982, %v5297, %v5402
      %5404 = vst [vmem:[%s5366 + $0x3c] sm:$0xf] %v5403
      %5405 = vst [vmem:[%s5366 + $0x40] sm:$0xf] %v5306
      %v5406 = vld [vmem:[%s5366 + $0x44] sm:$0x1]
      %v5407 = vsel %vm527, %v5307, %v5406
      %5408 = vst [vmem:[%s5366 + $0x44] sm:$0x1] %v5407
      %v5409 = vld [vmem:[%s5366 + $0x48] sm:$0xf]
      %v5410 = vsel %vm2982, %v5314, %v5409
      %5411 = vst [vmem:[%s5366 + $0x48] sm:$0xf] %v5410
      %5412 = vst [vmem:[%s5366 + $0x4c] sm:$0xf] %v5323
      %v5413 = vld [vmem:[%s5366 + $0x50] sm:$0x1]
      %v5414 = vsel %vm527, %v5324, %v5413
      %5415 = vst [vmem:[%s5366 + $0x50] sm:$0x1] %v5414
      %v5416 = vld [vmem:[%s5366 + $0x54] sm:$0xf]
      %v5417 = vsel %vm2982, %v5331, %v5416
      %5418 = vst [vmem:[%s5366 + $0x54] sm:$0xf] %v5417
      %5419 = vst [vmem:[%s5366 + $0x58] sm:$0xf] %v5340
      %v5420 = vld [vmem:[%s5366 + $0x5c] sm:$0x1]
      %v5421 = vsel %vm527, %v5341, %v5420
      %5422 = vst [vmem:[%s5366 + $0x5c] sm:$0x1] %v5421
      %v5423 = vld [vmem:[#allocation3] sm:$0xf]
      %v5424 = vld [vmem:[#allocation3 + $0x4] sm:$0xf]
      %v5425 = vld [vmem:[#allocation3 + $0x8] sm:$0x1]
      %v5426 = vld [vmem:[#allocation3 + $0xc] sm:$0xf]
      %v5427 = vld [vmem:[#allocation3 + $0x10] sm:$0xf]
      %v5428 = vld [vmem:[#allocation3 + $0x14] sm:$0x1]
      %v5429 = vld [vmem:[#allocation3 + $0x18] sm:$0xf]
      %v5430 = vld [vmem:[#allocation3 + $0x1c] sm:$0xf]
      %v5431 = vld [vmem:[#allocation3 + $0x20] sm:$0x1]
      %v5432 = vld [vmem:[#allocation3 + $0x24] sm:$0xf]
      %v5433 = vld [vmem:[#allocation3 + $0x28] sm:$0xf]
      %v5434 = vld [vmem:[#allocation3 + $0x2c] sm:$0x1]
      %v5435 = vld [vmem:[#allocation3 + $0x30] sm:$0xf]
      %v5436 = vld [vmem:[#allocation3 + $0x34] sm:$0xf]
      %v5437 = vld [vmem:[#allocation3 + $0x38] sm:$0x1]
      %v5438 = vld [vmem:[#allocation3 + $0x3c] sm:$0xf]
      %v5439 = vld [vmem:[#allocation3 + $0x40] sm:$0xf]
      %v5440 = vld [vmem:[#allocation3 + $0x44] sm:$0x1]
      %v5441 = vld [vmem:[#allocation3 + $0x48] sm:$0xf]
      %v5442 = vld [vmem:[#allocation3 + $0x4c] sm:$0xf]
      %v5443 = vld [vmem:[#allocation3 + $0x50] sm:$0x1]
      %v5444 = vld [vmem:[#allocation3 + $0x54] sm:$0xf]
      %v5445 = vld [vmem:[#allocation3 + $0x58] sm:$0xf]
      %v5446 = vld [vmem:[#allocation3 + $0x5c] sm:$0x1]
      %v5447 = vld [vmem:[#allocation3 + $0x60] sm:$0xf]
      %v5448 = vld [vmem:[#allocation3 + $0x64] sm:$0xf]
      %v5449 = vld [vmem:[#allocation3 + $0x68] sm:$0x1]
      %v5450 = vld [vmem:[#allocation3 + $0x6c] sm:$0xf]
      %v5451 = vld [vmem:[#allocation3 + $0x70] sm:$0xf]
      %v5452 = vld [vmem:[#allocation3 + $0x74] sm:$0x1]
      %v5453 = vld [vmem:[#allocation3 + $0x78] sm:$0xf]
      %v5454 = vld [vmem:[#allocation3 + $0x7c] sm:$0xf]
      %v5455 = vld [vmem:[#allocation3 + $0x80] sm:$0x1]
      %v5456 = vld [vmem:[#allocation3 + $0x84] sm:$0xf]
      %v5457 = vld [vmem:[#allocation3 + $0x88] sm:$0xf]
      %v5458 = vld [vmem:[#allocation3 + $0x8c] sm:$0x1]
      %v5459 = vld [vmem:[#allocation3 + $0x90] sm:$0xf]
      %v5460 = vld [vmem:[#allocation3 + $0x94] sm:$0xf]
      %v5461 = vld [vmem:[#allocation3 + $0x98] sm:$0x1]
      %v5462 = vld [vmem:[#allocation3 + $0x9c] sm:$0xf]
      %v5463 = vld [vmem:[#allocation3 + $0xa0] sm:$0xf]
      %v5464 = vld [vmem:[#allocation3 + $0xa4] sm:$0x1]
      %v5465 = vld [vmem:[#allocation3 + $0xa8] sm:$0xf]
      %v5466 = vld [vmem:[#allocation3 + $0xac] sm:$0xf]
      %v5467 = vld [vmem:[#allocation3 + $0xb0] sm:$0x1]
      %v5468 = vld [vmem:[#allocation3 + $0xb4] sm:$0xf]
      %v5469 = vld [vmem:[#allocation3 + $0xb8] sm:$0xf]
      %v5470 = vld [vmem:[#allocation3 + $0xbc] sm:$0x1]
      %5471 = vst [vmem:[#allocation2] sm:$0xf] %v5423
      %5472 = vst [vmem:[#allocation2 + $0xc] sm:$0xf] %v5424
      %5473 = vst [vmem:[#allocation2 + $0x18] sm:$0x1] %v5425
      %5474 = vst [vmem:[#allocation2 + $0x24] sm:$0xf] %v5426
      %5475 = vst [vmem:[#allocation2 + $0x30] sm:$0xf] %v5427
      %5476 = vst [vmem:[#allocation2 + $0x3c] sm:$0x1] %v5428
      %5477 = vst [vmem:[#allocation2 + $0x48] sm:$0xf] %v5429
      %5478 = vst [vmem:[#allocation2 + $0x54] sm:$0xf] %v5430
      %5479 = vst [vmem:[#allocation2 + $0x60] sm:$0x1] %v5431
      %5480 = vst [vmem:[#allocation2 + $0x6c] sm:$0xf] %v5432
      %5481 = vst [vmem:[#allocation2 + $0x78] sm:$0xf] %v5433
      %5482 = vst [vmem:[#allocation2 + $0x84] sm:$0x1] %v5434
      %5483 = vst [vmem:[#allocation2 + $0x90] sm:$0xf] %v5435
      %5484 = vst [vmem:[#allocation2 + $0x9c] sm:$0xf] %v5436
      %5485 = vst [vmem:[#allocation2 + $0xa8] sm:$0x1] %v5437
      %5486 = vst [vmem:[#allocation2 + $0xb4] sm:$0xf] %v5438
      %5487 = vst [vmem:[#allocation2 + $0xc0] sm:$0xf] %v5439
      %5488 = vst [vmem:[#allocation2 + $0xcc] sm:$0x1] %v5440
      %5489 = vst [vmem:[#allocation2 + $0xd8] sm:$0xf] %v5441
      %5490 = vst [vmem:[#allocation2 + $0xe4] sm:$0xf] %v5442
      %5491 = vst [vmem:[#allocation2 + $0xf0] sm:$0x1] %v5443
      %5492 = vst [vmem:[#allocation2 + $0xfc] sm:$0xf] %v5444
      %5493 = vst [vmem:[#allocation2 + $0x108] sm:$0xf] %v5445
      %5494 = vst [vmem:[#allocation2 + $0x114] sm:$0x1] %v5446
      %5495 = vst [vmem:[#allocation2 + $0x120] sm:$0xf] %v5447
      %5496 = vst [vmem:[#allocation2 + $0x12c] sm:$0xf] %v5448
      %5497 = vst [vmem:[#allocation2 + $0x138] sm:$0x1] %v5449
      %5498 = vst [vmem:[#allocation2 + $0x144] sm:$0xf] %v5450
      %5499 = vst [vmem:[#allocation2 + $0x150] sm:$0xf] %v5451
      %5500 = vst [vmem:[#allocation2 + $0x15c] sm:$0x1] %v5452
      %5501 = vst [vmem:[#allocation2 + $0x168] sm:$0xf] %v5453
      %5502 = vst [vmem:[#allocation2 + $0x174] sm:$0xf] %v5454
      %5503 = vst [vmem:[#allocation2 + $0x180] sm:$0x1] %v5455
      %5504 = vst [vmem:[#allocation2 + $0x18c] sm:$0xf] %v5456
      %5505 = vst [vmem:[#allocation2 + $0x198] sm:$0xf] %v5457
      %5506 = vst [vmem:[#allocation2 + $0x1a4] sm:$0x1] %v5458
      %5507 = vst [vmem:[#allocation2 + $0x1b0] sm:$0xf] %v5459
      %5508 = vst [vmem:[#allocation2 + $0x1bc] sm:$0xf] %v5460
      %5509 = vst [vmem:[#allocation2 + $0x1c8] sm:$0x1] %v5461
      %5510 = vst [vmem:[#allocation2 + $0x1d4] sm:$0xf] %v5462
      %5511 = vst [vmem:[#allocation2 + $0x1e0] sm:$0xf] %v5463
      %5512 = vst [vmem:[#allocation2 + $0x1ec] sm:$0x1] %v5464
      %5513 = vst [vmem:[#allocation2 + $0x1f8] sm:$0xf] %v5465
      %5514 = vst [vmem:[#allocation2 + $0x204] sm:$0xf] %v5466
      %5515 = vst [vmem:[#allocation2 + $0x210] sm:$0x1] %v5467
      %5516 = vst [vmem:[#allocation2 + $0x21c] sm:$0xf] %v5468
      %5517 = vst [vmem:[#allocation2 + $0x228] sm:$0xf] %v5469
      %5518 = vst [vmem:[#allocation2 + $0x234] sm:$0x1] %v5470
      %v5519 = vld [vmem:[%s2980] sm:$0xf]
      %v5520 = vld [vmem:[%s2980 + $0x4] sm:$0xf]
      %v5521 = vld [vmem:[%s2980 + $0x8] sm:$0x1]
      %v5522 = vld [vmem:[%s2980 + $0xc] sm:$0xf]
      %v5523 = vld [vmem:[%s2980 + $0x10] sm:$0xf]
      %v5524 = vld [vmem:[%s2980 + $0x14] sm:$0x1]
      %v5525 = vld [vmem:[%s2980 + $0x18] sm:$0xf]
      %v5526 = vld [vmem:[%s2980 + $0x1c] sm:$0xf]
      %v5527 = vld [vmem:[%s2980 + $0x20] sm:$0x1]
      %v5528 = vld [vmem:[%s2980 + $0x24] sm:$0xf]
      %v5529 = vld [vmem:[%s2980 + $0x28] sm:$0xf]
      %v5530 = vld [vmem:[%s2980 + $0x2c] sm:$0x1]
      %v5531 = vld [vmem:[%s2980 + $0x30] sm:$0xf]
      %v5532 = vld [vmem:[%s2980 + $0x34] sm:$0xf]
      %v5533 = vld [vmem:[%s2980 + $0x38] sm:$0x1]
      %v5534 = vld [vmem:[%s2980 + $0x3c] sm:$0xf]
      %v5535 = vld [vmem:[%s2980 + $0x40] sm:$0xf]
      %v5536 = vld [vmem:[%s2980 + $0x44] sm:$0x1]
      %v5537 = vld [vmem:[%s2980 + $0x48] sm:$0xf]
      %v5538 = vld [vmem:[%s2980 + $0x4c] sm:$0xf]
      %v5539 = vld [vmem:[%s2980 + $0x50] sm:$0x1]
      %v5540 = vld [vmem:[%s2980 + $0x54] sm:$0xf]
      %v5541 = vld [vmem:[%s2980 + $0x58] sm:$0xf]
      %v5542 = vld [vmem:[%s2980 + $0x5c] sm:$0x1]
      %v5543 = vld [vmem:[%s2980 + $0x60] sm:$0xf]
      %v5544 = vld [vmem:[%s2980 + $0x64] sm:$0xf]
      %v5545 = vld [vmem:[%s2980 + $0x68] sm:$0x1]
      %v5546 = vld [vmem:[%s2980 + $0x6c] sm:$0xf]
      %v5547 = vld [vmem:[%s2980 + $0x70] sm:$0xf]
      %v5548 = vld [vmem:[%s2980 + $0x74] sm:$0x1]
      %v5549 = vld [vmem:[%s2980 + $0x78] sm:$0xf]
      %v5550 = vld [vmem:[%s2980 + $0x7c] sm:$0xf]
      %v5551 = vld [vmem:[%s2980 + $0x80] sm:$0x1]
      %v5552 = vld [vmem:[%s2980 + $0x84] sm:$0xf]
      %v5553 = vld [vmem:[%s2980 + $0x88] sm:$0xf]
      %v5554 = vld [vmem:[%s2980 + $0x8c] sm:$0x1]
      %v5555 = vld [vmem:[%s2980 + $0x90] sm:$0xf]
      %v5556 = vld [vmem:[%s2980 + $0x94] sm:$0xf]
      %v5557 = vld [vmem:[%s2980 + $0x98] sm:$0x1]
      %v5558 = vld [vmem:[%s2980 + $0x9c] sm:$0xf]
      %v5559 = vld [vmem:[%s2980 + $0xa0] sm:$0xf]
      %v5560 = vld [vmem:[%s2980 + $0xa4] sm:$0x1]
      %v5561 = vld [vmem:[%s2980 + $0xa8] sm:$0xf]
      %v5562 = vld [vmem:[%s2980 + $0xac] sm:$0xf]
      %v5563 = vld [vmem:[%s2980 + $0xb0] sm:$0x1]
      %v5564 = vld [vmem:[%s2980 + $0xb4] sm:$0xf]
      %v5565 = vld [vmem:[%s2980 + $0xb8] sm:$0xf]
      %v5566 = vld [vmem:[%s2980 + $0xbc] sm:$0x1]
      %5567 = vst [vmem:[#allocation2 + $0x4] sm:$0xf] %v5519
      %5568 = vst [vmem:[#allocation2 + $0x10] sm:$0xf] %v5520
      %5569 = vst [vmem:[#allocation2 + $0x1c] sm:$0x1] %v5521
      %5570 = vst [vmem:[#allocation2 + $0x28] sm:$0xf] %v5522
      %5571 = vst [vmem:[#allocation2 + $0x34] sm:$0xf] %v5523
      %5572 = vst [vmem:[#allocation2 + $0x40] sm:$0x1] %v5524
      %5573 = vst [vmem:[#allocation2 + $0x4c] sm:$0xf] %v5525
      %5574 = vst [vmem:[#allocation2 + $0x58] sm:$0xf] %v5526
      %5575 = vst [vmem:[#allocation2 + $0x64] sm:$0x1] %v5527
      %5576 = vst [vmem:[#allocation2 + $0x70] sm:$0xf] %v5528
      %5577 = vst [vmem:[#allocation2 + $0x7c] sm:$0xf] %v5529
      %5578 = vst [vmem:[#allocation2 + $0x88] sm:$0x1] %v5530
      %5579 = vst [vmem:[#allocation2 + $0x94] sm:$0xf] %v5531
      %5580 = vst [vmem:[#allocation2 + $0xa0] sm:$0xf] %v5532
      %5581 = vst [vmem:[#allocation2 + $0xac] sm:$0x1] %v5533
      %5582 = vst [vmem:[#allocation2 + $0xb8] sm:$0xf] %v5534
      %5583 = vst [vmem:[#allocation2 + $0xc4] sm:$0xf] %v5535
      %5584 = vst [vmem:[#allocation2 + $0xd0] sm:$0x1] %v5536
      %5585 = vst [vmem:[#allocation2 + $0xdc] sm:$0xf] %v5537
      %5586 = vst [vmem:[#allocation2 + $0xe8] sm:$0xf] %v5538
      %5587 = vst [vmem:[#allocation2 + $0xf4] sm:$0x1] %v5539
      %5588 = vst [vmem:[#allocation2 + $0x100] sm:$0xf] %v5540
      %5589 = vst [vmem:[#allocation2 + $0x10c] sm:$0xf] %v5541
      %5590 = vst [vmem:[#allocation2 + $0x118] sm:$0x1] %v5542
      %5591 = vst [vmem:[#allocation2 + $0x124] sm:$0xf] %v5543
      %5592 = vst [vmem:[#allocation2 + $0x130] sm:$0xf] %v5544
      %5593 = vst [vmem:[#allocation2 + $0x13c] sm:$0x1] %v5545
      %5594 = vst [vmem:[#allocation2 + $0x148] sm:$0xf] %v5546
      %5595 = vst [vmem:[#allocation2 + $0x154] sm:$0xf] %v5547
      %5596 = vst [vmem:[#allocation2 + $0x160] sm:$0x1] %v5548
      %5597 = vst [vmem:[#allocation2 + $0x16c] sm:$0xf] %v5549
      %5598 = vst [vmem:[#allocation2 + $0x178] sm:$0xf] %v5550
      %5599 = vst [vmem:[#allocation2 + $0x184] sm:$0x1] %v5551
      %5600 = vst [vmem:[#allocation2 + $0x190] sm:$0xf] %v5552
      %5601 = vst [vmem:[#allocation2 + $0x19c] sm:$0xf] %v5553
      %5602 = vst [vmem:[#allocation2 + $0x1a8] sm:$0x1] %v5554
      %5603 = vst [vmem:[#allocation2 + $0x1b4] sm:$0xf] %v5555
      %5604 = vst [vmem:[#allocation2 + $0x1c0] sm:$0xf] %v5556
      %5605 = vst [vmem:[#allocation2 + $0x1cc] sm:$0x1] %v5557
      %5606 = vst [vmem:[#allocation2 + $0x1d8] sm:$0xf] %v5558
      %5607 = vst [vmem:[#allocation2 + $0x1e4] sm:$0xf] %v5559
      %5608 = vst [vmem:[#allocation2 + $0x1f0] sm:$0x1] %v5560
      %5609 = vst [vmem:[#allocation2 + $0x1fc] sm:$0xf] %v5561
      %5610 = vst [vmem:[#allocation2 + $0x208] sm:$0xf] %v5562
      %5611 = vst [vmem:[#allocation2 + $0x214] sm:$0x1] %v5563
      %5612 = vst [vmem:[#allocation2 + $0x220] sm:$0xf] %v5564
      %5613 = vst [vmem:[#allocation2 + $0x22c] sm:$0xf] %v5565
      %5614 = vst [vmem:[#allocation2 + $0x238] sm:$0x1] %v5566
      %s5615 = scalar_lea.vmem [#allocation3], 24
      %v5616 = vld [vmem:[%s5615] sm:$0xf]
      %v5617 = vld [vmem:[%s5615 + $0x4] sm:$0xf]
      %v5618 = vld [vmem:[%s5615 + $0x8] sm:$0x1]
      %v5619 = vld [vmem:[%s5615 + $0xc] sm:$0xf]
      %v5620 = vld [vmem:[%s5615 + $0x10] sm:$0xf]
      %v5621 = vld [vmem:[%s5615 + $0x14] sm:$0x1]
      %v5622 = vld [vmem:[%s5615 + $0x18] sm:$0xf]
      %v5623 = vld [vmem:[%s5615 + $0x1c] sm:$0xf]
      %v5624 = vld [vmem:[%s5615 + $0x20] sm:$0x1]
      %v5625 = vld [vmem:[%s5615 + $0x24] sm:$0xf]
      %v5626 = vld [vmem:[%s5615 + $0x28] sm:$0xf]
      %v5627 = vld [vmem:[%s5615 + $0x2c] sm:$0x1]
      %v5628 = vld [vmem:[%s5615 + $0x30] sm:$0xf]
      %v5629 = vld [vmem:[%s5615 + $0x34] sm:$0xf]
      %v5630 = vld [vmem:[%s5615 + $0x38] sm:$0x1]
      %v5631 = vld [vmem:[%s5615 + $0x3c] sm:$0xf]
      %v5632 = vld [vmem:[%s5615 + $0x40] sm:$0xf]
      %v5633 = vld [vmem:[%s5615 + $0x44] sm:$0x1]
      %v5634 = vld [vmem:[%s5615 + $0x48] sm:$0xf]
      %v5635 = vld [vmem:[%s5615 + $0x4c] sm:$0xf]
      %v5636 = vld [vmem:[%s5615 + $0x50] sm:$0x1]
      %v5637 = vld [vmem:[%s5615 + $0x54] sm:$0xf]
      %v5638 = vld [vmem:[%s5615 + $0x58] sm:$0xf]
      %v5639 = vld [vmem:[%s5615 + $0x5c] sm:$0x1]
      %v5640 = vld [vmem:[%s5615 + $0x60] sm:$0xf]
      %v5641 = vld [vmem:[%s5615 + $0x64] sm:$0xf]
      %v5642 = vld [vmem:[%s5615 + $0x68] sm:$0x1]
      %v5643 = vld [vmem:[%s5615 + $0x6c] sm:$0xf]
      %v5644 = vld [vmem:[%s5615 + $0x70] sm:$0xf]
      %v5645 = vld [vmem:[%s5615 + $0x74] sm:$0x1]
      %v5646 = vld [vmem:[%s5615 + $0x78] sm:$0xf]
      %v5647 = vld [vmem:[%s5615 + $0x7c] sm:$0xf]
      %v5648 = vld [vmem:[%s5615 + $0x80] sm:$0x1]
      %v5649 = vld [vmem:[%s5615 + $0x84] sm:$0xf]
      %v5650 = vld [vmem:[%s5615 + $0x88] sm:$0xf]
      %v5651 = vld [vmem:[%s5615 + $0x8c] sm:$0x1]
      %v5652 = vld [vmem:[%s5615 + $0x90] sm:$0xf]
      %v5653 = vld [vmem:[%s5615 + $0x94] sm:$0xf]
      %v5654 = vld [vmem:[%s5615 + $0x98] sm:$0x1]
      %v5655 = vld [vmem:[%s5615 + $0x9c] sm:$0xf]
      %v5656 = vld [vmem:[%s5615 + $0xa0] sm:$0xf]
      %v5657 = vld [vmem:[%s5615 + $0xa4] sm:$0x1]
      %v5658 = vld [vmem:[%s5615 + $0xa8] sm:$0xf]
      %v5659 = vld [vmem:[%s5615 + $0xac] sm:$0xf]
      %v5660 = vld [vmem:[%s5615 + $0xb0] sm:$0x1]
      %v5661 = vld [vmem:[%s5615 + $0xb4] sm:$0xf]
      %v5662 = vld [vmem:[%s5615 + $0xb8] sm:$0xf]
      %v5663 = vld [vmem:[%s5615 + $0xbc] sm:$0x1]
      %5664 = vst [vmem:[#allocation2 + $0x8] sm:$0xf] %v5616
      %5665 = vst [vmem:[#allocation2 + $0x14] sm:$0xf] %v5617
      %5666 = vst [vmem:[#allocation2 + $0x20] sm:$0x1] %v5618
      %5667 = vst [vmem:[#allocation2 + $0x2c] sm:$0xf] %v5619
      %5668 = vst [vmem:[#allocation2 + $0x38] sm:$0xf] %v5620
      %5669 = vst [vmem:[#allocation2 + $0x44] sm:$0x1] %v5621
      %5670 = vst [vmem:[#allocation2 + $0x50] sm:$0xf] %v5622
      %5671 = vst [vmem:[#allocation2 + $0x5c] sm:$0xf] %v5623
      %5672 = vst [vmem:[#allocation2 + $0x68] sm:$0x1] %v5624
      %5673 = vst [vmem:[#allocation2 + $0x74] sm:$0xf] %v5625
      %5674 = vst [vmem:[#allocation2 + $0x80] sm:$0xf] %v5626
      %5675 = vst [vmem:[#allocation2 + $0x8c] sm:$0x1] %v5627
      %5676 = vst [vmem:[#allocation2 + $0x98] sm:$0xf] %v5628
      %5677 = vst [vmem:[#allocation2 + $0xa4] sm:$0xf] %v5629
      %5678 = vst [vmem:[#allocation2 + $0xb0] sm:$0x1] %v5630
      %5679 = vst [vmem:[#allocation2 + $0xbc] sm:$0xf] %v5631
      %5680 = vst [vmem:[#allocation2 + $0xc8] sm:$0xf] %v5632
      %5681 = vst [vmem:[#allocation2 + $0xd4] sm:$0x1] %v5633
      %5682 = vst [vmem:[#allocation2 + $0xe0] sm:$0xf] %v5634
      %5683 = vst [vmem:[#allocation2 + $0xec] sm:$0xf] %v5635
      %5684 = vst [vmem:[#allocation2 + $0xf8] sm:$0x1] %v5636
      %5685 = vst [vmem:[#allocation2 + $0x104] sm:$0xf] %v5637
      %5686 = vst [vmem:[#allocation2 + $0x110] sm:$0xf] %v5638
      %5687 = vst [vmem:[#allocation2 + $0x11c] sm:$0x1] %v5639
      %5688 = vst [vmem:[#allocation2 + $0x128] sm:$0xf] %v5640
      %5689 = vst [vmem:[#allocation2 + $0x134] sm:$0xf] %v5641
      %5690 = vst [vmem:[#allocation2 + $0x140] sm:$0x1] %v5642
      %5691 = vst [vmem:[#allocation2 + $0x14c] sm:$0xf] %v5643
      %5692 = vst [vmem:[#allocation2 + $0x158] sm:$0xf] %v5644
      %5693 = vst [vmem:[#allocation2 + $0x164] sm:$0x1] %v5645
      %5694 = vst [vmem:[#allocation2 + $0x170] sm:$0xf] %v5646
      %5695 = vst [vmem:[#allocation2 + $0x17c] sm:$0xf] %v5647
      %5696 = vst [vmem:[#allocation2 + $0x188] sm:$0x1] %v5648
      %5697 = vst [vmem:[#allocation2 + $0x194] sm:$0xf] %v5649
      %5698 = vst [vmem:[#allocation2 + $0x1a0] sm:$0xf] %v5650
      %5699 = vst [vmem:[#allocation2 + $0x1ac] sm:$0x1] %v5651
      %5700 = vst [vmem:[#allocation2 + $0x1b8] sm:$0xf] %v5652
      %5701 = vst [vmem:[#allocation2 + $0x1c4] sm:$0xf] %v5653
      %5702 = vst [vmem:[#allocation2 + $0x1d0] sm:$0x1] %v5654
      %5703 = vst [vmem:[#allocation2 + $0x1dc] sm:$0xf] %v5655
      %5704 = vst [vmem:[#allocation2 + $0x1e8] sm:$0xf] %v5656
      %5705 = vst [vmem:[#allocation2 + $0x1f4] sm:$0x1] %v5657
      %5706 = vst [vmem:[#allocation2 + $0x200] sm:$0xf] %v5658
      %5707 = vst [vmem:[#allocation2 + $0x20c] sm:$0xf] %v5659
      %5708 = vst [vmem:[#allocation2 + $0x218] sm:$0x1] %v5660
      %5709 = vst [vmem:[#allocation2 + $0x224] sm:$0xf] %v5661
      %5710 = vst [vmem:[#allocation2 + $0x230] sm:$0xf] %v5662
      %5711 = vst [vmem:[#allocation2 + $0x23c] sm:$0x1] %v5663
      %v5712 = vld [vmem:[#allocation2] sm:$0xff]
      %v5713 = vld [vmem:[#allocation2 + $0x8] sm:$0xf]
      %v5714 = vld [vmem:[#allocation2 + $0xc] sm:$0xff]
      %v5715 = vld [vmem:[#allocation2 + $0x14] sm:$0xf]
      %v5716 = vld [vmem:[#allocation2 + $0x24] sm:$0xff]
      %v5717 = vld [vmem:[#allocation2 + $0x2c] sm:$0xf]
      %v5718 = vld [vmem:[#allocation2 + $0x30] sm:$0xff]
      %v5719 = vld [vmem:[#allocation2 + $0x38] sm:$0xf]
      %v5720 = vld [vmem:[#allocation2 + $0x48] sm:$0xff]
      %v5721 = vld [vmem:[#allocation2 + $0x50] sm:$0xf]
      %v5722 = vld [vmem:[#allocation2 + $0x54] sm:$0xff]
      %v5723 = vld [vmem:[#allocation2 + $0x5c] sm:$0xf]
      %v5724 = vld [vmem:[#allocation2 + $0x6c] sm:$0xff]
      %v5725 = vld [vmem:[#allocation2 + $0x74] sm:$0xf]
      %v5726 = vld [vmem:[#allocation2 + $0x78] sm:$0xff]
      %v5727 = vld [vmem:[#allocation2 + $0x80] sm:$0xf]
      %v5728 = vld [vmem:[#allocation2 + $0x90] sm:$0xff]
      %v5729 = vld [vmem:[#allocation2 + $0x98] sm:$0xf]
      %v5730 = vld [vmem:[#allocation2 + $0x9c] sm:$0xff]
      %v5731 = vld [vmem:[#allocation2 + $0xa4] sm:$0xf]
      %v5732 = vld [vmem:[#allocation2 + $0xb4] sm:$0xff]
      %v5733 = vld [vmem:[#allocation2 + $0xbc] sm:$0xf]
      %v5734 = vld [vmem:[#allocation2 + $0xc0] sm:$0xff]
      %v5735 = vld [vmem:[#allocation2 + $0xc8] sm:$0xf]
      %v5736 = vld [vmem:[#allocation2 + $0xd8] sm:$0xff]
      %v5737 = vld [vmem:[#allocation2 + $0xe0] sm:$0xf]
      %v5738 = vld [vmem:[#allocation2 + $0xe4] sm:$0xff]
      %v5739 = vld [vmem:[#allocation2 + $0xec] sm:$0xf]
      %v5740 = vld [vmem:[#allocation2 + $0xfc] sm:$0xff]
      %v5741 = vld [vmem:[#allocation2 + $0x104] sm:$0xf]
      %v5742 = vld [vmem:[#allocation2 + $0x108] sm:$0xff]
      %v5743 = vld [vmem:[#allocation2 + $0x110] sm:$0xf]
      %v5744 = vld [vmem:[%s2] sm:$0xf]
      %v5745 = vld [vmem:[%s2 + $0x4] sm:$0xf]
      %v5746 = vld [vmem:[%s2 + $0x8] sm:$0xf]
      %v5747 = vld [vmem:[%s2 + $0xc] sm:$0xf]
      %v5748 = vld [vmem:[%s2 + $0x10] sm:$0xf]
      %v5749 = vld [vmem:[%s2 + $0x14] sm:$0xf]
      %v5750 = vld [vmem:[%s2 + $0x18] sm:$0xf]
      %v5751 = vld [vmem:[%s2 + $0x1c] sm:$0xf]
      %v5752 = vld [vmem:[%s2 + $0x20] sm:$0xf]
      %v5753 = vld [vmem:[%s2 + $0x24] sm:$0xf]
      %v5754 = vld [vmem:[%s2 + $0x28] sm:$0xf]
      %v5755 = vld [vmem:[%s2 + $0x2c] sm:$0xf]
      %v5756 = vld [vmem:[%s2 + $0x30] sm:$0xf]
      %v5757 = vld [vmem:[%s2 + $0x34] sm:$0xf]
      %v5758 = vld [vmem:[%s2 + $0x38] sm:$0xf]
      %v5759 = vld [vmem:[%s2 + $0x3c] sm:$0xf]
      %v5760 = vld [vmem:[%s2 + $0x40] sm:$0xf]
      %v5761 = vld [vmem:[%s2 + $0x44] sm:$0xf]
      %v5762 = vld [vmem:[%s2 + $0x48] sm:$0xf]
      %v5763 = vld [vmem:[%s2 + $0x4c] sm:$0xf]
      %v5764 = vld [vmem:[%s2 + $0x50] sm:$0xf]
      %v5765 = vld [vmem:[%s2 + $0x54] sm:$0xf]
      %v5766 = vld [vmem:[%s2 + $0x58] sm:$0xf]
      %v5767 = vld [vmem:[%s2 + $0x5c] sm:$0xf]
      %v5768 = vld [vmem:[%s2 + $0x60] sm:$0xf]
      %v5769 = vld [vmem:[%s2 + $0x64] sm:$0xf]
      %v5770 = vld [vmem:[%s2 + $0x68] sm:$0xf]
      %v5771 = vld [vmem:[%s2 + $0x6c] sm:$0xf]
      %v5772 = vld [vmem:[%s2 + $0x70] sm:$0xf]
      %v5773 = vld [vmem:[%s2 + $0x74] sm:$0xf]
      %v5774 = vld [vmem:[%s2 + $0x78] sm:$0xf]
      %v5775 = vld [vmem:[%s2 + $0x7c] sm:$0xf]
      %v5776 = vld [vmem:[%s2 + $0x80] sm:$0xf]
      %v5777 = vld [vmem:[%s2 + $0x84] sm:$0xf]
      %v5778 = vld [vmem:[%s2 + $0x88] sm:$0xf]
      %v5779 = vld [vmem:[%s2 + $0x8c] sm:$0xf]
      %v5780 = vld [vmem:[%s2 + $0x90] sm:$0xf]
      %v5781 = vld [vmem:[%s2 + $0x94] sm:$0xf]
      %v5782 = vld [vmem:[%s2 + $0x98] sm:$0xf]
      %v5783 = vld [vmem:[%s2 + $0x9c] sm:$0xf]
      %v5784 = vld [vmem:[%s2 + $0xa0] sm:$0xf]
      %v5785 = vld [vmem:[%s2 + $0xa4] sm:$0xf]
      %v5786 = vld [vmem:[%s2 + $0xa8] sm:$0xf]
      %v5787 = vld [vmem:[%s2 + $0xac] sm:$0xf]
      %v5788 = vld [vmem:[%s2 + $0xb0] sm:$0xf]
      %v5789 = vld [vmem:[%s2 + $0xb4] sm:$0xf]
      %v5790 = vld [vmem:[%s2 + $0xb8] sm:$0xf]
      %v5791 = vld [vmem:[%s2 + $0xbc] sm:$0xf]
      %v5792 = vld [vmem:[#allocation2 + $0x18] sm:$0x11]
      %v5793 = vld [vmem:[#allocation2 + $0x20] sm:$0x1]
      %v5794 = vld [vmem:[#allocation2 + $0x3c] sm:$0x11]
      %v5795 = vld [vmem:[#allocation2 + $0x44] sm:$0x1]
      %v5796 = vld [vmem:[#allocation2 + $0x60] sm:$0x11]
      %v5797 = vld [vmem:[#allocation2 + $0x68] sm:$0x1]
      %v5798 = vld [vmem:[#allocation2 + $0x84] sm:$0x11]
      %v5799 = vld [vmem:[#allocation2 + $0x8c] sm:$0x1]
      %v5800 = vld [vmem:[#allocation2 + $0xa8] sm:$0x11]
      %v5801 = vld [vmem:[#allocation2 + $0xb0] sm:$0x1]
      %v5802 = vld [vmem:[#allocation2 + $0xcc] sm:$0x11]
      %v5803 = vld [vmem:[#allocation2 + $0xd4] sm:$0x1]
      %v5804 = vld [vmem:[#allocation2 + $0xf0] sm:$0x11]
      %v5805 = vld [vmem:[#allocation2 + $0xf8] sm:$0x1]
      %v5806 = vld [vmem:[#allocation2 + $0x114] sm:$0x11]
      %v5807 = vld [vmem:[#allocation2 + $0x11c] sm:$0x1]
      %v5809 = vshrl.u32 %v5712, 16
      %v5811 = vrot.slane %v5809, 4
      %v5812 = vshll.u32 %v5712, 16
      %v5814 = vrot.slane %v5812, 5
      %v5815 = vor.u32 %v5811, %v5814
      %v5816 = vrot.slane %v5815, 4
      %v5818 = vshll.u32 %v5714, 16
      %v5820 = vrot.slane %v5818, 5
      %v5821 = vsel %vm736, %v5816, %v5820
      %v5823 = vshrl.u32 %v5713, 16
      %v5825 = vrot.slane %v5823, 4
      %v5826 = vshll.u32 %v5713, 16
      %v5828 = vrot.slane %v5826, 5
      %v5829 = vor.u32 %v5825, %v5828
      %v5830 = vrot.slane %v5829, 4
      %v5832 = vshll.u32 %v5715, 16
      %v5834 = vrot.slane %v5832, 5
      %v5835 = vsel %vm736, %v5830, %v5834
      %v5836 = vshrl.u32 %v5714, 16
      %v5838 = vrot.slane %v5836, 4
      %v5839 = vor.u32 %v5838, %v5820
      %v5840 = vrot.slane %v5839, 4
      %v5842 = vshll.u32 %v5792, 16
      %v5844 = vrot.slane %v5842, 5
      %v5845 = vsel %vm736, %v5840, %v5844
      %v5846 = vshrl.u32 %v5715, 16
      %v5848 = vrot.slane %v5846, 4
      %v5849 = vor.u32 %v5848, %v5834
      %v5850 = vrot.slane %v5849, 4
      %v5852 = vshll.u32 %v5793, 16
      %v5854 = vrot.slane %v5852, 5
      %v5855 = vsel %vm736, %v5850, %v5854
      %v5857 = vshrl.u32 %v5716, 16
      %v5859 = vrot.slane %v5857, 4
      %v5860 = vshll.u32 %v5716, 16
      %v5862 = vrot.slane %v5860, 5
      %v5863 = vor.u32 %v5859, %v5862
      %v5864 = vrot.slane %v5863, 4
      %v5866 = vshll.u32 %v5718, 16
      %v5868 = vrot.slane %v5866, 5
      %v5869 = vsel %vm736, %v5864, %v5868
      %v5871 = vshrl.u32 %v5717, 16
      %v5873 = vrot.slane %v5871, 4
      %v5874 = vshll.u32 %v5717, 16
      %v5876 = vrot.slane %v5874, 5
      %v5877 = vor.u32 %v5873, %v5876
      %v5878 = vrot.slane %v5877, 4
      %v5880 = vshll.u32 %v5719, 16
      %v5882 = vrot.slane %v5880, 5
      %v5883 = vsel %vm736, %v5878, %v5882
      %v5884 = vshrl.u32 %v5718, 16
      %v5886 = vrot.slane %v5884, 4
      %v5887 = vor.u32 %v5886, %v5868
      %v5888 = vrot.slane %v5887, 4
      %v5890 = vshll.u32 %v5794, 16
      %v5892 = vrot.slane %v5890, 5
      %v5893 = vsel %vm736, %v5888, %v5892
      %v5894 = vshrl.u32 %v5719, 16
      %v5896 = vrot.slane %v5894, 4
      %v5897 = vor.u32 %v5896, %v5882
      %v5898 = vrot.slane %v5897, 4
      %v5900 = vshll.u32 %v5795, 16
      %v5902 = vrot.slane %v5900, 5
      %v5903 = vsel %vm736, %v5898, %v5902
      %v5905 = vshrl.u32 %v5720, 16
      %v5907 = vrot.slane %v5905, 4
      %v5908 = vshll.u32 %v5720, 16
      %v5910 = vrot.slane %v5908, 5
      %v5911 = vor.u32 %v5907, %v5910
      %v5912 = vrot.slane %v5911, 4
      %v5914 = vshll.u32 %v5722, 16
      %v5916 = vrot.slane %v5914, 5
      %v5917 = vsel %vm736, %v5912, %v5916
      %v5919 = vshrl.u32 %v5721, 16
      %v5921 = vrot.slane %v5919, 4
      %v5922 = vshll.u32 %v5721, 16
      %v5924 = vrot.slane %v5922, 5
      %v5925 = vor.u32 %v5921, %v5924
      %v5926 = vrot.slane %v5925, 4
      %v5928 = vshll.u32 %v5723, 16
      %v5930 = vrot.slane %v5928, 5
      %v5931 = vsel %vm736, %v5926, %v5930
      %v5932 = vshrl.u32 %v5722, 16
      %v5934 = vrot.slane %v5932, 4
      %v5935 = vor.u32 %v5934, %v5916
      %v5936 = vrot.slane %v5935, 4
      %v5938 = vshll.u32 %v5796, 16
      %v5940 = vrot.slane %v5938, 5
      %v5941 = vsel %vm736, %v5936, %v5940
      %v5942 = vshrl.u32 %v5723, 16
      %v5944 = vrot.slane %v5942, 4
      %v5945 = vor.u32 %v5944, %v5930
      %v5946 = vrot.slane %v5945, 4
      %v5948 = vshll.u32 %v5797, 16
      %v5950 = vrot.slane %v5948, 5
      %v5951 = vsel %vm736, %v5946, %v5950
      %v5953 = vshrl.u32 %v5724, 16
      %v5955 = vrot.slane %v5953, 4
      %v5956 = vshll.u32 %v5724, 16
      %v5958 = vrot.slane %v5956, 5
      %v5959 = vor.u32 %v5955, %v5958
      %v5960 = vrot.slane %v5959, 4
      %v5962 = vshll.u32 %v5726, 16
      %v5964 = vrot.slane %v5962, 5
      %v5965 = vsel %vm736, %v5960, %v5964
      %v5967 = vshrl.u32 %v5725, 16
      %v5969 = vrot.slane %v5967, 4
      %v5970 = vshll.u32 %v5725, 16
      %v5972 = vrot.slane %v5970, 5
      %v5973 = vor.u32 %v5969, %v5972
      %v5974 = vrot.slane %v5973, 4
      %v5976 = vshll.u32 %v5727, 16
      %v5978 = vrot.slane %v5976, 5
      %v5979 = vsel %vm736, %v5974, %v5978
      %v5980 = vshrl.u32 %v5726, 16
      %v5982 = vrot.slane %v5980, 4
      %v5983 = vor.u32 %v5982, %v5964
      %v5984 = vrot.slane %v5983, 4
      %v5986 = vshll.u32 %v5798, 16
      %v5988 = vrot.slane %v5986, 5
      %v5989 = vsel %vm736, %v5984, %v5988
      %v5990 = vshrl.u32 %v5727, 16
      %v5992 = vrot.slane %v5990, 4
      %v5993 = vor.u32 %v5992, %v5978
      %v5994 = vrot.slane %v5993, 4
      %v5996 = vshll.u32 %v5799, 16
      %v5998 = vrot.slane %v5996, 5
      %v5999 = vsel %vm736, %v5994, %v5998
      %v6001 = vshrl.u32 %v5728, 16
      %v6003 = vrot.slane %v6001, 4
      %v6004 = vshll.u32 %v5728, 16
      %v6006 = vrot.slane %v6004, 5
      %v6007 = vor.u32 %v6003, %v6006
      %v6008 = vrot.slane %v6007, 4
      %v6010 = vshll.u32 %v5730, 16
      %v6012 = vrot.slane %v6010, 5
      %v6013 = vsel %vm736, %v6008, %v6012
      %v6015 = vshrl.u32 %v5729, 16
      %v6017 = vrot.slane %v6015, 4
      %v6018 = vshll.u32 %v5729, 16
      %v6020 = vrot.slane %v6018, 5
      %v6021 = vor.u32 %v6017, %v6020
      %v6022 = vrot.slane %v6021, 4
      %v6024 = vshll.u32 %v5731, 16
      %v6026 = vrot.slane %v6024, 5
      %v6027 = vsel %vm736, %v6022, %v6026
      %v6028 = vshrl.u32 %v5730, 16
      %v6030 = vrot.slane %v6028, 4
      %v6031 = vor.u32 %v6030, %v6012
      %v6032 = vrot.slane %v6031, 4
      %v6034 = vshll.u32 %v5800, 16
      %v6036 = vrot.slane %v6034, 5
      %v6037 = vsel %vm736, %v6032, %v6036
      %v6038 = vshrl.u32 %v5731, 16
      %v6040 = vrot.slane %v6038, 4
      %v6041 = vor.u32 %v6040, %v6026
      %v6042 = vrot.slane %v6041, 4
      %v6044 = vshll.u32 %v5801, 16
      %v6046 = vrot.slane %v6044, 5
      %v6047 = vsel %vm736, %v6042, %v6046
      %v6049 = vshrl.u32 %v5732, 16
      %v6051 = vrot.slane %v6049, 4
      %v6052 = vshll.u32 %v5732, 16
      %v6054 = vrot.slane %v6052, 5
      %v6055 = vor.u32 %v6051, %v6054
      %v6056 = vrot.slane %v6055, 4
      %v6058 = vshll.u32 %v5734, 16
      %v6060 = vrot.slane %v6058, 5
      %v6061 = vsel %vm736, %v6056, %v6060
      %v6063 = vshrl.u32 %v5733, 16
      %v6065 = vrot.slane %v6063, 4
      %v6066 = vshll.u32 %v5733, 16
      %v6068 = vrot.slane %v6066, 5
      %v6069 = vor.u32 %v6065, %v6068
      %v6070 = vrot.slane %v6069, 4
      %v6072 = vshll.u32 %v5735, 16
      %v6074 = vrot.slane %v6072, 5
      %v6075 = vsel %vm736, %v6070, %v6074
      %v6076 = vshrl.u32 %v5734, 16
      %v6078 = vrot.slane %v6076, 4
      %v6079 = vor.u32 %v6078, %v6060
      %v6080 = vrot.slane %v6079, 4
      %v6082 = vshll.u32 %v5802, 16
      %v6084 = vrot.slane %v6082, 5
      %v6085 = vsel %vm736, %v6080, %v6084
      %v6086 = vshrl.u32 %v5735, 16
      %v6088 = vrot.slane %v6086, 4
      %v6089 = vor.u32 %v6088, %v6074
      %v6090 = vrot.slane %v6089, 4
      %v6092 = vshll.u32 %v5803, 16
      %v6094 = vrot.slane %v6092, 5
      %v6095 = vsel %vm736, %v6090, %v6094
      %v6097 = vshrl.u32 %v5736, 16
      %v6099 = vrot.slane %v6097, 4
      %v6100 = vshll.u32 %v5736, 16
      %v6102 = vrot.slane %v6100, 5
      %v6103 = vor.u32 %v6099, %v6102
      %v6104 = vrot.slane %v6103, 4
      %v6106 = vshll.u32 %v5738, 16
      %v6108 = vrot.slane %v6106, 5
      %v6109 = vsel %vm736, %v6104, %v6108
      %v6111 = vshrl.u32 %v5737, 16
      %v6113 = vrot.slane %v6111, 4
      %v6114 = vshll.u32 %v5737, 16
      %v6116 = vrot.slane %v6114, 5
      %v6117 = vor.u32 %v6113, %v6116
      %v6118 = vrot.slane %v6117, 4
      %v6120 = vshll.u32 %v5739, 16
      %v6122 = vrot.slane %v6120, 5
      %v6123 = vsel %vm736, %v6118, %v6122
      %v6124 = vshrl.u32 %v5738, 16
      %v6126 = vrot.slane %v6124, 4
      %v6127 = vor.u32 %v6126, %v6108
      %v6128 = vrot.slane %v6127, 4
      %v6130 = vshll.u32 %v5804, 16
      %v6132 = vrot.slane %v6130, 5
      %v6133 = vsel %vm736, %v6128, %v6132
      %v6134 = vshrl.u32 %v5739, 16
      %v6136 = vrot.slane %v6134, 4
      %v6137 = vor.u32 %v6136, %v6122
      %v6138 = vrot.slane %v6137, 4
      %v6140 = vshll.u32 %v5805, 16
      %v6142 = vrot.slane %v6140, 5
      %v6143 = vsel %vm736, %v6138, %v6142
      %v6145 = vshrl.u32 %v5740, 16
      %v6147 = vrot.slane %v6145, 4
      %v6148 = vshll.u32 %v5740, 16
      %v6150 = vrot.slane %v6148, 5
      %v6151 = vor.u32 %v6147, %v6150
      %v6152 = vrot.slane %v6151, 4
      %v6154 = vshll.u32 %v5742, 16
      %v6156 = vrot.slane %v6154, 5
      %v6157 = vsel %vm736, %v6152, %v6156
      %v6159 = vshrl.u32 %v5741, 16
      %v6161 = vrot.slane %v6159, 4
      %v6162 = vshll.u32 %v5741, 16
      %v6164 = vrot.slane %v6162, 5
      %v6165 = vor.u32 %v6161, %v6164
      %v6166 = vrot.slane %v6165, 4
      %v6168 = vshll.u32 %v5743, 16
      %v6170 = vrot.slane %v6168, 5
      %v6171 = vsel %vm736, %v6166, %v6170
      %v6172 = vshrl.u32 %v5742, 16
      %v6174 = vrot.slane %v6172, 4
      %v6175 = vor.u32 %v6174, %v6156
      %v6176 = vrot.slane %v6175, 4
      %v6178 = vshll.u32 %v5806, 16
      %v6180 = vrot.slane %v6178, 5
      %v6181 = vsel %vm736, %v6176, %v6180
      %v6182 = vshrl.u32 %v5743, 16
      %v6184 = vrot.slane %v6182, 4
      %v6185 = vor.u32 %v6184, %v6170
      %v6186 = vrot.slane %v6185, 4
      %v6188 = vshll.u32 %v5807, 16
      %v6190 = vrot.slane %v6188, 5
      %v6191 = vsel %vm736, %v6186, %v6190
      %s6192 = scalar_lea.vmem %s2, 192
      %v6193 = vld [vmem:[%s6192] sm:$0xf]
      %v6194 = vld [vmem:[%s6192 + $0x4] sm:$0xf]
      %v6195 = vld [vmem:[%s6192 + $0x8] sm:$0xf]
      %v6196 = vld [vmem:[%s6192 + $0xc] sm:$0xf]
      %v6197 = vld [vmem:[%s6192 + $0x10] sm:$0xf]
      %v6198 = vld [vmem:[%s6192 + $0x14] sm:$0xf]
      %v6199 = vld [vmem:[%s6192 + $0x18] sm:$0xf]
      %v6200 = vld [vmem:[%s6192 + $0x1c] sm:$0xf]
      %v6201 = vld [vmem:[%s6192 + $0x20] sm:$0xf]
      %v6202 = vld [vmem:[%s6192 + $0x24] sm:$0xf]
      %v6203 = vld [vmem:[%s6192 + $0x28] sm:$0xf]
      %v6204 = vld [vmem:[%s6192 + $0x2c] sm:$0xf]
      %v6205 = vld [vmem:[%s6192 + $0x30] sm:$0xf]
      %v6206 = vld [vmem:[%s6192 + $0x34] sm:$0xf]
      %v6207 = vld [vmem:[%s6192 + $0x38] sm:$0xf]
      %v6208 = vld [vmem:[%s6192 + $0x3c] sm:$0xf]
      %v6209 = vld [vmem:[%s6192 + $0x40] sm:$0xf]
      %v6210 = vld [vmem:[%s6192 + $0x44] sm:$0xf]
      %v6211 = vld [vmem:[%s6192 + $0x48] sm:$0xf]
      %v6212 = vld [vmem:[%s6192 + $0x4c] sm:$0xf]
      %v6213 = vld [vmem:[%s6192 + $0x50] sm:$0xf]
      %v6214 = vld [vmem:[%s6192 + $0x54] sm:$0xf]
      %v6215 = vld [vmem:[%s6192 + $0x58] sm:$0xf]
      %v6216 = vld [vmem:[%s6192 + $0x5c] sm:$0xf]
      %v6217 = vld [vmem:[%s6192 + $0x60] sm:$0xf]
      %v6218 = vld [vmem:[%s6192 + $0x64] sm:$0xf]
      %v6219 = vld [vmem:[%s6192 + $0x68] sm:$0xf]
      %v6220 = vld [vmem:[%s6192 + $0x6c] sm:$0xf]
      %v6221 = vld [vmem:[%s6192 + $0x70] sm:$0xf]
      %v6222 = vld [vmem:[%s6192 + $0x74] sm:$0xf]
      %v6223 = vld [vmem:[%s6192 + $0x78] sm:$0xf]
      %v6224 = vld [vmem:[%s6192 + $0x7c] sm:$0xf]
      %v6225 = vld [vmem:[%s6192 + $0x80] sm:$0xf]
      %v6226 = vld [vmem:[%s6192 + $0x84] sm:$0xf]
      %v6227 = vld [vmem:[%s6192 + $0x88] sm:$0xf]
      %v6228 = vld [vmem:[%s6192 + $0x8c] sm:$0xf]
      %v6229 = vld [vmem:[%s6192 + $0x90] sm:$0xf]
      %v6230 = vld [vmem:[%s6192 + $0x94] sm:$0xf]
      %v6231 = vld [vmem:[%s6192 + $0x98] sm:$0xf]
      %v6232 = vld [vmem:[%s6192 + $0x9c] sm:$0xf]
      %v6233 = vld [vmem:[%s6192 + $0xa0] sm:$0xf]
      %v6234 = vld [vmem:[%s6192 + $0xa4] sm:$0xf]
      %v6235 = vld [vmem:[%s6192 + $0xa8] sm:$0xf]
      %v6236 = vld [vmem:[%s6192 + $0xac] sm:$0xf]
      %v6237 = vld [vmem:[%s6192 + $0xb0] sm:$0xf]
      %v6238 = vld [vmem:[%s6192 + $0xb4] sm:$0xf]
      %v6239 = vld [vmem:[%s6192 + $0xb8] sm:$0xf]
      %v6240 = vld [vmem:[%s6192 + $0xbc] sm:$0xf]
      %v6241 = vunpack.c.l.b16 %v5821
      %v6242 = vunpack.c.h.b16 %v5821
      %v6243 = vunpack.c.l.b16 %v5835
      %v6244 = vunpack.c.l.b16 %v5845
      %v6245 = vunpack.c.h.b16 %v5845
      %v6246 = vunpack.c.l.b16 %v5855
      %v6247 = vunpack.c.l.b16 %v5869
      %v6248 = vunpack.c.h.b16 %v5869
      %v6249 = vunpack.c.l.b16 %v5883
      %v6250 = vunpack.c.l.b16 %v5893
      %v6251 = vunpack.c.h.b16 %v5893
      %v6252 = vunpack.c.l.b16 %v5903
      %v6253 = vunpack.c.l.b16 %v5917
      %v6254 = vunpack.c.h.b16 %v5917
      %v6255 = vunpack.c.l.b16 %v5931
      %v6256 = vunpack.c.l.b16 %v5941
      %v6257 = vunpack.c.h.b16 %v5941
      %v6258 = vunpack.c.l.b16 %v5951
      %v6259 = vunpack.c.l.b16 %v5965
      %v6260 = vunpack.c.h.b16 %v5965
      %v6261 = vunpack.c.l.b16 %v5979
      %v6262 = vunpack.c.l.b16 %v5989
      %v6263 = vunpack.c.h.b16 %v5989
      %v6264 = vunpack.c.l.b16 %v5999
      %v6265 = vunpack.c.l.b16 %v6013
      %v6266 = vunpack.c.h.b16 %v6013
      %v6267 = vunpack.c.l.b16 %v6027
      %v6268 = vunpack.c.l.b16 %v6037
      %v6269 = vunpack.c.h.b16 %v6037
      %v6270 = vunpack.c.l.b16 %v6047
      %v6271 = vunpack.c.l.b16 %v6061
      %v6272 = vunpack.c.h.b16 %v6061
      %v6273 = vunpack.c.l.b16 %v6075
      %v6274 = vunpack.c.l.b16 %v6085
      %v6275 = vunpack.c.h.b16 %v6085
      %v6276 = vunpack.c.l.b16 %v6095
      %v6277 = vunpack.c.l.b16 %v6109
      %v6278 = vunpack.c.h.b16 %v6109
      %v6279 = vunpack.c.l.b16 %v6123
      %v6280 = vunpack.c.l.b16 %v6133
      %v6281 = vunpack.c.h.b16 %v6133
      %v6282 = vunpack.c.l.b16 %v6143
      %v6283 = vunpack.c.l.b16 %v6157
      %v6284 = vunpack.c.h.b16 %v6157
      %v6285 = vunpack.c.l.b16 %v6171
      %v6286 = vunpack.c.l.b16 %v6181
      %v6287 = vunpack.c.h.b16 %v6181
      %v6288 = vunpack.c.l.b16 %v6191
      %v6289 = vpack.c.b16 %v6244, %v6241
      %v6290 = vpack.c.b16 %v6245, %v6242
      %v6291 = vpack.c.b16 %v6246, %v6243
      %v6292 = vpack.c.b16 %v6250, %v6247
      %v6293 = vpack.c.b16 %v6251, %v6248
      %v6294 = vpack.c.b16 %v6252, %v6249
      %v6295 = vpack.c.b16 %v6256, %v6253
      %v6296 = vpack.c.b16 %v6257, %v6254
      %v6297 = vpack.c.b16 %v6258, %v6255
      %v6298 = vpack.c.b16 %v6262, %v6259
      %v6299 = vpack.c.b16 %v6263, %v6260
      %v6300 = vpack.c.b16 %v6264, %v6261
      %v6301 = vpack.c.b16 %v6268, %v6265
      %v6302 = vpack.c.b16 %v6269, %v6266
      %v6303 = vpack.c.b16 %v6270, %v6267
      %v6304 = vpack.c.b16 %v6274, %v6271
      %v6305 = vpack.c.b16 %v6275, %v6272
      %v6306 = vpack.c.b16 %v6276, %v6273
      %v6307 = vpack.c.b16 %v6280, %v6277
      %v6308 = vpack.c.b16 %v6281, %v6278
      %v6309 = vpack.c.b16 %v6282, %v6279
      %v6310 = vpack.c.b16 %v6286, %v6283
      %v6311 = vpack.c.b16 %v6287, %v6284
      %v6312 = vpack.c.b16 %v6288, %v6285
      %v6385 = vunpack.c.l.b16 %v6193
      %v6386 = vunpack.c.l.b16 %v6194
      %v6387 = vunpack.c.l.b16 %v6195
      %v6388 = vunpack.c.l.b16 %v6196
      %v6389 = vunpack.c.l.b16 %v6197
      %v6390 = vunpack.c.l.b16 %v6198
      %v6391 = vunpack.c.l.b16 %v6199
      %v6392 = vunpack.c.l.b16 %v6200
      %v6393 = vunpack.c.l.b16 %v6201
      %v6394 = vunpack.c.l.b16 %v6202
      %v6395 = vunpack.c.l.b16 %v6203
      %v6396 = vunpack.c.l.b16 %v6204
      %v6397 = vunpack.c.l.b16 %v6205
      %v6398 = vunpack.c.l.b16 %v6206
      %v6399 = vunpack.c.l.b16 %v6207
      %v6400 = vunpack.c.l.b16 %v6208
      %v6401 = vunpack.c.l.b16 %v6209
      %v6402 = vunpack.c.l.b16 %v6210
      %v6403 = vunpack.c.l.b16 %v6211
      %v6404 = vunpack.c.l.b16 %v6212
      %v6405 = vunpack.c.l.b16 %v6213
      %v6406 = vunpack.c.l.b16 %v6214
      %v6407 = vunpack.c.l.b16 %v6215
      %v6408 = vunpack.c.l.b16 %v6216
      %v6409 = vunpack.c.l.b16 %v6217
      %v6410 = vunpack.c.l.b16 %v6218
      %v6411 = vunpack.c.l.b16 %v6219
      %v6412 = vunpack.c.l.b16 %v6220
      %v6413 = vunpack.c.l.b16 %v6221
      %v6414 = vunpack.c.l.b16 %v6222
      %v6415 = vunpack.c.l.b16 %v6223
      %v6416 = vunpack.c.l.b16 %v6224
      %v6417 = vunpack.c.l.b16 %v6225
      %v6418 = vunpack.c.l.b16 %v6226
      %v6419 = vunpack.c.l.b16 %v6227
      %v6420 = vunpack.c.l.b16 %v6228
      %v6421 = vunpack.c.l.b16 %v6229
      %v6422 = vunpack.c.l.b16 %v6230
      %v6423 = vunpack.c.l.b16 %v6231
      %v6424 = vunpack.c.l.b16 %v6232
      %v6425 = vunpack.c.l.b16 %v6233
      %v6426 = vunpack.c.l.b16 %v6234
      %v6427 = vunpack.c.l.b16 %v6235
      %v6428 = vunpack.c.l.b16 %v6236
      %v6429 = vunpack.c.l.b16 %v6237
      %v6430 = vunpack.c.l.b16 %v6238
      %v6431 = vunpack.c.l.b16 %v6239
      %v6432 = vunpack.c.l.b16 %v6240
      %v6433 = vpack.c.b16 %v6386, %v6385
      %v6434 = vpack.c.b16 %v6388, %v6387
      %v6435 = vpack.c.b16 %v6390, %v6389
      %v6436 = vpack.c.b16 %v6392, %v6391
      %v6437 = vpack.c.b16 %v6394, %v6393
      %v6438 = vpack.c.b16 %v6396, %v6395
      %v6439 = vpack.c.b16 %v6398, %v6397
      %v6440 = vpack.c.b16 %v6400, %v6399
      %v6441 = vpack.c.b16 %v6402, %v6401
      %v6442 = vpack.c.b16 %v6404, %v6403
      %v6443 = vpack.c.b16 %v6406, %v6405
      %v6444 = vpack.c.b16 %v6408, %v6407
      %v6445 = vpack.c.b16 %v6410, %v6409
      %v6446 = vpack.c.b16 %v6412, %v6411
      %v6447 = vpack.c.b16 %v6414, %v6413
      %v6448 = vpack.c.b16 %v6416, %v6415
      %v6449 = vpack.c.b16 %v6418, %v6417
      %v6450 = vpack.c.b16 %v6420, %v6419
      %v6451 = vpack.c.b16 %v6422, %v6421
      %v6452 = vpack.c.b16 %v6424, %v6423
      %v6453 = vpack.c.b16 %v6426, %v6425
      %v6454 = vpack.c.b16 %v6428, %v6427
      %v6455 = vpack.c.b16 %v6430, %v6429
      %v6456 = vpack.c.b16 %v6432, %v6431
      %6481 = vmatprep.subr.bf16.mxu0 0
      %6482 = vmatpush1.bf16.msra.mxu0 %v6440
      %6483 = vmatprep.subr.bf16.mxu0 0
      %6484 = vmatpush1.bf16.msra.mxu0 %v6439
      %6485 = vmatprep.subr.bf16.mxu0 0
      %6486 = vmatpush1.bf16.msra.mxu0 %v6438
      %6487 = vmatprep.subr.bf16.mxu0 0
      %6488 = vmatpush1.bf16.msra.mxu0 %v6437
      %6489 = vmatprep.subr.bf16.mxu0 0
      %6490 = vmatpush1.bf16.msra.mxu0 %v6436
      %6491 = vmatprep.subr.bf16.mxu0 0
      %6492 = vmatpush1.bf16.msra.mxu0 %v6435
      %6493 = vmatprep.subr.bf16.mxu0 0
      %6494 = vmatpush1.bf16.msra.mxu0 %v6434
      %6495 = vmatprep.subr.bf16.mxu0 0
      %6496 = vmatpush1.bf16.msra.mxu0 %v6433
      %6497 = vmatprep.subr.bf16.mxu0 0
      %6498 = vmatpush2.bf16.msra.mxu0 %v6448
      %6499 = vmatprep.subr.bf16.mxu0 0
      %6500 = vmatpush2.bf16.msra.mxu0 %v6447
      %6501 = vmatprep.subr.bf16.mxu0 0
      %6502 = vmatpush2.bf16.msra.mxu0 %v6446
      %6503 = vmatprep.subr.bf16.mxu0 0
      %6504 = vmatpush2.bf16.msra.mxu0 %v6445
      %6505 = vmatprep.subr.bf16.mxu0 0
      %6506 = vmatpush2.bf16.msra.mxu0 %v6444
      %6507 = vmatprep.subr.bf16.mxu0 0
      %6508 = vmatpush2.bf16.msra.mxu0 %v6443
      %6509 = vmatprep.subr.bf16.mxu0 0
      %6510 = vmatpush2.bf16.msra.mxu0 %v6442
      %6511 = vmatprep.subr.bf16.mxu0 0
      %6512 = vmatpush2.bf16.msra.mxu0 %v6441
      %6513 = vmatprep.mubr.bf16.mxu0 %v6290
      %6514 = vmatmul.mubr.bf16.gmra.mxu0 %v6289
      %v6515 = vpop.f32.mrf.mxu0
      %v6516 = vadd.f32 0.0, %v6515
      %v6517 = vpop.f32.mrf.mxu0
      %v6518 = vpop.f32.mrf.mxu0
      %v6519 = vadd.f32 0.0, %v6518
      %v6520 = vpop.f32.mrf.mxu0
      %6521 = vmatprep.mubr.bf16.mxu0 %v6293
      %6522 = vmatmul.mubr.bf16.gmra.mxu0 %v6292
      %v6523 = vpop.f32.mrf.mxu0
      %v6524 = vadd.f32 0.0, %v6523
      %v6525 = vpop.f32.mrf.mxu0
      %v6526 = vpop.f32.mrf.mxu0
      %v6527 = vadd.f32 0.0, %v6526
      %v6528 = vpop.f32.mrf.mxu0
      %6529 = vmatprep.mubr.bf16.mxu0 %v6296
      %6530 = vmatmul.mubr.bf16.gmra.mxu0 %v6295
      %v6531 = vpop.f32.mrf.mxu0
      %v6532 = vadd.f32 0.0, %v6531
      %v6533 = vpop.f32.mrf.mxu0
      %v6534 = vpop.f32.mrf.mxu0
      %v6535 = vadd.f32 0.0, %v6534
      %v6536 = vpop.f32.mrf.mxu0
      %6537 = vmatprep.mubr.bf16.mxu0 %v6299
      %6538 = vmatmul.mubr.bf16.gmra.mxu0 %v6298
      %v6539 = vpop.f32.mrf.mxu0
      %v6540 = vadd.f32 0.0, %v6539
      %v6541 = vpop.f32.mrf.mxu0
      %v6542 = vpop.f32.mrf.mxu0
      %v6543 = vadd.f32 0.0, %v6542
      %v6544 = vpop.f32.mrf.mxu0
      %6545 = vmatprep.mubr.bf16.mxu0 %v6302
      %6546 = vmatmul.mubr.bf16.gmra.mxu0 %v6301
      %v6547 = vpop.f32.mrf.mxu0
      %v6548 = vadd.f32 0.0, %v6547
      %v6549 = vpop.f32.mrf.mxu0
      %v6550 = vpop.f32.mrf.mxu0
      %v6551 = vadd.f32 0.0, %v6550
      %v6552 = vpop.f32.mrf.mxu0
      %6553 = vmatprep.mubr.bf16.mxu0 %v6305
      %6554 = vmatmul.mubr.bf16.gmra.mxu0 %v6304
      %v6555 = vpop.f32.mrf.mxu0
      %v6556 = vadd.f32 0.0, %v6555
      %v6557 = vpop.f32.mrf.mxu0
      %v6558 = vpop.f32.mrf.mxu0
      %v6559 = vadd.f32 0.0, %v6558
      %v6560 = vpop.f32.mrf.mxu0
      %6561 = vmatprep.mubr.bf16.mxu0 %v6308
      %6562 = vmatmul.mubr.bf16.gmra.mxu0 %v6307
      %v6563 = vpop.f32.mrf.mxu0
      %v6564 = vadd.f32 0.0, %v6563
      %v6565 = vpop.f32.mrf.mxu0
      %v6566 = vpop.f32.mrf.mxu0
      %v6567 = vadd.f32 0.0, %v6566
      %v6568 = vpop.f32.mrf.mxu0
      %6569 = vmatprep.mubr.bf16.mxu0 %v6311
      %6570 = vmatmul.mubr.bf16.gmra.mxu0 %v6310
      %v6571 = vpop.f32.mrf.mxu0
      %v6572 = vadd.f32 0.0, %v6571
      %v6573 = vpop.f32.mrf.mxu0
      %v6574 = vpop.f32.mrf.mxu0
      %v6575 = vadd.f32 0.0, %v6574
      %v6576 = vpop.f32.mrf.mxu0
      %6577 = vdwg.mxu0
      %6578 = vmatprep.subr.bf16.mxu0 0
      %6579 = vmatpush1.bf16.msra.mxu0 %v6456
      %6580 = vmatprep.subr.bf16.mxu0 0
      %6581 = vmatpush1.bf16.msra.mxu0 %v6455
      %6582 = vmatprep.subr.bf16.mxu0 0
      %6583 = vmatpush1.bf16.msra.mxu0 %v6454
      %6584 = vmatprep.subr.bf16.mxu0 0
      %6585 = vmatpush1.bf16.msra.mxu0 %v6453
      %6586 = vmatprep.subr.bf16.mxu0 0
      %6587 = vmatpush1.bf16.msra.mxu0 %v6452
      %6588 = vmatprep.subr.bf16.mxu0 0
      %6589 = vmatpush1.bf16.msra.mxu0 %v6451
      %6590 = vmatprep.subr.bf16.mxu0 0
      %6591 = vmatpush1.bf16.msra.mxu0 %v6450
      %6592 = vmatprep.subr.bf16.mxu0 0
      %6593 = vmatpush1.bf16.msra.mxu0 %v6449
      %6594 = vmatprep.subr.bf16.mxu0 0
      %6595 = vmatpush2.bf16.msra.mxu0 0
      %6596 = vmatprep.subr.bf16.mxu0 0
      %6597 = vmatpush2.bf16.msra.mxu0 0
      %6598 = vmatprep.subr.bf16.mxu0 0
      %6599 = vmatpush2.bf16.msra.mxu0 0
      %6600 = vmatprep.subr.bf16.mxu0 0
      %6601 = vmatpush2.bf16.msra.mxu0 0
      %6602 = vmatprep.subr.bf16.mxu0 0
      %6603 = vmatpush2.bf16.msra.mxu0 0
      %6604 = vmatprep.subr.bf16.mxu0 0
      %6605 = vmatpush2.bf16.msra.mxu0 0
      %6606 = vmatprep.subr.bf16.mxu0 0
      %6607 = vmatpush2.bf16.msra.mxu0 0
      %6608 = vmatprep.subr.bf16.mxu0 0
      %6609 = vmatpush2.bf16.msra.mxu0 0
      %6610 = vmatprep.mubr.bf16.mxu0 0
      %6611 = vmatmul.mubr.bf16.gmra.mxu0 %v6291
      %v6612 = vpop.f32.mrf.mxu0
      %v6613 = vadd.f32 %v6516, %v6612
      %v6614 = vpop.f32.mrf.mxu0
      %v6615 = vpop.f32.mrf.mxu0
      %v6616 = vadd.f32 %v6519, %v6615
      %v6617 = vpop.f32.mrf.mxu0
      %6618 = vmatprep.mubr.bf16.mxu0 0
      %6619 = vmatmul.mubr.bf16.gmra.mxu0 %v6294
      %v6620 = vpop.f32.mrf.mxu0
      %v6621 = vadd.f32 %v6524, %v6620
      %v6622 = vpop.f32.mrf.mxu0
      %v6623 = vpop.f32.mrf.mxu0
      %v6624 = vadd.f32 %v6527, %v6623
      %v6625 = vpop.f32.mrf.mxu0
      %6626 = vmatprep.mubr.bf16.mxu0 0
      %6627 = vmatmul.mubr.bf16.gmra.mxu0 %v6297
      %v6628 = vpop.f32.mrf.mxu0
      %v6629 = vadd.f32 %v6532, %v6628
      %v6630 = vpop.f32.mrf.mxu0
      %v6631 = vpop.f32.mrf.mxu0
      %v6632 = vadd.f32 %v6535, %v6631
      %v6633 = vpop.f32.mrf.mxu0
      %6634 = vmatprep.mubr.bf16.mxu0 0
      %6635 = vmatmul.mubr.bf16.gmra.mxu0 %v6300
      %v6636 = vpop.f32.mrf.mxu0
      %v6637 = vadd.f32 %v6540, %v6636
      %v6638 = vpop.f32.mrf.mxu0
      %v6639 = vpop.f32.mrf.mxu0
      %v6640 = vadd.f32 %v6543, %v6639
      %v6641 = vpop.f32.mrf.mxu0
      %6642 = vmatprep.mubr.bf16.mxu0 0
      %6643 = vmatmul.mubr.bf16.gmra.mxu0 %v6303
      %v6644 = vpop.f32.mrf.mxu0
      %v6645 = vadd.f32 %v6548, %v6644
      %v6646 = vpop.f32.mrf.mxu0
      %v6647 = vpop.f32.mrf.mxu0
      %v6648 = vadd.f32 %v6551, %v6647
      %v6649 = vpop.f32.mrf.mxu0
      %6650 = vmatprep.mubr.bf16.mxu0 0
      %6651 = vmatmul.mubr.bf16.gmra.mxu0 %v6306
      %v6652 = vpop.f32.mrf.mxu0
      %v6653 = vadd.f32 %v6556, %v6652
      %v6654 = vpop.f32.mrf.mxu0
      %v6655 = vpop.f32.mrf.mxu0
      %v6656 = vadd.f32 %v6559, %v6655
      %v6657 = vpop.f32.mrf.mxu0
      %6658 = vmatprep.mubr.bf16.mxu0 0
      %6659 = vmatmul.mubr.bf16.gmra.mxu0 %v6309
      %v6660 = vpop.f32.mrf.mxu0
      %v6661 = vadd.f32 %v6564, %v6660
      %v6662 = vpop.f32.mrf.mxu0
      %v6663 = vpop.f32.mrf.mxu0
      %v6664 = vadd.f32 %v6567, %v6663
      %v6665 = vpop.f32.mrf.mxu0
      %6666 = vmatprep.mubr.bf16.mxu0 0
      %6667 = vmatmul.mubr.bf16.gmra.mxu0 %v6312
      %v6668 = vpop.f32.mrf.mxu0
      %v6669 = vadd.f32 %v6572, %v6668
      %v6670 = vpop.f32.mrf.mxu0
      %v6671 = vpop.f32.mrf.mxu0
      %v6672 = vadd.f32 %v6575, %v6671
      %v6673 = vpop.f32.mrf.mxu0
      %6674 = vdwg.mxu0
      %v6707 = vunpack.c.l.b16 %v5712
      %v6708 = vunpack.c.h.b16 %v5712
      %v6709 = vunpack.c.l.b16 %v5713
      %v6710 = vunpack.c.l.b16 %v5714
      %v6711 = vunpack.c.h.b16 %v5714
      %v6712 = vunpack.c.l.b16 %v5715
      %v6713 = vunpack.c.l.b16 %v5716
      %v6714 = vunpack.c.h.b16 %v5716
      %v6715 = vunpack.c.l.b16 %v5717
      %v6716 = vunpack.c.l.b16 %v5718
      %v6717 = vunpack.c.h.b16 %v5718
      %v6718 = vunpack.c.l.b16 %v5719
      %v6719 = vunpack.c.l.b16 %v5720
      %v6720 = vunpack.c.h.b16 %v5720
      %v6721 = vunpack.c.l.b16 %v5721
      %v6722 = vunpack.c.l.b16 %v5722
      %v6723 = vunpack.c.h.b16 %v5722
      %v6724 = vunpack.c.l.b16 %v5723
      %v6725 = vunpack.c.l.b16 %v5724
      %v6726 = vunpack.c.h.b16 %v5724
      %v6727 = vunpack.c.l.b16 %v5725
      %v6728 = vunpack.c.l.b16 %v5726
      %v6729 = vunpack.c.h.b16 %v5726
      %v6730 = vunpack.c.l.b16 %v5727
      %v6731 = vunpack.c.l.b16 %v5728
      %v6732 = vunpack.c.h.b16 %v5728
      %v6733 = vunpack.c.l.b16 %v5729
      %v6734 = vunpack.c.l.b16 %v5730
      %v6735 = vunpack.c.h.b16 %v5730
      %v6736 = vunpack.c.l.b16 %v5731
      %v6737 = vunpack.c.l.b16 %v5732
      %v6738 = vunpack.c.h.b16 %v5732
      %v6739 = vunpack.c.l.b16 %v5733
      %v6740 = vunpack.c.l.b16 %v5734
      %v6741 = vunpack.c.h.b16 %v5734
      %v6742 = vunpack.c.l.b16 %v5735
      %v6743 = vunpack.c.l.b16 %v5736
      %v6744 = vunpack.c.h.b16 %v5736
      %v6745 = vunpack.c.l.b16 %v5737
      %v6746 = vunpack.c.l.b16 %v5738
      %v6747 = vunpack.c.h.b16 %v5738
      %v6748 = vunpack.c.l.b16 %v5739
      %v6749 = vunpack.c.l.b16 %v5740
      %v6750 = vunpack.c.h.b16 %v5740
      %v6751 = vunpack.c.l.b16 %v5741
      %v6752 = vunpack.c.l.b16 %v5742
      %v6753 = vunpack.c.h.b16 %v5742
      %v6754 = vunpack.c.l.b16 %v5743
      %v6755 = vpack.c.b16 %v6710, %v6707
      %v6756 = vpack.c.b16 %v6711, %v6708
      %v6757 = vpack.c.b16 %v6712, %v6709
      %v6758 = vpack.c.b16 %v6716, %v6713
      %v6759 = vpack.c.b16 %v6717, %v6714
      %v6760 = vpack.c.b16 %v6718, %v6715
      %v6761 = vpack.c.b16 %v6722, %v6719
      %v6762 = vpack.c.b16 %v6723, %v6720
      %v6763 = vpack.c.b16 %v6724, %v6721
      %v6764 = vpack.c.b16 %v6728, %v6725
      %v6765 = vpack.c.b16 %v6729, %v6726
      %v6766 = vpack.c.b16 %v6730, %v6727
      %v6767 = vpack.c.b16 %v6734, %v6731
      %v6768 = vpack.c.b16 %v6735, %v6732
      %v6769 = vpack.c.b16 %v6736, %v6733
      %v6770 = vpack.c.b16 %v6740, %v6737
      %v6771 = vpack.c.b16 %v6741, %v6738
      %v6772 = vpack.c.b16 %v6742, %v6739
      %v6773 = vpack.c.b16 %v6746, %v6743
      %v6774 = vpack.c.b16 %v6747, %v6744
      %v6775 = vpack.c.b16 %v6748, %v6745
      %v6776 = vpack.c.b16 %v6752, %v6749
      %v6777 = vpack.c.b16 %v6753, %v6750
      %v6778 = vpack.c.b16 %v6754, %v6751
      %v6851 = vunpack.c.l.b16 %v5744
      %v6852 = vunpack.c.l.b16 %v5745
      %v6853 = vunpack.c.l.b16 %v5746
      %v6854 = vunpack.c.l.b16 %v5747
      %v6855 = vunpack.c.l.b16 %v5748
      %v6856 = vunpack.c.l.b16 %v5749
      %v6857 = vunpack.c.l.b16 %v5750
      %v6858 = vunpack.c.l.b16 %v5751
      %v6859 = vunpack.c.l.b16 %v5752
      %v6860 = vunpack.c.l.b16 %v5753
      %v6861 = vunpack.c.l.b16 %v5754
      %v6862 = vunpack.c.l.b16 %v5755
      %v6863 = vunpack.c.l.b16 %v5756
      %v6864 = vunpack.c.l.b16 %v5757
      %v6865 = vunpack.c.l.b16 %v5758
      %v6866 = vunpack.c.l.b16 %v5759
      %v6867 = vunpack.c.l.b16 %v5760
      %v6868 = vunpack.c.l.b16 %v5761
      %v6869 = vunpack.c.l.b16 %v5762
      %v6870 = vunpack.c.l.b16 %v5763
      %v6871 = vunpack.c.l.b16 %v5764
      %v6872 = vunpack.c.l.b16 %v5765
      %v6873 = vunpack.c.l.b16 %v5766
      %v6874 = vunpack.c.l.b16 %v5767
      %v6875 = vunpack.c.l.b16 %v5768
      %v6876 = vunpack.c.l.b16 %v5769
      %v6877 = vunpack.c.l.b16 %v5770
      %v6878 = vunpack.c.l.b16 %v5771
      %v6879 = vunpack.c.l.b16 %v5772
      %v6880 = vunpack.c.l.b16 %v5773
      %v6881 = vunpack.c.l.b16 %v5774
      %v6882 = vunpack.c.l.b16 %v5775
      %v6883 = vunpack.c.l.b16 %v5776
      %v6884 = vunpack.c.l.b16 %v5777
      %v6885 = vunpack.c.l.b16 %v5778
      %v6886 = vunpack.c.l.b16 %v5779
      %v6887 = vunpack.c.l.b16 %v5780
      %v6888 = vunpack.c.l.b16 %v5781
      %v6889 = vunpack.c.l.b16 %v5782
      %v6890 = vunpack.c.l.b16 %v5783
      %v6891 = vunpack.c.l.b16 %v5784
      %v6892 = vunpack.c.l.b16 %v5785
      %v6893 = vunpack.c.l.b16 %v5786
      %v6894 = vunpack.c.l.b16 %v5787
      %v6895 = vunpack.c.l.b16 %v5788
      %v6896 = vunpack.c.l.b16 %v5789
      %v6897 = vunpack.c.l.b16 %v5790
      %v6898 = vunpack.c.l.b16 %v5791
      %v6899 = vpack.c.b16 %v6852, %v6851
      %v6900 = vpack.c.b16 %v6854, %v6853
      %v6901 = vpack.c.b16 %v6856, %v6855
      %v6902 = vpack.c.b16 %v6858, %v6857
      %v6903 = vpack.c.b16 %v6860, %v6859
      %v6904 = vpack.c.b16 %v6862, %v6861
      %v6905 = vpack.c.b16 %v6864, %v6863
      %v6906 = vpack.c.b16 %v6866, %v6865
      %v6907 = vpack.c.b16 %v6868, %v6867
      %v6908 = vpack.c.b16 %v6870, %v6869
      %v6909 = vpack.c.b16 %v6872, %v6871
      %v6910 = vpack.c.b16 %v6874, %v6873
      %v6911 = vpack.c.b16 %v6876, %v6875
      %v6912 = vpack.c.b16 %v6878, %v6877
      %v6913 = vpack.c.b16 %v6880, %v6879
      %v6914 = vpack.c.b16 %v6882, %v6881
      %v6915 = vpack.c.b16 %v6884, %v6883
      %v6916 = vpack.c.b16 %v6886, %v6885
      %v6917 = vpack.c.b16 %v6888, %v6887
      %v6918 = vpack.c.b16 %v6890, %v6889
      %v6919 = vpack.c.b16 %v6892, %v6891
      %v6920 = vpack.c.b16 %v6894, %v6893
      %v6921 = vpack.c.b16 %v6896, %v6895
      %v6922 = vpack.c.b16 %v6898, %v6897
      %6947 = vmatprep.subr.bf16.mxu0 0
      %6948 = vmatpush1.bf16.msra.mxu0 %v6906
      %6949 = vmatprep.subr.bf16.mxu0 0
      %6950 = vmatpush1.bf16.msra.mxu0 %v6905
      %6951 = vmatprep.subr.bf16.mxu0 0
      %6952 = vmatpush1.bf16.msra.mxu0 %v6904
      %6953 = vmatprep.subr.bf16.mxu0 0
      %6954 = vmatpush1.bf16.msra.mxu0 %v6903
      %6955 = vmatprep.subr.bf16.mxu0 0
      %6956 = vmatpush1.bf16.msra.mxu0 %v6902
      %6957 = vmatprep.subr.bf16.mxu0 0
      %6958 = vmatpush1.bf16.msra.mxu0 %v6901
      %6959 = vmatprep.subr.bf16.mxu0 0
      %6960 = vmatpush1.bf16.msra.mxu0 %v6900
      %6961 = vmatprep.subr.bf16.mxu0 0
      %6962 = vmatpush1.bf16.msra.mxu0 %v6899
      %6963 = vmatprep.subr.bf16.mxu0 0
      %6964 = vmatpush2.bf16.msra.mxu0 %v6914
      %6965 = vmatprep.subr.bf16.mxu0 0
      %6966 = vmatpush2.bf16.msra.mxu0 %v6913
      %6967 = vmatprep.subr.bf16.mxu0 0
      %6968 = vmatpush2.bf16.msra.mxu0 %v6912
      %6969 = vmatprep.subr.bf16.mxu0 0
      %6970 = vmatpush2.bf16.msra.mxu0 %v6911
      %6971 = vmatprep.subr.bf16.mxu0 0
      %6972 = vmatpush2.bf16.msra.mxu0 %v6910
      %6973 = vmatprep.subr.bf16.mxu0 0
      %6974 = vmatpush2.bf16.msra.mxu0 %v6909
      %6975 = vmatprep.subr.bf16.mxu0 0
      %6976 = vmatpush2.bf16.msra.mxu0 %v6908
      %6977 = vmatprep.subr.bf16.mxu0 0
      %6978 = vmatpush2.bf16.msra.mxu0 %v6907
      %6979 = vmatprep.mubr.bf16.mxu0 %v6756
      %6980 = vmatmul.mubr.bf16.gmra.mxu0 %v6755
      %v6981 = vpop.f32.mrf.mxu0
      %v6982 = vadd.f32 %v6613, %v6981
      %v6983 = vpop.f32.mrf.mxu0
      %v6984 = vpop.f32.mrf.mxu0
      %v6985 = vadd.f32 %v6616, %v6984
      %v6986 = vpop.f32.mrf.mxu0
      %6987 = vmatprep.mubr.bf16.mxu0 %v6759
      %6988 = vmatmul.mubr.bf16.gmra.mxu0 %v6758
      %v6989 = vpop.f32.mrf.mxu0
      %v6990 = vadd.f32 %v6621, %v6989
      %v6991 = vpop.f32.mrf.mxu0
      %v6992 = vpop.f32.mrf.mxu0
      %v6993 = vadd.f32 %v6624, %v6992
      %v6994 = vpop.f32.mrf.mxu0
      %6995 = vmatprep.mubr.bf16.mxu0 %v6762
      %6996 = vmatmul.mubr.bf16.gmra.mxu0 %v6761
      %v6997 = vpop.f32.mrf.mxu0
      %v6998 = vadd.f32 %v6629, %v6997
      %v6999 = vpop.f32.mrf.mxu0
      %v7000 = vpop.f32.mrf.mxu0
      %v7001 = vadd.f32 %v6632, %v7000
      %v7002 = vpop.f32.mrf.mxu0
      %7003 = vmatprep.mubr.bf16.mxu0 %v6765
      %7004 = vmatmul.mubr.bf16.gmra.mxu0 %v6764
      %v7005 = vpop.f32.mrf.mxu0
      %v7006 = vadd.f32 %v6637, %v7005
      %v7007 = vpop.f32.mrf.mxu0
      %v7008 = vpop.f32.mrf.mxu0
      %v7009 = vadd.f32 %v6640, %v7008
      %v7010 = vpop.f32.mrf.mxu0
      %7011 = vmatprep.mubr.bf16.mxu0 %v6768
      %7012 = vmatmul.mubr.bf16.gmra.mxu0 %v6767
      %v7013 = vpop.f32.mrf.mxu0
      %v7014 = vadd.f32 %v6645, %v7013
      %v7015 = vpop.f32.mrf.mxu0
      %v7016 = vpop.f32.mrf.mxu0
      %v7017 = vadd.f32 %v6648, %v7016
      %v7018 = vpop.f32.mrf.mxu0
      %7019 = vmatprep.mubr.bf16.mxu0 %v6771
      %7020 = vmatmul.mubr.bf16.gmra.mxu0 %v6770
      %v7021 = vpop.f32.mrf.mxu0
      %v7022 = vadd.f32 %v6653, %v7021
      %v7023 = vpop.f32.mrf.mxu0
      %v7024 = vpop.f32.mrf.mxu0
      %v7025 = vadd.f32 %v6656, %v7024
      %v7026 = vpop.f32.mrf.mxu0
      %7027 = vmatprep.mubr.bf16.mxu0 %v6774
      %7028 = vmatmul.mubr.bf16.gmra.mxu0 %v6773
      %v7029 = vpop.f32.mrf.mxu0
      %v7030 = vadd.f32 %v6661, %v7029
      %v7031 = vpop.f32.mrf.mxu0
      %v7032 = vpop.f32.mrf.mxu0
      %v7033 = vadd.f32 %v6664, %v7032
      %v7034 = vpop.f32.mrf.mxu0
      %7035 = vmatprep.mubr.bf16.mxu0 %v6777
      %7036 = vmatmul.mubr.bf16.gmra.mxu0 %v6776
      %v7037 = vpop.f32.mrf.mxu0
      %v7038 = vadd.f32 %v6669, %v7037
      %v7039 = vpop.f32.mrf.mxu0
      %v7040 = vpop.f32.mrf.mxu0
      %v7041 = vadd.f32 %v6672, %v7040
      %v7042 = vpop.f32.mrf.mxu0
      %7043 = vdwg.mxu0
      %7044 = vmatprep.subr.bf16.mxu0 0
      %7045 = vmatpush1.bf16.msra.mxu0 %v6922
      %7046 = vmatprep.subr.bf16.mxu0 0
      %7047 = vmatpush1.bf16.msra.mxu0 %v6921
      %7048 = vmatprep.subr.bf16.mxu0 0
      %7049 = vmatpush1.bf16.msra.mxu0 %v6920
      %7050 = vmatprep.subr.bf16.mxu0 0
      %7051 = vmatpush1.bf16.msra.mxu0 %v6919
      %7052 = vmatprep.subr.bf16.mxu0 0
      %7053 = vmatpush1.bf16.msra.mxu0 %v6918
      %7054 = vmatprep.subr.bf16.mxu0 0
      %7055 = vmatpush1.bf16.msra.mxu0 %v6917
      %7056 = vmatprep.subr.bf16.mxu0 0
      %7057 = vmatpush1.bf16.msra.mxu0 %v6916
      %7058 = vmatprep.subr.bf16.mxu0 0
      %7059 = vmatpush1.bf16.msra.mxu0 %v6915
      %7060 = vmatprep.subr.bf16.mxu0 0
      %7061 = vmatpush2.bf16.msra.mxu0 0
      %7062 = vmatprep.subr.bf16.mxu0 0
      %7063 = vmatpush2.bf16.msra.mxu0 0
      %7064 = vmatprep.subr.bf16.mxu0 0
      %7065 = vmatpush2.bf16.msra.mxu0 0
      %7066 = vmatprep.subr.bf16.mxu0 0
      %7067 = vmatpush2.bf16.msra.mxu0 0
      %7068 = vmatprep.subr.bf16.mxu0 0
      %7069 = vmatpush2.bf16.msra.mxu0 0
      %7070 = vmatprep.subr.bf16.mxu0 0
      %7071 = vmatpush2.bf16.msra.mxu0 0
      %7072 = vmatprep.subr.bf16.mxu0 0
      %7073 = vmatpush2.bf16.msra.mxu0 0
      %7074 = vmatprep.subr.bf16.mxu0 0
      %7075 = vmatpush2.bf16.msra.mxu0 0
      %7076 = vmatprep.mubr.bf16.mxu0 0
      %7077 = vmatmul.mubr.bf16.gmra.mxu0 %v6757
      %v7078 = vpop.f32.mrf.mxu0
      %v7079 = vadd.f32 %v6982, %v7078
      %v7080 = vpop.f32.mrf.mxu0
      %v7081 = vpop.f32.mrf.mxu0
      %v7082 = vadd.f32 %v6985, %v7081
      %v7083 = vpop.f32.mrf.mxu0
      %7084 = vmatprep.mubr.bf16.mxu0 0
      %7085 = vmatmul.mubr.bf16.gmra.mxu0 %v6760
      %v7086 = vpop.f32.mrf.mxu0
      %v7087 = vadd.f32 %v6990, %v7086
      %v7088 = vpop.f32.mrf.mxu0
      %v7089 = vpop.f32.mrf.mxu0
      %v7090 = vadd.f32 %v6993, %v7089
      %v7091 = vpop.f32.mrf.mxu0
      %7092 = vmatprep.mubr.bf16.mxu0 0
      %7093 = vmatmul.mubr.bf16.gmra.mxu0 %v6763
      %v7094 = vpop.f32.mrf.mxu0
      %v7095 = vadd.f32 %v6998, %v7094
      %v7096 = vpop.f32.mrf.mxu0
      %v7097 = vpop.f32.mrf.mxu0
      %v7098 = vadd.f32 %v7001, %v7097
      %v7099 = vpop.f32.mrf.mxu0
      %7100 = vmatprep.mubr.bf16.mxu0 0
      %7101 = vmatmul.mubr.bf16.gmra.mxu0 %v6766
      %v7102 = vpop.f32.mrf.mxu0
      %v7103 = vadd.f32 %v7006, %v7102
      %v7104 = vpop.f32.mrf.mxu0
      %v7105 = vpop.f32.mrf.mxu0
      %v7106 = vadd.f32 %v7009, %v7105
      %v7107 = vpop.f32.mrf.mxu0
      %7108 = vmatprep.mubr.bf16.mxu0 0
      %7109 = vmatmul.mubr.bf16.gmra.mxu0 %v6769
      %v7110 = vpop.f32.mrf.mxu0
      %v7111 = vadd.f32 %v7014, %v7110
      %v7112 = vpop.f32.mrf.mxu0
      %v7113 = vpop.f32.mrf.mxu0
      %v7114 = vadd.f32 %v7017, %v7113
      %v7115 = vpop.f32.mrf.mxu0
      %7116 = vmatprep.mubr.bf16.mxu0 0
      %7117 = vmatmul.mubr.bf16.gmra.mxu0 %v6772
      %v7118 = vpop.f32.mrf.mxu0
      %v7119 = vadd.f32 %v7022, %v7118
      %v7120 = vpop.f32.mrf.mxu0
      %v7121 = vpop.f32.mrf.mxu0
      %v7122 = vadd.f32 %v7025, %v7121
      %v7123 = vpop.f32.mrf.mxu0
      %7124 = vmatprep.mubr.bf16.mxu0 0
      %7125 = vmatmul.mubr.bf16.gmra.mxu0 %v6775
      %v7126 = vpop.f32.mrf.mxu0
      %v7127 = vadd.f32 %v7030, %v7126
      %v7128 = vpop.f32.mrf.mxu0
      %v7129 = vpop.f32.mrf.mxu0
      %v7130 = vadd.f32 %v7033, %v7129
      %v7131 = vpop.f32.mrf.mxu0
      %7132 = vmatprep.mubr.bf16.mxu0 0
      %7133 = vmatmul.mubr.bf16.gmra.mxu0 %v6778
      %v7134 = vpop.f32.mrf.mxu0
      %v7135 = vadd.f32 %v7038, %v7134
      %v7136 = vpop.f32.mrf.mxu0
      %v7137 = vpop.f32.mrf.mxu0
      %v7138 = vadd.f32 %v7041, %v7137
      %v7139 = vpop.f32.mrf.mxu0
      %7140 = vdwg.mxu0
      %v7141 = vld [vmem:[#allocation2] sm:$0xee]
      %v7142 = vld [vmem:[#allocation2 + $0x8] sm:$0xe]
      %v7143 = vld [vmem:[#allocation2 + $0x24] sm:$0xee]
      %v7144 = vld [vmem:[#allocation2 + $0x2c] sm:$0xe]
      %v7145 = vld [vmem:[#allocation2 + $0x48] sm:$0xee]
      %v7146 = vld [vmem:[#allocation2 + $0x50] sm:$0xe]
      %v7147 = vld [vmem:[#allocation2 + $0x6c] sm:$0xee]
      %v7148 = vld [vmem:[#allocation2 + $0x74] sm:$0xe]
      %v7149 = vld [vmem:[#allocation2 + $0x90] sm:$0xee]
      %v7150 = vld [vmem:[#allocation2 + $0x98] sm:$0xe]
      %v7151 = vld [vmem:[#allocation2 + $0xb4] sm:$0xee]
      %v7152 = vld [vmem:[#allocation2 + $0xbc] sm:$0xe]
      %v7153 = vld [vmem:[#allocation2 + $0xd8] sm:$0xee]
      %v7154 = vld [vmem:[#allocation2 + $0xe0] sm:$0xe]
      %v7155 = vld [vmem:[#allocation2 + $0xfc] sm:$0xee]
      %v7156 = vld [vmem:[#allocation2 + $0x104] sm:$0xe]
      %v7189 = vrot.slane %v7141, 5
      %v7190 = vrot.slane %v7189, 4
      %v7191 = vrot.slane %v5714, 5
      %v7192 = vsel %vm2120, %v7190, %v7191
      %v7193 = vrot.slane %v7142, 5
      %v7194 = vrot.slane %v7193, 4
      %v7195 = vrot.slane %v5715, 5
      %v7196 = vsel %vm2120, %v7194, %v7195
      %v7197 = vrot.slane %v7191, 4
      %v7198 = vrot.slane %v5792, 5
      %v7199 = vsel %vm2120, %v7197, %v7198
      %v7200 = vrot.slane %v7195, 4
      %v7201 = vrot.slane %v5793, 5
      %v7202 = vsel %vm2120, %v7200, %v7201
      %v7203 = vrot.slane %v7143, 5
      %v7204 = vrot.slane %v7203, 4
      %v7205 = vrot.slane %v5718, 5
      %v7206 = vsel %vm2120, %v7204, %v7205
      %v7207 = vrot.slane %v7144, 5
      %v7208 = vrot.slane %v7207, 4
      %v7209 = vrot.slane %v5719, 5
      %v7210 = vsel %vm2120, %v7208, %v7209
      %v7211 = vrot.slane %v7205, 4
      %v7212 = vrot.slane %v5794, 5
      %v7213 = vsel %vm2120, %v7211, %v7212
      %v7214 = vrot.slane %v7209, 4
      %v7215 = vrot.slane %v5795, 5
      %v7216 = vsel %vm2120, %v7214, %v7215
      %v7217 = vrot.slane %v7145, 5
      %v7218 = vrot.slane %v7217, 4
      %v7219 = vrot.slane %v5722, 5
      %v7220 = vsel %vm2120, %v7218, %v7219
      %v7221 = vrot.slane %v7146, 5
      %v7222 = vrot.slane %v7221, 4
      %v7223 = vrot.slane %v5723, 5
      %v7224 = vsel %vm2120, %v7222, %v7223
      %v7225 = vrot.slane %v7219, 4
      %v7226 = vrot.slane %v5796, 5
      %v7227 = vsel %vm2120, %v7225, %v7226
      %v7228 = vrot.slane %v7223, 4
      %v7229 = vrot.slane %v5797, 5
      %v7230 = vsel %vm2120, %v7228, %v7229
      %v7231 = vrot.slane %v7147, 5
      %v7232 = vrot.slane %v7231, 4
      %v7233 = vrot.slane %v5726, 5
      %v7234 = vsel %vm2120, %v7232, %v7233
      %v7235 = vrot.slane %v7148, 5
      %v7236 = vrot.slane %v7235, 4
      %v7237 = vrot.slane %v5727, 5
      %v7238 = vsel %vm2120, %v7236, %v7237
      %v7239 = vrot.slane %v7233, 4
      %v7240 = vrot.slane %v5798, 5
      %v7241 = vsel %vm2120, %v7239, %v7240
      %v7242 = vrot.slane %v7237, 4
      %v7243 = vrot.slane %v5799, 5
      %v7244 = vsel %vm2120, %v7242, %v7243
      %v7245 = vrot.slane %v7149, 5
      %v7246 = vrot.slane %v7245, 4
      %v7247 = vrot.slane %v5730, 5
      %v7248 = vsel %vm2120, %v7246, %v7247
      %v7249 = vrot.slane %v7150, 5
      %v7250 = vrot.slane %v7249, 4
      %v7251 = vrot.slane %v5731, 5
      %v7252 = vsel %vm2120, %v7250, %v7251
      %v7253 = vrot.slane %v7247, 4
      %v7254 = vrot.slane %v5800, 5
      %v7255 = vsel %vm2120, %v7253, %v7254
      %v7256 = vrot.slane %v7251, 4
      %v7257 = vrot.slane %v5801, 5
      %v7258 = vsel %vm2120, %v7256, %v7257
      %v7259 = vrot.slane %v7151, 5
      %v7260 = vrot.slane %v7259, 4
      %v7261 = vrot.slane %v5734, 5
      %v7262 = vsel %vm2120, %v7260, %v7261
      %v7263 = vrot.slane %v7152, 5
      %v7264 = vrot.slane %v7263, 4
      %v7265 = vrot.slane %v5735, 5
      %v7266 = vsel %vm2120, %v7264, %v7265
      %v7267 = vrot.slane %v7261, 4
      %v7268 = vrot.slane %v5802, 5
      %v7269 = vsel %vm2120, %v7267, %v7268
      %v7270 = vrot.slane %v7265, 4
      %v7271 = vrot.slane %v5803, 5
      %v7272 = vsel %vm2120, %v7270, %v7271
      %v7273 = vrot.slane %v7153, 5
      %v7274 = vrot.slane %v7273, 4
      %v7275 = vrot.slane %v5738, 5
      %v7276 = vsel %vm2120, %v7274, %v7275
      %v7277 = vrot.slane %v7154, 5
      %v7278 = vrot.slane %v7277, 4
      %v7279 = vrot.slane %v5739, 5
      %v7280 = vsel %vm2120, %v7278, %v7279
      %v7281 = vrot.slane %v7275, 4
      %v7282 = vrot.slane %v5804, 5
      %v7283 = vsel %vm2120, %v7281, %v7282
      %v7284 = vrot.slane %v7279, 4
      %v7285 = vrot.slane %v5805, 5
      %v7286 = vsel %vm2120, %v7284, %v7285
      %v7287 = vrot.slane %v7155, 5
      %v7288 = vrot.slane %v7287, 4
      %v7289 = vrot.slane %v5742, 5
      %v7290 = vsel %vm2120, %v7288, %v7289
      %v7291 = vrot.slane %v7156, 5
      %v7292 = vrot.slane %v7291, 4
      %v7293 = vrot.slane %v5743, 5
      %v7294 = vsel %vm2120, %v7292, %v7293
      %v7295 = vrot.slane %v7289, 4
      %v7296 = vrot.slane %v5806, 5
      %v7297 = vsel %vm2120, %v7295, %v7296
      %v7298 = vrot.slane %v7293, 4
      %v7299 = vrot.slane %v5807, 5
      %v7300 = vsel %vm2120, %v7298, %v7299
      %s7301 = scalar_lea.vmem %s2, 384
      %v7302 = vld [vmem:[%s7301] sm:$0xf]
      %v7303 = vld [vmem:[%s7301 + $0x4] sm:$0xf]
      %v7304 = vld [vmem:[%s7301 + $0x8] sm:$0xf]
      %v7305 = vld [vmem:[%s7301 + $0xc] sm:$0xf]
      %v7306 = vld [vmem:[%s7301 + $0x10] sm:$0xf]
      %v7307 = vld [vmem:[%s7301 + $0x14] sm:$0xf]
      %v7308 = vld [vmem:[%s7301 + $0x18] sm:$0xf]
      %v7309 = vld [vmem:[%s7301 + $0x1c] sm:$0xf]
      %v7310 = vld [vmem:[%s7301 + $0x20] sm:$0xf]
      %v7311 = vld [vmem:[%s7301 + $0x24] sm:$0xf]
      %v7312 = vld [vmem:[%s7301 + $0x28] sm:$0xf]
      %v7313 = vld [vmem:[%s7301 + $0x2c] sm:$0xf]
      %v7314 = vld [vmem:[%s7301 + $0x30] sm:$0xf]
      %v7315 = vld [vmem:[%s7301 + $0x34] sm:$0xf]
      %v7316 = vld [vmem:[%s7301 + $0x38] sm:$0xf]
      %v7317 = vld [vmem:[%s7301 + $0x3c] sm:$0xf]
      %v7318 = vld [vmem:[%s7301 + $0x40] sm:$0xf]
      %v7319 = vld [vmem:[%s7301 + $0x44] sm:$0xf]
      %v7320 = vld [vmem:[%s7301 + $0x48] sm:$0xf]
      %v7321 = vld [vmem:[%s7301 + $0x4c] sm:$0xf]
      %v7322 = vld [vmem:[%s7301 + $0x50] sm:$0xf]
      %v7323 = vld [vmem:[%s7301 + $0x54] sm:$0xf]
      %v7324 = vld [vmem:[%s7301 + $0x58] sm:$0xf]
      %v7325 = vld [vmem:[%s7301 + $0x5c] sm:$0xf]
      %v7326 = vld [vmem:[%s7301 + $0x60] sm:$0xf]
      %v7327 = vld [vmem:[%s7301 + $0x64] sm:$0xf]
      %v7328 = vld [vmem:[%s7301 + $0x68] sm:$0xf]
      %v7329 = vld [vmem:[%s7301 + $0x6c] sm:$0xf]
      %v7330 = vld [vmem:[%s7301 + $0x70] sm:$0xf]
      %v7331 = vld [vmem:[%s7301 + $0x74] sm:$0xf]
      %v7332 = vld [vmem:[%s7301 + $0x78] sm:$0xf]
      %v7333 = vld [vmem:[%s7301 + $0x7c] sm:$0xf]
      %v7334 = vld [vmem:[%s7301 + $0x80] sm:$0xf]
      %v7335 = vld [vmem:[%s7301 + $0x84] sm:$0xf]
      %v7336 = vld [vmem:[%s7301 + $0x88] sm:$0xf]
      %v7337 = vld [vmem:[%s7301 + $0x8c] sm:$0xf]
      %v7338 = vld [vmem:[%s7301 + $0x90] sm:$0xf]
      %v7339 = vld [vmem:[%s7301 + $0x94] sm:$0xf]
      %v7340 = vld [vmem:[%s7301 + $0x98] sm:$0xf]
      %v7341 = vld [vmem:[%s7301 + $0x9c] sm:$0xf]
      %v7342 = vld [vmem:[%s7301 + $0xa0] sm:$0xf]
      %v7343 = vld [vmem:[%s7301 + $0xa4] sm:$0xf]
      %v7344 = vld [vmem:[%s7301 + $0xa8] sm:$0xf]
      %v7345 = vld [vmem:[%s7301 + $0xac] sm:$0xf]
      %v7346 = vld [vmem:[%s7301 + $0xb0] sm:$0xf]
      %v7347 = vld [vmem:[%s7301 + $0xb4] sm:$0xf]
      %v7348 = vld [vmem:[%s7301 + $0xb8] sm:$0xf]
      %v7349 = vld [vmem:[%s7301 + $0xbc] sm:$0xf]
      %v7350 = vunpack.c.l.b16 %v7192
      %v7351 = vunpack.c.h.b16 %v7192
      %v7352 = vunpack.c.l.b16 %v7196
      %v7353 = vunpack.c.l.b16 %v7199
      %v7354 = vunpack.c.h.b16 %v7199
      %v7355 = vunpack.c.l.b16 %v7202
      %v7356 = vunpack.c.l.b16 %v7206
      %v7357 = vunpack.c.h.b16 %v7206
      %v7358 = vunpack.c.l.b16 %v7210
      %v7359 = vunpack.c.l.b16 %v7213
      %v7360 = vunpack.c.h.b16 %v7213
      %v7361 = vunpack.c.l.b16 %v7216
      %v7362 = vunpack.c.l.b16 %v7220
      %v7363 = vunpack.c.h.b16 %v7220
      %v7364 = vunpack.c.l.b16 %v7224
      %v7365 = vunpack.c.l.b16 %v7227
      %v7366 = vunpack.c.h.b16 %v7227
      %v7367 = vunpack.c.l.b16 %v7230
      %v7368 = vunpack.c.l.b16 %v7234
      %v7369 = vunpack.c.h.b16 %v7234
      %v7370 = vunpack.c.l.b16 %v7238
      %v7371 = vunpack.c.l.b16 %v7241
      %v7372 = vunpack.c.h.b16 %v7241
      %v7373 = vunpack.c.l.b16 %v7244
      %v7374 = vunpack.c.l.b16 %v7248
      %v7375 = vunpack.c.h.b16 %v7248
      %v7376 = vunpack.c.l.b16 %v7252
      %v7377 = vunpack.c.l.b16 %v7255
      %v7378 = vunpack.c.h.b16 %v7255
      %v7379 = vunpack.c.l.b16 %v7258
      %v7380 = vunpack.c.l.b16 %v7262
      %v7381 = vunpack.c.h.b16 %v7262
      %v7382 = vunpack.c.l.b16 %v7266
      %v7383 = vunpack.c.l.b16 %v7269
      %v7384 = vunpack.c.h.b16 %v7269
      %v7385 = vunpack.c.l.b16 %v7272
      %v7386 = vunpack.c.l.b16 %v7276
      %v7387 = vunpack.c.h.b16 %v7276
      %v7388 = vunpack.c.l.b16 %v7280
      %v7389 = vunpack.c.l.b16 %v7283
      %v7390 = vunpack.c.h.b16 %v7283
      %v7391 = vunpack.c.l.b16 %v7286
      %v7392 = vunpack.c.l.b16 %v7290
      %v7393 = vunpack.c.h.b16 %v7290
      %v7394 = vunpack.c.l.b16 %v7294
      %v7395 = vunpack.c.l.b16 %v7297
      %v7396 = vunpack.c.h.b16 %v7297
      %v7397 = vunpack.c.l.b16 %v7300
      %v7398 = vpack.c.b16 %v7353, %v7350
      %v7399 = vpack.c.b16 %v7354, %v7351
      %v7400 = vpack.c.b16 %v7355, %v7352
      %v7401 = vpack.c.b16 %v7359, %v7356
      %v7402 = vpack.c.b16 %v7360, %v7357
      %v7403 = vpack.c.b16 %v7361, %v7358
      %v7404 = vpack.c.b16 %v7365, %v7362
      %v7405 = vpack.c.b16 %v7366, %v7363
      %v7406 = vpack.c.b16 %v7367, %v7364
      %v7407 = vpack.c.b16 %v7371, %v7368
      %v7408 = vpack.c.b16 %v7372, %v7369
      %v7409 = vpack.c.b16 %v7373, %v7370
      %v7410 = vpack.c.b16 %v7377, %v7374
      %v7411 = vpack.c.b16 %v7378, %v7375
      %v7412 = vpack.c.b16 %v7379, %v7376
      %v7413 = vpack.c.b16 %v7383, %v7380
      %v7414 = vpack.c.b16 %v7384, %v7381
      %v7415 = vpack.c.b16 %v7385, %v7382
      %v7416 = vpack.c.b16 %v7389, %v7386
      %v7417 = vpack.c.b16 %v7390, %v7387
      %v7418 = vpack.c.b16 %v7391, %v7388
      %v7419 = vpack.c.b16 %v7395, %v7392
      %v7420 = vpack.c.b16 %v7396, %v7393
      %v7421 = vpack.c.b16 %v7397, %v7394
      %v7494 = vunpack.c.l.b16 %v7302
      %v7495 = vunpack.c.l.b16 %v7303
      %v7496 = vunpack.c.l.b16 %v7304
      %v7497 = vunpack.c.l.b16 %v7305
      %v7498 = vunpack.c.l.b16 %v7306
      %v7499 = vunpack.c.l.b16 %v7307
      %v7500 = vunpack.c.l.b16 %v7308
      %v7501 = vunpack.c.l.b16 %v7309
      %v7502 = vunpack.c.l.b16 %v7310
      %v7503 = vunpack.c.l.b16 %v7311
      %v7504 = vunpack.c.l.b16 %v7312
      %v7505 = vunpack.c.l.b16 %v7313
      %v7506 = vunpack.c.l.b16 %v7314
      %v7507 = vunpack.c.l.b16 %v7315
      %v7508 = vunpack.c.l.b16 %v7316
      %v7509 = vunpack.c.l.b16 %v7317
      %v7510 = vunpack.c.l.b16 %v7318
      %v7511 = vunpack.c.l.b16 %v7319
      %v7512 = vunpack.c.l.b16 %v7320
      %v7513 = vunpack.c.l.b16 %v7321
      %v7514 = vunpack.c.l.b16 %v7322
      %v7515 = vunpack.c.l.b16 %v7323
      %v7516 = vunpack.c.l.b16 %v7324
      %v7517 = vunpack.c.l.b16 %v7325
      %v7518 = vunpack.c.l.b16 %v7326
      %v7519 = vunpack.c.l.b16 %v7327
      %v7520 = vunpack.c.l.b16 %v7328
      %v7521 = vunpack.c.l.b16 %v7329
      %v7522 = vunpack.c.l.b16 %v7330
      %v7523 = vunpack.c.l.b16 %v7331
      %v7524 = vunpack.c.l.b16 %v7332
      %v7525 = vunpack.c.l.b16 %v7333
      %v7526 = vunpack.c.l.b16 %v7334
      %v7527 = vunpack.c.l.b16 %v7335
      %v7528 = vunpack.c.l.b16 %v7336
      %v7529 = vunpack.c.l.b16 %v7337
      %v7530 = vunpack.c.l.b16 %v7338
      %v7531 = vunpack.c.l.b16 %v7339
      %v7532 = vunpack.c.l.b16 %v7340
      %v7533 = vunpack.c.l.b16 %v7341
      %v7534 = vunpack.c.l.b16 %v7342
      %v7535 = vunpack.c.l.b16 %v7343
      %v7536 = vunpack.c.l.b16 %v7344
      %v7537 = vunpack.c.l.b16 %v7345
      %v7538 = vunpack.c.l.b16 %v7346
      %v7539 = vunpack.c.l.b16 %v7347
      %v7540 = vunpack.c.l.b16 %v7348
      %v7541 = vunpack.c.l.b16 %v7349
      %v7542 = vpack.c.b16 %v7495, %v7494
      %v7543 = vpack.c.b16 %v7497, %v7496
      %v7544 = vpack.c.b16 %v7499, %v7498
      %v7545 = vpack.c.b16 %v7501, %v7500
      %v7546 = vpack.c.b16 %v7503, %v7502
      %v7547 = vpack.c.b16 %v7505, %v7504
      %v7548 = vpack.c.b16 %v7507, %v7506
      %v7549 = vpack.c.b16 %v7509, %v7508
      %v7550 = vpack.c.b16 %v7511, %v7510
      %v7551 = vpack.c.b16 %v7513, %v7512
      %v7552 = vpack.c.b16 %v7515, %v7514
      %v7553 = vpack.c.b16 %v7517, %v7516
      %v7554 = vpack.c.b16 %v7519, %v7518
      %v7555 = vpack.c.b16 %v7521, %v7520
      %v7556 = vpack.c.b16 %v7523, %v7522
      %v7557 = vpack.c.b16 %v7525, %v7524
      %v7558 = vpack.c.b16 %v7527, %v7526
      %v7559 = vpack.c.b16 %v7529, %v7528
      %v7560 = vpack.c.b16 %v7531, %v7530
      %v7561 = vpack.c.b16 %v7533, %v7532
      %v7562 = vpack.c.b16 %v7535, %v7534
      %v7563 = vpack.c.b16 %v7537, %v7536
      %v7564 = vpack.c.b16 %v7539, %v7538
      %v7565 = vpack.c.b16 %v7541, %v7540
      %7590 = vmatprep.subr.bf16.mxu0 0
      %7591 = vmatpush1.bf16.msra.mxu0 %v7549
      %7592 = vmatprep.subr.bf16.mxu0 0
      %7593 = vmatpush1.bf16.msra.mxu0 %v7548
      %7594 = vmatprep.subr.bf16.mxu0 0
      %7595 = vmatpush1.bf16.msra.mxu0 %v7547
      %7596 = vmatprep.subr.bf16.mxu0 0
      %7597 = vmatpush1.bf16.msra.mxu0 %v7546
      %7598 = vmatprep.subr.bf16.mxu0 0
      %7599 = vmatpush1.bf16.msra.mxu0 %v7545
      %7600 = vmatprep.subr.bf16.mxu0 0
      %7601 = vmatpush1.bf16.msra.mxu0 %v7544
      %7602 = vmatprep.subr.bf16.mxu0 0
      %7603 = vmatpush1.bf16.msra.mxu0 %v7543
      %7604 = vmatprep.subr.bf16.mxu0 0
      %7605 = vmatpush1.bf16.msra.mxu0 %v7542
      %7606 = vmatprep.subr.bf16.mxu0 0
      %7607 = vmatpush2.bf16.msra.mxu0 %v7557
      %7608 = vmatprep.subr.bf16.mxu0 0
      %7609 = vmatpush2.bf16.msra.mxu0 %v7556
      %7610 = vmatprep.subr.bf16.mxu0 0
      %7611 = vmatpush2.bf16.msra.mxu0 %v7555
      %7612 = vmatprep.subr.bf16.mxu0 0
      %7613 = vmatpush2.bf16.msra.mxu0 %v7554
      %7614 = vmatprep.subr.bf16.mxu0 0
      %7615 = vmatpush2.bf16.msra.mxu0 %v7553
      %7616 = vmatprep.subr.bf16.mxu0 0
      %7617 = vmatpush2.bf16.msra.mxu0 %v7552
      %7618 = vmatprep.subr.bf16.mxu0 0
      %7619 = vmatpush2.bf16.msra.mxu0 %v7551
      %7620 = vmatprep.subr.bf16.mxu0 0
      %7621 = vmatpush2.bf16.msra.mxu0 %v7550
      %7622 = vmatprep.mubr.bf16.mxu0 %v7399
      %7623 = vmatmul.mubr.bf16.gmra.mxu0 %v7398
      %v7624 = vpop.f32.mrf.mxu0
      %v7625 = vadd.f32 0.0, %v7624
      %v7626 = vpop.f32.mrf.mxu0
      %v7627 = vpop.f32.mrf.mxu0
      %v7628 = vadd.f32 0.0, %v7627
      %v7629 = vpop.f32.mrf.mxu0
      %7630 = vmatprep.mubr.bf16.mxu0 %v7402
      %7631 = vmatmul.mubr.bf16.gmra.mxu0 %v7401
      %v7632 = vpop.f32.mrf.mxu0
      %v7633 = vadd.f32 0.0, %v7632
      %v7634 = vpop.f32.mrf.mxu0
      %v7635 = vpop.f32.mrf.mxu0
      %v7636 = vadd.f32 0.0, %v7635
      %v7637 = vpop.f32.mrf.mxu0
      %7638 = vmatprep.mubr.bf16.mxu0 %v7405
      %7639 = vmatmul.mubr.bf16.gmra.mxu0 %v7404
      %v7640 = vpop.f32.mrf.mxu0
      %v7641 = vadd.f32 0.0, %v7640
      %v7642 = vpop.f32.mrf.mxu0
      %v7643 = vpop.f32.mrf.mxu0
      %v7644 = vadd.f32 0.0, %v7643
      %v7645 = vpop.f32.mrf.mxu0
      %7646 = vmatprep.mubr.bf16.mxu0 %v7408
      %7647 = vmatmul.mubr.bf16.gmra.mxu0 %v7407
      %v7648 = vpop.f32.mrf.mxu0
      %v7649 = vadd.f32 0.0, %v7648
      %v7650 = vpop.f32.mrf.mxu0
      %v7651 = vpop.f32.mrf.mxu0
      %v7652 = vadd.f32 0.0, %v7651
      %v7653 = vpop.f32.mrf.mxu0
      %7654 = vmatprep.mubr.bf16.mxu0 %v7411
      %7655 = vmatmul.mubr.bf16.gmra.mxu0 %v7410
      %v7656 = vpop.f32.mrf.mxu0
      %v7657 = vadd.f32 0.0, %v7656
      %v7658 = vpop.f32.mrf.mxu0
      %v7659 = vpop.f32.mrf.mxu0
      %v7660 = vadd.f32 0.0, %v7659
      %v7661 = vpop.f32.mrf.mxu0
      %7662 = vmatprep.mubr.bf16.mxu0 %v7414
      %7663 = vmatmul.mubr.bf16.gmra.mxu0 %v7413
      %v7664 = vpop.f32.mrf.mxu0
      %v7665 = vadd.f32 0.0, %v7664
      %v7666 = vpop.f32.mrf.mxu0
      %v7667 = vpop.f32.mrf.mxu0
      %v7668 = vadd.f32 0.0, %v7667
      %v7669 = vpop.f32.mrf.mxu0
      %7670 = vmatprep.mubr.bf16.mxu0 %v7417
      %7671 = vmatmul.mubr.bf16.gmra.mxu0 %v7416
      %v7672 = vpop.f32.mrf.mxu0
      %v7673 = vadd.f32 0.0, %v7672
      %v7674 = vpop.f32.mrf.mxu0
      %v7675 = vpop.f32.mrf.mxu0
      %v7676 = vadd.f32 0.0, %v7675
      %v7677 = vpop.f32.mrf.mxu0
      %7678 = vmatprep.mubr.bf16.mxu0 %v7420
      %7679 = vmatmul.mubr.bf16.gmra.mxu0 %v7419
      %v7680 = vpop.f32.mrf.mxu0
      %v7681 = vadd.f32 0.0, %v7680
      %v7682 = vpop.f32.mrf.mxu0
      %v7683 = vpop.f32.mrf.mxu0
      %v7684 = vadd.f32 0.0, %v7683
      %v7685 = vpop.f32.mrf.mxu0
      %7686 = vdwg.mxu0
      %7687 = vmatprep.subr.bf16.mxu0 0
      %7688 = vmatpush1.bf16.msra.mxu0 %v7565
      %7689 = vmatprep.subr.bf16.mxu0 0
      %7690 = vmatpush1.bf16.msra.mxu0 %v7564
      %7691 = vmatprep.subr.bf16.mxu0 0
      %7692 = vmatpush1.bf16.msra.mxu0 %v7563
      %7693 = vmatprep.subr.bf16.mxu0 0
      %7694 = vmatpush1.bf16.msra.mxu0 %v7562
      %7695 = vmatprep.subr.bf16.mxu0 0
      %7696 = vmatpush1.bf16.msra.mxu0 %v7561
      %7697 = vmatprep.subr.bf16.mxu0 0
      %7698 = vmatpush1.bf16.msra.mxu0 %v7560
      %7699 = vmatprep.subr.bf16.mxu0 0
      %7700 = vmatpush1.bf16.msra.mxu0 %v7559
      %7701 = vmatprep.subr.bf16.mxu0 0
      %7702 = vmatpush1.bf16.msra.mxu0 %v7558
      %7703 = vmatprep.subr.bf16.mxu0 0
      %7704 = vmatpush2.bf16.msra.mxu0 0
      %7705 = vmatprep.subr.bf16.mxu0 0
      %7706 = vmatpush2.bf16.msra.mxu0 0
      %7707 = vmatprep.subr.bf16.mxu0 0
      %7708 = vmatpush2.bf16.msra.mxu0 0
      %7709 = vmatprep.subr.bf16.mxu0 0
      %7710 = vmatpush2.bf16.msra.mxu0 0
      %7711 = vmatprep.subr.bf16.mxu0 0
      %7712 = vmatpush2.bf16.msra.mxu0 0
      %7713 = vmatprep.subr.bf16.mxu0 0
      %7714 = vmatpush2.bf16.msra.mxu0 0
      %7715 = vmatprep.subr.bf16.mxu0 0
      %7716 = vmatpush2.bf16.msra.mxu0 0
      %7717 = vmatprep.subr.bf16.mxu0 0
      %7718 = vmatpush2.bf16.msra.mxu0 0
      %7719 = vmatprep.mubr.bf16.mxu0 0
      %7720 = vmatmul.mubr.bf16.gmra.mxu0 %v7400
      %v7721 = vpop.f32.mrf.mxu0
      %v7722 = vadd.f32 %v7625, %v7721
      %v7723 = vpop.f32.mrf.mxu0
      %v7724 = vpop.f32.mrf.mxu0
      %v7725 = vadd.f32 %v7628, %v7724
      %v7726 = vpop.f32.mrf.mxu0
      %7727 = vmatprep.mubr.bf16.mxu0 0
      %7728 = vmatmul.mubr.bf16.gmra.mxu0 %v7403
      %v7729 = vpop.f32.mrf.mxu0
      %v7730 = vadd.f32 %v7633, %v7729
      %v7731 = vpop.f32.mrf.mxu0
      %v7732 = vpop.f32.mrf.mxu0
      %v7733 = vadd.f32 %v7636, %v7732
      %v7734 = vpop.f32.mrf.mxu0
      %7735 = vmatprep.mubr.bf16.mxu0 0
      %7736 = vmatmul.mubr.bf16.gmra.mxu0 %v7406
      %v7737 = vpop.f32.mrf.mxu0
      %v7738 = vadd.f32 %v7641, %v7737
      %v7739 = vpop.f32.mrf.mxu0
      %v7740 = vpop.f32.mrf.mxu0
      %v7741 = vadd.f32 %v7644, %v7740
      %v7742 = vpop.f32.mrf.mxu0
      %7743 = vmatprep.mubr.bf16.mxu0 0
      %7744 = vmatmul.mubr.bf16.gmra.mxu0 %v7409
      %v7745 = vpop.f32.mrf.mxu0
      %v7746 = vadd.f32 %v7649, %v7745
      %v7747 = vpop.f32.mrf.mxu0
      %v7748 = vpop.f32.mrf.mxu0
      %v7749 = vadd.f32 %v7652, %v7748
      %v7750 = vpop.f32.mrf.mxu0
      %7751 = vmatprep.mubr.bf16.mxu0 0
      %7752 = vmatmul.mubr.bf16.gmra.mxu0 %v7412
      %v7753 = vpop.f32.mrf.mxu0
      %v7754 = vadd.f32 %v7657, %v7753
      %v7755 = vpop.f32.mrf.mxu0
      %v7756 = vpop.f32.mrf.mxu0
      %v7757 = vadd.f32 %v7660, %v7756
      %v7758 = vpop.f32.mrf.mxu0
      %7759 = vmatprep.mubr.bf16.mxu0 0
      %7760 = vmatmul.mubr.bf16.gmra.mxu0 %v7415
      %v7761 = vpop.f32.mrf.mxu0
      %v7762 = vadd.f32 %v7665, %v7761
      %v7763 = vpop.f32.mrf.mxu0
      %v7764 = vpop.f32.mrf.mxu0
      %v7765 = vadd.f32 %v7668, %v7764
      %v7766 = vpop.f32.mrf.mxu0
      %7767 = vmatprep.mubr.bf16.mxu0 0
      %7768 = vmatmul.mubr.bf16.gmra.mxu0 %v7418
      %v7769 = vpop.f32.mrf.mxu0
      %v7770 = vadd.f32 %v7673, %v7769
      %v7771 = vpop.f32.mrf.mxu0
      %v7772 = vpop.f32.mrf.mxu0
      %v7773 = vadd.f32 %v7676, %v7772
      %v7774 = vpop.f32.mrf.mxu0
      %7775 = vmatprep.mubr.bf16.mxu0 0
      %7776 = vmatmul.mubr.bf16.gmra.mxu0 %v7421
      %v7777 = vpop.f32.mrf.mxu0
      %v7778 = vadd.f32 %v7681, %v7777
      %v7779 = vpop.f32.mrf.mxu0
      %v7780 = vpop.f32.mrf.mxu0
      %v7781 = vadd.f32 %v7684, %v7780
      %v7782 = vpop.f32.mrf.mxu0
      %7783 = vdwg.mxu0
      %v7784 = vadd.f32 %v7079, %v7722
      %v7785 = vadd.f32 %v7082, %v7725
      %v7786 = vadd.f32 %v7087, %v7730
      %v7787 = vadd.f32 %v7090, %v7733
      %v7788 = vadd.f32 %v7095, %v7738
      %v7789 = vadd.f32 %v7098, %v7741
      %v7790 = vadd.f32 %v7103, %v7746
      %v7791 = vadd.f32 %v7106, %v7749
      %v7792 = vadd.f32 %v7111, %v7754
      %v7793 = vadd.f32 %v7114, %v7757
      %v7794 = vadd.f32 %v7119, %v7762
      %v7795 = vadd.f32 %v7122, %v7765
      %v7796 = vadd.f32 %v7127, %v7770
      %v7797 = vadd.f32 %v7130, %v7773
      %v7798 = vadd.f32 %v7135, %v7778
      %v7799 = vadd.f32 %v7138, %v7781
      %v7800 = vld [vmem:[%s324] sm:$0xf]
      %v7801 = vld [vmem:[%s324 + $0x4] sm:$0xf]
      %v7802 = vld [vmem:[%s324 + $0x8] sm:$0x1]
      %v7803 = vld [vmem:[%s324 + $0xc] sm:$0xf]
      %v7804 = vld [vmem:[%s324 + $0x10] sm:$0xf]
      %v7805 = vld [vmem:[%s324 + $0x14] sm:$0x1]
      %v7806 = vld [vmem:[%s324 + $0x18] sm:$0xf]
      %v7807 = vld [vmem:[%s324 + $0x1c] sm:$0xf]
      %v7808 = vld [vmem:[%s324 + $0x20] sm:$0x1]
      %v7809 = vld [vmem:[%s324 + $0x24] sm:$0xf]
      %v7810 = vld [vmem:[%s324 + $0x28] sm:$0xf]
      %v7811 = vld [vmem:[%s324 + $0x2c] sm:$0x1]
      %v7812 = vld [vmem:[%s324 + $0x30] sm:$0xf]
      %v7813 = vld [vmem:[%s324 + $0x34] sm:$0xf]
      %v7814 = vld [vmem:[%s324 + $0x38] sm:$0x1]
      %v7815 = vld [vmem:[%s324 + $0x3c] sm:$0xf]
      %v7816 = vld [vmem:[%s324 + $0x40] sm:$0xf]
      %v7817 = vld [vmem:[%s324 + $0x44] sm:$0x1]
      %v7818 = vld [vmem:[%s324 + $0x48] sm:$0xf]
      %v7819 = vld [vmem:[%s324 + $0x4c] sm:$0xf]
      %v7820 = vld [vmem:[%s324 + $0x50] sm:$0x1]
      %v7821 = vld [vmem:[%s324 + $0x54] sm:$0xf]
      %v7822 = vld [vmem:[%s324 + $0x58] sm:$0xf]
      %v7823 = vld [vmem:[%s324 + $0x5c] sm:$0x1]
      %v7824 = vunpack.c.l.bf16 %v7800
      %v7825 = vunpack.c.l.bf16 %v7801
      %v7826 = vunpack.c.l.bf16 %v7802
      %v7827 = vunpack.c.l.bf16 %v7803
      %v7828 = vunpack.c.l.bf16 %v7804
      %v7829 = vunpack.c.l.bf16 %v7805
      %v7830 = vunpack.c.l.bf16 %v7806
      %v7831 = vunpack.c.l.bf16 %v7807
      %v7832 = vunpack.c.l.bf16 %v7808
      %v7833 = vunpack.c.l.bf16 %v7809
      %v7834 = vunpack.c.l.bf16 %v7810
      %v7835 = vunpack.c.l.bf16 %v7811
      %v7836 = vunpack.c.l.bf16 %v7812
      %v7837 = vunpack.c.l.bf16 %v7813
      %v7838 = vunpack.c.l.bf16 %v7814
      %v7839 = vunpack.c.l.bf16 %v7815
      %v7840 = vunpack.c.l.bf16 %v7816
      %v7841 = vunpack.c.l.bf16 %v7817
      %v7842 = vunpack.c.l.bf16 %v7818
      %v7843 = vunpack.c.l.bf16 %v7819
      %v7844 = vunpack.c.l.bf16 %v7820
      %v7845 = vunpack.c.l.bf16 %v7821
      %v7846 = vunpack.c.l.bf16 %v7822
      %v7847 = vunpack.c.l.bf16 %v7823
      %v7849 = vlaneseq
      %v7850 = vshrl.u32 %v7849, 7
      %v7851 = vsub.s32 0, %v7850
      %v7852 = vrot.slane %v227, %v7851
      %v7854 = vadd.f32 %v7784, %v7852
      %v7855 = vadd.f32 %v7785, %v7852
      %v7856 = vadd.f32 %v7786, %v7852
      %v7857 = vadd.f32 %v7787, %v7852
      %v7858 = vadd.f32 %v7788, %v7852
      %v7859 = vadd.f32 %v7789, %v7852
      %v7860 = vadd.f32 %v7790, %v7852
      %v7861 = vadd.f32 %v7791, %v7852
      %v7862 = vadd.f32 %v7792, %v7852
      %v7863 = vadd.f32 %v7793, %v7852
      %v7864 = vadd.f32 %v7794, %v7852
      %v7865 = vadd.f32 %v7795, %v7852
      %v7866 = vadd.f32 %v7796, %v7852
      %v7867 = vadd.f32 %v7797, %v7852
      %v7868 = vadd.f32 %v7798, %v7852
      %v7869 = vadd.f32 %v7799, %v7852
      %vm7894 = vcmask 1046528
      %v7895 = vrot.slane %v7824, 1
      %v7896 = vrot.slane %v7825, 1
      %v7897 = vsel %vm7894, %v7895, %v7896
      %v7898 = vrot.slane %v7826, 1
      %v7899 = vsel %vm7894, %v7896, %v7898
      %v7900 = vrot.slane %v7827, 1
      %v7901 = vrot.slane %v7828, 1
      %v7902 = vsel %vm7894, %v7900, %v7901
      %v7903 = vrot.slane %v7829, 1
      %v7904 = vsel %vm7894, %v7901, %v7903
      %v7905 = vrot.slane %v7830, 1
      %v7906 = vrot.slane %v7831, 1
      %v7907 = vsel %vm7894, %v7905, %v7906
      %v7908 = vrot.slane %v7832, 1
      %v7909 = vsel %vm7894, %v7906, %v7908
      %v7910 = vrot.slane %v7833, 1
      %v7911 = vrot.slane %v7834, 1
      %v7912 = vsel %vm7894, %v7910, %v7911
      %v7913 = vrot.slane %v7835, 1
      %v7914 = vsel %vm7894, %v7911, %v7913
      %v7915 = vrot.slane %v7836, 1
      %v7916 = vrot.slane %v7837, 1
      %v7917 = vsel %vm7894, %v7915, %v7916
      %v7918 = vrot.slane %v7838, 1
      %v7919 = vsel %vm7894, %v7916, %v7918
      %v7920 = vrot.slane %v7839, 1
      %v7921 = vrot.slane %v7840, 1
      %v7922 = vsel %vm7894, %v7920, %v7921
      %v7923 = vrot.slane %v7841, 1
      %v7924 = vsel %vm7894, %v7921, %v7923
      %v7925 = vrot.slane %v7842, 1
      %v7926 = vrot.slane %v7843, 1
      %v7927 = vsel %vm7894, %v7925, %v7926
      %v7928 = vrot.slane %v7844, 1
      %v7929 = vsel %vm7894, %v7926, %v7928
      %v7930 = vrot.slane %v7845, 1
      %v7931 = vrot.slane %v7846, 1
      %v7932 = vsel %vm7894, %v7930, %v7931
      %v7933 = vrot.slane %v7847, 1
      %v7934 = vsel %vm7894, %v7931, %v7933
      %v7951 = vadd.f32 %v7854, %v7897
      %v7952 = vadd.f32 %v7855, %v7899
      %v7953 = vadd.f32 %v7856, %v7902
      %v7954 = vadd.f32 %v7857, %v7904
      %v7955 = vadd.f32 %v7858, %v7907
      %v7956 = vadd.f32 %v7859, %v7909
      %v7957 = vadd.f32 %v7860, %v7912
      %v7958 = vadd.f32 %v7861, %v7914
      %v7959 = vadd.f32 %v7862, %v7917
      %v7960 = vadd.f32 %v7863, %v7919
      %v7961 = vadd.f32 %v7864, %v7922
      %v7962 = vadd.f32 %v7865, %v7924
      %v7963 = vadd.f32 %v7866, %v7927
      %v7964 = vadd.f32 %v7867, %v7929
      %v7965 = vadd.f32 %v7868, %v7932
      %v7966 = vadd.f32 %v7869, %v7934
      %v7967 = vmax.f32 %v7951, 0.0
      %v7968 = vmax.f32 %v7952, 0.0
      %v7969 = vmax.f32 %v7953, 0.0
      %v7970 = vmax.f32 %v7954, 0.0
      %v7971 = vmax.f32 %v7955, 0.0
      %v7972 = vmax.f32 %v7956, 0.0
      %v7973 = vmax.f32 %v7957, 0.0
      %v7974 = vmax.f32 %v7958, 0.0
      %v7975 = vmax.f32 %v7959, 0.0
      %v7976 = vmax.f32 %v7960, 0.0
      %v7977 = vmax.f32 %v7961, 0.0
      %v7978 = vmax.f32 %v7962, 0.0
      %v7979 = vmax.f32 %v7963, 0.0
      %v7980 = vmax.f32 %v7964, 0.0
      %v7981 = vmax.f32 %v7965, 0.0
      %v7982 = vmax.f32 %v7966, 0.0
      %7983 = vst [vmem:[%s224] sm:$0xff] %v7967
      %7984 = vst [vmem:[%s224 + $0x8] sm:$0xff] %v7968
      %7985 = vst [vmem:[%s224 + $0x10] sm:$0xff] %v7969
      %7986 = vst [vmem:[%s224 + $0x18] sm:$0xff] %v7970
      %7987 = vst [vmem:[%s224 + $0x20] sm:$0xff] %v7971
      %7988 = vst [vmem:[%s224 + $0x28] sm:$0xff] %v7972
      %7989 = vst [vmem:[%s224 + $0x30] sm:$0xff] %v7973
      %7990 = vst [vmem:[%s224 + $0x38] sm:$0xff] %v7974
      %7991 = vst [vmem:[%s224 + $0x40] sm:$0xff] %v7975
      %7992 = vst [vmem:[%s224 + $0x48] sm:$0xff] %v7976
      %7993 = vst [vmem:[%s224 + $0x50] sm:$0xff] %v7977
      %7994 = vst [vmem:[%s224 + $0x58] sm:$0xff] %v7978
      %7995 = vst [vmem:[%s224 + $0x60] sm:$0xff] %v7979
      %7996 = vst [vmem:[%s224 + $0x68] sm:$0xff] %v7980
      %7997 = vst [vmem:[%s224 + $0x70] sm:$0xff] %v7981
      %7998 = vst [vmem:[%s224 + $0x78] sm:$0xff] %v7982
      %v7999 = vld [vmem:[%s3039] sm:$0xff]
      %v8000 = vld [vmem:[%s3039 + $0x8] sm:$0xf]
      %v8001 = vld [vmem:[%s3039 + $0xc] sm:$0xff]
      %v8002 = vld [vmem:[%s3039 + $0x14] sm:$0xf]
      %v8003 = vld [vmem:[%s3039 + $0x24] sm:$0xff]
      %v8004 = vld [vmem:[%s3039 + $0x2c] sm:$0xf]
      %v8005 = vld [vmem:[%s3039 + $0x30] sm:$0xff]
      %v8006 = vld [vmem:[%s3039 + $0x38] sm:$0xf]
      %v8007 = vld [vmem:[%s3039 + $0x48] sm:$0xff]
      %v8008 = vld [vmem:[%s3039 + $0x50] sm:$0xf]
      %v8009 = vld [vmem:[%s3039 + $0x54] sm:$0xff]
      %v8010 = vld [vmem:[%s3039 + $0x5c] sm:$0xf]
      %v8011 = vld [vmem:[%s3039 + $0x6c] sm:$0xff]
      %v8012 = vld [vmem:[%s3039 + $0x74] sm:$0xf]
      %v8013 = vld [vmem:[%s3039 + $0x78] sm:$0xff]
      %v8014 = vld [vmem:[%s3039 + $0x80] sm:$0xf]
      %v8015 = vld [vmem:[%s3039 + $0x90] sm:$0xff]
      %v8016 = vld [vmem:[%s3039 + $0x98] sm:$0xf]
      %v8017 = vld [vmem:[%s3039 + $0x9c] sm:$0xff]
      %v8018 = vld [vmem:[%s3039 + $0xa4] sm:$0xf]
      %v8019 = vld [vmem:[%s3039 + $0xb4] sm:$0xff]
      %v8020 = vld [vmem:[%s3039 + $0xbc] sm:$0xf]
      %v8021 = vld [vmem:[%s3039 + $0xc0] sm:$0xff]
      %v8022 = vld [vmem:[%s3039 + $0xc8] sm:$0xf]
      %v8023 = vld [vmem:[%s3039 + $0xd8] sm:$0xff]
      %v8024 = vld [vmem:[%s3039 + $0xe0] sm:$0xf]
      %v8025 = vld [vmem:[%s3039 + $0xe4] sm:$0xff]
      %v8026 = vld [vmem:[%s3039 + $0xec] sm:$0xf]
      %v8027 = vld [vmem:[%s3039 + $0xfc] sm:$0xff]
      %v8028 = vld [vmem:[%s3039 + $0x104] sm:$0xf]
      %v8029 = vld [vmem:[%s3039 + $0x108] sm:$0xff]
      %v8030 = vld [vmem:[%s3039 + $0x110] sm:$0xf]
      %v8031 = vld [vmem:[%s2] sm:$0xf]
      %v8032 = vld [vmem:[%s2 + $0x4] sm:$0xf]
      %v8033 = vld [vmem:[%s2 + $0x8] sm:$0xf]
      %v8034 = vld [vmem:[%s2 + $0xc] sm:$0xf]
      %v8035 = vld [vmem:[%s2 + $0x10] sm:$0xf]
      %v8036 = vld [vmem:[%s2 + $0x14] sm:$0xf]
      %v8037 = vld [vmem:[%s2 + $0x18] sm:$0xf]
      %v8038 = vld [vmem:[%s2 + $0x1c] sm:$0xf]
      %v8039 = vld [vmem:[%s2 + $0x20] sm:$0xf]
      %v8040 = vld [vmem:[%s2 + $0x24] sm:$0xf]
      %v8041 = vld [vmem:[%s2 + $0x28] sm:$0xf]
      %v8042 = vld [vmem:[%s2 + $0x2c] sm:$0xf]
      %v8043 = vld [vmem:[%s2 + $0x30] sm:$0xf]
      %v8044 = vld [vmem:[%s2 + $0x34] sm:$0xf]
      %v8045 = vld [vmem:[%s2 + $0x38] sm:$0xf]
      %v8046 = vld [vmem:[%s2 + $0x3c] sm:$0xf]
      %v8047 = vld [vmem:[%s2 + $0x40] sm:$0xf]
      %v8048 = vld [vmem:[%s2 + $0x44] sm:$0xf]
      %v8049 = vld [vmem:[%s2 + $0x48] sm:$0xf]
      %v8050 = vld [vmem:[%s2 + $0x4c] sm:$0xf]
      %v8051 = vld [vmem:[%s2 + $0x50] sm:$0xf]
      %v8052 = vld [vmem:[%s2 + $0x54] sm:$0xf]
      %v8053 = vld [vmem:[%s2 + $0x58] sm:$0xf]
      %v8054 = vld [vmem:[%s2 + $0x5c] sm:$0xf]
      %v8055 = vld [vmem:[%s2 + $0x60] sm:$0xf]
      %v8056 = vld [vmem:[%s2 + $0x64] sm:$0xf]
      %v8057 = vld [vmem:[%s2 + $0x68] sm:$0xf]
      %v8058 = vld [vmem:[%s2 + $0x6c] sm:$0xf]
      %v8059 = vld [vmem:[%s2 + $0x70] sm:$0xf]
      %v8060 = vld [vmem:[%s2 + $0x74] sm:$0xf]
      %v8061 = vld [vmem:[%s2 + $0x78] sm:$0xf]
      %v8062 = vld [vmem:[%s2 + $0x7c] sm:$0xf]
      %v8063 = vld [vmem:[%s2 + $0x80] sm:$0xf]
      %v8064 = vld [vmem:[%s2 + $0x84] sm:$0xf]
      %v8065 = vld [vmem:[%s2 + $0x88] sm:$0xf]
      %v8066 = vld [vmem:[%s2 + $0x8c] sm:$0xf]
      %v8067 = vld [vmem:[%s2 + $0x90] sm:$0xf]
      %v8068 = vld [vmem:[%s2 + $0x94] sm:$0xf]
      %v8069 = vld [vmem:[%s2 + $0x98] sm:$0xf]
      %v8070 = vld [vmem:[%s2 + $0x9c] sm:$0xf]
      %v8071 = vld [vmem:[%s2 + $0xa0] sm:$0xf]
      %v8072 = vld [vmem:[%s2 + $0xa4] sm:$0xf]
      %v8073 = vld [vmem:[%s2 + $0xa8] sm:$0xf]
      %v8074 = vld [vmem:[%s2 + $0xac] sm:$0xf]
      %v8075 = vld [vmem:[%s2 + $0xb0] sm:$0xf]
      %v8076 = vld [vmem:[%s2 + $0xb4] sm:$0xf]
      %v8077 = vld [vmem:[%s2 + $0xb8] sm:$0xf]
      %v8078 = vld [vmem:[%s2 + $0xbc] sm:$0xf]
      %v8079 = vld [vmem:[%s3039 + $0x18] sm:$0x11]
      %v8080 = vld [vmem:[%s3039 + $0x20] sm:$0x1]
      %v8081 = vld [vmem:[%s3039 + $0x3c] sm:$0x11]
      %v8082 = vld [vmem:[%s3039 + $0x44] sm:$0x1]
      %v8083 = vld [vmem:[%s3039 + $0x60] sm:$0x11]
      %v8084 = vld [vmem:[%s3039 + $0x68] sm:$0x1]
      %v8085 = vld [vmem:[%s3039 + $0x84] sm:$0x11]
      %v8086 = vld [vmem:[%s3039 + $0x8c] sm:$0x1]
      %v8087 = vld [vmem:[%s3039 + $0xa8] sm:$0x11]
      %v8088 = vld [vmem:[%s3039 + $0xb0] sm:$0x1]
      %v8089 = vld [vmem:[%s3039 + $0xcc] sm:$0x11]
      %v8090 = vld [vmem:[%s3039 + $0xd4] sm:$0x1]
      %v8091 = vld [vmem:[%s3039 + $0xf0] sm:$0x11]
      %v8092 = vld [vmem:[%s3039 + $0xf8] sm:$0x1]
      %v8093 = vld [vmem:[%s3039 + $0x114] sm:$0x11]
      %v8094 = vld [vmem:[%s3039 + $0x11c] sm:$0x1]
      %v8096 = vshrl.u32 %v7999, 16
      %v8098 = vrot.slane %v8096, 4
      %v8099 = vshll.u32 %v7999, 16
      %v8101 = vrot.slane %v8099, 5
      %v8102 = vor.u32 %v8098, %v8101
      %v8103 = vrot.slane %v8102, 4
      %v8105 = vshll.u32 %v8001, 16
      %v8107 = vrot.slane %v8105, 5
      %v8108 = vsel %vm736, %v8103, %v8107
      %v8110 = vshrl.u32 %v8000, 16
      %v8112 = vrot.slane %v8110, 4
      %v8113 = vshll.u32 %v8000, 16
      %v8115 = vrot.slane %v8113, 5
      %v8116 = vor.u32 %v8112, %v8115
      %v8117 = vrot.slane %v8116, 4
      %v8119 = vshll.u32 %v8002, 16
      %v8121 = vrot.slane %v8119, 5
      %v8122 = vsel %vm736, %v8117, %v8121
      %v8123 = vshrl.u32 %v8001, 16
      %v8125 = vrot.slane %v8123, 4
      %v8126 = vor.u32 %v8125, %v8107
      %v8127 = vrot.slane %v8126, 4
      %v8129 = vshll.u32 %v8079, 16
      %v8131 = vrot.slane %v8129, 5
      %v8132 = vsel %vm736, %v8127, %v8131
      %v8133 = vshrl.u32 %v8002, 16
      %v8135 = vrot.slane %v8133, 4
      %v8136 = vor.u32 %v8135, %v8121
      %v8137 = vrot.slane %v8136, 4
      %v8139 = vshll.u32 %v8080, 16
      %v8141 = vrot.slane %v8139, 5
      %v8142 = vsel %vm736, %v8137, %v8141
      %v8144 = vshrl.u32 %v8003, 16
      %v8146 = vrot.slane %v8144, 4
      %v8147 = vshll.u32 %v8003, 16
      %v8149 = vrot.slane %v8147, 5
      %v8150 = vor.u32 %v8146, %v8149
      %v8151 = vrot.slane %v8150, 4
      %v8153 = vshll.u32 %v8005, 16
      %v8155 = vrot.slane %v8153, 5
      %v8156 = vsel %vm736, %v8151, %v8155
      %v8158 = vshrl.u32 %v8004, 16
      %v8160 = vrot.slane %v8158, 4
      %v8161 = vshll.u32 %v8004, 16
      %v8163 = vrot.slane %v8161, 5
      %v8164 = vor.u32 %v8160, %v8163
      %v8165 = vrot.slane %v8164, 4
      %v8167 = vshll.u32 %v8006, 16
      %v8169 = vrot.slane %v8167, 5
      %v8170 = vsel %vm736, %v8165, %v8169
      %v8171 = vshrl.u32 %v8005, 16
      %v8173 = vrot.slane %v8171, 4
      %v8174 = vor.u32 %v8173, %v8155
      %v8175 = vrot.slane %v8174, 4
      %v8177 = vshll.u32 %v8081, 16
      %v8179 = vrot.slane %v8177, 5
      %v8180 = vsel %vm736, %v8175, %v8179
      %v8181 = vshrl.u32 %v8006, 16
      %v8183 = vrot.slane %v8181, 4
      %v8184 = vor.u32 %v8183, %v8169
      %v8185 = vrot.slane %v8184, 4
      %v8187 = vshll.u32 %v8082, 16
      %v8189 = vrot.slane %v8187, 5
      %v8190 = vsel %vm736, %v8185, %v8189
      %v8192 = vshrl.u32 %v8007, 16
      %v8194 = vrot.slane %v8192, 4
      %v8195 = vshll.u32 %v8007, 16
      %v8197 = vrot.slane %v8195, 5
      %v8198 = vor.u32 %v8194, %v8197
      %v8199 = vrot.slane %v8198, 4
      %v8201 = vshll.u32 %v8009, 16
      %v8203 = vrot.slane %v8201, 5
      %v8204 = vsel %vm736, %v8199, %v8203
      %v8206 = vshrl.u32 %v8008, 16
      %v8208 = vrot.slane %v8206, 4
      %v8209 = vshll.u32 %v8008, 16
      %v8211 = vrot.slane %v8209, 5
      %v8212 = vor.u32 %v8208, %v8211
      %v8213 = vrot.slane %v8212, 4
      %v8215 = vshll.u32 %v8010, 16
      %v8217 = vrot.slane %v8215, 5
      %v8218 = vsel %vm736, %v8213, %v8217
      %v8219 = vshrl.u32 %v8009, 16
      %v8221 = vrot.slane %v8219, 4
      %v8222 = vor.u32 %v8221, %v8203
      %v8223 = vrot.slane %v8222, 4
      %v8225 = vshll.u32 %v8083, 16
      %v8227 = vrot.slane %v8225, 5
      %v8228 = vsel %vm736, %v8223, %v8227
      %v8229 = vshrl.u32 %v8010, 16
      %v8231 = vrot.slane %v8229, 4
      %v8232 = vor.u32 %v8231, %v8217
      %v8233 = vrot.slane %v8232, 4
      %v8235 = vshll.u32 %v8084, 16
      %v8237 = vrot.slane %v8235, 5
      %v8238 = vsel %vm736, %v8233, %v8237
      %v8240 = vshrl.u32 %v8011, 16
      %v8242 = vrot.slane %v8240, 4
      %v8243 = vshll.u32 %v8011, 16
      %v8245 = vrot.slane %v8243, 5
      %v8246 = vor.u32 %v8242, %v8245
      %v8247 = vrot.slane %v8246, 4
      %v8249 = vshll.u32 %v8013, 16
      %v8251 = vrot.slane %v8249, 5
      %v8252 = vsel %vm736, %v8247, %v8251
      %v8254 = vshrl.u32 %v8012, 16
      %v8256 = vrot.slane %v8254, 4
      %v8257 = vshll.u32 %v8012, 16
      %v8259 = vrot.slane %v8257, 5
      %v8260 = vor.u32 %v8256, %v8259
      %v8261 = vrot.slane %v8260, 4
      %v8263 = vshll.u32 %v8014, 16
      %v8265 = vrot.slane %v8263, 5
      %v8266 = vsel %vm736, %v8261, %v8265
      %v8267 = vshrl.u32 %v8013, 16
      %v8269 = vrot.slane %v8267, 4
      %v8270 = vor.u32 %v8269, %v8251
      %v8271 = vrot.slane %v8270, 4
      %v8273 = vshll.u32 %v8085, 16
      %v8275 = vrot.slane %v8273, 5
      %v8276 = vsel %vm736, %v8271, %v8275
      %v8277 = vshrl.u32 %v8014, 16
      %v8279 = vrot.slane %v8277, 4
      %v8280 = vor.u32 %v8279, %v8265
      %v8281 = vrot.slane %v8280, 4
      %v8283 = vshll.u32 %v8086, 16
      %v8285 = vrot.slane %v8283, 5
      %v8286 = vsel %vm736, %v8281, %v8285
      %v8288 = vshrl.u32 %v8015, 16
      %v8290 = vrot.slane %v8288, 4
      %v8291 = vshll.u32 %v8015, 16
      %v8293 = vrot.slane %v8291, 5
      %v8294 = vor.u32 %v8290, %v8293
      %v8295 = vrot.slane %v8294, 4
      %v8297 = vshll.u32 %v8017, 16
      %v8299 = vrot.slane %v8297, 5
      %v8300 = vsel %vm736, %v8295, %v8299
      %v8302 = vshrl.u32 %v8016, 16
      %v8304 = vrot.slane %v8302, 4
      %v8305 = vshll.u32 %v8016, 16
      %v8307 = vrot.slane %v8305, 5
      %v8308 = vor.u32 %v8304, %v8307
      %v8309 = vrot.slane %v8308, 4
      %v8311 = vshll.u32 %v8018, 16
      %v8313 = vrot.slane %v8311, 5
      %v8314 = vsel %vm736, %v8309, %v8313
      %v8315 = vshrl.u32 %v8017, 16
      %v8317 = vrot.slane %v8315, 4
      %v8318 = vor.u32 %v8317, %v8299
      %v8319 = vrot.slane %v8318, 4
      %v8321 = vshll.u32 %v8087, 16
      %v8323 = vrot.slane %v8321, 5
      %v8324 = vsel %vm736, %v8319, %v8323
      %v8325 = vshrl.u32 %v8018, 16
      %v8327 = vrot.slane %v8325, 4
      %v8328 = vor.u32 %v8327, %v8313
      %v8329 = vrot.slane %v8328, 4
      %v8331 = vshll.u32 %v8088, 16
      %v8333 = vrot.slane %v8331, 5
      %v8334 = vsel %vm736, %v8329, %v8333
      %v8336 = vshrl.u32 %v8019, 16
      %v8338 = vrot.slane %v8336, 4
      %v8339 = vshll.u32 %v8019, 16
      %v8341 = vrot.slane %v8339, 5
      %v8342 = vor.u32 %v8338, %v8341
      %v8343 = vrot.slane %v8342, 4
      %v8345 = vshll.u32 %v8021, 16
      %v8347 = vrot.slane %v8345, 5
      %v8348 = vsel %vm736, %v8343, %v8347
      %v8350 = vshrl.u32 %v8020, 16
      %v8352 = vrot.slane %v8350, 4
      %v8353 = vshll.u32 %v8020, 16
      %v8355 = vrot.slane %v8353, 5
      %v8356 = vor.u32 %v8352, %v8355
      %v8357 = vrot.slane %v8356, 4
      %v8359 = vshll.u32 %v8022, 16
      %v8361 = vrot.slane %v8359, 5
      %v8362 = vsel %vm736, %v8357, %v8361
      %v8363 = vshrl.u32 %v8021, 16
      %v8365 = vrot.slane %v8363, 4
      %v8366 = vor.u32 %v8365, %v8347
      %v8367 = vrot.slane %v8366, 4
      %v8369 = vshll.u32 %v8089, 16
      %v8371 = vrot.slane %v8369, 5
      %v8372 = vsel %vm736, %v8367, %v8371
      %v8373 = vshrl.u32 %v8022, 16
      %v8375 = vrot.slane %v8373, 4
      %v8376 = vor.u32 %v8375, %v8361
      %v8377 = vrot.slane %v8376, 4
      %v8379 = vshll.u32 %v8090, 16
      %v8381 = vrot.slane %v8379, 5
      %v8382 = vsel %vm736, %v8377, %v8381
      %v8384 = vshrl.u32 %v8023, 16
      %v8386 = vrot.slane %v8384, 4
      %v8387 = vshll.u32 %v8023, 16
      %v8389 = vrot.slane %v8387, 5
      %v8390 = vor.u32 %v8386, %v8389
      %v8391 = vrot.slane %v8390, 4
      %v8393 = vshll.u32 %v8025, 16
      %v8395 = vrot.slane %v8393, 5
      %v8396 = vsel %vm736, %v8391, %v8395
      %v8398 = vshrl.u32 %v8024, 16
      %v8400 = vrot.slane %v8398, 4
      %v8401 = vshll.u32 %v8024, 16
      %v8403 = vrot.slane %v8401, 5
      %v8404 = vor.u32 %v8400, %v8403
      %v8405 = vrot.slane %v8404, 4
      %v8407 = vshll.u32 %v8026, 16
      %v8409 = vrot.slane %v8407, 5
      %v8410 = vsel %vm736, %v8405, %v8409
      %v8411 = vshrl.u32 %v8025, 16
      %v8413 = vrot.slane %v8411, 4
      %v8414 = vor.u32 %v8413, %v8395
      %v8415 = vrot.slane %v8414, 4
      %v8417 = vshll.u32 %v8091, 16
      %v8419 = vrot.slane %v8417, 5
      %v8420 = vsel %vm736, %v8415, %v8419
      %v8421 = vshrl.u32 %v8026, 16
      %v8423 = vrot.slane %v8421, 4
      %v8424 = vor.u32 %v8423, %v8409
      %v8425 = vrot.slane %v8424, 4
      %v8427 = vshll.u32 %v8092, 16
      %v8429 = vrot.slane %v8427, 5
      %v8430 = vsel %vm736, %v8425, %v8429
      %v8432 = vshrl.u32 %v8027, 16
      %v8434 = vrot.slane %v8432, 4
      %v8435 = vshll.u32 %v8027, 16
      %v8437 = vrot.slane %v8435, 5
      %v8438 = vor.u32 %v8434, %v8437
      %v8439 = vrot.slane %v8438, 4
      %v8441 = vshll.u32 %v8029, 16
      %v8443 = vrot.slane %v8441, 5
      %v8444 = vsel %vm736, %v8439, %v8443
      %v8446 = vshrl.u32 %v8028, 16
      %v8448 = vrot.slane %v8446, 4
      %v8449 = vshll.u32 %v8028, 16
      %v8451 = vrot.slane %v8449, 5
      %v8452 = vor.u32 %v8448, %v8451
      %v8453 = vrot.slane %v8452, 4
      %v8455 = vshll.u32 %v8030, 16
      %v8457 = vrot.slane %v8455, 5
      %v8458 = vsel %vm736, %v8453, %v8457
      %v8459 = vshrl.u32 %v8029, 16
      %v8461 = vrot.slane %v8459, 4
      %v8462 = vor.u32 %v8461, %v8443
      %v8463 = vrot.slane %v8462, 4
      %v8465 = vshll.u32 %v8093, 16
      %v8467 = vrot.slane %v8465, 5
      %v8468 = vsel %vm736, %v8463, %v8467
      %v8469 = vshrl.u32 %v8030, 16
      %v8471 = vrot.slane %v8469, 4
      %v8472 = vor.u32 %v8471, %v8457
      %v8473 = vrot.slane %v8472, 4
      %v8475 = vshll.u32 %v8094, 16
      %v8477 = vrot.slane %v8475, 5
      %v8478 = vsel %vm736, %v8473, %v8477
      %v8479 = vld [vmem:[%s6192] sm:$0xf]
      %v8480 = vld [vmem:[%s6192 + $0x4] sm:$0xf]
      %v8481 = vld [vmem:[%s6192 + $0x8] sm:$0xf]
      %v8482 = vld [vmem:[%s6192 + $0xc] sm:$0xf]
      %v8483 = vld [vmem:[%s6192 + $0x10] sm:$0xf]
      %v8484 = vld [vmem:[%s6192 + $0x14] sm:$0xf]
      %v8485 = vld [vmem:[%s6192 + $0x18] sm:$0xf]
      %v8486 = vld [vmem:[%s6192 + $0x1c] sm:$0xf]
      %v8487 = vld [vmem:[%s6192 + $0x20] sm:$0xf]
      %v8488 = vld [vmem:[%s6192 + $0x24] sm:$0xf]
      %v8489 = vld [vmem:[%s6192 + $0x28] sm:$0xf]
      %v8490 = vld [vmem:[%s6192 + $0x2c] sm:$0xf]
      %v8491 = vld [vmem:[%s6192 + $0x30] sm:$0xf]
      %v8492 = vld [vmem:[%s6192 + $0x34] sm:$0xf]
      %v8493 = vld [vmem:[%s6192 + $0x38] sm:$0xf]
      %v8494 = vld [vmem:[%s6192 + $0x3c] sm:$0xf]
      %v8495 = vld [vmem:[%s6192 + $0x40] sm:$0xf]
      %v8496 = vld [vmem:[%s6192 + $0x44] sm:$0xf]
      %v8497 = vld [vmem:[%s6192 + $0x48] sm:$0xf]
      %v8498 = vld [vmem:[%s6192 + $0x4c] sm:$0xf]
      %v8499 = vld [vmem:[%s6192 + $0x50] sm:$0xf]
      %v8500 = vld [vmem:[%s6192 + $0x54] sm:$0xf]
      %v8501 = vld [vmem:[%s6192 + $0x58] sm:$0xf]
      %v8502 = vld [vmem:[%s6192 + $0x5c] sm:$0xf]
      %v8503 = vld [vmem:[%s6192 + $0x60] sm:$0xf]
      %v8504 = vld [vmem:[%s6192 + $0x64] sm:$0xf]
      %v8505 = vld [vmem:[%s6192 + $0x68] sm:$0xf]
      %v8506 = vld [vmem:[%s6192 + $0x6c] sm:$0xf]
      %v8507 = vld [vmem:[%s6192 + $0x70] sm:$0xf]
      %v8508 = vld [vmem:[%s6192 + $0x74] sm:$0xf]
      %v8509 = vld [vmem:[%s6192 + $0x78] sm:$0xf]
      %v8510 = vld [vmem:[%s6192 + $0x7c] sm:$0xf]
      %v8511 = vld [vmem:[%s6192 + $0x80] sm:$0xf]
      %v8512 = vld [vmem:[%s6192 + $0x84] sm:$0xf]
      %v8513 = vld [vmem:[%s6192 + $0x88] sm:$0xf]
      %v8514 = vld [vmem:[%s6192 + $0x8c] sm:$0xf]
      %v8515 = vld [vmem:[%s6192 + $0x90] sm:$0xf]
      %v8516 = vld [vmem:[%s6192 + $0x94] sm:$0xf]
      %v8517 = vld [vmem:[%s6192 + $0x98] sm:$0xf]
      %v8518 = vld [vmem:[%s6192 + $0x9c] sm:$0xf]
      %v8519 = vld [vmem:[%s6192 + $0xa0] sm:$0xf]
      %v8520 = vld [vmem:[%s6192 + $0xa4] sm:$0xf]
      %v8521 = vld [vmem:[%s6192 + $0xa8] sm:$0xf]
      %v8522 = vld [vmem:[%s6192 + $0xac] sm:$0xf]
      %v8523 = vld [vmem:[%s6192 + $0xb0] sm:$0xf]
      %v8524 = vld [vmem:[%s6192 + $0xb4] sm:$0xf]
      %v8525 = vld [vmem:[%s6192 + $0xb8] sm:$0xf]
      %v8526 = vld [vmem:[%s6192 + $0xbc] sm:$0xf]
      %v8527 = vunpack.c.l.b16 %v8108
      %v8528 = vunpack.c.h.b16 %v8108
      %v8529 = vunpack.c.l.b16 %v8122
      %v8530 = vunpack.c.l.b16 %v8132
      %v8531 = vunpack.c.h.b16 %v8132
      %v8532 = vunpack.c.l.b16 %v8142
      %v8533 = vunpack.c.l.b16 %v8156
      %v8534 = vunpack.c.h.b16 %v8156
      %v8535 = vunpack.c.l.b16 %v8170
      %v8536 = vunpack.c.l.b16 %v8180
      %v8537 = vunpack.c.h.b16 %v8180
      %v8538 = vunpack.c.l.b16 %v8190
      %v8539 = vunpack.c.l.b16 %v8204
      %v8540 = vunpack.c.h.b16 %v8204
      %v8541 = vunpack.c.l.b16 %v8218
      %v8542 = vunpack.c.l.b16 %v8228
      %v8543 = vunpack.c.h.b16 %v8228
      %v8544 = vunpack.c.l.b16 %v8238
      %v8545 = vunpack.c.l.b16 %v8252
      %v8546 = vunpack.c.h.b16 %v8252
      %v8547 = vunpack.c.l.b16 %v8266
      %v8548 = vunpack.c.l.b16 %v8276
      %v8549 = vunpack.c.h.b16 %v8276
      %v8550 = vunpack.c.l.b16 %v8286
      %v8551 = vunpack.c.l.b16 %v8300
      %v8552 = vunpack.c.h.b16 %v8300
      %v8553 = vunpack.c.l.b16 %v8314
      %v8554 = vunpack.c.l.b16 %v8324
      %v8555 = vunpack.c.h.b16 %v8324
      %v8556 = vunpack.c.l.b16 %v8334
      %v8557 = vunpack.c.l.b16 %v8348
      %v8558 = vunpack.c.h.b16 %v8348
      %v8559 = vunpack.c.l.b16 %v8362
      %v8560 = vunpack.c.l.b16 %v8372
      %v8561 = vunpack.c.h.b16 %v8372
      %v8562 = vunpack.c.l.b16 %v8382
      %v8563 = vunpack.c.l.b16 %v8396
      %v8564 = vunpack.c.h.b16 %v8396
      %v8565 = vunpack.c.l.b16 %v8410
      %v8566 = vunpack.c.l.b16 %v8420
      %v8567 = vunpack.c.h.b16 %v8420
      %v8568 = vunpack.c.l.b16 %v8430
      %v8569 = vunpack.c.l.b16 %v8444
      %v8570 = vunpack.c.h.b16 %v8444
      %v8571 = vunpack.c.l.b16 %v8458
      %v8572 = vunpack.c.l.b16 %v8468
      %v8573 = vunpack.c.h.b16 %v8468
      %v8574 = vunpack.c.l.b16 %v8478
      %v8575 = vpack.c.b16 %v8530, %v8527
      %v8576 = vpack.c.b16 %v8531, %v8528
      %v8577 = vpack.c.b16 %v8532, %v8529
      %v8578 = vpack.c.b16 %v8536, %v8533
      %v8579 = vpack.c.b16 %v8537, %v8534
      %v8580 = vpack.c.b16 %v8538, %v8535
      %v8581 = vpack.c.b16 %v8542, %v8539
      %v8582 = vpack.c.b16 %v8543, %v8540
      %v8583 = vpack.c.b16 %v8544, %v8541
      %v8584 = vpack.c.b16 %v8548, %v8545
      %v8585 = vpack.c.b16 %v8549, %v8546
      %v8586 = vpack.c.b16 %v8550, %v8547
      %v8587 = vpack.c.b16 %v8554, %v8551
      %v8588 = vpack.c.b16 %v8555, %v8552
      %v8589 = vpack.c.b16 %v8556, %v8553
      %v8590 = vpack.c.b16 %v8560, %v8557
      %v8591 = vpack.c.b16 %v8561, %v8558
      %v8592 = vpack.c.b16 %v8562, %v8559
      %v8593 = vpack.c.b16 %v8566, %v8563
      %v8594 = vpack.c.b16 %v8567, %v8564
      %v8595 = vpack.c.b16 %v8568, %v8565
      %v8596 = vpack.c.b16 %v8572, %v8569
      %v8597 = vpack.c.b16 %v8573, %v8570
      %v8598 = vpack.c.b16 %v8574, %v8571
      %v8671 = vunpack.c.l.b16 %v8479
      %v8672 = vunpack.c.l.b16 %v8480
      %v8673 = vunpack.c.l.b16 %v8481
      %v8674 = vunpack.c.l.b16 %v8482
      %v8675 = vunpack.c.l.b16 %v8483
      %v8676 = vunpack.c.l.b16 %v8484
      %v8677 = vunpack.c.l.b16 %v8485
      %v8678 = vunpack.c.l.b16 %v8486
      %v8679 = vunpack.c.l.b16 %v8487
      %v8680 = vunpack.c.l.b16 %v8488
      %v8681 = vunpack.c.l.b16 %v8489
      %v8682 = vunpack.c.l.b16 %v8490
      %v8683 = vunpack.c.l.b16 %v8491
      %v8684 = vunpack.c.l.b16 %v8492
      %v8685 = vunpack.c.l.b16 %v8493
      %v8686 = vunpack.c.l.b16 %v8494
      %v8687 = vunpack.c.l.b16 %v8495
      %v8688 = vunpack.c.l.b16 %v8496
      %v8689 = vunpack.c.l.b16 %v8497
      %v8690 = vunpack.c.l.b16 %v8498
      %v8691 = vunpack.c.l.b16 %v8499
      %v8692 = vunpack.c.l.b16 %v8500
      %v8693 = vunpack.c.l.b16 %v8501
      %v8694 = vunpack.c.l.b16 %v8502
      %v8695 = vunpack.c.l.b16 %v8503
      %v8696 = vunpack.c.l.b16 %v8504
      %v8697 = vunpack.c.l.b16 %v8505
      %v8698 = vunpack.c.l.b16 %v8506
      %v8699 = vunpack.c.l.b16 %v8507
      %v8700 = vunpack.c.l.b16 %v8508
      %v8701 = vunpack.c.l.b16 %v8509
      %v8702 = vunpack.c.l.b16 %v8510
      %v8703 = vunpack.c.l.b16 %v8511
      %v8704 = vunpack.c.l.b16 %v8512
      %v8705 = vunpack.c.l.b16 %v8513
      %v8706 = vunpack.c.l.b16 %v8514
      %v8707 = vunpack.c.l.b16 %v8515
      %v8708 = vunpack.c.l.b16 %v8516
      %v8709 = vunpack.c.l.b16 %v8517
      %v8710 = vunpack.c.l.b16 %v8518
      %v8711 = vunpack.c.l.b16 %v8519
      %v8712 = vunpack.c.l.b16 %v8520
      %v8713 = vunpack.c.l.b16 %v8521
      %v8714 = vunpack.c.l.b16 %v8522
      %v8715 = vunpack.c.l.b16 %v8523
      %v8716 = vunpack.c.l.b16 %v8524
      %v8717 = vunpack.c.l.b16 %v8525
      %v8718 = vunpack.c.l.b16 %v8526
      %v8719 = vpack.c.b16 %v8672, %v8671
      %v8720 = vpack.c.b16 %v8674, %v8673
      %v8721 = vpack.c.b16 %v8676, %v8675
      %v8722 = vpack.c.b16 %v8678, %v8677
      %v8723 = vpack.c.b16 %v8680, %v8679
      %v8724 = vpack.c.b16 %v8682, %v8681
      %v8725 = vpack.c.b16 %v8684, %v8683
      %v8726 = vpack.c.b16 %v8686, %v8685
      %v8727 = vpack.c.b16 %v8688, %v8687
      %v8728 = vpack.c.b16 %v8690, %v8689
      %v8729 = vpack.c.b16 %v8692, %v8691
      %v8730 = vpack.c.b16 %v8694, %v8693
      %v8731 = vpack.c.b16 %v8696, %v8695
      %v8732 = vpack.c.b16 %v8698, %v8697
      %v8733 = vpack.c.b16 %v8700, %v8699
      %v8734 = vpack.c.b16 %v8702, %v8701
      %v8735 = vpack.c.b16 %v8704, %v8703
      %v8736 = vpack.c.b16 %v8706, %v8705
      %v8737 = vpack.c.b16 %v8708, %v8707
      %v8738 = vpack.c.b16 %v8710, %v8709
      %v8739 = vpack.c.b16 %v8712, %v8711
      %v8740 = vpack.c.b16 %v8714, %v8713
      %v8741 = vpack.c.b16 %v8716, %v8715
      %v8742 = vpack.c.b16 %v8718, %v8717
      %8767 = vmatprep.subr.bf16.mxu0 0
      %8768 = vmatpush1.bf16.msra.mxu0 %v8726
      %8769 = vmatprep.subr.bf16.mxu0 0
      %8770 = vmatpush1.bf16.msra.mxu0 %v8725
      %8771 = vmatprep.subr.bf16.mxu0 0
      %8772 = vmatpush1.bf16.msra.mxu0 %v8724
      %8773 = vmatprep.subr.bf16.mxu0 0
      %8774 = vmatpush1.bf16.msra.mxu0 %v8723
      %8775 = vmatprep.subr.bf16.mxu0 0
      %8776 = vmatpush1.bf16.msra.mxu0 %v8722
      %8777 = vmatprep.subr.bf16.mxu0 0
      %8778 = vmatpush1.bf16.msra.mxu0 %v8721
      %8779 = vmatprep.subr.bf16.mxu0 0
      %8780 = vmatpush1.bf16.msra.mxu0 %v8720
      %8781 = vmatprep.subr.bf16.mxu0 0
      %8782 = vmatpush1.bf16.msra.mxu0 %v8719
      %8783 = vmatprep.subr.bf16.mxu0 0
      %8784 = vmatpush2.bf16.msra.mxu0 %v8734
      %8785 = vmatprep.subr.bf16.mxu0 0
      %8786 = vmatpush2.bf16.msra.mxu0 %v8733
      %8787 = vmatprep.subr.bf16.mxu0 0
      %8788 = vmatpush2.bf16.msra.mxu0 %v8732
      %8789 = vmatprep.subr.bf16.mxu0 0
      %8790 = vmatpush2.bf16.msra.mxu0 %v8731
      %8791 = vmatprep.subr.bf16.mxu0 0
      %8792 = vmatpush2.bf16.msra.mxu0 %v8730
      %8793 = vmatprep.subr.bf16.mxu0 0
      %8794 = vmatpush2.bf16.msra.mxu0 %v8729
      %8795 = vmatprep.subr.bf16.mxu0 0
      %8796 = vmatpush2.bf16.msra.mxu0 %v8728
      %8797 = vmatprep.subr.bf16.mxu0 0
      %8798 = vmatpush2.bf16.msra.mxu0 %v8727
      %8799 = vmatprep.mubr.bf16.mxu0 %v8576
      %8800 = vmatmul.mubr.bf16.gmra.mxu0 %v8575
      %v8801 = vpop.f32.mrf.mxu0
      %v8802 = vadd.f32 0.0, %v8801
      %v8803 = vpop.f32.mrf.mxu0
      %v8804 = vpop.f32.mrf.mxu0
      %v8805 = vadd.f32 0.0, %v8804
      %v8806 = vpop.f32.mrf.mxu0
      %8807 = vmatprep.mubr.bf16.mxu0 %v8579
      %8808 = vmatmul.mubr.bf16.gmra.mxu0 %v8578
      %v8809 = vpop.f32.mrf.mxu0
      %v8810 = vadd.f32 0.0, %v8809
      %v8811 = vpop.f32.mrf.mxu0
      %v8812 = vpop.f32.mrf.mxu0
      %v8813 = vadd.f32 0.0, %v8812
      %v8814 = vpop.f32.mrf.mxu0
      %8815 = vmatprep.mubr.bf16.mxu0 %v8582
      %8816 = vmatmul.mubr.bf16.gmra.mxu0 %v8581
      %v8817 = vpop.f32.mrf.mxu0
      %v8818 = vadd.f32 0.0, %v8817
      %v8819 = vpop.f32.mrf.mxu0
      %v8820 = vpop.f32.mrf.mxu0
      %v8821 = vadd.f32 0.0, %v8820
      %v8822 = vpop.f32.mrf.mxu0
      %8823 = vmatprep.mubr.bf16.mxu0 %v8585
      %8824 = vmatmul.mubr.bf16.gmra.mxu0 %v8584
      %v8825 = vpop.f32.mrf.mxu0
      %v8826 = vadd.f32 0.0, %v8825
      %v8827 = vpop.f32.mrf.mxu0
      %v8828 = vpop.f32.mrf.mxu0
      %v8829 = vadd.f32 0.0, %v8828
      %v8830 = vpop.f32.mrf.mxu0
      %8831 = vmatprep.mubr.bf16.mxu0 %v8588
      %8832 = vmatmul.mubr.bf16.gmra.mxu0 %v8587
      %v8833 = vpop.f32.mrf.mxu0
      %v8834 = vadd.f32 0.0, %v8833
      %v8835 = vpop.f32.mrf.mxu0
      %v8836 = vpop.f32.mrf.mxu0
      %v8837 = vadd.f32 0.0, %v8836
      %v8838 = vpop.f32.mrf.mxu0
      %8839 = vmatprep.mubr.bf16.mxu0 %v8591
      %8840 = vmatmul.mubr.bf16.gmra.mxu0 %v8590
      %v8841 = vpop.f32.mrf.mxu0
      %v8842 = vadd.f32 0.0, %v8841
      %v8843 = vpop.f32.mrf.mxu0
      %v8844 = vpop.f32.mrf.mxu0
      %v8845 = vadd.f32 0.0, %v8844
      %v8846 = vpop.f32.mrf.mxu0
      %8847 = vmatprep.mubr.bf16.mxu0 %v8594
      %8848 = vmatmul.mubr.bf16.gmra.mxu0 %v8593
      %v8849 = vpop.f32.mrf.mxu0
      %v8850 = vadd.f32 0.0, %v8849
      %v8851 = vpop.f32.mrf.mxu0
      %v8852 = vpop.f32.mrf.mxu0
      %v8853 = vadd.f32 0.0, %v8852
      %v8854 = vpop.f32.mrf.mxu0
      %8855 = vmatprep.mubr.bf16.mxu0 %v8597
      %8856 = vmatmul.mubr.bf16.gmra.mxu0 %v8596
      %v8857 = vpop.f32.mrf.mxu0
      %v8858 = vadd.f32 0.0, %v8857
      %v8859 = vpop.f32.mrf.mxu0
      %v8860 = vpop.f32.mrf.mxu0
      %v8861 = vadd.f32 0.0, %v8860
      %v8862 = vpop.f32.mrf.mxu0
      %8863 = vdwg.mxu0
      %8864 = vmatprep.subr.bf16.mxu0 0
      %8865 = vmatpush1.bf16.msra.mxu0 %v8742
      %8866 = vmatprep.subr.bf16.mxu0 0
      %8867 = vmatpush1.bf16.msra.mxu0 %v8741
      %8868 = vmatprep.subr.bf16.mxu0 0
      %8869 = vmatpush1.bf16.msra.mxu0 %v8740
      %8870 = vmatprep.subr.bf16.mxu0 0
      %8871 = vmatpush1.bf16.msra.mxu0 %v8739
      %8872 = vmatprep.subr.bf16.mxu0 0
      %8873 = vmatpush1.bf16.msra.mxu0 %v8738
      %8874 = vmatprep.subr.bf16.mxu0 0
      %8875 = vmatpush1.bf16.msra.mxu0 %v8737
      %8876 = vmatprep.subr.bf16.mxu0 0
      %8877 = vmatpush1.bf16.msra.mxu0 %v8736
      %8878 = vmatprep.subr.bf16.mxu0 0
      %8879 = vmatpush1.bf16.msra.mxu0 %v8735
      %8880 = vmatprep.subr.bf16.mxu0 0
      %8881 = vmatpush2.bf16.msra.mxu0 0
      %8882 = vmatprep.subr.bf16.mxu0 0
      %8883 = vmatpush2.bf16.msra.mxu0 0
      %8884 = vmatprep.subr.bf16.mxu0 0
      %8885 = vmatpush2.bf16.msra.mxu0 0
      %8886 = vmatprep.subr.bf16.mxu0 0
      %8887 = vmatpush2.bf16.msra.mxu0 0
      %8888 = vmatprep.subr.bf16.mxu0 0
      %8889 = vmatpush2.bf16.msra.mxu0 0
      %8890 = vmatprep.subr.bf16.mxu0 0
      %8891 = vmatpush2.bf16.msra.mxu0 0
      %8892 = vmatprep.subr.bf16.mxu0 0
      %8893 = vmatpush2.bf16.msra.mxu0 0
      %8894 = vmatprep.subr.bf16.mxu0 0
      %8895 = vmatpush2.bf16.msra.mxu0 0
      %8896 = vmatprep.mubr.bf16.mxu0 0
      %8897 = vmatmul.mubr.bf16.gmra.mxu0 %v8577
      %v8898 = vpop.f32.mrf.mxu0
      %v8899 = vadd.f32 %v8802, %v8898
      %v8900 = vpop.f32.mrf.mxu0
      %v8901 = vpop.f32.mrf.mxu0
      %v8902 = vadd.f32 %v8805, %v8901
      %v8903 = vpop.f32.mrf.mxu0
      %8904 = vmatprep.mubr.bf16.mxu0 0
      %8905 = vmatmul.mubr.bf16.gmra.mxu0 %v8580
      %v8906 = vpop.f32.mrf.mxu0
      %v8907 = vadd.f32 %v8810, %v8906
      %v8908 = vpop.f32.mrf.mxu0
      %v8909 = vpop.f32.mrf.mxu0
      %v8910 = vadd.f32 %v8813, %v8909
      %v8911 = vpop.f32.mrf.mxu0
      %8912 = vmatprep.mubr.bf16.mxu0 0
      %8913 = vmatmul.mubr.bf16.gmra.mxu0 %v8583
      %v8914 = vpop.f32.mrf.mxu0
      %v8915 = vadd.f32 %v8818, %v8914
      %v8916 = vpop.f32.mrf.mxu0
      %v8917 = vpop.f32.mrf.mxu0
      %v8918 = vadd.f32 %v8821, %v8917
      %v8919 = vpop.f32.mrf.mxu0
      %8920 = vmatprep.mubr.bf16.mxu0 0
      %8921 = vmatmul.mubr.bf16.gmra.mxu0 %v8586
      %v8922 = vpop.f32.mrf.mxu0
      %v8923 = vadd.f32 %v8826, %v8922
      %v8924 = vpop.f32.mrf.mxu0
      %v8925 = vpop.f32.mrf.mxu0
      %v8926 = vadd.f32 %v8829, %v8925
      %v8927 = vpop.f32.mrf.mxu0
      %8928 = vmatprep.mubr.bf16.mxu0 0
      %8929 = vmatmul.mubr.bf16.gmra.mxu0 %v8589
      %v8930 = vpop.f32.mrf.mxu0
      %v8931 = vadd.f32 %v8834, %v8930
      %v8932 = vpop.f32.mrf.mxu0
      %v8933 = vpop.f32.mrf.mxu0
      %v8934 = vadd.f32 %v8837, %v8933
      %v8935 = vpop.f32.mrf.mxu0
      %8936 = vmatprep.mubr.bf16.mxu0 0
      %8937 = vmatmul.mubr.bf16.gmra.mxu0 %v8592
      %v8938 = vpop.f32.mrf.mxu0
      %v8939 = vadd.f32 %v8842, %v8938
      %v8940 = vpop.f32.mrf.mxu0
      %v8941 = vpop.f32.mrf.mxu0
      %v8942 = vadd.f32 %v8845, %v8941
      %v8943 = vpop.f32.mrf.mxu0
      %8944 = vmatprep.mubr.bf16.mxu0 0
      %8945 = vmatmul.mubr.bf16.gmra.mxu0 %v8595
      %v8946 = vpop.f32.mrf.mxu0
      %v8947 = vadd.f32 %v8850, %v8946
      %v8948 = vpop.f32.mrf.mxu0
      %v8949 = vpop.f32.mrf.mxu0
      %v8950 = vadd.f32 %v8853, %v8949
      %v8951 = vpop.f32.mrf.mxu0
      %8952 = vmatprep.mubr.bf16.mxu0 0
      %8953 = vmatmul.mubr.bf16.gmra.mxu0 %v8598
      %v8954 = vpop.f32.mrf.mxu0
      %v8955 = vadd.f32 %v8858, %v8954
      %v8956 = vpop.f32.mrf.mxu0
      %v8957 = vpop.f32.mrf.mxu0
      %v8958 = vadd.f32 %v8861, %v8957
      %v8959 = vpop.f32.mrf.mxu0
      %8960 = vdwg.mxu0
      %v8993 = vunpack.c.l.b16 %v7999
      %v8994 = vunpack.c.h.b16 %v7999
      %v8995 = vunpack.c.l.b16 %v8000
      %v8996 = vunpack.c.l.b16 %v8001
      %v8997 = vunpack.c.h.b16 %v8001
      %v8998 = vunpack.c.l.b16 %v8002
      %v8999 = vunpack.c.l.b16 %v8003
      %v9000 = vunpack.c.h.b16 %v8003
      %v9001 = vunpack.c.l.b16 %v8004
      %v9002 = vunpack.c.l.b16 %v8005
      %v9003 = vunpack.c.h.b16 %v8005
      %v9004 = vunpack.c.l.b16 %v8006
      %v9005 = vunpack.c.l.b16 %v8007
      %v9006 = vunpack.c.h.b16 %v8007
      %v9007 = vunpack.c.l.b16 %v8008
      %v9008 = vunpack.c.l.b16 %v8009
      %v9009 = vunpack.c.h.b16 %v8009
      %v9010 = vunpack.c.l.b16 %v8010
      %v9011 = vunpack.c.l.b16 %v8011
      %v9012 = vunpack.c.h.b16 %v8011
      %v9013 = vunpack.c.l.b16 %v8012
      %v9014 = vunpack.c.l.b16 %v8013
      %v9015 = vunpack.c.h.b16 %v8013
      %v9016 = vunpack.c.l.b16 %v8014
      %v9017 = vunpack.c.l.b16 %v8015
      %v9018 = vunpack.c.h.b16 %v8015
      %v9019 = vunpack.c.l.b16 %v8016
      %v9020 = vunpack.c.l.b16 %v8017
      %v9021 = vunpack.c.h.b16 %v8017
      %v9022 = vunpack.c.l.b16 %v8018
      %v9023 = vunpack.c.l.b16 %v8019
      %v9024 = vunpack.c.h.b16 %v8019
      %v9025 = vunpack.c.l.b16 %v8020
      %v9026 = vunpack.c.l.b16 %v8021
      %v9027 = vunpack.c.h.b16 %v8021
      %v9028 = vunpack.c.l.b16 %v8022
      %v9029 = vunpack.c.l.b16 %v8023
      %v9030 = vunpack.c.h.b16 %v8023
      %v9031 = vunpack.c.l.b16 %v8024
      %v9032 = vunpack.c.l.b16 %v8025
      %v9033 = vunpack.c.h.b16 %v8025
      %v9034 = vunpack.c.l.b16 %v8026
      %v9035 = vunpack.c.l.b16 %v8027
      %v9036 = vunpack.c.h.b16 %v8027
      %v9037 = vunpack.c.l.b16 %v8028
      %v9038 = vunpack.c.l.b16 %v8029
      %v9039 = vunpack.c.h.b16 %v8029
      %v9040 = vunpack.c.l.b16 %v8030
      %v9041 = vpack.c.b16 %v8996, %v8993
      %v9042 = vpack.c.b16 %v8997, %v8994
      %v9043 = vpack.c.b16 %v8998, %v8995
      %v9044 = vpack.c.b16 %v9002, %v8999
      %v9045 = vpack.c.b16 %v9003, %v9000
      %v9046 = vpack.c.b16 %v9004, %v9001
      %v9047 = vpack.c.b16 %v9008, %v9005
      %v9048 = vpack.c.b16 %v9009, %v9006
      %v9049 = vpack.c.b16 %v9010, %v9007
      %v9050 = vpack.c.b16 %v9014, %v9011
      %v9051 = vpack.c.b16 %v9015, %v9012
      %v9052 = vpack.c.b16 %v9016, %v9013
      %v9053 = vpack.c.b16 %v9020, %v9017
      %v9054 = vpack.c.b16 %v9021, %v9018
      %v9055 = vpack.c.b16 %v9022, %v9019
      %v9056 = vpack.c.b16 %v9026, %v9023
      %v9057 = vpack.c.b16 %v9027, %v9024
      %v9058 = vpack.c.b16 %v9028, %v9025
      %v9059 = vpack.c.b16 %v9032, %v9029
      %v9060 = vpack.c.b16 %v9033, %v9030
      %v9061 = vpack.c.b16 %v9034, %v9031
      %v9062 = vpack.c.b16 %v9038, %v9035
      %v9063 = vpack.c.b16 %v9039, %v9036
      %v9064 = vpack.c.b16 %v9040, %v9037
      %v9137 = vunpack.c.l.b16 %v8031
      %v9138 = vunpack.c.l.b16 %v8032
      %v9139 = vunpack.c.l.b16 %v8033
      %v9140 = vunpack.c.l.b16 %v8034
      %v9141 = vunpack.c.l.b16 %v8035
      %v9142 = vunpack.c.l.b16 %v8036
      %v9143 = vunpack.c.l.b16 %v8037
      %v9144 = vunpack.c.l.b16 %v8038
      %v9145 = vunpack.c.l.b16 %v8039
      %v9146 = vunpack.c.l.b16 %v8040
      %v9147 = vunpack.c.l.b16 %v8041
      %v9148 = vunpack.c.l.b16 %v8042
      %v9149 = vunpack.c.l.b16 %v8043
      %v9150 = vunpack.c.l.b16 %v8044
      %v9151 = vunpack.c.l.b16 %v8045
      %v9152 = vunpack.c.l.b16 %v8046
      %v9153 = vunpack.c.l.b16 %v8047
      %v9154 = vunpack.c.l.b16 %v8048
      %v9155 = vunpack.c.l.b16 %v8049
      %v9156 = vunpack.c.l.b16 %v8050
      %v9157 = vunpack.c.l.b16 %v8051
      %v9158 = vunpack.c.l.b16 %v8052
      %v9159 = vunpack.c.l.b16 %v8053
      %v9160 = vunpack.c.l.b16 %v8054
      %v9161 = vunpack.c.l.b16 %v8055
      %v9162 = vunpack.c.l.b16 %v8056
      %v9163 = vunpack.c.l.b16 %v8057
      %v9164 = vunpack.c.l.b16 %v8058
      %v9165 = vunpack.c.l.b16 %v8059
      %v9166 = vunpack.c.l.b16 %v8060
      %v9167 = vunpack.c.l.b16 %v8061
      %v9168 = vunpack.c.l.b16 %v8062
      %v9169 = vunpack.c.l.b16 %v8063
      %v9170 = vunpack.c.l.b16 %v8064
      %v9171 = vunpack.c.l.b16 %v8065
      %v9172 = vunpack.c.l.b16 %v8066
      %v9173 = vunpack.c.l.b16 %v8067
      %v9174 = vunpack.c.l.b16 %v8068
      %v9175 = vunpack.c.l.b16 %v8069
      %v9176 = vunpack.c.l.b16 %v8070
      %v9177 = vunpack.c.l.b16 %v8071
      %v9178 = vunpack.c.l.b16 %v8072
      %v9179 = vunpack.c.l.b16 %v8073
      %v9180 = vunpack.c.l.b16 %v8074
      %v9181 = vunpack.c.l.b16 %v8075
      %v9182 = vunpack.c.l.b16 %v8076
      %v9183 = vunpack.c.l.b16 %v8077
      %v9184 = vunpack.c.l.b16 %v8078
      %v9185 = vpack.c.b16 %v9138, %v9137
      %v9186 = vpack.c.b16 %v9140, %v9139
      %v9187 = vpack.c.b16 %v9142, %v9141
      %v9188 = vpack.c.b16 %v9144, %v9143
      %v9189 = vpack.c.b16 %v9146, %v9145
      %v9190 = vpack.c.b16 %v9148, %v9147
      %v9191 = vpack.c.b16 %v9150, %v9149
      %v9192 = vpack.c.b16 %v9152, %v9151
      %v9193 = vpack.c.b16 %v9154, %v9153
      %v9194 = vpack.c.b16 %v9156, %v9155
      %v9195 = vpack.c.b16 %v9158, %v9157
      %v9196 = vpack.c.b16 %v9160, %v9159
      %v9197 = vpack.c.b16 %v9162, %v9161
      %v9198 = vpack.c.b16 %v9164, %v9163
      %v9199 = vpack.c.b16 %v9166, %v9165
      %v9200 = vpack.c.b16 %v9168, %v9167
      %v9201 = vpack.c.b16 %v9170, %v9169
      %v9202 = vpack.c.b16 %v9172, %v9171
      %v9203 = vpack.c.b16 %v9174, %v9173
      %v9204 = vpack.c.b16 %v9176, %v9175
      %v9205 = vpack.c.b16 %v9178, %v9177
      %v9206 = vpack.c.b16 %v9180, %v9179
      %v9207 = vpack.c.b16 %v9182, %v9181
      %v9208 = vpack.c.b16 %v9184, %v9183
      %9233 = vmatprep.subr.bf16.mxu0 0
      %9234 = vmatpush1.bf16.msra.mxu0 %v9192
      %9235 = vmatprep.subr.bf16.mxu0 0
      %9236 = vmatpush1.bf16.msra.mxu0 %v9191
      %9237 = vmatprep.subr.bf16.mxu0 0
      %9238 = vmatpush1.bf16.msra.mxu0 %v9190
      %9239 = vmatprep.subr.bf16.mxu0 0
      %9240 = vmatpush1.bf16.msra.mxu0 %v9189
      %9241 = vmatprep.subr.bf16.mxu0 0
      %9242 = vmatpush1.bf16.msra.mxu0 %v9188
      %9243 = vmatprep.subr.bf16.mxu0 0
      %9244 = vmatpush1.bf16.msra.mxu0 %v9187
      %9245 = vmatprep.subr.bf16.mxu0 0
      %9246 = vmatpush1.bf16.msra.mxu0 %v9186
      %9247 = vmatprep.subr.bf16.mxu0 0
      %9248 = vmatpush1.bf16.msra.mxu0 %v9185
      %9249 = vmatprep.subr.bf16.mxu0 0
      %9250 = vmatpush2.bf16.msra.mxu0 %v9200
      %9251 = vmatprep.subr.bf16.mxu0 0
      %9252 = vmatpush2.bf16.msra.mxu0 %v9199
      %9253 = vmatprep.subr.bf16.mxu0 0
      %9254 = vmatpush2.bf16.msra.mxu0 %v9198
      %9255 = vmatprep.subr.bf16.mxu0 0
      %9256 = vmatpush2.bf16.msra.mxu0 %v9197
      %9257 = vmatprep.subr.bf16.mxu0 0
      %9258 = vmatpush2.bf16.msra.mxu0 %v9196
      %9259 = vmatprep.subr.bf16.mxu0 0
      %9260 = vmatpush2.bf16.msra.mxu0 %v9195
      %9261 = vmatprep.subr.bf16.mxu0 0
      %9262 = vmatpush2.bf16.msra.mxu0 %v9194
      %9263 = vmatprep.subr.bf16.mxu0 0
      %9264 = vmatpush2.bf16.msra.mxu0 %v9193
      %9265 = vmatprep.mubr.bf16.mxu0 %v9042
      %9266 = vmatmul.mubr.bf16.gmra.mxu0 %v9041
      %v9267 = vpop.f32.mrf.mxu0
      %v9268 = vadd.f32 %v8899, %v9267
      %v9269 = vpop.f32.mrf.mxu0
      %v9270 = vpop.f32.mrf.mxu0
      %v9271 = vadd.f32 %v8902, %v9270
      %v9272 = vpop.f32.mrf.mxu0
      %9273 = vmatprep.mubr.bf16.mxu0 %v9045
      %9274 = vmatmul.mubr.bf16.gmra.mxu0 %v9044
      %v9275 = vpop.f32.mrf.mxu0
      %v9276 = vadd.f32 %v8907, %v9275
      %v9277 = vpop.f32.mrf.mxu0
      %v9278 = vpop.f32.mrf.mxu0
      %v9279 = vadd.f32 %v8910, %v9278
      %v9280 = vpop.f32.mrf.mxu0
      %9281 = vmatprep.mubr.bf16.mxu0 %v9048
      %9282 = vmatmul.mubr.bf16.gmra.mxu0 %v9047
      %v9283 = vpop.f32.mrf.mxu0
      %v9284 = vadd.f32 %v8915, %v9283
      %v9285 = vpop.f32.mrf.mxu0
      %v9286 = vpop.f32.mrf.mxu0
      %v9287 = vadd.f32 %v8918, %v9286
      %v9288 = vpop.f32.mrf.mxu0
      %9289 = vmatprep.mubr.bf16.mxu0 %v9051
      %9290 = vmatmul.mubr.bf16.gmra.mxu0 %v9050
      %v9291 = vpop.f32.mrf.mxu0
      %v9292 = vadd.f32 %v8923, %v9291
      %v9293 = vpop.f32.mrf.mxu0
      %v9294 = vpop.f32.mrf.mxu0
      %v9295 = vadd.f32 %v8926, %v9294
      %v9296 = vpop.f32.mrf.mxu0
      %9297 = vmatprep.mubr.bf16.mxu0 %v9054
      %9298 = vmatmul.mubr.bf16.gmra.mxu0 %v9053
      %v9299 = vpop.f32.mrf.mxu0
      %v9300 = vadd.f32 %v8931, %v9299
      %v9301 = vpop.f32.mrf.mxu0
      %v9302 = vpop.f32.mrf.mxu0
      %v9303 = vadd.f32 %v8934, %v9302
      %v9304 = vpop.f32.mrf.mxu0
      %9305 = vmatprep.mubr.bf16.mxu0 %v9057
      %9306 = vmatmul.mubr.bf16.gmra.mxu0 %v9056
      %v9307 = vpop.f32.mrf.mxu0
      %v9308 = vadd.f32 %v8939, %v9307
      %v9309 = vpop.f32.mrf.mxu0
      %v9310 = vpop.f32.mrf.mxu0
      %v9311 = vadd.f32 %v8942, %v9310
      %v9312 = vpop.f32.mrf.mxu0
      %9313 = vmatprep.mubr.bf16.mxu0 %v9060
      %9314 = vmatmul.mubr.bf16.gmra.mxu0 %v9059
      %v9315 = vpop.f32.mrf.mxu0
      %v9316 = vadd.f32 %v8947, %v9315
      %v9317 = vpop.f32.mrf.mxu0
      %v9318 = vpop.f32.mrf.mxu0
      %v9319 = vadd.f32 %v8950, %v9318
      %v9320 = vpop.f32.mrf.mxu0
      %9321 = vmatprep.mubr.bf16.mxu0 %v9063
      %9322 = vmatmul.mubr.bf16.gmra.mxu0 %v9062
      %v9323 = vpop.f32.mrf.mxu0
      %v9324 = vadd.f32 %v8955, %v9323
      %v9325 = vpop.f32.mrf.mxu0
      %v9326 = vpop.f32.mrf.mxu0
      %v9327 = vadd.f32 %v8958, %v9326
      %v9328 = vpop.f32.mrf.mxu0
      %9329 = vdwg.mxu0
      %9330 = vmatprep.subr.bf16.mxu0 0
      %9331 = vmatpush1.bf16.msra.mxu0 %v9208
      %9332 = vmatprep.subr.bf16.mxu0 0
      %9333 = vmatpush1.bf16.msra.mxu0 %v9207
      %9334 = vmatprep.subr.bf16.mxu0 0
      %9335 = vmatpush1.bf16.msra.mxu0 %v9206
      %9336 = vmatprep.subr.bf16.mxu0 0
      %9337 = vmatpush1.bf16.msra.mxu0 %v9205
      %9338 = vmatprep.subr.bf16.mxu0 0
      %9339 = vmatpush1.bf16.msra.mxu0 %v9204
      %9340 = vmatprep.subr.bf16.mxu0 0
      %9341 = vmatpush1.bf16.msra.mxu0 %v9203
      %9342 = vmatprep.subr.bf16.mxu0 0
      %9343 = vmatpush1.bf16.msra.mxu0 %v9202
      %9344 = vmatprep.subr.bf16.mxu0 0
      %9345 = vmatpush1.bf16.msra.mxu0 %v9201
      %9346 = vmatprep.subr.bf16.mxu0 0
      %9347 = vmatpush2.bf16.msra.mxu0 0
      %9348 = vmatprep.subr.bf16.mxu0 0
      %9349 = vmatpush2.bf16.msra.mxu0 0
      %9350 = vmatprep.subr.bf16.mxu0 0
      %9351 = vmatpush2.bf16.msra.mxu0 0
      %9352 = vmatprep.subr.bf16.mxu0 0
      %9353 = vmatpush2.bf16.msra.mxu0 0
      %9354 = vmatprep.subr.bf16.mxu0 0
      %9355 = vmatpush2.bf16.msra.mxu0 0
      %9356 = vmatprep.subr.bf16.mxu0 0
      %9357 = vmatpush2.bf16.msra.mxu0 0
      %9358 = vmatprep.subr.bf16.mxu0 0
      %9359 = vmatpush2.bf16.msra.mxu0 0
      %9360 = vmatprep.subr.bf16.mxu0 0
      %9361 = vmatpush2.bf16.msra.mxu0 0
      %9362 = vmatprep.mubr.bf16.mxu0 0
      %9363 = vmatmul.mubr.bf16.gmra.mxu0 %v9043
      %v9364 = vpop.f32.mrf.mxu0
      %v9365 = vadd.f32 %v9268, %v9364
      %v9366 = vpop.f32.mrf.mxu0
      %v9367 = vpop.f32.mrf.mxu0
      %v9368 = vadd.f32 %v9271, %v9367
      %v9369 = vpop.f32.mrf.mxu0
      %9370 = vmatprep.mubr.bf16.mxu0 0
      %9371 = vmatmul.mubr.bf16.gmra.mxu0 %v9046
      %v9372 = vpop.f32.mrf.mxu0
      %v9373 = vadd.f32 %v9276, %v9372
      %v9374 = vpop.f32.mrf.mxu0
      %v9375 = vpop.f32.mrf.mxu0
      %v9376 = vadd.f32 %v9279, %v9375
      %v9377 = vpop.f32.mrf.mxu0
      %9378 = vmatprep.mubr.bf16.mxu0 0
      %9379 = vmatmul.mubr.bf16.gmra.mxu0 %v9049
      %v9380 = vpop.f32.mrf.mxu0
      %v9381 = vadd.f32 %v9284, %v9380
      %v9382 = vpop.f32.mrf.mxu0
      %v9383 = vpop.f32.mrf.mxu0
      %v9384 = vadd.f32 %v9287, %v9383
      %v9385 = vpop.f32.mrf.mxu0
      %9386 = vmatprep.mubr.bf16.mxu0 0
      %9387 = vmatmul.mubr.bf16.gmra.mxu0 %v9052
      %v9388 = vpop.f32.mrf.mxu0
      %v9389 = vadd.f32 %v9292, %v9388
      %v9390 = vpop.f32.mrf.mxu0
      %v9391 = vpop.f32.mrf.mxu0
      %v9392 = vadd.f32 %v9295, %v9391
      %v9393 = vpop.f32.mrf.mxu0
      %9394 = vmatprep.mubr.bf16.mxu0 0
      %9395 = vmatmul.mubr.bf16.gmra.mxu0 %v9055
      %v9396 = vpop.f32.mrf.mxu0
      %v9397 = vadd.f32 %v9300, %v9396
      %v9398 = vpop.f32.mrf.mxu0
      %v9399 = vpop.f32.mrf.mxu0
      %v9400 = vadd.f32 %v9303, %v9399
      %v9401 = vpop.f32.mrf.mxu0
      %9402 = vmatprep.mubr.bf16.mxu0 0
      %9403 = vmatmul.mubr.bf16.gmra.mxu0 %v9058
      %v9404 = vpop.f32.mrf.mxu0
      %v9405 = vadd.f32 %v9308, %v9404
      %v9406 = vpop.f32.mrf.mxu0
      %v9407 = vpop.f32.mrf.mxu0
      %v9408 = vadd.f32 %v9311, %v9407
      %v9409 = vpop.f32.mrf.mxu0
      %9410 = vmatprep.mubr.bf16.mxu0 0
      %9411 = vmatmul.mubr.bf16.gmra.mxu0 %v9061
      %v9412 = vpop.f32.mrf.mxu0
      %v9413 = vadd.f32 %v9316, %v9412
      %v9414 = vpop.f32.mrf.mxu0
      %v9415 = vpop.f32.mrf.mxu0
      %v9416 = vadd.f32 %v9319, %v9415
      %v9417 = vpop.f32.mrf.mxu0
      %9418 = vmatprep.mubr.bf16.mxu0 0
      %9419 = vmatmul.mubr.bf16.gmra.mxu0 %v9064
      %v9420 = vpop.f32.mrf.mxu0
      %v9421 = vadd.f32 %v9324, %v9420
      %v9422 = vpop.f32.mrf.mxu0
      %v9423 = vpop.f32.mrf.mxu0
      %v9424 = vadd.f32 %v9327, %v9423
      %v9425 = vpop.f32.mrf.mxu0
      %9426 = vdwg.mxu0
      %v9427 = vld [vmem:[%s3039] sm:$0xee]
      %v9428 = vld [vmem:[%s3039 + $0x8] sm:$0xe]
      %v9429 = vld [vmem:[%s3039 + $0x24] sm:$0xee]
      %v9430 = vld [vmem:[%s3039 + $0x2c] sm:$0xe]
      %v9431 = vld [vmem:[%s3039 + $0x48] sm:$0xee]
      %v9432 = vld [vmem:[%s3039 + $0x50] sm:$0xe]
      %v9433 = vld [vmem:[%s3039 + $0x6c] sm:$0xee]
      %v9434 = vld [vmem:[%s3039 + $0x74] sm:$0xe]
      %v9435 = vld [vmem:[%s3039 + $0x90] sm:$0xee]
      %v9436 = vld [vmem:[%s3039 + $0x98] sm:$0xe]
      %v9437 = vld [vmem:[%s3039 + $0xb4] sm:$0xee]
      %v9438 = vld [vmem:[%s3039 + $0xbc] sm:$0xe]
      %v9439 = vld [vmem:[%s3039 + $0xd8] sm:$0xee]
      %v9440 = vld [vmem:[%s3039 + $0xe0] sm:$0xe]
      %v9441 = vld [vmem:[%s3039 + $0xfc] sm:$0xee]
      %v9442 = vld [vmem:[%s3039 + $0x104] sm:$0xe]
      %v9475 = vrot.slane %v9427, 5
      %v9476 = vrot.slane %v9475, 4
      %v9477 = vrot.slane %v8001, 5
      %v9478 = vsel %vm2120, %v9476, %v9477
      %v9479 = vrot.slane %v9428, 5
      %v9480 = vrot.slane %v9479, 4
      %v9481 = vrot.slane %v8002, 5
      %v9482 = vsel %vm2120, %v9480, %v9481
      %v9483 = vrot.slane %v9477, 4
      %v9484 = vrot.slane %v8079, 5
      %v9485 = vsel %vm2120, %v9483, %v9484
      %v9486 = vrot.slane %v9481, 4
      %v9487 = vrot.slane %v8080, 5
      %v9488 = vsel %vm2120, %v9486, %v9487
      %v9489 = vrot.slane %v9429, 5
      %v9490 = vrot.slane %v9489, 4
      %v9491 = vrot.slane %v8005, 5
      %v9492 = vsel %vm2120, %v9490, %v9491
      %v9493 = vrot.slane %v9430, 5
      %v9494 = vrot.slane %v9493, 4
      %v9495 = vrot.slane %v8006, 5
      %v9496 = vsel %vm2120, %v9494, %v9495
      %v9497 = vrot.slane %v9491, 4
      %v9498 = vrot.slane %v8081, 5
      %v9499 = vsel %vm2120, %v9497, %v9498
      %v9500 = vrot.slane %v9495, 4
      %v9501 = vrot.slane %v8082, 5
      %v9502 = vsel %vm2120, %v9500, %v9501
      %v9503 = vrot.slane %v9431, 5
      %v9504 = vrot.slane %v9503, 4
      %v9505 = vrot.slane %v8009, 5
      %v9506 = vsel %vm2120, %v9504, %v9505
      %v9507 = vrot.slane %v9432, 5
      %v9508 = vrot.slane %v9507, 4
      %v9509 = vrot.slane %v8010, 5
      %v9510 = vsel %vm2120, %v9508, %v9509
      %v9511 = vrot.slane %v9505, 4
      %v9512 = vrot.slane %v8083, 5
      %v9513 = vsel %vm2120, %v9511, %v9512
      %v9514 = vrot.slane %v9509, 4
      %v9515 = vrot.slane %v8084, 5
      %v9516 = vsel %vm2120, %v9514, %v9515
      %v9517 = vrot.slane %v9433, 5
      %v9518 = vrot.slane %v9517, 4
      %v9519 = vrot.slane %v8013, 5
      %v9520 = vsel %vm2120, %v9518, %v9519
      %v9521 = vrot.slane %v9434, 5
      %v9522 = vrot.slane %v9521, 4
      %v9523 = vrot.slane %v8014, 5
      %v9524 = vsel %vm2120, %v9522, %v9523
      %v9525 = vrot.slane %v9519, 4
      %v9526 = vrot.slane %v8085, 5
      %v9527 = vsel %vm2120, %v9525, %v9526
      %v9528 = vrot.slane %v9523, 4
      %v9529 = vrot.slane %v8086, 5
      %v9530 = vsel %vm2120, %v9528, %v9529
      %v9531 = vrot.slane %v9435, 5
      %v9532 = vrot.slane %v9531, 4
      %v9533 = vrot.slane %v8017, 5
      %v9534 = vsel %vm2120, %v9532, %v9533
      %v9535 = vrot.slane %v9436, 5
      %v9536 = vrot.slane %v9535, 4
      %v9537 = vrot.slane %v8018, 5
      %v9538 = vsel %vm2120, %v9536, %v9537
      %v9539 = vrot.slane %v9533, 4
      %v9540 = vrot.slane %v8087, 5
      %v9541 = vsel %vm2120, %v9539, %v9540
      %v9542 = vrot.slane %v9537, 4
      %v9543 = vrot.slane %v8088, 5
      %v9544 = vsel %vm2120, %v9542, %v9543
      %v9545 = vrot.slane %v9437, 5
      %v9546 = vrot.slane %v9545, 4
      %v9547 = vrot.slane %v8021, 5
      %v9548 = vsel %vm2120, %v9546, %v9547
      %v9549 = vrot.slane %v9438, 5
      %v9550 = vrot.slane %v9549, 4
      %v9551 = vrot.slane %v8022, 5
      %v9552 = vsel %vm2120, %v9550, %v9551
      %v9553 = vrot.slane %v9547, 4
      %v9554 = vrot.slane %v8089, 5
      %v9555 = vsel %vm2120, %v9553, %v9554
      %v9556 = vrot.slane %v9551, 4
      %v9557 = vrot.slane %v8090, 5
      %v9558 = vsel %vm2120, %v9556, %v9557
      %v9559 = vrot.slane %v9439, 5
      %v9560 = vrot.slane %v9559, 4
      %v9561 = vrot.slane %v8025, 5
      %v9562 = vsel %vm2120, %v9560, %v9561
      %v9563 = vrot.slane %v9440, 5
      %v9564 = vrot.slane %v9563, 4
      %v9565 = vrot.slane %v8026, 5
      %v9566 = vsel %vm2120, %v9564, %v9565
      %v9567 = vrot.slane %v9561, 4
      %v9568 = vrot.slane %v8091, 5
      %v9569 = vsel %vm2120, %v9567, %v9568
      %v9570 = vrot.slane %v9565, 4
      %v9571 = vrot.slane %v8092, 5
      %v9572 = vsel %vm2120, %v9570, %v9571
      %v9573 = vrot.slane %v9441, 5
      %v9574 = vrot.slane %v9573, 4
      %v9575 = vrot.slane %v8029, 5
      %v9576 = vsel %vm2120, %v9574, %v9575
      %v9577 = vrot.slane %v9442, 5
      %v9578 = vrot.slane %v9577, 4
      %v9579 = vrot.slane %v8030, 5
      %v9580 = vsel %vm2120, %v9578, %v9579
      %v9581 = vrot.slane %v9575, 4
      %v9582 = vrot.slane %v8093, 5
      %v9583 = vsel %vm2120, %v9581, %v9582
      %v9584 = vrot.slane %v9579, 4
      %v9585 = vrot.slane %v8094, 5
      %v9586 = vsel %vm2120, %v9584, %v9585
      %v9587 = vld [vmem:[%s7301] sm:$0xf]
      %v9588 = vld [vmem:[%s7301 + $0x4] sm:$0xf]
      %v9589 = vld [vmem:[%s7301 + $0x8] sm:$0xf]
      %v9590 = vld [vmem:[%s7301 + $0xc] sm:$0xf]
      %v9591 = vld [vmem:[%s7301 + $0x10] sm:$0xf]
      %v9592 = vld [vmem:[%s7301 + $0x14] sm:$0xf]
      %v9593 = vld [vmem:[%s7301 + $0x18] sm:$0xf]
      %v9594 = vld [vmem:[%s7301 + $0x1c] sm:$0xf]
      %v9595 = vld [vmem:[%s7301 + $0x20] sm:$0xf]
      %v9596 = vld [vmem:[%s7301 + $0x24] sm:$0xf]
      %v9597 = vld [vmem:[%s7301 + $0x28] sm:$0xf]
      %v9598 = vld [vmem:[%s7301 + $0x2c] sm:$0xf]
      %v9599 = vld [vmem:[%s7301 + $0x30] sm:$0xf]
      %v9600 = vld [vmem:[%s7301 + $0x34] sm:$0xf]
      %v9601 = vld [vmem:[%s7301 + $0x38] sm:$0xf]
      %v9602 = vld [vmem:[%s7301 + $0x3c] sm:$0xf]
      %v9603 = vld [vmem:[%s7301 + $0x40] sm:$0xf]
      %v9604 = vld [vmem:[%s7301 + $0x44] sm:$0xf]
      %v9605 = vld [vmem:[%s7301 + $0x48] sm:$0xf]
      %v9606 = vld [vmem:[%s7301 + $0x4c] sm:$0xf]
      %v9607 = vld [vmem:[%s7301 + $0x50] sm:$0xf]
      %v9608 = vld [vmem:[%s7301 + $0x54] sm:$0xf]
      %v9609 = vld [vmem:[%s7301 + $0x58] sm:$0xf]
      %v9610 = vld [vmem:[%s7301 + $0x5c] sm:$0xf]
      %v9611 = vld [vmem:[%s7301 + $0x60] sm:$0xf]
      %v9612 = vld [vmem:[%s7301 + $0x64] sm:$0xf]
      %v9613 = vld [vmem:[%s7301 + $0x68] sm:$0xf]
      %v9614 = vld [vmem:[%s7301 + $0x6c] sm:$0xf]
      %v9615 = vld [vmem:[%s7301 + $0x70] sm:$0xf]
      %v9616 = vld [vmem:[%s7301 + $0x74] sm:$0xf]
      %v9617 = vld [vmem:[%s7301 + $0x78] sm:$0xf]
      %v9618 = vld [vmem:[%s7301 + $0x7c] sm:$0xf]
      %v9619 = vld [vmem:[%s7301 + $0x80] sm:$0xf]
      %v9620 = vld [vmem:[%s7301 + $0x84] sm:$0xf]
      %v9621 = vld [vmem:[%s7301 + $0x88] sm:$0xf]
      %v9622 = vld [vmem:[%s7301 + $0x8c] sm:$0xf]
      %v9623 = vld [vmem:[%s7301 + $0x90] sm:$0xf]
      %v9624 = vld [vmem:[%s7301 + $0x94] sm:$0xf]
      %v9625 = vld [vmem:[%s7301 + $0x98] sm:$0xf]
      %v9626 = vld [vmem:[%s7301 + $0x9c] sm:$0xf]
      %v9627 = vld [vmem:[%s7301 + $0xa0] sm:$0xf]
      %v9628 = vld [vmem:[%s7301 + $0xa4] sm:$0xf]
      %v9629 = vld [vmem:[%s7301 + $0xa8] sm:$0xf]
      %v9630 = vld [vmem:[%s7301 + $0xac] sm:$0xf]
      %v9631 = vld [vmem:[%s7301 + $0xb0] sm:$0xf]
      %v9632 = vld [vmem:[%s7301 + $0xb4] sm:$0xf]
      %v9633 = vld [vmem:[%s7301 + $0xb8] sm:$0xf]
      %v9634 = vld [vmem:[%s7301 + $0xbc] sm:$0xf]
      %v9635 = vunpack.c.l.b16 %v9478
      %v9636 = vunpack.c.h.b16 %v9478
      %v9637 = vunpack.c.l.b16 %v9482
      %v9638 = vunpack.c.l.b16 %v9485
      %v9639 = vunpack.c.h.b16 %v9485
      %v9640 = vunpack.c.l.b16 %v9488
      %v9641 = vunpack.c.l.b16 %v9492
      %v9642 = vunpack.c.h.b16 %v9492
      %v9643 = vunpack.c.l.b16 %v9496
      %v9644 = vunpack.c.l.b16 %v9499
      %v9645 = vunpack.c.h.b16 %v9499
      %v9646 = vunpack.c.l.b16 %v9502
      %v9647 = vunpack.c.l.b16 %v9506
      %v9648 = vunpack.c.h.b16 %v9506
      %v9649 = vunpack.c.l.b16 %v9510
      %v9650 = vunpack.c.l.b16 %v9513
      %v9651 = vunpack.c.h.b16 %v9513
      %v9652 = vunpack.c.l.b16 %v9516
      %v9653 = vunpack.c.l.b16 %v9520
      %v9654 = vunpack.c.h.b16 %v9520
      %v9655 = vunpack.c.l.b16 %v9524
      %v9656 = vunpack.c.l.b16 %v9527
      %v9657 = vunpack.c.h.b16 %v9527
      %v9658 = vunpack.c.l.b16 %v9530
      %v9659 = vunpack.c.l.b16 %v9534
      %v9660 = vunpack.c.h.b16 %v9534
      %v9661 = vunpack.c.l.b16 %v9538
      %v9662 = vunpack.c.l.b16 %v9541
      %v9663 = vunpack.c.h.b16 %v9541
      %v9664 = vunpack.c.l.b16 %v9544
      %v9665 = vunpack.c.l.b16 %v9548
      %v9666 = vunpack.c.h.b16 %v9548
      %v9667 = vunpack.c.l.b16 %v9552
      %v9668 = vunpack.c.l.b16 %v9555
      %v9669 = vunpack.c.h.b16 %v9555
      %v9670 = vunpack.c.l.b16 %v9558
      %v9671 = vunpack.c.l.b16 %v9562
      %v9672 = vunpack.c.h.b16 %v9562
      %v9673 = vunpack.c.l.b16 %v9566
      %v9674 = vunpack.c.l.b16 %v9569
      %v9675 = vunpack.c.h.b16 %v9569
      %v9676 = vunpack.c.l.b16 %v9572
      %v9677 = vunpack.c.l.b16 %v9576
      %v9678 = vunpack.c.h.b16 %v9576
      %v9679 = vunpack.c.l.b16 %v9580
      %v9680 = vunpack.c.l.b16 %v9583
      %v9681 = vunpack.c.h.b16 %v9583
      %v9682 = vunpack.c.l.b16 %v9586
      %v9683 = vpack.c.b16 %v9638, %v9635
      %v9684 = vpack.c.b16 %v9639, %v9636
      %v9685 = vpack.c.b16 %v9640, %v9637
      %v9686 = vpack.c.b16 %v9644, %v9641
      %v9687 = vpack.c.b16 %v9645, %v9642
      %v9688 = vpack.c.b16 %v9646, %v9643
      %v9689 = vpack.c.b16 %v9650, %v9647
      %v9690 = vpack.c.b16 %v9651, %v9648
      %v9691 = vpack.c.b16 %v9652, %v9649
      %v9692 = vpack.c.b16 %v9656, %v9653
      %v9693 = vpack.c.b16 %v9657, %v9654
      %v9694 = vpack.c.b16 %v9658, %v9655
      %v9695 = vpack.c.b16 %v9662, %v9659
      %v9696 = vpack.c.b16 %v9663, %v9660
      %v9697 = vpack.c.b16 %v9664, %v9661
      %v9698 = vpack.c.b16 %v9668, %v9665
      %v9699 = vpack.c.b16 %v9669, %v9666
      %v9700 = vpack.c.b16 %v9670, %v9667
      %v9701 = vpack.c.b16 %v9674, %v9671
      %v9702 = vpack.c.b16 %v9675, %v9672
      %v9703 = vpack.c.b16 %v9676, %v9673
      %v9704 = vpack.c.b16 %v9680, %v9677
      %v9705 = vpack.c.b16 %v9681, %v9678
      %v9706 = vpack.c.b16 %v9682, %v9679
      %v9779 = vunpack.c.l.b16 %v9587
      %v9780 = vunpack.c.l.b16 %v9588
      %v9781 = vunpack.c.l.b16 %v9589
      %v9782 = vunpack.c.l.b16 %v9590
      %v9783 = vunpack.c.l.b16 %v9591
      %v9784 = vunpack.c.l.b16 %v9592
      %v9785 = vunpack.c.l.b16 %v9593
      %v9786 = vunpack.c.l.b16 %v9594
      %v9787 = vunpack.c.l.b16 %v9595
      %v9788 = vunpack.c.l.b16 %v9596
      %v9789 = vunpack.c.l.b16 %v9597
      %v9790 = vunpack.c.l.b16 %v9598
      %v9791 = vunpack.c.l.b16 %v9599
      %v9792 = vunpack.c.l.b16 %v9600
      %v9793 = vunpack.c.l.b16 %v9601
      %v9794 = vunpack.c.l.b16 %v9602
      %v9795 = vunpack.c.l.b16 %v9603
      %v9796 = vunpack.c.l.b16 %v9604
      %v9797 = vunpack.c.l.b16 %v9605
      %v9798 = vunpack.c.l.b16 %v9606
      %v9799 = vunpack.c.l.b16 %v9607
      %v9800 = vunpack.c.l.b16 %v9608
      %v9801 = vunpack.c.l.b16 %v9609
      %v9802 = vunpack.c.l.b16 %v9610
      %v9803 = vunpack.c.l.b16 %v9611
      %v9804 = vunpack.c.l.b16 %v9612
      %v9805 = vunpack.c.l.b16 %v9613
      %v9806 = vunpack.c.l.b16 %v9614
      %v9807 = vunpack.c.l.b16 %v9615
      %v9808 = vunpack.c.l.b16 %v9616
      %v9809 = vunpack.c.l.b16 %v9617
      %v9810 = vunpack.c.l.b16 %v9618
      %v9811 = vunpack.c.l.b16 %v9619
      %v9812 = vunpack.c.l.b16 %v9620
      %v9813 = vunpack.c.l.b16 %v9621
      %v9814 = vunpack.c.l.b16 %v9622
      %v9815 = vunpack.c.l.b16 %v9623
      %v9816 = vunpack.c.l.b16 %v9624
      %v9817 = vunpack.c.l.b16 %v9625
      %v9818 = vunpack.c.l.b16 %v9626
      %v9819 = vunpack.c.l.b16 %v9627
      %v9820 = vunpack.c.l.b16 %v9628
      %v9821 = vunpack.c.l.b16 %v9629
      %v9822 = vunpack.c.l.b16 %v9630
      %v9823 = vunpack.c.l.b16 %v9631
      %v9824 = vunpack.c.l.b16 %v9632
      %v9825 = vunpack.c.l.b16 %v9633
      %v9826 = vunpack.c.l.b16 %v9634
      %v9827 = vpack.c.b16 %v9780, %v9779
      %v9828 = vpack.c.b16 %v9782, %v9781
      %v9829 = vpack.c.b16 %v9784, %v9783
      %v9830 = vpack.c.b16 %v9786, %v9785
      %v9831 = vpack.c.b16 %v9788, %v9787
      %v9832 = vpack.c.b16 %v9790, %v9789
      %v9833 = vpack.c.b16 %v9792, %v9791
      %v9834 = vpack.c.b16 %v9794, %v9793
      %v9835 = vpack.c.b16 %v9796, %v9795
      %v9836 = vpack.c.b16 %v9798, %v9797
      %v9837 = vpack.c.b16 %v9800, %v9799
      %v9838 = vpack.c.b16 %v9802, %v9801
      %v9839 = vpack.c.b16 %v9804, %v9803
      %v9840 = vpack.c.b16 %v9806, %v9805
      %v9841 = vpack.c.b16 %v9808, %v9807
      %v9842 = vpack.c.b16 %v9810, %v9809
      %v9843 = vpack.c.b16 %v9812, %v9811
      %v9844 = vpack.c.b16 %v9814, %v9813
      %v9845 = vpack.c.b16 %v9816, %v9815
      %v9846 = vpack.c.b16 %v9818, %v9817
      %v9847 = vpack.c.b16 %v9820, %v9819
      %v9848 = vpack.c.b16 %v9822, %v9821
      %v9849 = vpack.c.b16 %v9824, %v9823
      %v9850 = vpack.c.b16 %v9826, %v9825
      %9875 = vmatprep.subr.bf16.mxu0 0
      %9876 = vmatpush1.bf16.msra.mxu0 %v9834
      %9877 = vmatprep.subr.bf16.mxu0 0
      %9878 = vmatpush1.bf16.msra.mxu0 %v9833
      %9879 = vmatprep.subr.bf16.mxu0 0
      %9880 = vmatpush1.bf16.msra.mxu0 %v9832
      %9881 = vmatprep.subr.bf16.mxu0 0
      %9882 = vmatpush1.bf16.msra.mxu0 %v9831
      %9883 = vmatprep.subr.bf16.mxu0 0
      %9884 = vmatpush1.bf16.msra.mxu0 %v9830
      %9885 = vmatprep.subr.bf16.mxu0 0
      %9886 = vmatpush1.bf16.msra.mxu0 %v9829
      %9887 = vmatprep.subr.bf16.mxu0 0
      %9888 = vmatpush1.bf16.msra.mxu0 %v9828
      %9889 = vmatprep.subr.bf16.mxu0 0
      %9890 = vmatpush1.bf16.msra.mxu0 %v9827
      %9891 = vmatprep.subr.bf16.mxu0 0
      %9892 = vmatpush2.bf16.msra.mxu0 %v9842
      %9893 = vmatprep.subr.bf16.mxu0 0
      %9894 = vmatpush2.bf16.msra.mxu0 %v9841
      %9895 = vmatprep.subr.bf16.mxu0 0
      %9896 = vmatpush2.bf16.msra.mxu0 %v9840
      %9897 = vmatprep.subr.bf16.mxu0 0
      %9898 = vmatpush2.bf16.msra.mxu0 %v9839
      %9899 = vmatprep.subr.bf16.mxu0 0
      %9900 = vmatpush2.bf16.msra.mxu0 %v9838
      %9901 = vmatprep.subr.bf16.mxu0 0
      %9902 = vmatpush2.bf16.msra.mxu0 %v9837
      %9903 = vmatprep.subr.bf16.mxu0 0
      %9904 = vmatpush2.bf16.msra.mxu0 %v9836
      %9905 = vmatprep.subr.bf16.mxu0 0
      %9906 = vmatpush2.bf16.msra.mxu0 %v9835
      %9907 = vmatprep.mubr.bf16.mxu0 %v9684
      %9908 = vmatmul.mubr.bf16.gmra.mxu0 %v9683
      %v9909 = vpop.f32.mrf.mxu0
      %v9910 = vadd.f32 0.0, %v9909
      %v9911 = vpop.f32.mrf.mxu0
      %v9912 = vpop.f32.mrf.mxu0
      %v9913 = vadd.f32 0.0, %v9912
      %v9914 = vpop.f32.mrf.mxu0
      %9915 = vmatprep.mubr.bf16.mxu0 %v9687
      %9916 = vmatmul.mubr.bf16.gmra.mxu0 %v9686
      %v9917 = vpop.f32.mrf.mxu0
      %v9918 = vadd.f32 0.0, %v9917
      %v9919 = vpop.f32.mrf.mxu0
      %v9920 = vpop.f32.mrf.mxu0
      %v9921 = vadd.f32 0.0, %v9920
      %v9922 = vpop.f32.mrf.mxu0
      %9923 = vmatprep.mubr.bf16.mxu0 %v9690
      %9924 = vmatmul.mubr.bf16.gmra.mxu0 %v9689
      %v9925 = vpop.f32.mrf.mxu0
      %v9926 = vadd.f32 0.0, %v9925
      %v9927 = vpop.f32.mrf.mxu0
      %v9928 = vpop.f32.mrf.mxu0
      %v9929 = vadd.f32 0.0, %v9928
      %v9930 = vpop.f32.mrf.mxu0
      %9931 = vmatprep.mubr.bf16.mxu0 %v9693
      %9932 = vmatmul.mubr.bf16.gmra.mxu0 %v9692
      %v9933 = vpop.f32.mrf.mxu0
      %v9934 = vadd.f32 0.0, %v9933
      %v9935 = vpop.f32.mrf.mxu0
      %v9936 = vpop.f32.mrf.mxu0
      %v9937 = vadd.f32 0.0, %v9936
      %v9938 = vpop.f32.mrf.mxu0
      %9939 = vmatprep.mubr.bf16.mxu0 %v9696
      %9940 = vmatmul.mubr.bf16.gmra.mxu0 %v9695
      %v9941 = vpop.f32.mrf.mxu0
      %v9942 = vadd.f32 0.0, %v9941
      %v9943 = vpop.f32.mrf.mxu0
      %v9944 = vpop.f32.mrf.mxu0
      %v9945 = vadd.f32 0.0, %v9944
      %v9946 = vpop.f32.mrf.mxu0
      %9947 = vmatprep.mubr.bf16.mxu0 %v9699
      %9948 = vmatmul.mubr.bf16.gmra.mxu0 %v9698
      %v9949 = vpop.f32.mrf.mxu0
      %v9950 = vadd.f32 0.0, %v9949
      %v9951 = vpop.f32.mrf.mxu0
      %v9952 = vpop.f32.mrf.mxu0
      %v9953 = vadd.f32 0.0, %v9952
      %v9954 = vpop.f32.mrf.mxu0
      %9955 = vmatprep.mubr.bf16.mxu0 %v9702
      %9956 = vmatmul.mubr.bf16.gmra.mxu0 %v9701
      %v9957 = vpop.f32.mrf.mxu0
      %v9958 = vadd.f32 0.0, %v9957
      %v9959 = vpop.f32.mrf.mxu0
      %v9960 = vpop.f32.mrf.mxu0
      %v9961 = vadd.f32 0.0, %v9960
      %v9962 = vpop.f32.mrf.mxu0
      %9963 = vmatprep.mubr.bf16.mxu0 %v9705
      %9964 = vmatmul.mubr.bf16.gmra.mxu0 %v9704
      %v9965 = vpop.f32.mrf.mxu0
      %v9966 = vadd.f32 0.0, %v9965
      %v9967 = vpop.f32.mrf.mxu0
      %v9968 = vpop.f32.mrf.mxu0
      %v9969 = vadd.f32 0.0, %v9968
      %v9970 = vpop.f32.mrf.mxu0
      %9971 = vdwg.mxu0
      %9972 = vmatprep.subr.bf16.mxu0 0
      %9973 = vmatpush1.bf16.msra.mxu0 %v9850
      %9974 = vmatprep.subr.bf16.mxu0 0
      %9975 = vmatpush1.bf16.msra.mxu0 %v9849
      %9976 = vmatprep.subr.bf16.mxu0 0
      %9977 = vmatpush1.bf16.msra.mxu0 %v9848
      %9978 = vmatprep.subr.bf16.mxu0 0
      %9979 = vmatpush1.bf16.msra.mxu0 %v9847
      %9980 = vmatprep.subr.bf16.mxu0 0
      %9981 = vmatpush1.bf16.msra.mxu0 %v9846
      %9982 = vmatprep.subr.bf16.mxu0 0
      %9983 = vmatpush1.bf16.msra.mxu0 %v9845
      %9984 = vmatprep.subr.bf16.mxu0 0
      %9985 = vmatpush1.bf16.msra.mxu0 %v9844
      %9986 = vmatprep.subr.bf16.mxu0 0
      %9987 = vmatpush1.bf16.msra.mxu0 %v9843
      %9988 = vmatprep.subr.bf16.mxu0 0
      %9989 = vmatpush2.bf16.msra.mxu0 0
      %9990 = vmatprep.subr.bf16.mxu0 0
      %9991 = vmatpush2.bf16.msra.mxu0 0
      %9992 = vmatprep.subr.bf16.mxu0 0
      %9993 = vmatpush2.bf16.msra.mxu0 0
      %9994 = vmatprep.subr.bf16.mxu0 0
      %9995 = vmatpush2.bf16.msra.mxu0 0
      %9996 = vmatprep.subr.bf16.mxu0 0
      %9997 = vmatpush2.bf16.msra.mxu0 0
      %9998 = vmatprep.subr.bf16.mxu0 0
      %9999 = vmatpush2.bf16.msra.mxu0 0
      %10000 = vmatprep.subr.bf16.mxu0 0
      %10001 = vmatpush2.bf16.msra.mxu0 0
      %10002 = vmatprep.subr.bf16.mxu0 0
      %10003 = vmatpush2.bf16.msra.mxu0 0
      %10004 = vmatprep.mubr.bf16.mxu0 0
      %10005 = vmatmul.mubr.bf16.gmra.mxu0 %v9685
      %v10006 = vpop.f32.mrf.mxu0
      %v10007 = vadd.f32 %v9910, %v10006
      %v10008 = vpop.f32.mrf.mxu0
      %v10009 = vpop.f32.mrf.mxu0
      %v10010 = vadd.f32 %v9913, %v10009
      %v10011 = vpop.f32.mrf.mxu0
      %10012 = vmatprep.mubr.bf16.mxu0 0
      %10013 = vmatmul.mubr.bf16.gmra.mxu0 %v9688
      %v10014 = vpop.f32.mrf.mxu0
      %v10015 = vadd.f32 %v9918, %v10014
      %v10016 = vpop.f32.mrf.mxu0
      %v10017 = vpop.f32.mrf.mxu0
      %v10018 = vadd.f32 %v9921, %v10017
      %v10019 = vpop.f32.mrf.mxu0
      %10020 = vmatprep.mubr.bf16.mxu0 0
      %10021 = vmatmul.mubr.bf16.gmra.mxu0 %v9691
      %v10022 = vpop.f32.mrf.mxu0
      %v10023 = vadd.f32 %v9926, %v10022
      %v10024 = vpop.f32.mrf.mxu0
      %v10025 = vpop.f32.mrf.mxu0
      %v10026 = vadd.f32 %v9929, %v10025
      %v10027 = vpop.f32.mrf.mxu0
      %10028 = vmatprep.mubr.bf16.mxu0 0
      %10029 = vmatmul.mubr.bf16.gmra.mxu0 %v9694
      %v10030 = vpop.f32.mrf.mxu0
      %v10031 = vadd.f32 %v9934, %v10030
      %v10032 = vpop.f32.mrf.mxu0
      %v10033 = vpop.f32.mrf.mxu0
      %v10034 = vadd.f32 %v9937, %v10033
      %v10035 = vpop.f32.mrf.mxu0
      %10036 = vmatprep.mubr.bf16.mxu0 0
      %10037 = vmatmul.mubr.bf16.gmra.mxu0 %v9697
      %v10038 = vpop.f32.mrf.mxu0
      %v10039 = vadd.f32 %v9942, %v10038
      %v10040 = vpop.f32.mrf.mxu0
      %v10041 = vpop.f32.mrf.mxu0
      %v10042 = vadd.f32 %v9945, %v10041
      %v10043 = vpop.f32.mrf.mxu0
      %10044 = vmatprep.mubr.bf16.mxu0 0
      %10045 = vmatmul.mubr.bf16.gmra.mxu0 %v9700
      %v10046 = vpop.f32.mrf.mxu0
      %v10047 = vadd.f32 %v9950, %v10046
      %v10048 = vpop.f32.mrf.mxu0
      %v10049 = vpop.f32.mrf.mxu0
      %v10050 = vadd.f32 %v9953, %v10049
      %v10051 = vpop.f32.mrf.mxu0
      %10052 = vmatprep.mubr.bf16.mxu0 0
      %10053 = vmatmul.mubr.bf16.gmra.mxu0 %v9703
      %v10054 = vpop.f32.mrf.mxu0
      %v10055 = vadd.f32 %v9958, %v10054
      %v10056 = vpop.f32.mrf.mxu0
      %v10057 = vpop.f32.mrf.mxu0
      %v10058 = vadd.f32 %v9961, %v10057
      %v10059 = vpop.f32.mrf.mxu0
      %10060 = vmatprep.mubr.bf16.mxu0 0
      %10061 = vmatmul.mubr.bf16.gmra.mxu0 %v9706
      %v10062 = vpop.f32.mrf.mxu0
      %v10063 = vadd.f32 %v9966, %v10062
      %v10064 = vpop.f32.mrf.mxu0
      %v10065 = vpop.f32.mrf.mxu0
      %v10066 = vadd.f32 %v9969, %v10065
      %v10067 = vpop.f32.mrf.mxu0
      %10068 = vdwg.mxu0
      %v10069 = vadd.f32 %v9365, %v10007
      %v10070 = vadd.f32 %v9368, %v10010
      %v10071 = vadd.f32 %v9373, %v10015
      %v10072 = vadd.f32 %v9376, %v10018
      %v10073 = vadd.f32 %v9381, %v10023
      %v10074 = vadd.f32 %v9384, %v10026
      %v10075 = vadd.f32 %v9389, %v10031
      %v10076 = vadd.f32 %v9392, %v10034
      %v10077 = vadd.f32 %v9397, %v10039
      %v10078 = vadd.f32 %v9400, %v10042
      %v10079 = vadd.f32 %v9405, %v10047
      %v10080 = vadd.f32 %v9408, %v10050
      %v10081 = vadd.f32 %v9413, %v10055
      %v10082 = vadd.f32 %v9416, %v10058
      %v10083 = vadd.f32 %v9421, %v10063
      %v10084 = vadd.f32 %v9424, %v10066
      %s10085 = scalar_lea.vmem %s219, 108
      %v10086 = vld [vmem:[%s10085] sm:$0xf]
      %v10087 = vld [vmem:[%s10085 + $0x4] sm:$0xf]
      %v10088 = vld [vmem:[%s10085 + $0x8] sm:$0x1]
      %v10089 = vld [vmem:[%s10085 + $0xc] sm:$0xf]
      %v10090 = vld [vmem:[%s10085 + $0x10] sm:$0xf]
      %v10091 = vld [vmem:[%s10085 + $0x14] sm:$0x1]
      %v10092 = vld [vmem:[%s10085 + $0x18] sm:$0xf]
      %v10093 = vld [vmem:[%s10085 + $0x1c] sm:$0xf]
      %v10094 = vld [vmem:[%s10085 + $0x20] sm:$0x1]
      %v10095 = vld [vmem:[%s10085 + $0x24] sm:$0xf]
      %v10096 = vld [vmem:[%s10085 + $0x28] sm:$0xf]
      %v10097 = vld [vmem:[%s10085 + $0x2c] sm:$0x1]
      %v10098 = vld [vmem:[%s10085 + $0x30] sm:$0xf]
      %v10099 = vld [vmem:[%s10085 + $0x34] sm:$0xf]
      %v10100 = vld [vmem:[%s10085 + $0x38] sm:$0x1]
      %v10101 = vld [vmem:[%s10085 + $0x3c] sm:$0xf]
      %v10102 = vld [vmem:[%s10085 + $0x40] sm:$0xf]
      %v10103 = vld [vmem:[%s10085 + $0x44] sm:$0x1]
      %v10104 = vld [vmem:[%s10085 + $0x48] sm:$0xf]
      %v10105 = vld [vmem:[%s10085 + $0x4c] sm:$0xf]
      %v10106 = vld [vmem:[%s10085 + $0x50] sm:$0x1]
      %v10107 = vld [vmem:[%s10085 + $0x54] sm:$0xf]
      %v10108 = vld [vmem:[%s10085 + $0x58] sm:$0xf]
      %v10109 = vld [vmem:[%s10085 + $0x5c] sm:$0x1]
      %v10110 = vunpack.c.l.bf16 %v10086
      %v10111 = vunpack.c.l.bf16 %v10087
      %v10112 = vunpack.c.l.bf16 %v10088
      %v10113 = vunpack.c.l.bf16 %v10089
      %v10114 = vunpack.c.l.bf16 %v10090
      %v10115 = vunpack.c.l.bf16 %v10091
      %v10116 = vunpack.c.l.bf16 %v10092
      %v10117 = vunpack.c.l.bf16 %v10093
      %v10118 = vunpack.c.l.bf16 %v10094
      %v10119 = vunpack.c.l.bf16 %v10095
      %v10120 = vunpack.c.l.bf16 %v10096
      %v10121 = vunpack.c.l.bf16 %v10097
      %v10122 = vunpack.c.l.bf16 %v10098
      %v10123 = vunpack.c.l.bf16 %v10099
      %v10124 = vunpack.c.l.bf16 %v10100
      %v10125 = vunpack.c.l.bf16 %v10101
      %v10126 = vunpack.c.l.bf16 %v10102
      %v10127 = vunpack.c.l.bf16 %v10103
      %v10128 = vunpack.c.l.bf16 %v10104
      %v10129 = vunpack.c.l.bf16 %v10105
      %v10130 = vunpack.c.l.bf16 %v10106
      %v10131 = vunpack.c.l.bf16 %v10107
      %v10132 = vunpack.c.l.bf16 %v10108
      %v10133 = vunpack.c.l.bf16 %v10109
      %v10134 = vadd.f32 %v10069, %v7852
      %v10135 = vadd.f32 %v10070, %v7852
      %v10136 = vadd.f32 %v10071, %v7852
      %v10137 = vadd.f32 %v10072, %v7852
      %v10138 = vadd.f32 %v10073, %v7852
      %v10139 = vadd.f32 %v10074, %v7852
      %v10140 = vadd.f32 %v10075, %v7852
      %v10141 = vadd.f32 %v10076, %v7852
      %v10142 = vadd.f32 %v10077, %v7852
      %v10143 = vadd.f32 %v10078, %v7852
      %v10144 = vadd.f32 %v10079, %v7852
      %v10145 = vadd.f32 %v10080, %v7852
      %v10146 = vadd.f32 %v10081, %v7852
      %v10147 = vadd.f32 %v10082, %v7852
      %v10148 = vadd.f32 %v10083, %v7852
      %v10149 = vadd.f32 %v10084, %v7852
      %v10174 = vrot.slane %v10110, 1
      %v10175 = vrot.slane %v10111, 1
      %v10176 = vsel %vm7894, %v10174, %v10175
      %v10177 = vrot.slane %v10112, 1
      %v10178 = vsel %vm7894, %v10175, %v10177
      %v10179 = vrot.slane %v10113, 1
      %v10180 = vrot.slane %v10114, 1
      %v10181 = vsel %vm7894, %v10179, %v10180
      %v10182 = vrot.slane %v10115, 1
      %v10183 = vsel %vm7894, %v10180, %v10182
      %v10184 = vrot.slane %v10116, 1
      %v10185 = vrot.slane %v10117, 1
      %v10186 = vsel %vm7894, %v10184, %v10185
      %v10187 = vrot.slane %v10118, 1
      %v10188 = vsel %vm7894, %v10185, %v10187
      %v10189 = vrot.slane %v10119, 1
      %v10190 = vrot.slane %v10120, 1
      %v10191 = vsel %vm7894, %v10189, %v10190
      %v10192 = vrot.slane %v10121, 1
      %v10193 = vsel %vm7894, %v10190, %v10192
      %v10194 = vrot.slane %v10122, 1
      %v10195 = vrot.slane %v10123, 1
      %v10196 = vsel %vm7894, %v10194, %v10195
      %v10197 = vrot.slane %v10124, 1
      %v10198 = vsel %vm7894, %v10195, %v10197
      %v10199 = vrot.slane %v10125, 1
      %v10200 = vrot.slane %v10126, 1
      %v10201 = vsel %vm7894, %v10199, %v10200
      %v10202 = vrot.slane %v10127, 1
      %v10203 = vsel %vm7894, %v10200, %v10202
      %v10204 = vrot.slane %v10128, 1
      %v10205 = vrot.slane %v10129, 1
      %v10206 = vsel %vm7894, %v10204, %v10205
      %v10207 = vrot.slane %v10130, 1
      %v10208 = vsel %vm7894, %v10205, %v10207
      %v10209 = vrot.slane %v10131, 1
      %v10210 = vrot.slane %v10132, 1
      %v10211 = vsel %vm7894, %v10209, %v10210
      %v10212 = vrot.slane %v10133, 1
      %v10213 = vsel %vm7894, %v10210, %v10212
      %v10230 = vadd.f32 %v10134, %v10176
      %v10231 = vadd.f32 %v10135, %v10178
      %v10232 = vadd.f32 %v10136, %v10181
      %v10233 = vadd.f32 %v10137, %v10183
      %v10234 = vadd.f32 %v10138, %v10186
      %v10235 = vadd.f32 %v10139, %v10188
      %v10236 = vadd.f32 %v10140, %v10191
      %v10237 = vadd.f32 %v10141, %v10193
      %v10238 = vadd.f32 %v10142, %v10196
      %v10239 = vadd.f32 %v10143, %v10198
      %v10240 = vadd.f32 %v10144, %v10201
      %v10241 = vadd.f32 %v10145, %v10203
      %v10242 = vadd.f32 %v10146, %v10206
      %v10243 = vadd.f32 %v10147, %v10208
      %v10244 = vadd.f32 %v10148, %v10211
      %v10245 = vadd.f32 %v10149, %v10213
      %v10246 = vmax.f32 %v10230, 0.0
      %v10247 = vmax.f32 %v10231, 0.0
      %v10248 = vmax.f32 %v10232, 0.0
      %v10249 = vmax.f32 %v10233, 0.0
      %v10250 = vmax.f32 %v10234, 0.0
      %v10251 = vmax.f32 %v10235, 0.0
      %v10252 = vmax.f32 %v10236, 0.0
      %v10253 = vmax.f32 %v10237, 0.0
      %v10254 = vmax.f32 %v10238, 0.0
      %v10255 = vmax.f32 %v10239, 0.0
      %v10256 = vmax.f32 %v10240, 0.0
      %v10257 = vmax.f32 %v10241, 0.0
      %v10258 = vmax.f32 %v10242, 0.0
      %v10259 = vmax.f32 %v10243, 0.0
      %v10260 = vmax.f32 %v10244, 0.0
      %v10261 = vmax.f32 %v10245, 0.0
      %s10262 = scalar_lea.vmem %s224, 128
      %10263 = vst [vmem:[%s10262] sm:$0xff] %v10246
      %10264 = vst [vmem:[%s10262 + $0x8] sm:$0xff] %v10247
      %10265 = vst [vmem:[%s10262 + $0x10] sm:$0xff] %v10248
      %10266 = vst [vmem:[%s10262 + $0x18] sm:$0xff] %v10249
      %10267 = vst [vmem:[%s10262 + $0x20] sm:$0xff] %v10250
      %10268 = vst [vmem:[%s10262 + $0x28] sm:$0xff] %v10251
      %10269 = vst [vmem:[%s10262 + $0x30] sm:$0xff] %v10252
      %10270 = vst [vmem:[%s10262 + $0x38] sm:$0xff] %v10253
      %10271 = vst [vmem:[%s10262 + $0x40] sm:$0xff] %v10254
      %10272 = vst [vmem:[%s10262 + $0x48] sm:$0xff] %v10255
      %10273 = vst [vmem:[%s10262 + $0x50] sm:$0xff] %v10256
      %10274 = vst [vmem:[%s10262 + $0x58] sm:$0xff] %v10257
      %10275 = vst [vmem:[%s10262 + $0x60] sm:$0xff] %v10258
      %10276 = vst [vmem:[%s10262 + $0x68] sm:$0xff] %v10259
      %10277 = vst [vmem:[%s10262 + $0x70] sm:$0xff] %v10260
      %10278 = vst [vmem:[%s10262 + $0x78] sm:$0xff] %v10261
      %p10279 = scmp.lt.s32.totalorder %s16, 1
      %s10280 = scalar_select %p10279, %s16, 1
      %s10281 = smul.addr %s10280, 32
      %s10282 = smul.addr %s10281, 8
      %s10283 = scalar_lea.vmem %s5, %s10282
      // Predicated region
      $region41: #{attn_basic_block_forward.1} parent=39 // pred_check
        %p10284 = pneg %p144
      $region42: #{attn_basic_block_forward.1} parent=39 // pred_check_branch
        %10286 = sbr.rel (%p10284) target = $region44
      $region43: #{attn_basic_block_forward.1} parent=39 // pred_region
        _
      $region44: #{attn_basic_block_forward.1} parent=39 // pred_fallthru
        _
    $region40: #{attn_basic_block_forward.1} parent=5 // pred_fallthru
      _
    %p10287 = scmp.le.s32.totalorder 2, %s11
    // Predicated region
    $region45: #{attn_basic_block_forward.1} parent=5 // pred_check
      %p10288 = pneg %p10287
    $region46: #{attn_basic_block_forward.1} parent=5 // pred_check_branch
      %10290 = sbr.rel (%p10288) target = $region48
    $region47: #{attn_basic_block_forward.1} parent=5 // pred_region
      %s10291 = ssub.s32 %s11, 2
      // Predicated region
      $region49: #{attn_basic_block_forward.1} parent=47 // pred_check
        %p10292 = pneg %p150
      $region50: #{attn_basic_block_forward.1} parent=47 // pred_check_branch
        %10294 = sbr.rel (%p10292) target = $region52
      $region51: #{attn_basic_block_forward.1} parent=47 // pred_region
        %p10295 = scmp.lt.s32.totalorder %s17, 1
        %s10296 = scalar_select %p10295, %s17, 1
        %s10297 = smul.addr %s10296, 32
        %s10298 = smul.addr %s10297, 8
        %s10299 = scalar_lea.vmem %s5, %s10298
      $region52: #{attn_basic_block_forward.1} parent=47 // pred_fallthru
        _
    $region48: #{attn_basic_block_forward.1} parent=5 // pred_fallthru
      _
  $region6: #{attn_basic_block_forward.1} parent=0 // loop_footer
    %s15 = sadd.s32 1, %s11
  $region7: #{attn_basic_block_forward.1} parent=0 // loop_footer_branch
    %10 = sbr.rel target = $region3
  $region8: #{attn_basic_block_forward.1} parent=0 // loop_exit
    _

</llo_original>
